<compile_context>
chip_gen: v5e
topology: v5e:2x2
jax: 0.10.0
libtpu: 0.0.40
codegen_flags: <defaults>
</compile_context>

<pallas_src>
import jax
import jax.numpy as jnp
from jax.experimental import pallas as pl
from jax.experimental.pallas import tpu as pltpu

CLASSIFIER_INPUT_SIDE = 14
IMAGE_SIDE = 4 * CLASSIFIER_INPUT_SIDE + 8   # 64: only input size the module supports
GRID_SIDE = IMAGE_SIDE + 2                   # 66: image + 1-pixel zero border
GRID_M = GRID_SIDE * GRID_SIDE               # 4356 flattened spatial positions


def _round_up(n, k):
    return -(-n // k) * k


# ----------------------------------------------------------------------------
# Fused per-image kernel.
# ----------------------------------------------------------------------------
def _make_fused_kernel(grid_w):
    def shift(v, s):
        # shifted[p] = v[p + s]; wrap-around only lands on positions that are
        # never read for valid outputs.
        # TODO(synk): pltpu.roll would guarantee XLU lane-rotate codegen here.
        return v if s == 0 else jnp.roll(v, -s, axis=-1)

    def conv3x3(act, w_ref, b_ref, scale, base, mask=None):
        # One MXU matmul per conv: fold the 9 taps into K = 9*Cin by stacking
        # shifted copies of the activation along sublanes (channel blocks are
        # 8-row aligned thanks to host-side channel padding).
        act_bf = act.astype(jnp.bfloat16)
        taps = [shift(act_bf, scale * (kh * grid_w + kw) + base)
                for kh in range(3) for kw in range(3)]
        stacked = jnp.concatenate(taps, axis=0)                  # (9*Cin, M) bf16
        acc = jnp.dot(w_ref[...], stacked,
                      preferred_element_type=jnp.float32)        # (Cout, M) f32
        acc = jnp.maximum(acc + b_ref[...], 0.0)
        if mask is not None:
            acc = acc * mask
        return acc

    def kernel(x_ref, mask_ref,
               w1a_ref, b1a_ref, w1b_ref, b1b_ref,
               w2a_ref, b2a_ref, w2b_ref, b2b_ref,
               wexp_ref, bc1_ref, wc2_ref, bc2_ref, o_ref):
        mask = mask_ref[...]
        center = -(grid_w + 1)                                   # centered taps
        # conv_layer_1 (padding=1): outputs live on the centered 64x64 region;
        # the border must be re-zeroed (mask) so it acts as conv1b's zero pad.
        a = conv3x3(x_ref[...], w1a_ref, b1a_ref, 1, center, mask=mask)
        a = conv3x3(a, w1b_ref, b1b_ref, 1, center)
        # MaxPool 2x2: pairwise maxes; pooled values stay in place on the
        # stride-2 lattice (1+2i, 1+2j) of the 66x66 grid.
        a = jnp.maximum(a, shift(a, 1))
        a = jnp.maximum(a, shift(a, grid_w))
        # conv_layer_2 (padding=0) on the stride-2 lattice -> dilated taps.
        a = conv3x3(a, w2a_ref, b2a_ref, 2, 0)
        a = conv3x3(a, w2b_ref, b2b_ref, 2, 0)
        # MaxPool 2x2 on the lattice: the stride-4 lattice (1+4u, 1+4v) now
        # holds the 14x14 classifier features.
        a = jnp.maximum(a, shift(a, 2))
        a = jnp.maximum(a, shift(a, 2 * grid_w))
        # Classifier layer 1: the 14x14 gather is folded into wexp (zero rows
        # everywhere except the 196 lattice positions per channel), so this is
        # a plain multiply + lane reduction per channel.
        tot = None
        for c in range(a.shape[0]):
            contrib = wexp_ref[c].astype(jnp.float32) * a[c:c + 1, :]
            tot = contrib if tot is None else tot + contrib
        h = jnp.sum(tot, axis=1).reshape(1, -1)                  # (1, hidden)
        h = jnp.maximum(h + bc1_ref[...], 0.0)
        out = jnp.dot(h, wc2_ref[...], preferred_element_type=jnp.float32)
        o_ref[...] = jnp.maximum(out + bc2_ref[...], 0.0)

    return kernel


# ----------------------------------------------------------------------------
# One-time host-side weight packing (hoisted out of the jitted forward).
# ----------------------------------------------------------------------------
def prepare_params(p):
    cin = p["w1a"].shape[2]
    hidden = p["w1a"].shape[3]
    out_dim = p["wc2"].shape[1]
    cin_pad = _round_up(cin, 8)
    cp = _round_up(hidden, 8)

    def conv_mat(w, b, cin_to, cout_to):
        w = w.astype(jnp.float32)
        _, _, wcin, wcout = w.shape
        w = jnp.pad(w, ((0, 0), (0, 0), (0, cin_to - wcin), (0, cout_to - wcout)))
        wmat = w.reshape(9 * cin_to, cout_to).T                  # (Cout, 9*Cin)
        bias = jnp.pad(b.astype(jnp.float32), (0, cout_to - wcout))
        return wmat.astype(jnp.bfloat16), bias.reshape(-1, 1)

    prep = {}
    prep["w1a"], prep["b1a"] = conv_mat(p["w1a"], p["b1a"], cin_pad, cp)
    prep["w1b"], prep["b1b"] = conv_mat(p["w1b"], p["b1b"], cp, cp)
    prep["w2a"], prep["b2a"] = conv_mat(p["w2a"], p["b2a"], cp, cp)
    prep["w2b"], prep["b2b"] = conv_mat(p["w2b"], p["b2b"], cp, cp)

    # Border mask: 1 inside the centered IMAGE_SIDE x IMAGE_SIDE region.
    mg = jnp.zeros((GRID_SIDE, GRID_SIDE), jnp.float32)
    mg = mg.at[1:1 + IMAGE_SIDE, 1:1 + IMAGE_SIDE].set(1.0)
    prep["mask"] = mg.reshape(1, GRID_M)

    # Classifier layer 1: scatter wc1 rows onto the stride-4 lattice positions
    # of the flattened 66x66 grid, folding the final 14x14 gather into the
    # weights (PyTorch flatten order (C, H, W) is preserved automatically).
    side = CLASSIFIER_INPUT_SIDE
    uu = jnp.arange(side)
    pos = ((1 + 4 * uu)[:, None] * GRID_SIDE + (1 + 4 * uu)[None, :]).reshape(-1)
    wc1 = p["wc1"].astype(jnp.float32).reshape(hidden, side * side, hidden)
    wexp = jnp.zeros((cp, hidden, GRID_M), jnp.float32)
    wexp = wexp.at[:hidden, :, pos].set(jnp.transpose(wc1, (0, 2, 1)))
    prep["wexp"] = wexp.astype(jnp.bfloat16)

    prep["bc1"] = p["bc1"].astype(jnp.float32).reshape(1, hidden)
    prep["wc2"] = p["wc2"].astype(jnp.float32)
    prep["bc2"] = p["bc2"].astype(jnp.float32).reshape(1, out_dim)
    return prep


# ----------------------------------------------------------------------------
# Forward pass (matches LedgeriseLens.forward)
# ----------------------------------------------------------------------------
def ledgerise_lens_forward(x, prep):
    bsz, cin, h, w = x.shape
    assert h == IMAGE_SIDE and w == IMAGE_SIDE, (
        "LedgeriseLens's classifier requires 64x64 inputs")
    cin_pad = prep["w1a"].shape[1] // 9
    out_dim = prep["bc2"].shape[-1]

    # Zero-pad channels (sublane alignment) and spatial border, flatten, bf16.
    xg = jnp.pad(x, ((0, 0), (0, cin_pad - cin), (1, 1), (1, 1)))
    xg = xg.reshape(bsz, cin_pad, GRID_M).astype(jnp.bfloat16)

    def full_spec(arr):
        nd = arr.ndim
        return pl.BlockSpec(arr.shape, lambda i, _n=nd: (0,) * _n)

    operands = (xg, prep["mask"],
                prep["w1a"], prep["b1a"], prep["w1b"], prep["b1b"],
                prep["w2a"], prep["b2a"], prep["w2b"], prep["b2b"],
                prep["wexp"], prep["bc1"], prep["wc2"], prep["bc2"])
    in_specs = [pl.BlockSpec((None, cin_pad, GRID_M), lambda i: (i, 0, 0))]
    in_specs += [full_spec(a) for a in operands[1:]]

    out = pl.pallas_call(
        _make_fused_kernel(GRID_SIDE),
        out_shape=jax.ShapeDtypeStruct((bsz, 1, out_dim), jnp.float32),
        grid=(bsz,),
        in_specs=in_specs,
        out_specs=pl.BlockSpec((None, 1, out_dim), lambda i: (i, 0, 0)),
        compiler_params=pltpu.CompilerParams(dimension_semantics=("parallel",)),
    )(*operands)
    return out.reshape(bsz, out_dim)


# ----------------------------------------------------------------------------
# Deterministic synthetic parameters (shapes from the module's __init__)
# ----------------------------------------------------------------------------
def make_params(key, input_channels, hidden_units, output_channels):
    ks = jax.random.split(key, 12)

    def conv_init(kw_, kb_, cin, cout):
        w = jax.random.normal(kw_, (3, 3, cin, cout), jnp.float32) / jnp.sqrt(9.0 * cin)
        b = jax.random.normal(kb_, (cout,), jnp.float32) * 0.05
        return w, b

    def lin_init(kw_, kb_, fin, fout):
        w = jax.random.normal(kw_, (fin, fout), jnp.float32) / jnp.sqrt(float(fin))
        b = jax.random.normal(kb_, (fout,), jnp.float32) * 0.05
        return w, b

    feat = hidden_units * CLASSIFIER_INPUT_SIDE * CLASSIFIER_INPUT_SIDE
    p = {}
    p["w1a"], p["b1a"] = conv_init(ks[0], ks[1], input_channels, hidden_units)
    p["w1b"], p["b1b"] = conv_init(ks[2], ks[3], hidden_units, hidden_units)
    p["w2a"], p["b2a"] = conv_init(ks[4], ks[5], hidden_units, hidden_units)
    p["w2b"], p["b2b"] = conv_init(ks[6], ks[7], hidden_units, hidden_units)
    p["wc1"], p["bc1"] = lin_init(ks[8], ks[9], feat, hidden_units)
    p["wc2"], p["bc2"] = lin_init(ks[10], ks[11], hidden_units, output_channels)
    return p


# ----------------------------------------------------------------------------
# Pure-JAX f32 reference for correctness checking
# ----------------------------------------------------------------------------
def _conv_ref(x, w, b, padding):
    y = jax.lax.conv_general_dilated(
        x, w, window_strides=(1, 1),
        padding=[(padding, padding), (padding, padding)],
        dimension_numbers=("NHWC", "HWIO", "NHWC"),
        precision=jax.lax.Precision.HIGHEST)
    return jnp.maximum(y + b, 0.0)


def _pool_ref(x):
    b, h, w, c = x.shape
    return x.reshape(b, h // 2, 2, w // 2, 2, c).max(axis=(2, 4))


def forward_ref(x_nchw, p):
    x = jnp.transpose(x_nchw, (0, 2, 3, 1))
    x = _conv_ref(x, p["w1a"], p["b1a"], 1)
    x = _conv_ref(x, p["w1b"], p["b1b"], 1)
    x = _pool_ref(x)
    x = _conv_ref(x, p["w2a"], p["b2a"], 0)
    x = _conv_ref(x, p["w2b"], p["b2b"], 0)
    x = _pool_ref(x)
    feat = jnp.transpose(x, (0, 3, 1, 2)).reshape(x.shape[0], -1)
    h = jnp.maximum(feat @ p["wc1"] + p["bc1"], 0.0)
    return jnp.maximum(h @ p["wc2"] + p["bc2"], 0.0)


if __name__ == "__main__":
    key = jax.random.PRNGKey(0)
    kx, kp = jax.random.split(key)

    # 64x64 input so the classifier sees hidden * 14 * 14 features.
    B, C_in, H, W = 2, 3, IMAGE_SIDE, IMAGE_SIDE
    hidden_units, output_channels = 8, 4

    x = jax.random.normal(kx, (B, C_in, H, W), jnp.float32)
    params = make_params(kp, C_in, hidden_units, output_channels)
    prep = prepare_params(params)            # one-time host-side packing

    fwd = jax.jit(ledgerise_lens_forward)
    out = jax.block_until_ready(fwd(x, prep))

    ref = forward_ref(x, params)
    assert out.shape == (B, output_channels), out.shape
    err = float(jnp.max(jnp.abs(out.astype(jnp.float32) - ref)))
    scale = max(1.0, float(jnp.max(jnp.abs(ref))))
    assert err <= 5e-2 * scale, f"mismatch: max abs err {err} (scale {scale})"

    print("KERNEL_OK")
</pallas_src>

<mosaic_0001>
module attributes {stable_mosaic.version = 11 : i64} {
  func.func @kernel(%arg0: i32, %arg1: memref<1x8x4356xbf16, #tpu.memory_space<vmem>>, %arg2: memref<1x4356xf32, #tpu.memory_space<vmem>>, %arg3: memref<8x72xbf16, #tpu.memory_space<vmem>>, %arg4: memref<8x1xf32, #tpu.memory_space<vmem>>, %arg5: memref<8x72xbf16, #tpu.memory_space<vmem>>, %arg6: memref<8x1xf32, #tpu.memory_space<vmem>>, %arg7: memref<8x72xbf16, #tpu.memory_space<vmem>>, %arg8: memref<8x1xf32, #tpu.memory_space<vmem>>, %arg9: memref<8x72xbf16, #tpu.memory_space<vmem>>, %arg10: memref<8x1xf32, #tpu.memory_space<vmem>>, %arg11: memref<8x8x4356xbf16, #tpu.memory_space<vmem>>, %arg12: memref<1x8xf32, #tpu.memory_space<vmem>>, %arg13: memref<8x4xf32, #tpu.memory_space<vmem>>, %arg14: memref<1x4xf32, #tpu.memory_space<vmem>>, %arg15: memref<1x1x4xf32, #tpu.memory_space<vmem>>) attributes {dimension_semantics = [#tpu.dimension_semantics<parallel>], iteration_bounds = array<i64: 2>, scalar_prefetch = 0 : i64, scratch_operands = 0 : i64, tpu.core_type = #tpu.core_type<tc>, window_params = [{transform_indices = @transform_0, window_bounds = array<i64: 1, 8, 4356>}, {pipeline_mode = #tpu.pipeline_mode<synchronous>, transform_indices = @transform_1, window_bounds = array<i64: 1, 4356>}, {pipeline_mode = #tpu.pipeline_mode<synchronous>, transform_indices = @transform_2, window_bounds = array<i64: 8, 72>}, {pipeline_mode = #tpu.pipeline_mode<synchronous>, transform_indices = @transform_3, window_bounds = array<i64: 8, 1>}, {pipeline_mode = #tpu.pipeline_mode<synchronous>, transform_indices = @transform_4, window_bounds = array<i64: 8, 72>}, {pipeline_mode = #tpu.pipeline_mode<synchronous>, transform_indices = @transform_5, window_bounds = array<i64: 8, 1>}, {pipeline_mode = #tpu.pipeline_mode<synchronous>, transform_indices = @transform_6, window_bounds = array<i64: 8, 72>}, {pipeline_mode = #tpu.pipeline_mode<synchronous>, transform_indices = @transform_7, window_bounds = array<i64: 8, 1>}, {pipeline_mode = #tpu.pipeline_mode<synchronous>, transform_indices = @transform_8, window_bounds = array<i64: 8, 72>}, {pipeline_mode = #tpu.pipeline_mode<synchronous>, transform_indices = @transform_9, window_bounds = array<i64: 8, 1>}, {pipeline_mode = #tpu.pipeline_mode<synchronous>, transform_indices = @transform_10, window_bounds = array<i64: 8, 8, 4356>}, {pipeline_mode = #tpu.pipeline_mode<synchronous>, transform_indices = @transform_11, window_bounds = array<i64: 1, 8>}, {pipeline_mode = #tpu.pipeline_mode<synchronous>, transform_indices = @transform_12, window_bounds = array<i64: 8, 4>}, {pipeline_mode = #tpu.pipeline_mode<synchronous>, transform_indices = @transform_13, window_bounds = array<i64: 1, 4>}, {transform_indices = @transform_14, window_bounds = array<i64: 1, 1, 4>}]} {
    %c0 = arith.constant 0 : index
    %c0_0 = arith.constant 0 : index
    %0 = vector.load %arg2[%c0, %c0_0] : memref<1x4356xf32, #tpu.memory_space<vmem>>, vector<1x4356xf32>
    %c0_1 = arith.constant 0 : index
    %c0_2 = arith.constant 0 : index
    %c0_3 = arith.constant 0 : index
    %1 = vector.load %arg1[%c0_1, %c0_2, %c0_3] : memref<1x8x4356xbf16, #tpu.memory_space<vmem>>, vector<1x8x4356xbf16>
    %2 = vector.shape_cast %1 : vector<1x8x4356xbf16> to vector<8x4356xbf16>
    %3 = vector.extract_strided_slice %2 {offsets = [0, 4289], sizes = [8, 67], strides = [1, 1]} : vector<8x4356xbf16> to vector<8x67xbf16>
    %4 = vector.extract_strided_slice %2 {offsets = [0, 0], sizes = [8, 4289], strides = [1, 1]} : vector<8x4356xbf16> to vector<8x4289xbf16>
    %5 = tpu.concatenate %3, %4 in 1 : vector<8x67xbf16>, vector<8x4289xbf16> -> vector<8x4356xbf16>
    %6 = vector.extract_strided_slice %2 {offsets = [0, 4290], sizes = [8, 66], strides = [1, 1]} : vector<8x4356xbf16> to vector<8x66xbf16>
    %7 = vector.extract_strided_slice %2 {offsets = [0, 0], sizes = [8, 4290], strides = [1, 1]} : vector<8x4356xbf16> to vector<8x4290xbf16>
    %8 = tpu.concatenate %6, %7 in 1 : vector<8x66xbf16>, vector<8x4290xbf16> -> vector<8x4356xbf16>
    %9 = vector.extract_strided_slice %2 {offsets = [0, 4291], sizes = [8, 65], strides = [1, 1]} : vector<8x4356xbf16> to vector<8x65xbf16>
    %10 = vector.extract_strided_slice %2 {offsets = [0, 0], sizes = [8, 4291], strides = [1, 1]} : vector<8x4356xbf16> to vector<8x4291xbf16>
    %11 = tpu.concatenate %9, %10 in 1 : vector<8x65xbf16>, vector<8x4291xbf16> -> vector<8x4356xbf16>
    %12 = vector.extract_strided_slice %2 {offsets = [0, 4355], sizes = [8, 1], strides = [1, 1]} : vector<8x4356xbf16> to vector<8x1xbf16>
    %13 = vector.extract_strided_slice %2 {offsets = [0, 0], sizes = [8, 4355], strides = [1, 1]} : vector<8x4356xbf16> to vector<8x4355xbf16>
    %14 = tpu.concatenate %12, %13 in 1 : vector<8x1xbf16>, vector<8x4355xbf16> -> vector<8x4356xbf16>
    %15 = vector.extract_strided_slice %2 {offsets = [0, 1], sizes = [8, 4355], strides = [1, 1]} : vector<8x4356xbf16> to vector<8x4355xbf16>
    %16 = vector.extract_strided_slice %2 {offsets = [0, 0], sizes = [8, 1], strides = [1, 1]} : vector<8x4356xbf16> to vector<8x1xbf16>
    %17 = tpu.concatenate %15, %16 in 1 : vector<8x4355xbf16>, vector<8x1xbf16> -> vector<8x4356xbf16>
    %18 = vector.extract_strided_slice %2 {offsets = [0, 65], sizes = [8, 4291], strides = [1, 1]} : vector<8x4356xbf16> to vector<8x4291xbf16>
    %19 = vector.extract_strided_slice %2 {offsets = [0, 0], sizes = [8, 65], strides = [1, 1]} : vector<8x4356xbf16> to vector<8x65xbf16>
    %20 = tpu.concatenate %18, %19 in 1 : vector<8x4291xbf16>, vector<8x65xbf16> -> vector<8x4356xbf16>
    %21 = vector.extract_strided_slice %2 {offsets = [0, 66], sizes = [8, 4290], strides = [1, 1]} : vector<8x4356xbf16> to vector<8x4290xbf16>
    %22 = vector.extract_strided_slice %2 {offsets = [0, 0], sizes = [8, 66], strides = [1, 1]} : vector<8x4356xbf16> to vector<8x66xbf16>
    %23 = tpu.concatenate %21, %22 in 1 : vector<8x4290xbf16>, vector<8x66xbf16> -> vector<8x4356xbf16>
    %24 = vector.extract_strided_slice %2 {offsets = [0, 67], sizes = [8, 4289], strides = [1, 1]} : vector<8x4356xbf16> to vector<8x4289xbf16>
    %25 = vector.extract_strided_slice %2 {offsets = [0, 0], sizes = [8, 67], strides = [1, 1]} : vector<8x4356xbf16> to vector<8x67xbf16>
    %26 = tpu.concatenate %24, %25 in 1 : vector<8x4289xbf16>, vector<8x67xbf16> -> vector<8x4356xbf16>
    %27 = tpu.concatenate %5, %8, %11, %14, %2, %17, %20, %23, %26 in 0 : vector<8x4356xbf16>, vector<8x4356xbf16>, vector<8x4356xbf16>, vector<8x4356xbf16>, vector<8x4356xbf16>, vector<8x4356xbf16>, vector<8x4356xbf16>, vector<8x4356xbf16>, vector<8x4356xbf16> -> vector<72x4356xbf16>
    %c0_4 = arith.constant 0 : index
    %c0_5 = arith.constant 0 : index
    %28 = vector.load %arg3[%c0_4, %c0_5] : memref<8x72xbf16, #tpu.memory_space<vmem>>, vector<8x72xbf16>
    %cst = arith.constant dense<0.000000e+00> : vector<8x4356xf32>
    %29 = tpu.matmul %28, %27, %cst {dimension_numbers = #tpu.dot_dimension_numbers<[1], [0], [0], [1], [0, 0, 1, 1], [], []>} : vector<8x72xbf16>, vector<72x4356xbf16>, vector<8x4356xf32> -> vector<8x4356xf32>
    %c0_6 = arith.constant 0 : index
    %c0_7 = arith.constant 0 : index
    %30 = vector.load %arg4[%c0_6, %c0_7] : memref<8x1xf32, #tpu.memory_space<vmem>>, vector<8x1xf32>
    %31 = vector.broadcast %30 : vector<8x1xf32> to vector<8x4356xf32>
    %32 = arith.addf %29, %31 : vector<8x4356xf32>
    %cst_8 = arith.constant 0.000000e+00 : f32
    %33 = vector.broadcast %cst_8 : f32 to vector<8x4356xf32>
    %34 = arith.maximumf %32, %33 : vector<8x4356xf32>
    %35 = vector.broadcast %0 : vector<1x4356xf32> to vector<8x4356xf32>
    %36 = arith.mulf %34, %35 : vector<8x4356xf32>
    %37 = arith.truncf %36 : vector<8x4356xf32> to vector<8x4356xbf16>
    %38 = vector.extract_strided_slice %37 {offsets = [0, 4289], sizes = [8, 67], strides = [1, 1]} : vector<8x4356xbf16> to vector<8x67xbf16>
    %39 = vector.extract_strided_slice %37 {offsets = [0, 0], sizes = [8, 4289], strides = [1, 1]} : vector<8x4356xbf16> to vector<8x4289xbf16>
    %40 = tpu.concatenate %38, %39 in 1 : vector<8x67xbf16>, vector<8x4289xbf16> -> vector<8x4356xbf16>
    %41 = vector.extract_strided_slice %37 {offsets = [0, 4290], sizes = [8, 66], strides = [1, 1]} : vector<8x4356xbf16> to vector<8x66xbf16>
    %42 = vector.extract_strided_slice %37 {offsets = [0, 0], sizes = [8, 4290], strides = [1, 1]} : vector<8x4356xbf16> to vector<8x4290xbf16>
    %43 = tpu.concatenate %41, %42 in 1 : vector<8x66xbf16>, vector<8x4290xbf16> -> vector<8x4356xbf16>
    %44 = vector.extract_strided_slice %37 {offsets = [0, 4291], sizes = [8, 65], strides = [1, 1]} : vector<8x4356xbf16> to vector<8x65xbf16>
    %45 = vector.extract_strided_slice %37 {offsets = [0, 0], sizes = [8, 4291], strides = [1, 1]} : vector<8x4356xbf16> to vector<8x4291xbf16>
    %46 = tpu.concatenate %44, %45 in 1 : vector<8x65xbf16>, vector<8x4291xbf16> -> vector<8x4356xbf16>
    %47 = vector.extract_strided_slice %37 {offsets = [0, 4355], sizes = [8, 1], strides = [1, 1]} : vector<8x4356xbf16> to vector<8x1xbf16>
    %48 = vector.extract_strided_slice %37 {offsets = [0, 0], sizes = [8, 4355], strides = [1, 1]} : vector<8x4356xbf16> to vector<8x4355xbf16>
    %49 = tpu.concatenate %47, %48 in 1 : vector<8x1xbf16>, vector<8x4355xbf16> -> vector<8x4356xbf16>
    %50 = vector.extract_strided_slice %37 {offsets = [0, 1], sizes = [8, 4355], strides = [1, 1]} : vector<8x4356xbf16> to vector<8x4355xbf16>
    %51 = vector.extract_strided_slice %37 {offsets = [0, 0], sizes = [8, 1], strides = [1, 1]} : vector<8x4356xbf16> to vector<8x1xbf16>
    %52 = tpu.concatenate %50, %51 in 1 : vector<8x4355xbf16>, vector<8x1xbf16> -> vector<8x4356xbf16>
    %53 = vector.extract_strided_slice %37 {offsets = [0, 65], sizes = [8, 4291], strides = [1, 1]} : vector<8x4356xbf16> to vector<8x4291xbf16>
    %54 = vector.extract_strided_slice %37 {offsets = [0, 0], sizes = [8, 65], strides = [1, 1]} : vector<8x4356xbf16> to vector<8x65xbf16>
    %55 = tpu.concatenate %53, %54 in 1 : vector<8x4291xbf16>, vector<8x65xbf16> -> vector<8x4356xbf16>
    %56 = vector.extract_strided_slice %37 {offsets = [0, 66], sizes = [8, 4290], strides = [1, 1]} : vector<8x4356xbf16> to vector<8x4290xbf16>
    %57 = vector.extract_strided_slice %37 {offsets = [0, 0], sizes = [8, 66], strides = [1, 1]} : vector<8x4356xbf16> to vector<8x66xbf16>
    %58 = tpu.concatenate %56, %57 in 1 : vector<8x4290xbf16>, vector<8x66xbf16> -> vector<8x4356xbf16>
    %59 = vector.extract_strided_slice %37 {offsets = [0, 67], sizes = [8, 4289], strides = [1, 1]} : vector<8x4356xbf16> to vector<8x4289xbf16>
    %60 = vector.extract_strided_slice %37 {offsets = [0, 0], sizes = [8, 67], strides = [1, 1]} : vector<8x4356xbf16> to vector<8x67xbf16>
    %61 = tpu.concatenate %59, %60 in 1 : vector<8x4289xbf16>, vector<8x67xbf16> -> vector<8x4356xbf16>
    %62 = tpu.concatenate %40, %43, %46, %49, %37, %52, %55, %58, %61 in 0 : vector<8x4356xbf16>, vector<8x4356xbf16>, vector<8x4356xbf16>, vector<8x4356xbf16>, vector<8x4356xbf16>, vector<8x4356xbf16>, vector<8x4356xbf16>, vector<8x4356xbf16>, vector<8x4356xbf16> -> vector<72x4356xbf16>
    %c0_9 = arith.constant 0 : index
    %c0_10 = arith.constant 0 : index
    %63 = vector.load %arg5[%c0_9, %c0_10] : memref<8x72xbf16, #tpu.memory_space<vmem>>, vector<8x72xbf16>
    %cst_11 = arith.constant dense<0.000000e+00> : vector<8x4356xf32>
    %64 = tpu.matmul %63, %62, %cst_11 {dimension_numbers = #tpu.dot_dimension_numbers<[1], [0], [0], [1], [0, 0, 1, 1], [], []>} : vector<8x72xbf16>, vector<72x4356xbf16>, vector<8x4356xf32> -> vector<8x4356xf32>
    %c0_12 = arith.constant 0 : index
    %c0_13 = arith.constant 0 : index
    %65 = vector.load %arg6[%c0_12, %c0_13] : memref<8x1xf32, #tpu.memory_space<vmem>>, vector<8x1xf32>
    %66 = vector.broadcast %65 : vector<8x1xf32> to vector<8x4356xf32>
    %67 = arith.addf %64, %66 : vector<8x4356xf32>
    %cst_14 = arith.constant 0.000000e+00 : f32
    %68 = vector.broadcast %cst_14 : f32 to vector<8x4356xf32>
    %69 = arith.maximumf %67, %68 : vector<8x4356xf32>
    %70 = vector.extract_strided_slice %69 {offsets = [0, 1], sizes = [8, 4355], strides = [1, 1]} : vector<8x4356xf32> to vector<8x4355xf32>
    %71 = vector.extract_strided_slice %69 {offsets = [0, 0], sizes = [8, 1], strides = [1, 1]} : vector<8x4356xf32> to vector<8x1xf32>
    %72 = tpu.concatenate %70, %71 in 1 : vector<8x4355xf32>, vector<8x1xf32> -> vector<8x4356xf32>
    %73 = arith.maximumf %69, %72 : vector<8x4356xf32>
    %74 = vector.extract_strided_slice %73 {offsets = [0, 66], sizes = [8, 4290], strides = [1, 1]} : vector<8x4356xf32> to vector<8x4290xf32>
    %75 = vector.extract_strided_slice %73 {offsets = [0, 0], sizes = [8, 66], strides = [1, 1]} : vector<8x4356xf32> to vector<8x66xf32>
    %76 = tpu.concatenate %74, %75 in 1 : vector<8x4290xf32>, vector<8x66xf32> -> vector<8x4356xf32>
    %77 = arith.maximumf %73, %76 : vector<8x4356xf32>
    %78 = arith.truncf %77 : vector<8x4356xf32> to vector<8x4356xbf16>
    %79 = vector.extract_strided_slice %78 {offsets = [0, 2], sizes = [8, 4354], strides = [1, 1]} : vector<8x4356xbf16> to vector<8x4354xbf16>
    %80 = vector.extract_strided_slice %78 {offsets = [0, 0], sizes = [8, 2], strides = [1, 1]} : vector<8x4356xbf16> to vector<8x2xbf16>
    %81 = tpu.concatenate %79, %80 in 1 : vector<8x4354xbf16>, vector<8x2xbf16> -> vector<8x4356xbf16>
    %82 = vector.extract_strided_slice %78 {offsets = [0, 4], sizes = [8, 4352], strides = [1, 1]} : vector<8x4356xbf16> to vector<8x4352xbf16>
    %83 = vector.extract_strided_slice %78 {offsets = [0, 0], sizes = [8, 4], strides = [1, 1]} : vector<8x4356xbf16> to vector<8x4xbf16>
    %84 = tpu.concatenate %82, %83 in 1 : vector<8x4352xbf16>, vector<8x4xbf16> -> vector<8x4356xbf16>
    %85 = vector.extract_strided_slice %78 {offsets = [0, 132], sizes = [8, 4224], strides = [1, 1]} : vector<8x4356xbf16> to vector<8x4224xbf16>
    %86 = vector.extract_strided_slice %78 {offsets = [0, 0], sizes = [8, 132], strides = [1, 1]} : vector<8x4356xbf16> to vector<8x132xbf16>
    %87 = tpu.concatenate %85, %86 in 1 : vector<8x4224xbf16>, vector<8x132xbf16> -> vector<8x4356xbf16>
    %88 = vector.extract_strided_slice %78 {offsets = [0, 134], sizes = [8, 4222], strides = [1, 1]} : vector<8x4356xbf16> to vector<8x4222xbf16>
    %89 = vector.extract_strided_slice %78 {offsets = [0, 0], sizes = [8, 134], strides = [1, 1]} : vector<8x4356xbf16> to vector<8x134xbf16>
    %90 = tpu.concatenate %88, %89 in 1 : vector<8x4222xbf16>, vector<8x134xbf16> -> vector<8x4356xbf16>
    %91 = vector.extract_strided_slice %78 {offsets = [0, 136], sizes = [8, 4220], strides = [1, 1]} : vector<8x4356xbf16> to vector<8x4220xbf16>
    %92 = vector.extract_strided_slice %78 {offsets = [0, 0], sizes = [8, 136], strides = [1, 1]} : vector<8x4356xbf16> to vector<8x136xbf16>
    %93 = tpu.concatenate %91, %92 in 1 : vector<8x4220xbf16>, vector<8x136xbf16> -> vector<8x4356xbf16>
    %94 = vector.extract_strided_slice %78 {offsets = [0, 264], sizes = [8, 4092], strides = [1, 1]} : vector<8x4356xbf16> to vector<8x4092xbf16>
    %95 = vector.extract_strided_slice %78 {offsets = [0, 0], sizes = [8, 264], strides = [1, 1]} : vector<8x4356xbf16> to vector<8x264xbf16>
    %96 = tpu.concatenate %94, %95 in 1 : vector<8x4092xbf16>, vector<8x264xbf16> -> vector<8x4356xbf16>
    %97 = vector.extract_strided_slice %78 {offsets = [0, 266], sizes = [8, 4090], strides = [1, 1]} : vector<8x4356xbf16> to vector<8x4090xbf16>
    %98 = vector.extract_strided_slice %78 {offsets = [0, 0], sizes = [8, 266], strides = [1, 1]} : vector<8x4356xbf16> to vector<8x266xbf16>
    %99 = tpu.concatenate %97, %98 in 1 : vector<8x4090xbf16>, vector<8x266xbf16> -> vector<8x4356xbf16>
    %100 = vector.extract_strided_slice %78 {offsets = [0, 268], sizes = [8, 4088], strides = [1, 1]} : vector<8x4356xbf16> to vector<8x4088xbf16>
    %101 = vector.extract_strided_slice %78 {offsets = [0, 0], sizes = [8, 268], strides = [1, 1]} : vector<8x4356xbf16> to vector<8x268xbf16>
    %102 = tpu.concatenate %100, %101 in 1 : vector<8x4088xbf16>, vector<8x268xbf16> -> vector<8x4356xbf16>
    %103 = tpu.concatenate %78, %81, %84, %87, %90, %93, %96, %99, %102 in 0 : vector<8x4356xbf16>, vector<8x4356xbf16>, vector<8x4356xbf16>, vector<8x4356xbf16>, vector<8x4356xbf16>, vector<8x4356xbf16>, vector<8x4356xbf16>, vector<8x4356xbf16>, vector<8x4356xbf16> -> vector<72x4356xbf16>
    %c0_15 = arith.constant 0 : index
    %c0_16 = arith.constant 0 : index
    %104 = vector.load %arg7[%c0_15, %c0_16] : memref<8x72xbf16, #tpu.memory_space<vmem>>, vector<8x72xbf16>
    %cst_17 = arith.constant dense<0.000000e+00> : vector<8x4356xf32>
    %105 = tpu.matmul %104, %103, %cst_17 {dimension_numbers = #tpu.dot_dimension_numbers<[1], [0], [0], [1], [0, 0, 1, 1], [], []>} : vector<8x72xbf16>, vector<72x4356xbf16>, vector<8x4356xf32> -> vector<8x4356xf32>
    %c0_18 = arith.constant 0 : index
    %c0_19 = arith.constant 0 : index
    %106 = vector.load %arg8[%c0_18, %c0_19] : memref<8x1xf32, #tpu.memory_space<vmem>>, vector<8x1xf32>
    %107 = vector.broadcast %106 : vector<8x1xf32> to vector<8x4356xf32>
    %108 = arith.addf %105, %107 : vector<8x4356xf32>
    %cst_20 = arith.constant 0.000000e+00 : f32
    %109 = vector.broadcast %cst_20 : f32 to vector<8x4356xf32>
    %110 = arith.maximumf %108, %109 : vector<8x4356xf32>
    %111 = arith.truncf %110 : vector<8x4356xf32> to vector<8x4356xbf16>
    %112 = vector.extract_strided_slice %111 {offsets = [0, 2], sizes = [8, 4354], strides = [1, 1]} : vector<8x4356xbf16> to vector<8x4354xbf16>
    %113 = vector.extract_strided_slice %111 {offsets = [0, 0], sizes = [8, 2], strides = [1, 1]} : vector<8x4356xbf16> to vector<8x2xbf16>
    %114 = tpu.concatenate %112, %113 in 1 : vector<8x4354xbf16>, vector<8x2xbf16> -> vector<8x4356xbf16>
    %115 = vector.extract_strided_slice %111 {offsets = [0, 4], sizes = [8, 4352], strides = [1, 1]} : vector<8x4356xbf16> to vector<8x4352xbf16>
    %116 = vector.extract_strided_slice %111 {offsets = [0, 0], sizes = [8, 4], strides = [1, 1]} : vector<8x4356xbf16> to vector<8x4xbf16>
    %117 = tpu.concatenate %115, %116 in 1 : vector<8x4352xbf16>, vector<8x4xbf16> -> vector<8x4356xbf16>
    %118 = vector.extract_strided_slice %111 {offsets = [0, 132], sizes = [8, 4224], strides = [1, 1]} : vector<8x4356xbf16> to vector<8x4224xbf16>
    %119 = vector.extract_strided_slice %111 {offsets = [0, 0], sizes = [8, 132], strides = [1, 1]} : vector<8x4356xbf16> to vector<8x132xbf16>
    %120 = tpu.concatenate %118, %119 in 1 : vector<8x4224xbf16>, vector<8x132xbf16> -> vector<8x4356xbf16>
    %121 = vector.extract_strided_slice %111 {offsets = [0, 134], sizes = [8, 4222], strides = [1, 1]} : vector<8x4356xbf16> to vector<8x4222xbf16>
    %122 = vector.extract_strided_slice %111 {offsets = [0, 0], sizes = [8, 134], strides = [1, 1]} : vector<8x4356xbf16> to vector<8x134xbf16>
    %123 = tpu.concatenate %121, %122 in 1 : vector<8x4222xbf16>, vector<8x134xbf16> -> vector<8x4356xbf16>
    %124 = vector.extract_strided_slice %111 {offsets = [0, 136], sizes = [8, 4220], strides = [1, 1]} : vector<8x4356xbf16> to vector<8x4220xbf16>
    %125 = vector.extract_strided_slice %111 {offsets = [0, 0], sizes = [8, 136], strides = [1, 1]} : vector<8x4356xbf16> to vector<8x136xbf16>
    %126 = tpu.concatenate %124, %125 in 1 : vector<8x4220xbf16>, vector<8x136xbf16> -> vector<8x4356xbf16>
    %127 = vector.extract_strided_slice %111 {offsets = [0, 264], sizes = [8, 4092], strides = [1, 1]} : vector<8x4356xbf16> to vector<8x4092xbf16>
    %128 = vector.extract_strided_slice %111 {offsets = [0, 0], sizes = [8, 264], strides = [1, 1]} : vector<8x4356xbf16> to vector<8x264xbf16>
    %129 = tpu.concatenate %127, %128 in 1 : vector<8x4092xbf16>, vector<8x264xbf16> -> vector<8x4356xbf16>
    %130 = vector.extract_strided_slice %111 {offsets = [0, 266], sizes = [8, 4090], strides = [1, 1]} : vector<8x4356xbf16> to vector<8x4090xbf16>
    %131 = vector.extract_strided_slice %111 {offsets = [0, 0], sizes = [8, 266], strides = [1, 1]} : vector<8x4356xbf16> to vector<8x266xbf16>
    %132 = tpu.concatenate %130, %131 in 1 : vector<8x4090xbf16>, vector<8x266xbf16> -> vector<8x4356xbf16>
    %133 = vector.extract_strided_slice %111 {offsets = [0, 268], sizes = [8, 4088], strides = [1, 1]} : vector<8x4356xbf16> to vector<8x4088xbf16>
    %134 = vector.extract_strided_slice %111 {offsets = [0, 0], sizes = [8, 268], strides = [1, 1]} : vector<8x4356xbf16> to vector<8x268xbf16>
    %135 = tpu.concatenate %133, %134 in 1 : vector<8x4088xbf16>, vector<8x268xbf16> -> vector<8x4356xbf16>
    %136 = tpu.concatenate %111, %114, %117, %120, %123, %126, %129, %132, %135 in 0 : vector<8x4356xbf16>, vector<8x4356xbf16>, vector<8x4356xbf16>, vector<8x4356xbf16>, vector<8x4356xbf16>, vector<8x4356xbf16>, vector<8x4356xbf16>, vector<8x4356xbf16>, vector<8x4356xbf16> -> vector<72x4356xbf16>
    %c0_21 = arith.constant 0 : index
    %c0_22 = arith.constant 0 : index
    %137 = vector.load %arg9[%c0_21, %c0_22] : memref<8x72xbf16, #tpu.memory_space<vmem>>, vector<8x72xbf16>
    %cst_23 = arith.constant dense<0.000000e+00> : vector<8x4356xf32>
    %138 = tpu.matmul %137, %136, %cst_23 {dimension_numbers = #tpu.dot_dimension_numbers<[1], [0], [0], [1], [0, 0, 1, 1], [], []>} : vector<8x72xbf16>, vector<72x4356xbf16>, vector<8x4356xf32> -> vector<8x4356xf32>
    %c0_24 = arith.constant 0 : index
    %c0_25 = arith.constant 0 : index
    %139 = vector.load %arg10[%c0_24, %c0_25] : memref<8x1xf32, #tpu.memory_space<vmem>>, vector<8x1xf32>
    %140 = vector.broadcast %139 : vector<8x1xf32> to vector<8x4356xf32>
    %141 = arith.addf %138, %140 : vector<8x4356xf32>
    %cst_26 = arith.constant 0.000000e+00 : f32
    %142 = vector.broadcast %cst_26 : f32 to vector<8x4356xf32>
    %143 = arith.maximumf %141, %142 : vector<8x4356xf32>
    %144 = vector.extract_strided_slice %143 {offsets = [0, 2], sizes = [8, 4354], strides = [1, 1]} : vector<8x4356xf32> to vector<8x4354xf32>
    %145 = vector.extract_strided_slice %143 {offsets = [0, 0], sizes = [8, 2], strides = [1, 1]} : vector<8x4356xf32> to vector<8x2xf32>
    %146 = tpu.concatenate %144, %145 in 1 : vector<8x4354xf32>, vector<8x2xf32> -> vector<8x4356xf32>
    %147 = arith.maximumf %143, %146 : vector<8x4356xf32>
    %148 = vector.extract_strided_slice %147 {offsets = [0, 132], sizes = [8, 4224], strides = [1, 1]} : vector<8x4356xf32> to vector<8x4224xf32>
    %149 = vector.extract_strided_slice %147 {offsets = [0, 0], sizes = [8, 132], strides = [1, 1]} : vector<8x4356xf32> to vector<8x132xf32>
    %150 = tpu.concatenate %148, %149 in 1 : vector<8x4224xf32>, vector<8x132xf32> -> vector<8x4356xf32>
    %151 = arith.maximumf %147, %150 : vector<8x4356xf32>
    %c0_27 = arith.constant 0 : index
    %c0_28 = arith.constant 0 : index
    %c0_29 = arith.constant 0 : index
    %152 = vector.load %arg11[%c0_27, %c0_28, %c0_29] : memref<8x8x4356xbf16, #tpu.memory_space<vmem>>, vector<1x8x4356xbf16>
    %153 = vector.shape_cast %152 : vector<1x8x4356xbf16> to vector<8x4356xbf16>
    %154 = arith.extf %153 : vector<8x4356xbf16> to vector<8x4356xf32>
    %155 = vector.extract_strided_slice %151 {offsets = [0, 0], sizes = [1, 4356], strides = [1, 1]} : vector<8x4356xf32> to vector<1x4356xf32>
    %156 = vector.broadcast %155 : vector<1x4356xf32> to vector<8x4356xf32>
    %157 = arith.mulf %154, %156 : vector<8x4356xf32>
    %c1 = arith.constant 1 : index
    %c0_30 = arith.constant 0 : index
    %c0_31 = arith.constant 0 : index
    %158 = vector.load %arg11[%c1, %c0_30, %c0_31] : memref<8x8x4356xbf16, #tpu.memory_space<vmem>>, vector<1x8x4356xbf16>
    %159 = vector.shape_cast %158 : vector<1x8x4356xbf16> to vector<8x4356xbf16>
    %160 = arith.extf %159 : vector<8x4356xbf16> to vector<8x4356xf32>
    %161 = vector.extract_strided_slice %151 {offsets = [1, 0], sizes = [1, 4356], strides = [1, 1]} : vector<8x4356xf32> to vector<1x4356xf32>
    %162 = vector.broadcast %161 : vector<1x4356xf32> to vector<8x4356xf32>
    %163 = arith.mulf %160, %162 : vector<8x4356xf32>
    %164 = arith.addf %157, %163 : vector<8x4356xf32>
    %c2 = arith.constant 2 : index
    %c0_32 = arith.constant 0 : index
    %c0_33 = arith.constant 0 : index
    %165 = vector.load %arg11[%c2, %c0_32, %c0_33] : memref<8x8x4356xbf16, #tpu.memory_space<vmem>>, vector<1x8x4356xbf16>
    %166 = vector.shape_cast %165 : vector<1x8x4356xbf16> to vector<8x4356xbf16>
    %167 = arith.extf %166 : vector<8x4356xbf16> to vector<8x4356xf32>
    %168 = vector.extract_strided_slice %151 {offsets = [2, 0], sizes = [1, 4356], strides = [1, 1]} : vector<8x4356xf32> to vector<1x4356xf32>
    %169 = vector.broadcast %168 : vector<1x4356xf32> to vector<8x4356xf32>
    %170 = arith.mulf %167, %169 : vector<8x4356xf32>
    %171 = arith.addf %164, %170 : vector<8x4356xf32>
    %c3 = arith.constant 3 : index
    %c0_34 = arith.constant 0 : index
    %c0_35 = arith.constant 0 : index
    %172 = vector.load %arg11[%c3, %c0_34, %c0_35] : memref<8x8x4356xbf16, #tpu.memory_space<vmem>>, vector<1x8x4356xbf16>
    %173 = vector.shape_cast %172 : vector<1x8x4356xbf16> to vector<8x4356xbf16>
    %174 = arith.extf %173 : vector<8x4356xbf16> to vector<8x4356xf32>
    %175 = vector.extract_strided_slice %151 {offsets = [3, 0], sizes = [1, 4356], strides = [1, 1]} : vector<8x4356xf32> to vector<1x4356xf32>
    %176 = vector.broadcast %175 : vector<1x4356xf32> to vector<8x4356xf32>
    %177 = arith.mulf %174, %176 : vector<8x4356xf32>
    %178 = arith.addf %171, %177 : vector<8x4356xf32>
    %c4 = arith.constant 4 : index
    %c0_36 = arith.constant 0 : index
    %c0_37 = arith.constant 0 : index
    %179 = vector.load %arg11[%c4, %c0_36, %c0_37] : memref<8x8x4356xbf16, #tpu.memory_space<vmem>>, vector<1x8x4356xbf16>
    %180 = vector.shape_cast %179 : vector<1x8x4356xbf16> to vector<8x4356xbf16>
    %181 = arith.extf %180 : vector<8x4356xbf16> to vector<8x4356xf32>
    %182 = vector.extract_strided_slice %151 {offsets = [4, 0], sizes = [1, 4356], strides = [1, 1]} : vector<8x4356xf32> to vector<1x4356xf32>
    %183 = vector.broadcast %182 : vector<1x4356xf32> to vector<8x4356xf32>
    %184 = arith.mulf %181, %183 : vector<8x4356xf32>
    %185 = arith.addf %178, %184 : vector<8x4356xf32>
    %c5 = arith.constant 5 : index
    %c0_38 = arith.constant 0 : index
    %c0_39 = arith.constant 0 : index
    %186 = vector.load %arg11[%c5, %c0_38, %c0_39] : memref<8x8x4356xbf16, #tpu.memory_space<vmem>>, vector<1x8x4356xbf16>
    %187 = vector.shape_cast %186 : vector<1x8x4356xbf16> to vector<8x4356xbf16>
    %188 = arith.extf %187 : vector<8x4356xbf16> to vector<8x4356xf32>
    %189 = vector.extract_strided_slice %151 {offsets = [5, 0], sizes = [1, 4356], strides = [1, 1]} : vector<8x4356xf32> to vector<1x4356xf32>
    %190 = vector.broadcast %189 : vector<1x4356xf32> to vector<8x4356xf32>
    %191 = arith.mulf %188, %190 : vector<8x4356xf32>
    %192 = arith.addf %185, %191 : vector<8x4356xf32>
    %c6 = arith.constant 6 : index
    %c0_40 = arith.constant 0 : index
    %c0_41 = arith.constant 0 : index
    %193 = vector.load %arg11[%c6, %c0_40, %c0_41] : memref<8x8x4356xbf16, #tpu.memory_space<vmem>>, vector<1x8x4356xbf16>
    %194 = vector.shape_cast %193 : vector<1x8x4356xbf16> to vector<8x4356xbf16>
    %195 = arith.extf %194 : vector<8x4356xbf16> to vector<8x4356xf32>
    %196 = vector.extract_strided_slice %151 {offsets = [6, 0], sizes = [1, 4356], strides = [1, 1]} : vector<8x4356xf32> to vector<1x4356xf32>
    %197 = vector.broadcast %196 : vector<1x4356xf32> to vector<8x4356xf32>
    %198 = arith.mulf %195, %197 : vector<8x4356xf32>
    %199 = arith.addf %192, %198 : vector<8x4356xf32>
    %c7 = arith.constant 7 : index
    %c0_42 = arith.constant 0 : index
    %c0_43 = arith.constant 0 : index
    %200 = vector.load %arg11[%c7, %c0_42, %c0_43] : memref<8x8x4356xbf16, #tpu.memory_space<vmem>>, vector<1x8x4356xbf16>
    %201 = vector.shape_cast %200 : vector<1x8x4356xbf16> to vector<8x4356xbf16>
    %202 = arith.extf %201 : vector<8x4356xbf16> to vector<8x4356xf32>
    %203 = vector.extract_strided_slice %151 {offsets = [7, 0], sizes = [1, 4356], strides = [1, 1]} : vector<8x4356xf32> to vector<1x4356xf32>
    %204 = vector.broadcast %203 : vector<1x4356xf32> to vector<8x4356xf32>
    %205 = arith.mulf %202, %204 : vector<8x4356xf32>
    %206 = arith.addf %199, %205 : vector<8x4356xf32>
    %cst_44 = arith.constant dense<0.000000e+00> : vector<8xf32>
    %207 = vector.multi_reduction <add>, %206, %cst_44 [1] : vector<8x4356xf32> to vector<8xf32>
    %208 = vector.shape_cast %207 : vector<8xf32> to vector<1x8xf32>
    %c0_45 = arith.constant 0 : index
    %c0_46 = arith.constant 0 : index
    %209 = vector.load %arg12[%c0_45, %c0_46] : memref<1x8xf32, #tpu.memory_space<vmem>>, vector<1x8xf32>
    %210 = arith.addf %208, %209 : vector<1x8xf32>
    %cst_47 = arith.constant 0.000000e+00 : f32
    %211 = vector.broadcast %cst_47 : f32 to vector<1x8xf32>
    %212 = arith.maximumf %210, %211 : vector<1x8xf32>
    %c0_48 = arith.constant 0 : index
    %c0_49 = arith.constant 0 : index
    %213 = vector.load %arg13[%c0_48, %c0_49] : memref<8x4xf32, #tpu.memory_space<vmem>>, vector<8x4xf32>
    %cst_50 = arith.constant dense<0.000000e+00> : vector<1x4xf32>
    %214 = tpu.matmul %212, %213, %cst_50 {dimension_numbers = #tpu.dot_dimension_numbers<[1], [0], [0], [1], [0, 0, 1, 1], [], []>} : vector<1x8xf32>, vector<8x4xf32>, vector<1x4xf32> -> vector<1x4xf32>
    %c0_51 = arith.constant 0 : index
    %c0_52 = arith.constant 0 : index
    %215 = vector.load %arg14[%c0_51, %c0_52] : memref<1x4xf32, #tpu.memory_space<vmem>>, vector<1x4xf32>
    %216 = arith.addf %214, %215 : vector<1x4xf32>
    %cst_53 = arith.constant 0.000000e+00 : f32
    %217 = vector.broadcast %cst_53 : f32 to vector<1x4xf32>
    %218 = arith.maximumf %216, %217 : vector<1x4xf32>
    %c0_54 = arith.constant 0 : index
    %c0_55 = arith.constant 0 : index
    %c0_56 = arith.constant 0 : index
    %219 = vector.load %arg15[%c0_54, %c0_55, %c0_56] : memref<1x1x4xf32, #tpu.memory_space<vmem>>, vector<1x1x4xf32>
    %220 = vector.shape_cast %219 : vector<1x1x4xf32> to vector<1x4xf32>
    %221 = vector.shape_cast %218 : vector<1x4xf32> to vector<1x1x4xf32>
    tpu.vector_store %arg15[%c0_54, %c0_55, %c0_56], %221 {strides = array<i32>} : memref<1x1x4xf32, #tpu.memory_space<vmem>>, vector<1x1x4xf32>,
    return
  }
  func.func @transform_0(%arg0: i32) -> (i32, i32, i32) {
    %c0_i32 = arith.constant 0 : i32
    %c0_i32_0 = arith.constant 0 : i32
    %c0_i32_1 = arith.constant 0 : i32
    return %arg0, %c0_i32, %c0_i32_0 : i32, i32, i32
  }
  func.func @transform_1(%arg0: i32) -> (i32, i32) {
    %c0_i32 = arith.constant 0 : i32
    %c0_i32_0 = arith.constant 0 : i32
    %c0_i32_1 = arith.constant 0 : i32
    return %c0_i32, %c0_i32_0 : i32, i32
  }
  func.func @transform_2(%arg0: i32) -> (i32, i32) {
    %c0_i32 = arith.constant 0 : i32
    %c0_i32_0 = arith.constant 0 : i32
    %c0_i32_1 = arith.constant 0 : i32
    return %c0_i32, %c0_i32_0 : i32, i32
  }
  func.func @transform_3(%arg0: i32) -> (i32, i32) {
    %c0_i32 = arith.constant 0 : i32
    %c0_i32_0 = arith.constant 0 : i32
    %c0_i32_1 = arith.constant 0 : i32
    return %c0_i32, %c0_i32_0 : i32, i32
  }
  func.func @transform_4(%arg0: i32) -> (i32, i32) {
    %c0_i32 = arith.constant 0 : i32
    %c0_i32_0 = arith.constant 0 : i32
    %c0_i32_1 = arith.constant 0 : i32
    return %c0_i32, %c0_i32_0 : i32, i32
  }
  func.func @transform_5(%arg0: i32) -> (i32, i32) {
    %c0_i32 = arith.constant 0 : i32
    %c0_i32_0 = arith.constant 0 : i32
    %c0_i32_1 = arith.constant 0 : i32
    return %c0_i32, %c0_i32_0 : i32, i32
  }
  func.func @transform_6(%arg0: i32) -> (i32, i32) {
    %c0_i32 = arith.constant 0 : i32
    %c0_i32_0 = arith.constant 0 : i32
    %c0_i32_1 = arith.constant 0 : i32
    return %c0_i32, %c0_i32_0 : i32, i32
  }
  func.func @transform_7(%arg0: i32) -> (i32, i32) {
    %c0_i32 = arith.constant 0 : i32
    %c0_i32_0 = arith.constant 0 : i32
    %c0_i32_1 = arith.constant 0 : i32
    return %c0_i32, %c0_i32_0 : i32, i32
  }
  func.func @transform_8(%arg0: i32) -> (i32, i32) {
    %c0_i32 = arith.constant 0 : i32
    %c0_i32_0 = arith.constant 0 : i32
    %c0_i32_1 = arith.constant 0 : i32
    return %c0_i32, %c0_i32_0 : i32, i32
  }
  func.func @transform_9(%arg0: i32) -> (i32, i32) {
    %c0_i32 = arith.constant 0 : i32
    %c0_i32_0 = arith.constant 0 : i32
    %c0_i32_1 = arith.constant 0 : i32
    return %c0_i32, %c0_i32_0 : i32, i32
  }
  func.func @transform_10(%arg0: i32) -> (i32, i32, i32) {
    %c0_i32 = arith.constant 0 : i32
    %c0_i32_0 = arith.constant 0 : i32
    %c0_i32_1 = arith.constant 0 : i32
    %c0_i32_2 = arith.constant 0 : i32
    return %c0_i32, %c0_i32_0, %c0_i32_1 : i32, i32, i32
  }
  func.func @transform_11(%arg0: i32) -> (i32, i32) {
    %c0_i32 = arith.constant 0 : i32
    %c0_i32_0 = arith.constant 0 : i32
    %c0_i32_1 = arith.constant 0 : i32
    return %c0_i32, %c0_i32_0 : i32, i32
  }
  func.func @transform_12(%arg0: i32) -> (i32, i32) {
    %c0_i32 = arith.constant 0 : i32
    %c0_i32_0 = arith.constant 0 : i32
    %c0_i32_1 = arith.constant 0 : i32
    return %c0_i32, %c0_i32_0 : i32, i32
  }
  func.func @transform_13(%arg0: i32) -> (i32, i32) {
    %c0_i32 = arith.constant 0 : i32
    %c0_i32_0 = arith.constant 0 : i32
    %c0_i32_1 = arith.constant 0 : i32
    return %c0_i32, %c0_i32_0 : i32, i32
  }
  func.func @transform_14(%arg0: i32) -> (i32, i32, i32) {
    %c0_i32 = arith.constant 0 : i32
    %c0_i32_0 = arith.constant 0 : i32
    %c0_i32_1 = arith.constant 0 : i32
    return %arg0, %c0_i32, %c0_i32_0 : i32, i32, i32
  }
}

</mosaic_0001>

<llo_original>
// kernel: ledgerise_lens_forward.1
$region0: #{ledgerise_lens_forward.1}
  #allocation0 [shape = 'u32[]', space=smem, size = 0x4, offset = 0x4, fixed_abs, tag = 'smem constant byte address 0x4 - core index']
  #allocation1 [shape = 'u32[72,128]{1,0:T(1,128)}', space=vmem, size = 0x9000, scoped, tag = 'internal scratch']
  %s0 = inlined_call_operand.vmem [shape: bf16[2,8,4356], index: 0, kind: input, shape index: {}]
  %s1 = inlined_call_operand.vmem [shape: f32[1,4356], index: 1, kind: input, shape index: {}]
  %s2 = inlined_call_operand.vmem [shape: bf16[8,72], index: 2, kind: input, shape index: {}]
  %s3 = inlined_call_operand.vmem [shape: f32[8,1], index: 3, kind: input, shape index: {}]
  %s4 = inlined_call_operand.vmem [shape: bf16[8,72], index: 4, kind: input, shape index: {}]
  %s5 = inlined_call_operand.vmem [shape: f32[8,1], index: 5, kind: input, shape index: {}]
  %s6 = inlined_call_operand.vmem [shape: bf16[8,72], index: 6, kind: input, shape index: {}]
  %s7 = inlined_call_operand.vmem [shape: f32[8,1], index: 7, kind: input, shape index: {}]
  %s8 = inlined_call_operand.vmem [shape: bf16[8,72], index: 8, kind: input, shape index: {}]
  %s9 = inlined_call_operand.vmem [shape: f32[8,1], index: 9, kind: input, shape index: {}]
  %s10 = inlined_call_operand.vmem [shape: bf16[8,8,4356], index: 10, kind: input, shape index: {}]
  %s11 = inlined_call_operand.vmem [shape: f32[1,8], index: 11, kind: input, shape index: {}]
  %s12 = inlined_call_operand.vmem [shape: f32[8,4], index: 12, kind: input, shape index: {}]
  %s13 = inlined_call_operand.vmem [shape: f32[1,4], index: 13, kind: input, shape index: {}]
  %s14 = inlined_call_operand.hbm [shape: f32[2,1,4], index: 14, kind: output, shape index: {}]
  %s15 = sld [smem:[#allocation0]]
  $region89: #{ledgerise_lens_forward.1} parent=0
    _
  %s17 = ssub.s32 1, %s15
  %s18 = scalar_select 0, %s17, %s15
  $region1: #{ledgerise_lens_forward.1} parent=0
    #allocation2 [shape = 'u8[1024]{0}', space=vmem, size = 0x400, scoped, tag = 'output window, operand 0']
    #allocation3 [shape = 's32[2]{0}', space=sflag, size = 0x8, scoped, tag = 'scoped memory for ledgerise_lens_forward.1']
    %19 = vsyncpa [#allocation3], 0
    %s20 = scalar_lea.sflag [#allocation3], 1
    %21 = vsyncpa %s20, 0
    loop: start=0, step=1, limit=4
    $region2: #{ledgerise_lens_forward.1} parent=1 // loop_pre_header
      _
    $region3: #{ledgerise_lens_forward.1} parent=1 // loop_header
      %s23 = sphi 0, %s27
      %p24 = scmp.ge.s32.totalorder %s23, 4
      %s33 = sphi 0, %s35
      %s36 = sphi 0, %s33
      %s37 = sphi 0, %s36
      %s53 = sphi 0, %s37
      %s57 = sphi 0, %s57
      %s59 = sphi 0, %s57
      %s60 = sphi 0, %s59
      %s74 = sphi 0, %s60
      %s78 = sphi 0, %s78
      %s80 = sphi 0, %s78
      %s81 = sphi 0, %s80
      %s95 = sphi 0, %s81
      %s99 = sphi 0, %s99
      %s101 = sphi 0, %s99
      %s102 = sphi 0, %s101
      %s116 = sphi 0, %s102
      %s120 = sphi 0, %s120
      %s122 = sphi 0, %s120
      %s123 = sphi 0, %s122
      %s137 = sphi 0, %s123
      %s141 = sphi 0, %s141
      %s143 = sphi 0, %s141
      %s144 = sphi 0, %s143
      %s158 = sphi 0, %s144
      %s162 = sphi 0, %s162
      %s164 = sphi 0, %s162
      %s165 = sphi 0, %s164
      %s179 = sphi 0, %s165
      %s183 = sphi 0, %s183
      %s185 = sphi 0, %s183
      %s186 = sphi 0, %s185
      %s200 = sphi 0, %s186
      %s204 = sphi 0, %s204
      %s206 = sphi 0, %s204
      %s207 = sphi 0, %s206
      %s221 = sphi 0, %s207
      %s225 = sphi 0, %s225
      %s227 = sphi 0, %s225
      %s228 = sphi 0, %s227
      %s242 = sphi 0, %s228
      %s246 = sphi 0, %s246
      %s248 = sphi 0, %s246
      %s249 = sphi 0, %s248
      %s263 = sphi 0, %s249
      %s267 = sphi 0, %s267
      %s269 = sphi 0, %s267
      %s270 = sphi 0, %s269
      %s284 = sphi 0, %s270
      %s288 = sphi 0, %s288
      %s290 = sphi 0, %s288
      %s291 = sphi 0, %s290
      %s305 = sphi 0, %s291
      %s309 = sphi 0, %s309
      %s311 = sphi 0, %s309
      %s312 = sphi 0, %s311
      %s326 = sphi 0, %s312
      %s332 = sphi 0, %s334
      %s335 = sphi 0, %s332
      %s336 = sphi 0, %s335
      %s352 = sphi 0, %s336
    $region4: #{ledgerise_lens_forward.1} parent=1 // loop_header_branch
      %26 = sbr.rel (%p24) target = $region8
    $region5: #{ledgerise_lens_forward.1} parent=1 // loop_body
      %s28 = ssub.s32 %s23, 1
      %s29 = ssub.s32 %s23, 2
      %s30 = sadd.s32 %s23, 1
      %s31 = ssub.s32 %s23, %s30
      %p32 = scmp.eq.s32.totalorder %s31, 0
      %s34 = sadd.s32 %s33, 1
      %s35 = scalar_select %p32, %s33, %s34
      %p38 = pneg %p32
      %p39 = scmp.eq.s32.totalorder %s23, 1
      %p40 = por %p38, %p39
      %p41 = scmp.ne.s32.totalorder %s33, %s36
      %p42 = scmp.eq.s32.totalorder %s23, 0
      %p43 = por %p41, %p42
      %p44 = scmp.ne.s32.totalorder %s33, %s36
      %p45 = scmp.eq.s32.totalorder %s28, 1
      %p46 = por %p44, %p45
      %p47 = scmp.ne.s32.totalorder %s36, %s37
      %p48 = scmp.eq.s32.totalorder %s28, 0
      %p49 = por %p47, %p48
      %p50 = scmp.ne.s32.totalorder %s36, %s37
      %p51 = scmp.eq.s32.totalorder %s29, 1
      %p52 = por %p50, %p51
      %p54 = scmp.ne.s32.totalorder %s37, %s53
      %p55 = scmp.eq.s32.totalorder %s29, 0
      %p56 = por %p54, %p55
      %s58 = sadd.s32 %s57, 1
      %p61 = scmp.eq.s32.totalorder %s23, 1
      %p62 = scmp.ne.s32.totalorder %s57, %s59
      %p63 = scmp.eq.s32.totalorder %s23, 0
      %p64 = por %p62, %p63
      %p65 = scmp.ne.s32.totalorder %s57, %s59
      %p66 = scmp.eq.s32.totalorder %s28, 1
      %p67 = por %p65, %p66
      %p68 = scmp.ne.s32.totalorder %s59, %s60
      %p69 = scmp.eq.s32.totalorder %s28, 0
      %p70 = por %p68, %p69
      %p71 = scmp.ne.s32.totalorder %s59, %s60
      %p72 = scmp.eq.s32.totalorder %s29, 1
      %p73 = por %p71, %p72
      %p75 = scmp.ne.s32.totalorder %s60, %s74
      %p76 = scmp.eq.s32.totalorder %s29, 0
      %p77 = por %p75, %p76
      %s79 = sadd.s32 %s78, 1
      %p82 = scmp.eq.s32.totalorder %s23, 1
      %p83 = scmp.ne.s32.totalorder %s78, %s80
      %p84 = scmp.eq.s32.totalorder %s23, 0
      %p85 = por %p83, %p84
      %p86 = scmp.ne.s32.totalorder %s78, %s80
      %p87 = scmp.eq.s32.totalorder %s28, 1
      %p88 = por %p86, %p87
      %p89 = scmp.ne.s32.totalorder %s80, %s81
      %p90 = scmp.eq.s32.totalorder %s28, 0
      %p91 = por %p89, %p90
      %p92 = scmp.ne.s32.totalorder %s80, %s81
      %p93 = scmp.eq.s32.totalorder %s29, 1
      %p94 = por %p92, %p93
      %p96 = scmp.ne.s32.totalorder %s81, %s95
      %p97 = scmp.eq.s32.totalorder %s29, 0
      %p98 = por %p96, %p97
      %s100 = sadd.s32 %s99, 1
      %p103 = scmp.eq.s32.totalorder %s23, 1
      %p104 = scmp.ne.s32.totalorder %s99, %s101
      %p105 = scmp.eq.s32.totalorder %s23, 0
      %p106 = por %p104, %p105
      %p107 = scmp.ne.s32.totalorder %s99, %s101
      %p108 = scmp.eq.s32.totalorder %s28, 1
      %p109 = por %p107, %p108
      %p110 = scmp.ne.s32.totalorder %s101, %s102
      %p111 = scmp.eq.s32.totalorder %s28, 0
      %p112 = por %p110, %p111
      %p113 = scmp.ne.s32.totalorder %s101, %s102
      %p114 = scmp.eq.s32.totalorder %s29, 1
      %p115 = por %p113, %p114
      %p117 = scmp.ne.s32.totalorder %s102, %s116
      %p118 = scmp.eq.s32.totalorder %s29, 0
      %p119 = por %p117, %p118
      %s121 = sadd.s32 %s120, 1
      %p124 = scmp.eq.s32.totalorder %s23, 1
      %p125 = scmp.ne.s32.totalorder %s120, %s122
      %p126 = scmp.eq.s32.totalorder %s23, 0
      %p127 = por %p125, %p126
      %p128 = scmp.ne.s32.totalorder %s120, %s122
      %p129 = scmp.eq.s32.totalorder %s28, 1
      %p130 = por %p128, %p129
      %p131 = scmp.ne.s32.totalorder %s122, %s123
      %p132 = scmp.eq.s32.totalorder %s28, 0
      %p133 = por %p131, %p132
      %p134 = scmp.ne.s32.totalorder %s122, %s123
      %p135 = scmp.eq.s32.totalorder %s29, 1
      %p136 = por %p134, %p135
      %p138 = scmp.ne.s32.totalorder %s123, %s137
      %p139 = scmp.eq.s32.totalorder %s29, 0
      %p140 = por %p138, %p139
      %s142 = sadd.s32 %s141, 1
      %p145 = scmp.eq.s32.totalorder %s23, 1
      %p146 = scmp.ne.s32.totalorder %s141, %s143
      %p147 = scmp.eq.s32.totalorder %s23, 0
      %p148 = por %p146, %p147
      %p149 = scmp.ne.s32.totalorder %s141, %s143
      %p150 = scmp.eq.s32.totalorder %s28, 1
      %p151 = por %p149, %p150
      %p152 = scmp.ne.s32.totalorder %s143, %s144
      %p153 = scmp.eq.s32.totalorder %s28, 0
      %p154 = por %p152, %p153
      %p155 = scmp.ne.s32.totalorder %s143, %s144
      %p156 = scmp.eq.s32.totalorder %s29, 1
      %p157 = por %p155, %p156
      %p159 = scmp.ne.s32.totalorder %s144, %s158
      %p160 = scmp.eq.s32.totalorder %s29, 0
      %p161 = por %p159, %p160
      %s163 = sadd.s32 %s162, 1
      %p166 = scmp.eq.s32.totalorder %s23, 1
      %p167 = scmp.ne.s32.totalorder %s162, %s164
      %p168 = scmp.eq.s32.totalorder %s23, 0
      %p169 = por %p167, %p168
      %p170 = scmp.ne.s32.totalorder %s162, %s164
      %p171 = scmp.eq.s32.totalorder %s28, 1
      %p172 = por %p170, %p171
      %p173 = scmp.ne.s32.totalorder %s164, %s165
      %p174 = scmp.eq.s32.totalorder %s28, 0
      %p175 = por %p173, %p174
      %p176 = scmp.ne.s32.totalorder %s164, %s165
      %p177 = scmp.eq.s32.totalorder %s29, 1
      %p178 = por %p176, %p177
      %p180 = scmp.ne.s32.totalorder %s165, %s179
      %p181 = scmp.eq.s32.totalorder %s29, 0
      %p182 = por %p180, %p181
      %s184 = sadd.s32 %s183, 1
      %p187 = scmp.eq.s32.totalorder %s23, 1
      %p188 = scmp.ne.s32.totalorder %s183, %s185
      %p189 = scmp.eq.s32.totalorder %s23, 0
      %p190 = por %p188, %p189
      %p191 = scmp.ne.s32.totalorder %s183, %s185
      %p192 = scmp.eq.s32.totalorder %s28, 1
      %p193 = por %p191, %p192
      %p194 = scmp.ne.s32.totalorder %s185, %s186
      %p195 = scmp.eq.s32.totalorder %s28, 0
      %p196 = por %p194, %p195
      %p197 = scmp.ne.s32.totalorder %s185, %s186
      %p198 = scmp.eq.s32.totalorder %s29, 1
      %p199 = por %p197, %p198
      %p201 = scmp.ne.s32.totalorder %s186, %s200
      %p202 = scmp.eq.s32.totalorder %s29, 0
      %p203 = por %p201, %p202
      %s205 = sadd.s32 %s204, 1
      %p208 = scmp.eq.s32.totalorder %s23, 1
      %p209 = scmp.ne.s32.totalorder %s204, %s206
      %p210 = scmp.eq.s32.totalorder %s23, 0
      %p211 = por %p209, %p210
      %p212 = scmp.ne.s32.totalorder %s204, %s206
      %p213 = scmp.eq.s32.totalorder %s28, 1
      %p214 = por %p212, %p213
      %p215 = scmp.ne.s32.totalorder %s206, %s207
      %p216 = scmp.eq.s32.totalorder %s28, 0
      %p217 = por %p215, %p216
      %p218 = scmp.ne.s32.totalorder %s206, %s207
      %p219 = scmp.eq.s32.totalorder %s29, 1
      %p220 = por %p218, %p219
      %p222 = scmp.ne.s32.totalorder %s207, %s221
      %p223 = scmp.eq.s32.totalorder %s29, 0
      %p224 = por %p222, %p223
      %s226 = sadd.s32 %s225, 1
      %p229 = scmp.eq.s32.totalorder %s23, 1
      %p230 = scmp.ne.s32.totalorder %s225, %s227
      %p231 = scmp.eq.s32.totalorder %s23, 0
      %p232 = por %p230, %p231
      %p233 = scmp.ne.s32.totalorder %s225, %s227
      %p234 = scmp.eq.s32.totalorder %s28, 1
      %p235 = por %p233, %p234
      %p236 = scmp.ne.s32.totalorder %s227, %s228
      %p237 = scmp.eq.s32.totalorder %s28, 0
      %p238 = por %p236, %p237
      %p239 = scmp.ne.s32.totalorder %s227, %s228
      %p240 = scmp.eq.s32.totalorder %s29, 1
      %p241 = por %p239, %p240
      %p243 = scmp.ne.s32.totalorder %s228, %s242
      %p244 = scmp.eq.s32.totalorder %s29, 0
      %p245 = por %p243, %p244
      %s247 = sadd.s32 %s246, 1
      %p250 = scmp.eq.s32.totalorder %s23, 1
      %p251 = scmp.ne.s32.totalorder %s246, %s248
      %p252 = scmp.eq.s32.totalorder %s23, 0
      %p253 = por %p251, %p252
      %p254 = scmp.ne.s32.totalorder %s246, %s248
      %p255 = scmp.eq.s32.totalorder %s28, 1
      %p256 = por %p254, %p255
      %p257 = scmp.ne.s32.totalorder %s248, %s249
      %p258 = scmp.eq.s32.totalorder %s28, 0
      %p259 = por %p257, %p258
      %p260 = scmp.ne.s32.totalorder %s248, %s249
      %p261 = scmp.eq.s32.totalorder %s29, 1
      %p262 = por %p260, %p261
      %p264 = scmp.ne.s32.totalorder %s249, %s263
      %p265 = scmp.eq.s32.totalorder %s29, 0
      %p266 = por %p264, %p265
      %s268 = sadd.s32 %s267, 1
      %p271 = scmp.eq.s32.totalorder %s23, 1
      %p272 = scmp.ne.s32.totalorder %s267, %s269
      %p273 = scmp.eq.s32.totalorder %s23, 0
      %p274 = por %p272, %p273
      %p275 = scmp.ne.s32.totalorder %s267, %s269
      %p276 = scmp.eq.s32.totalorder %s28, 1
      %p277 = por %p275, %p276
      %p278 = scmp.ne.s32.totalorder %s269, %s270
      %p279 = scmp.eq.s32.totalorder %s28, 0
      %p280 = por %p278, %p279
      %p281 = scmp.ne.s32.totalorder %s269, %s270
      %p282 = scmp.eq.s32.totalorder %s29, 1
      %p283 = por %p281, %p282
      %p285 = scmp.ne.s32.totalorder %s270, %s284
      %p286 = scmp.eq.s32.totalorder %s29, 0
      %p287 = por %p285, %p286
      %s289 = sadd.s32 %s288, 1
      %p292 = scmp.eq.s32.totalorder %s23, 1
      %p293 = scmp.ne.s32.totalorder %s288, %s290
      %p294 = scmp.eq.s32.totalorder %s23, 0
      %p295 = por %p293, %p294
      %p296 = scmp.ne.s32.totalorder %s288, %s290
      %p297 = scmp.eq.s32.totalorder %s28, 1
      %p298 = por %p296, %p297
      %p299 = scmp.ne.s32.totalorder %s290, %s291
      %p300 = scmp.eq.s32.totalorder %s28, 0
      %p301 = por %p299, %p300
      %p302 = scmp.ne.s32.totalorder %s290, %s291
      %p303 = scmp.eq.s32.totalorder %s29, 1
      %p304 = por %p302, %p303
      %p306 = scmp.ne.s32.totalorder %s291, %s305
      %p307 = scmp.eq.s32.totalorder %s29, 0
      %p308 = por %p306, %p307
      %s310 = sadd.s32 %s309, 1
      %p313 = scmp.eq.s32.totalorder %s23, 1
      %p314 = scmp.ne.s32.totalorder %s309, %s311
      %p315 = scmp.eq.s32.totalorder %s23, 0
      %p316 = por %p314, %p315
      %p317 = scmp.ne.s32.totalorder %s309, %s311
      %p318 = scmp.eq.s32.totalorder %s28, 1
      %p319 = por %p317, %p318
      %p320 = scmp.ne.s32.totalorder %s311, %s312
      %p321 = scmp.eq.s32.totalorder %s28, 0
      %p322 = por %p320, %p321
      %p323 = scmp.ne.s32.totalorder %s311, %s312
      %p324 = scmp.eq.s32.totalorder %s29, 1
      %p325 = por %p323, %p324
      %p327 = scmp.ne.s32.totalorder %s312, %s326
      %p328 = scmp.eq.s32.totalorder %s29, 0
      %p329 = por %p327, %p328
      %s330 = ssub.s32 %s23, %s30
      %p331 = scmp.eq.s32.totalorder %s330, 0
      %s333 = sadd.s32 %s332, 1
      %s334 = scalar_select %p331, %s332, %s333
      %p337 = pneg %p331
      %p338 = scmp.eq.s32.totalorder %s23, 1
      %p339 = por %p337, %p338
      %p340 = scmp.ne.s32.totalorder %s332, %s335
      %p341 = scmp.eq.s32.totalorder %s23, 0
      %p342 = por %p340, %p341
      %p343 = scmp.ne.s32.totalorder %s332, %s335
      %p344 = scmp.eq.s32.totalorder %s28, 1
      %p345 = por %p343, %p344
      %p346 = scmp.ne.s32.totalorder %s335, %s336
      %p347 = scmp.eq.s32.totalorder %s28, 0
      %p348 = por %p346, %p347
      %p349 = scmp.ne.s32.totalorder %s335, %s336
      %p350 = scmp.eq.s32.totalorder %s29, 1
      %p351 = por %p349, %p350
      %p353 = scmp.ne.s32.totalorder %s336, %s352
      %p354 = scmp.eq.s32.totalorder %s29, 0
      %p355 = por %p353, %p354
      %p356 = scmp.le.s32.totalorder 1, %s23
      %p357 = scmp.lt.s32.totalorder %s23, 3
      %p358 = pnand %p356, %p357
      %p359 = pneg %p358
      // Predicated region
      $region9: #{ledgerise_lens_forward.1} parent=5 // pred_check
        _
      $region10: #{ledgerise_lens_forward.1} parent=5 // pred_check_branch
        %361 = sbr.rel (%p358) target = $region12
      $region11: #{ledgerise_lens_forward.1} parent=5 // pred_region
        %s362 = ssub.s32 %s23, 1
        // Predicated region
        $region13: #{ledgerise_lens_forward.1} parent=11 // pred_check
          %p363 = pneg %p70
        $region14: #{ledgerise_lens_forward.1} parent=11 // pred_check_branch
          %365 = sbr.rel (%p363) target = $region16
        $region15: #{ledgerise_lens_forward.1} parent=11 // pred_region
          _
        $region16: #{ledgerise_lens_forward.1} parent=11 // pred_fallthru
          _
        // Predicated region
        $region17: #{ledgerise_lens_forward.1} parent=11 // pred_check
          %p366 = pneg %p91
        $region18: #{ledgerise_lens_forward.1} parent=11 // pred_check_branch
          %368 = sbr.rel (%p366) target = $region20
        $region19: #{ledgerise_lens_forward.1} parent=11 // pred_region
          _
        $region20: #{ledgerise_lens_forward.1} parent=11 // pred_fallthru
          _
        // Predicated region
        $region21: #{ledgerise_lens_forward.1} parent=11 // pred_check
          %p369 = pneg %p112
        $region22: #{ledgerise_lens_forward.1} parent=11 // pred_check_branch
          %371 = sbr.rel (%p369) target = $region24
        $region23: #{ledgerise_lens_forward.1} parent=11 // pred_region
          _
        $region24: #{ledgerise_lens_forward.1} parent=11 // pred_fallthru
          _
        // Predicated region
        $region25: #{ledgerise_lens_forward.1} parent=11 // pred_check
          %p372 = pneg %p133
        $region26: #{ledgerise_lens_forward.1} parent=11 // pred_check_branch
          %374 = sbr.rel (%p372) target = $region28
        $region27: #{ledgerise_lens_forward.1} parent=11 // pred_region
          _
        $region28: #{ledgerise_lens_forward.1} parent=11 // pred_fallthru
          _
        // Predicated region
        $region29: #{ledgerise_lens_forward.1} parent=11 // pred_check
          %p375 = pneg %p154
        $region30: #{ledgerise_lens_forward.1} parent=11 // pred_check_branch
          %377 = sbr.rel (%p375) target = $region32
        $region31: #{ledgerise_lens_forward.1} parent=11 // pred_region
          _
        $region32: #{ledgerise_lens_forward.1} parent=11 // pred_fallthru
          _
        // Predicated region
        $region33: #{ledgerise_lens_forward.1} parent=11 // pred_check
          %p378 = pneg %p175
        $region34: #{ledgerise_lens_forward.1} parent=11 // pred_check_branch
          %380 = sbr.rel (%p378) target = $region36
        $region35: #{ledgerise_lens_forward.1} parent=11 // pred_region
          _
        $region36: #{ledgerise_lens_forward.1} parent=11 // pred_fallthru
          _
        // Predicated region
        $region37: #{ledgerise_lens_forward.1} parent=11 // pred_check
          %p381 = pneg %p196
        $region38: #{ledgerise_lens_forward.1} parent=11 // pred_check_branch
          %383 = sbr.rel (%p381) target = $region40
        $region39: #{ledgerise_lens_forward.1} parent=11 // pred_region
          _
        $region40: #{ledgerise_lens_forward.1} parent=11 // pred_fallthru
          _
        // Predicated region
        $region41: #{ledgerise_lens_forward.1} parent=11 // pred_check
          %p384 = pneg %p217
        $region42: #{ledgerise_lens_forward.1} parent=11 // pred_check_branch
          %386 = sbr.rel (%p384) target = $region44
        $region43: #{ledgerise_lens_forward.1} parent=11 // pred_region
          _
        $region44: #{ledgerise_lens_forward.1} parent=11 // pred_fallthru
          _
        // Predicated region
        $region45: #{ledgerise_lens_forward.1} parent=11 // pred_check
          %p387 = pneg %p238
        $region46: #{ledgerise_lens_forward.1} parent=11 // pred_check_branch
          %389 = sbr.rel (%p387) target = $region48
        $region47: #{ledgerise_lens_forward.1} parent=11 // pred_region
          _
        $region48: #{ledgerise_lens_forward.1} parent=11 // pred_fallthru
          _
        // Predicated region
        $region49: #{ledgerise_lens_forward.1} parent=11 // pred_check
          %p390 = pneg %p259
        $region50: #{ledgerise_lens_forward.1} parent=11 // pred_check_branch
          %392 = sbr.rel (%p390) target = $region52
        $region51: #{ledgerise_lens_forward.1} parent=11 // pred_region
          _
        $region52: #{ledgerise_lens_forward.1} parent=11 // pred_fallthru
          _
        // Predicated region
        $region53: #{ledgerise_lens_forward.1} parent=11 // pred_check
          %p393 = pneg %p280
        $region54: #{ledgerise_lens_forward.1} parent=11 // pred_check_branch
          %395 = sbr.rel (%p393) target = $region56
        $region55: #{ledgerise_lens_forward.1} parent=11 // pred_region
          _
        $region56: #{ledgerise_lens_forward.1} parent=11 // pred_fallthru
          _
        // Predicated region
        $region57: #{ledgerise_lens_forward.1} parent=11 // pred_check
          %p396 = pneg %p301
        $region58: #{ledgerise_lens_forward.1} parent=11 // pred_check_branch
          %398 = sbr.rel (%p396) target = $region60
        $region59: #{ledgerise_lens_forward.1} parent=11 // pred_region
          _
        $region60: #{ledgerise_lens_forward.1} parent=11 // pred_fallthru
          _
        // Predicated region
        $region61: #{ledgerise_lens_forward.1} parent=11 // pred_check
          %p399 = pneg %p322
        $region62: #{ledgerise_lens_forward.1} parent=11 // pred_check_branch
          %401 = sbr.rel (%p399) target = $region64
        $region63: #{ledgerise_lens_forward.1} parent=11 // pred_region
          _
        $region64: #{ledgerise_lens_forward.1} parent=11 // pred_fallthru
          _
      $region12: #{ledgerise_lens_forward.1} parent=5 // pred_fallthru
        _
      %p402 = scmp.lt.s32.totalorder %s23, 2
      // Predicated region
      $region65: #{ledgerise_lens_forward.1} parent=5 // pred_check
        %p403 = pneg %p402
      $region66: #{ledgerise_lens_forward.1} parent=5 // pred_check_branch
        %405 = sbr.rel (%p403) target = $region68
      $region67: #{ledgerise_lens_forward.1} parent=5 // pred_region
        // Predicated region
        $region69: #{ledgerise_lens_forward.1} parent=67 // pred_check
          %p406 = pneg %p43
        $region70: #{ledgerise_lens_forward.1} parent=67 // pred_check_branch
          %408 = sbr.rel (%p406) target = $region72
        $region71: #{ledgerise_lens_forward.1} parent=67 // pred_region
          %p409 = scmp.lt.s32.totalorder %s23, 1
          %s410 = scalar_select %p409, %s23, 1
          %s411 = smul.addr %s410, 35
          %s412 = smul.addr %s411, 4
          %s413 = scalar_lea.vmem %s0, %s412
        $region72: #{ledgerise_lens_forward.1} parent=67 // pred_fallthru
          _
      $region68: #{ledgerise_lens_forward.1} parent=5 // pred_fallthru
        _
      %p414 = scmp.le.s32.totalorder 1, %s23
      %p415 = scmp.lt.s32.totalorder %s23, 3
      %p416 = pnand %p414, %p415
      %p417 = pneg %p416
      // Predicated region
      $region73: #{ledgerise_lens_forward.1} parent=5 // pred_check
        _
      $region74: #{ledgerise_lens_forward.1} parent=5 // pred_check_branch
        %419 = sbr.rel (%p416) target = $region76
      $region75: #{ledgerise_lens_forward.1} parent=5 // pred_region
        %s420 = ssub.s32 %s23, 1
        %p421 = scmp.lt.s32.totalorder %s28, 1
        %s422 = scalar_select %p421, %s28, 1
        %s423 = smul.addr %s422, 35
        %s424 = smul.addr %s423, 4
        %s425 = scalar_lea.vmem %s0, %s424
        %p426 = pneg %p49
        %p427 = pneg %p46
        %p428 = pneg %p70
        %p429 = pneg %p67
        %p430 = pneg %p91
        %p431 = pneg %p88
        %p432 = pneg %p112
        %p433 = pneg %p109
        %p434 = pneg %p133
        %p435 = pneg %p130
        %p436 = pneg %p154
        %p437 = pneg %p151
        %p438 = pneg %p175
        %p439 = pneg %p172
        %p440 = pneg %p196
        %p441 = pneg %p193
        %p442 = pneg %p217
        %p443 = pneg %p214
        %p444 = pneg %p238
        %p445 = pneg %p235
        %p446 = pneg %p259
        %p447 = pneg %p256
        %p448 = pneg %p280
        %p449 = pneg %p277
        %p450 = pneg %p301
        %p451 = pneg %p298
        %p452 = pneg %p322
        %p453 = pneg %p319
        %p454 = pneg %p348
        %p455 = pneg %p345
        %s456 = sand.u32 %s335, 1
        %s457 = scalar_lea.sflag [#allocation3], %s456
        %s458 = sand.u32 %s335, 1
        %s459 = scalar_lea.vmem [#allocation2], %s458
        %p460 = scmp.lt.s32.totalorder %s28, 1
        %s461 = scalar_select %p460, %s28, 1
        %s462 = smul.addr %s461, 35
        %s463 = smul.addr %s462, 4
        %s464 = scalar_lea.vmem %s0, %s463
        %v466 = vld [vmem:[%s1] sm:$0xff]
        %v467 = vld [vmem:[%s1 + $0x8] sm:$0xff]
        %v468 = vld [vmem:[%s1 + $0x10] sm:$0xff]
        %v469 = vld [vmem:[%s1 + $0x18] sm:$0xff]
        %v470 = vld [vmem:[%s1 + $0x20] sm:$0x7]
        %v471 = vld [vmem:[%s464] sm:$0xff]
        %v472 = vld [vmem:[%s464 + $0x8] sm:$0xff]
        %v473 = vld [vmem:[%s464 + $0x10] sm:$0xff]
        %v474 = vld [vmem:[%s464 + $0x18] sm:$0xff]
        %v475 = vld [vmem:[%s464 + $0x20] sm:$0xff]
        %v476 = vld [vmem:[%s464 + $0x28] sm:$0xff]
        %v477 = vld [vmem:[%s464 + $0x30] sm:$0xff]
        %v478 = vld [vmem:[%s464 + $0x38] sm:$0xff]
        %v479 = vld [vmem:[%s464 + $0x40] sm:$0xff]
        %v480 = vld [vmem:[%s464 + $0x48] sm:$0xff]
        %v481 = vld [vmem:[%s464 + $0x50] sm:$0xff]
        %v482 = vld [vmem:[%s464 + $0x58] sm:$0xff]
        %v483 = vld [vmem:[%s464 + $0x60] sm:$0xff]
        %v484 = vld [vmem:[%s464 + $0x68] sm:$0xff]
        %v485 = vld [vmem:[%s464 + $0x70] sm:$0xff]
        %v486 = vld [vmem:[%s464 + $0x78] sm:$0xff]
        %v487 = vld [vmem:[%s464 + $0x80] sm:$0xff]
        %v488 = vld [vmem:[%s464 + $0x88] sm:$0xf]
        %v491 = vunpack.c.h.b16 %v487
        %v492 = vunpack.c.l.b16 %v488
        %v493 = vpack.c.b16 %v491, %v491
        %v494 = vpack.c.b16 %v492, %v492
        %495 = vrot.lane.b32.xlu0 %v493, 63
        %v496 = vpop.permute.xlu0 %495
        %497 = vrot.lane.b32.xlu0 %v494, 63
        %v498 = vpop.permute.xlu0 %497
        %vm499 = vcmask 515072
        %v500 = vsel %vm499, %v496, %v498
        %v517 = vunpack.c.l.b16 %v471
        %v518 = vunpack.c.h.b16 %v471
        %v519 = vunpack.c.l.b16 %v472
        %v520 = vunpack.c.h.b16 %v472
        %v521 = vunpack.c.l.b16 %v473
        %v522 = vunpack.c.h.b16 %v473
        %v523 = vunpack.c.l.b16 %v474
        %v524 = vunpack.c.h.b16 %v474
        %v525 = vunpack.c.l.b16 %v475
        %v526 = vunpack.c.h.b16 %v475
        %v527 = vunpack.c.l.b16 %v476
        %v528 = vunpack.c.h.b16 %v476
        %v529 = vunpack.c.l.b16 %v477
        %v530 = vunpack.c.h.b16 %v477
        %v531 = vunpack.c.l.b16 %v478
        %v532 = vunpack.c.h.b16 %v478
        %v533 = vunpack.c.l.b16 %v479
        %v534 = vunpack.c.h.b16 %v479
        %v535 = vunpack.c.l.b16 %v480
        %v536 = vunpack.c.h.b16 %v480
        %v537 = vunpack.c.l.b16 %v481
        %v538 = vunpack.c.h.b16 %v481
        %v539 = vunpack.c.l.b16 %v482
        %v540 = vunpack.c.h.b16 %v482
        %v541 = vunpack.c.l.b16 %v483
        %v542 = vunpack.c.h.b16 %v483
        %v543 = vunpack.c.l.b16 %v484
        %v544 = vunpack.c.h.b16 %v484
        %v545 = vunpack.c.l.b16 %v485
        %v546 = vunpack.c.h.b16 %v485
        %v547 = vunpack.c.l.b16 %v486
        %v548 = vunpack.c.h.b16 %v486
        %v549 = vunpack.c.l.b16 %v487
        %v550 = vpack.c.b16 %v517, %v517
        %v551 = vpack.c.b16 %v518, %v518
        %v552 = vpack.c.b16 %v519, %v519
        %v553 = vpack.c.b16 %v520, %v520
        %v554 = vpack.c.b16 %v521, %v521
        %v555 = vpack.c.b16 %v522, %v522
        %v556 = vpack.c.b16 %v523, %v523
        %v557 = vpack.c.b16 %v524, %v524
        %v558 = vpack.c.b16 %v525, %v525
        %v559 = vpack.c.b16 %v526, %v526
        %v560 = vpack.c.b16 %v527, %v527
        %v561 = vpack.c.b16 %v528, %v528
        %v562 = vpack.c.b16 %v529, %v529
        %v563 = vpack.c.b16 %v530, %v530
        %v564 = vpack.c.b16 %v531, %v531
        %v565 = vpack.c.b16 %v532, %v532
        %v566 = vpack.c.b16 %v533, %v533
        %v567 = vpack.c.b16 %v534, %v534
        %v568 = vpack.c.b16 %v535, %v535
        %v569 = vpack.c.b16 %v536, %v536
        %v570 = vpack.c.b16 %v537, %v537
        %v571 = vpack.c.b16 %v538, %v538
        %v572 = vpack.c.b16 %v539, %v539
        %v573 = vpack.c.b16 %v540, %v540
        %v574 = vpack.c.b16 %v541, %v541
        %v575 = vpack.c.b16 %v542, %v542
        %v576 = vpack.c.b16 %v543, %v543
        %v577 = vpack.c.b16 %v544, %v544
        %v578 = vpack.c.b16 %v545, %v545
        %v579 = vpack.c.b16 %v546, %v546
        %v580 = vpack.c.b16 %v547, %v547
        %v581 = vpack.c.b16 %v548, %v548
        %v582 = vpack.c.b16 %v549, %v549
        %583 = vrot.lane.b32.xlu0 %v550, 67
        %v584 = vpop.permute.xlu0 %583
        %585 = vrot.lane.b32.xlu0 %v551, 67
        %v586 = vpop.permute.xlu0 %585
        %587 = vrot.lane.b32.xlu0 %v552, 67
        %v588 = vpop.permute.xlu0 %587
        %589 = vrot.lane.b32.xlu0 %v553, 67
        %v590 = vpop.permute.xlu0 %589
        %591 = vrot.lane.b32.xlu0 %v554, 67
        %v592 = vpop.permute.xlu0 %591
        %593 = vrot.lane.b32.xlu0 %v555, 67
        %v594 = vpop.permute.xlu0 %593
        %595 = vrot.lane.b32.xlu0 %v556, 67
        %v596 = vpop.permute.xlu0 %595
        %597 = vrot.lane.b32.xlu0 %v557, 67
        %v598 = vpop.permute.xlu0 %597
        %599 = vrot.lane.b32.xlu0 %v558, 67
        %v600 = vpop.permute.xlu0 %599
        %601 = vrot.lane.b32.xlu0 %v559, 67
        %v602 = vpop.permute.xlu0 %601
        %603 = vrot.lane.b32.xlu0 %v560, 67
        %v604 = vpop.permute.xlu0 %603
        %605 = vrot.lane.b32.xlu0 %v561, 67
        %v606 = vpop.permute.xlu0 %605
        %607 = vrot.lane.b32.xlu0 %v562, 67
        %v608 = vpop.permute.xlu0 %607
        %609 = vrot.lane.b32.xlu0 %v563, 67
        %v610 = vpop.permute.xlu0 %609
        %611 = vrot.lane.b32.xlu0 %v564, 67
        %v612 = vpop.permute.xlu0 %611
        %613 = vrot.lane.b32.xlu0 %v565, 67
        %v614 = vpop.permute.xlu0 %613
        %615 = vrot.lane.b32.xlu0 %v566, 67
        %v616 = vpop.permute.xlu0 %615
        %617 = vrot.lane.b32.xlu0 %v567, 67
        %v618 = vpop.permute.xlu0 %617
        %619 = vrot.lane.b32.xlu0 %v568, 67
        %v620 = vpop.permute.xlu0 %619
        %621 = vrot.lane.b32.xlu0 %v569, 67
        %v622 = vpop.permute.xlu0 %621
        %623 = vrot.lane.b32.xlu0 %v570, 67
        %v624 = vpop.permute.xlu0 %623
        %625 = vrot.lane.b32.xlu0 %v571, 67
        %v626 = vpop.permute.xlu0 %625
        %627 = vrot.lane.b32.xlu0 %v572, 67
        %v628 = vpop.permute.xlu0 %627
        %629 = vrot.lane.b32.xlu0 %v573, 67
        %v630 = vpop.permute.xlu0 %629
        %631 = vrot.lane.b32.xlu0 %v574, 67
        %v632 = vpop.permute.xlu0 %631
        %633 = vrot.lane.b32.xlu0 %v575, 67
        %v634 = vpop.permute.xlu0 %633
        %635 = vrot.lane.b32.xlu0 %v576, 67
        %v636 = vpop.permute.xlu0 %635
        %637 = vrot.lane.b32.xlu0 %v577, 67
        %v638 = vpop.permute.xlu0 %637
        %639 = vrot.lane.b32.xlu0 %v578, 67
        %v640 = vpop.permute.xlu0 %639
        %641 = vrot.lane.b32.xlu0 %v579, 67
        %v642 = vpop.permute.xlu0 %641
        %643 = vrot.lane.b32.xlu0 %v580, 67
        %v644 = vpop.permute.xlu0 %643
        %645 = vrot.lane.b32.xlu0 %v581, 67
        %v646 = vpop.permute.xlu0 %645
        %647 = vrot.lane.b32.xlu0 %v582, 67
        %v648 = vpop.permute.xlu0 %647
        %649 = vrot.lane.b32.xlu0 %v493, 67
        %v650 = vpop.permute.xlu0 %649
        %vm651 = vcmask 547840
        %v652 = vsel %vm651, %v584, %v586
        %v653 = vsel %vm651, %v586, %v588
        %v654 = vsel %vm651, %v588, %v590
        %v655 = vsel %vm651, %v590, %v592
        %v656 = vsel %vm651, %v592, %v594
        %v657 = vsel %vm651, %v594, %v596
        %v658 = vsel %vm651, %v596, %v598
        %v659 = vsel %vm651, %v598, %v600
        %v660 = vsel %vm651, %v600, %v602
        %v661 = vsel %vm651, %v602, %v604
        %v662 = vsel %vm651, %v604, %v606
        %v663 = vsel %vm651, %v606, %v608
        %v664 = vsel %vm651, %v608, %v610
        %v665 = vsel %vm651, %v610, %v612
        %v666 = vsel %vm651, %v612, %v614
        %v667 = vsel %vm651, %v614, %v616
        %v668 = vsel %vm651, %v616, %v618
        %v669 = vsel %vm651, %v618, %v620
        %v670 = vsel %vm651, %v620, %v622
        %v671 = vsel %vm651, %v622, %v624
        %v672 = vsel %vm651, %v624, %v626
        %v673 = vsel %vm651, %v626, %v628
        %v674 = vsel %vm651, %v628, %v630
        %v675 = vsel %vm651, %v630, %v632
        %v676 = vsel %vm651, %v632, %v634
        %v677 = vsel %vm651, %v634, %v636
        %v678 = vsel %vm651, %v636, %v638
        %v679 = vsel %vm651, %v638, %v640
        %v680 = vsel %vm651, %v640, %v642
        %v681 = vsel %vm651, %v642, %v644
        %v682 = vsel %vm651, %v644, %v646
        %v683 = vsel %vm651, %v646, %v648
        %v684 = vsel %vm651, %v648, %v650
        %vm685 = vcmask 547840
        %v688 = vsel %vm685, %v500, %v584
        %689 = vrot.lane.b32.xlu0 %v493, 62
        %v690 = vpop.permute.xlu0 %689
        %691 = vrot.lane.b32.xlu0 %v494, 62
        %v692 = vpop.permute.xlu0 %691
        %vm693 = vcmask 506880
        %v694 = vsel %vm693, %v690, %v692
        %695 = vrot.lane.b32.xlu0 %v550, 66
        %v696 = vpop.permute.xlu0 %695
        %697 = vrot.lane.b32.xlu0 %v551, 66
        %v698 = vpop.permute.xlu0 %697
        %699 = vrot.lane.b32.xlu0 %v552, 66
        %v700 = vpop.permute.xlu0 %699
        %701 = vrot.lane.b32.xlu0 %v553, 66
        %v702 = vpop.permute.xlu0 %701
        %703 = vrot.lane.b32.xlu0 %v554, 66
        %v704 = vpop.permute.xlu0 %703
        %705 = vrot.lane.b32.xlu0 %v555, 66
        %v706 = vpop.permute.xlu0 %705
        %707 = vrot.lane.b32.xlu0 %v556, 66
        %v708 = vpop.permute.xlu0 %707
        %709 = vrot.lane.b32.xlu0 %v557, 66
        %v710 = vpop.permute.xlu0 %709
        %711 = vrot.lane.b32.xlu0 %v558, 66
        %v712 = vpop.permute.xlu0 %711
        %713 = vrot.lane.b32.xlu0 %v559, 66
        %v714 = vpop.permute.xlu0 %713
        %715 = vrot.lane.b32.xlu0 %v560, 66
        %v716 = vpop.permute.xlu0 %715
        %717 = vrot.lane.b32.xlu0 %v561, 66
        %v718 = vpop.permute.xlu0 %717
        %719 = vrot.lane.b32.xlu0 %v562, 66
        %v720 = vpop.permute.xlu0 %719
        %721 = vrot.lane.b32.xlu0 %v563, 66
        %v722 = vpop.permute.xlu0 %721
        %723 = vrot.lane.b32.xlu0 %v564, 66
        %v724 = vpop.permute.xlu0 %723
        %725 = vrot.lane.b32.xlu0 %v565, 66
        %v726 = vpop.permute.xlu0 %725
        %727 = vrot.lane.b32.xlu0 %v566, 66
        %v728 = vpop.permute.xlu0 %727
        %729 = vrot.lane.b32.xlu0 %v567, 66
        %v730 = vpop.permute.xlu0 %729
        %731 = vrot.lane.b32.xlu0 %v568, 66
        %v732 = vpop.permute.xlu0 %731
        %733 = vrot.lane.b32.xlu0 %v569, 66
        %v734 = vpop.permute.xlu0 %733
        %735 = vrot.lane.b32.xlu0 %v570, 66
        %v736 = vpop.permute.xlu0 %735
        %737 = vrot.lane.b32.xlu0 %v571, 66
        %v738 = vpop.permute.xlu0 %737
        %739 = vrot.lane.b32.xlu0 %v572, 66
        %v740 = vpop.permute.xlu0 %739
        %741 = vrot.lane.b32.xlu0 %v573, 66
        %v742 = vpop.permute.xlu0 %741
        %743 = vrot.lane.b32.xlu0 %v574, 66
        %v744 = vpop.permute.xlu0 %743
        %745 = vrot.lane.b32.xlu0 %v575, 66
        %v746 = vpop.permute.xlu0 %745
        %747 = vrot.lane.b32.xlu0 %v576, 66
        %v748 = vpop.permute.xlu0 %747
        %749 = vrot.lane.b32.xlu0 %v577, 66
        %v750 = vpop.permute.xlu0 %749
        %751 = vrot.lane.b32.xlu0 %v578, 66
        %v752 = vpop.permute.xlu0 %751
        %753 = vrot.lane.b32.xlu0 %v579, 66
        %v754 = vpop.permute.xlu0 %753
        %755 = vrot.lane.b32.xlu0 %v580, 66
        %v756 = vpop.permute.xlu0 %755
        %757 = vrot.lane.b32.xlu0 %v581, 66
        %v758 = vpop.permute.xlu0 %757
        %759 = vrot.lane.b32.xlu0 %v582, 66
        %v760 = vpop.permute.xlu0 %759
        %761 = vrot.lane.b32.xlu0 %v493, 66
        %v762 = vpop.permute.xlu0 %761
        %vm763 = vcmask 539648
        %v764 = vsel %vm763, %v696, %v698
        %v765 = vsel %vm763, %v698, %v700
        %v766 = vsel %vm763, %v700, %v702
        %v767 = vsel %vm763, %v702, %v704
        %v768 = vsel %vm763, %v704, %v706
        %v769 = vsel %vm763, %v706, %v708
        %v770 = vsel %vm763, %v708, %v710
        %v771 = vsel %vm763, %v710, %v712
        %v772 = vsel %vm763, %v712, %v714
        %v773 = vsel %vm763, %v714, %v716
        %v774 = vsel %vm763, %v716, %v718
        %v775 = vsel %vm763, %v718, %v720
        %v776 = vsel %vm763, %v720, %v722
        %v777 = vsel %vm763, %v722, %v724
        %v778 = vsel %vm763, %v724, %v726
        %v779 = vsel %vm763, %v726, %v728
        %v780 = vsel %vm763, %v728, %v730
        %v781 = vsel %vm763, %v730, %v732
        %v782 = vsel %vm763, %v732, %v734
        %v783 = vsel %vm763, %v734, %v736
        %v784 = vsel %vm763, %v736, %v738
        %v785 = vsel %vm763, %v738, %v740
        %v786 = vsel %vm763, %v740, %v742
        %v787 = vsel %vm763, %v742, %v744
        %v788 = vsel %vm763, %v744, %v746
        %v789 = vsel %vm763, %v746, %v748
        %v790 = vsel %vm763, %v748, %v750
        %v791 = vsel %vm763, %v750, %v752
        %v792 = vsel %vm763, %v752, %v754
        %v793 = vsel %vm763, %v754, %v756
        %v794 = vsel %vm763, %v756, %v758
        %v795 = vsel %vm763, %v758, %v760
        %v796 = vsel %vm763, %v760, %v762
        %vm797 = vcmask 539648
        %v800 = vsel %vm797, %v694, %v696
        %801 = vrot.lane.b32.xlu0 %v493, 61
        %v802 = vpop.permute.xlu0 %801
        %803 = vrot.lane.b32.xlu0 %v494, 61
        %v804 = vpop.permute.xlu0 %803
        %vm805 = vcmask 498688
        %v806 = vsel %vm805, %v802, %v804
        %807 = vrot.lane.b32.xlu0 %v550, 65
        %v808 = vpop.permute.xlu0 %807
        %809 = vrot.lane.b32.xlu0 %v551, 65
        %v810 = vpop.permute.xlu0 %809
        %811 = vrot.lane.b32.xlu0 %v552, 65
        %v812 = vpop.permute.xlu0 %811
        %813 = vrot.lane.b32.xlu0 %v553, 65
        %v814 = vpop.permute.xlu0 %813
        %815 = vrot.lane.b32.xlu0 %v554, 65
        %v816 = vpop.permute.xlu0 %815
        %817 = vrot.lane.b32.xlu0 %v555, 65
        %v818 = vpop.permute.xlu0 %817
        %819 = vrot.lane.b32.xlu0 %v556, 65
        %v820 = vpop.permute.xlu0 %819
        %821 = vrot.lane.b32.xlu0 %v557, 65
        %v822 = vpop.permute.xlu0 %821
        %823 = vrot.lane.b32.xlu0 %v558, 65
        %v824 = vpop.permute.xlu0 %823
        %825 = vrot.lane.b32.xlu0 %v559, 65
        %v826 = vpop.permute.xlu0 %825
        %827 = vrot.lane.b32.xlu0 %v560, 65
        %v828 = vpop.permute.xlu0 %827
        %829 = vrot.lane.b32.xlu0 %v561, 65
        %v830 = vpop.permute.xlu0 %829
        %831 = vrot.lane.b32.xlu0 %v562, 65
        %v832 = vpop.permute.xlu0 %831
        %833 = vrot.lane.b32.xlu0 %v563, 65
        %v834 = vpop.permute.xlu0 %833
        %835 = vrot.lane.b32.xlu0 %v564, 65
        %v836 = vpop.permute.xlu0 %835
        %837 = vrot.lane.b32.xlu0 %v565, 65
        %v838 = vpop.permute.xlu0 %837
        %839 = vrot.lane.b32.xlu0 %v566, 65
        %v840 = vpop.permute.xlu0 %839
        %841 = vrot.lane.b32.xlu0 %v567, 65
        %v842 = vpop.permute.xlu0 %841
        %843 = vrot.lane.b32.xlu0 %v568, 65
        %v844 = vpop.permute.xlu0 %843
        %845 = vrot.lane.b32.xlu0 %v569, 65
        %v846 = vpop.permute.xlu0 %845
        %847 = vrot.lane.b32.xlu0 %v570, 65
        %v848 = vpop.permute.xlu0 %847
        %849 = vrot.lane.b32.xlu0 %v571, 65
        %v850 = vpop.permute.xlu0 %849
        %851 = vrot.lane.b32.xlu0 %v572, 65
        %v852 = vpop.permute.xlu0 %851
        %853 = vrot.lane.b32.xlu0 %v573, 65
        %v854 = vpop.permute.xlu0 %853
        %855 = vrot.lane.b32.xlu0 %v574, 65
        %v856 = vpop.permute.xlu0 %855
        %857 = vrot.lane.b32.xlu0 %v575, 65
        %v858 = vpop.permute.xlu0 %857
        %859 = vrot.lane.b32.xlu0 %v576, 65
        %v860 = vpop.permute.xlu0 %859
        %861 = vrot.lane.b32.xlu0 %v577, 65
        %v862 = vpop.permute.xlu0 %861
        %863 = vrot.lane.b32.xlu0 %v578, 65
        %v864 = vpop.permute.xlu0 %863
        %865 = vrot.lane.b32.xlu0 %v579, 65
        %v866 = vpop.permute.xlu0 %865
        %867 = vrot.lane.b32.xlu0 %v580, 65
        %v868 = vpop.permute.xlu0 %867
        %869 = vrot.lane.b32.xlu0 %v581, 65
        %v870 = vpop.permute.xlu0 %869
        %871 = vrot.lane.b32.xlu0 %v582, 65
        %v872 = vpop.permute.xlu0 %871
        %873 = vrot.lane.b32.xlu0 %v493, 65
        %v874 = vpop.permute.xlu0 %873
        %vm875 = vcmask 531456
        %v876 = vsel %vm875, %v808, %v810
        %v877 = vsel %vm875, %v810, %v812
        %v878 = vsel %vm875, %v812, %v814
        %v879 = vsel %vm875, %v814, %v816
        %v880 = vsel %vm875, %v816, %v818
        %v881 = vsel %vm875, %v818, %v820
        %v882 = vsel %vm875, %v820, %v822
        %v883 = vsel %vm875, %v822, %v824
        %v884 = vsel %vm875, %v824, %v826
        %v885 = vsel %vm875, %v826, %v828
        %v886 = vsel %vm875, %v828, %v830
        %v887 = vsel %vm875, %v830, %v832
        %v888 = vsel %vm875, %v832, %v834
        %v889 = vsel %vm875, %v834, %v836
        %v890 = vsel %vm875, %v836, %v838
        %v891 = vsel %vm875, %v838, %v840
        %v892 = vsel %vm875, %v840, %v842
        %v893 = vsel %vm875, %v842, %v844
        %v894 = vsel %vm875, %v844, %v846
        %v895 = vsel %vm875, %v846, %v848
        %v896 = vsel %vm875, %v848, %v850
        %v897 = vsel %vm875, %v850, %v852
        %v898 = vsel %vm875, %v852, %v854
        %v899 = vsel %vm875, %v854, %v856
        %v900 = vsel %vm875, %v856, %v858
        %v901 = vsel %vm875, %v858, %v860
        %v902 = vsel %vm875, %v860, %v862
        %v903 = vsel %vm875, %v862, %v864
        %v904 = vsel %vm875, %v864, %v866
        %v905 = vsel %vm875, %v866, %v868
        %v906 = vsel %vm875, %v868, %v870
        %v907 = vsel %vm875, %v870, %v872
        %v908 = vsel %vm875, %v872, %v874
        %vm909 = vcmask 531456
        %v912 = vsel %vm909, %v806, %v808
        %913 = vrot.lane.b32.xlu0 %v494, 125
        %v914 = vpop.permute.xlu0 %913
        %915 = vrot.lane.b32.xlu0 %v550, 1
        %v916 = vpop.permute.xlu0 %915
        %917 = vrot.lane.b32.xlu0 %v551, 1
        %v918 = vpop.permute.xlu0 %917
        %919 = vrot.lane.b32.xlu0 %v552, 1
        %v920 = vpop.permute.xlu0 %919
        %921 = vrot.lane.b32.xlu0 %v553, 1
        %v922 = vpop.permute.xlu0 %921
        %923 = vrot.lane.b32.xlu0 %v554, 1
        %v924 = vpop.permute.xlu0 %923
        %925 = vrot.lane.b32.xlu0 %v555, 1
        %v926 = vpop.permute.xlu0 %925
        %927 = vrot.lane.b32.xlu0 %v556, 1
        %v928 = vpop.permute.xlu0 %927
        %929 = vrot.lane.b32.xlu0 %v557, 1
        %v930 = vpop.permute.xlu0 %929
        %931 = vrot.lane.b32.xlu0 %v558, 1
        %v932 = vpop.permute.xlu0 %931
        %933 = vrot.lane.b32.xlu0 %v559, 1
        %v934 = vpop.permute.xlu0 %933
        %935 = vrot.lane.b32.xlu0 %v560, 1
        %v936 = vpop.permute.xlu0 %935
        %937 = vrot.lane.b32.xlu0 %v561, 1
        %v938 = vpop.permute.xlu0 %937
        %939 = vrot.lane.b32.xlu0 %v562, 1
        %v940 = vpop.permute.xlu0 %939
        %941 = vrot.lane.b32.xlu0 %v563, 1
        %v942 = vpop.permute.xlu0 %941
        %943 = vrot.lane.b32.xlu0 %v564, 1
        %v944 = vpop.permute.xlu0 %943
        %945 = vrot.lane.b32.xlu0 %v565, 1
        %v946 = vpop.permute.xlu0 %945
        %947 = vrot.lane.b32.xlu0 %v566, 1
        %v948 = vpop.permute.xlu0 %947
        %949 = vrot.lane.b32.xlu0 %v567, 1
        %v950 = vpop.permute.xlu0 %949
        %951 = vrot.lane.b32.xlu0 %v568, 1
        %v952 = vpop.permute.xlu0 %951
        %953 = vrot.lane.b32.xlu0 %v569, 1
        %v954 = vpop.permute.xlu0 %953
        %955 = vrot.lane.b32.xlu0 %v570, 1
        %v956 = vpop.permute.xlu0 %955
        %957 = vrot.lane.b32.xlu0 %v571, 1
        %v958 = vpop.permute.xlu0 %957
        %959 = vrot.lane.b32.xlu0 %v572, 1
        %v960 = vpop.permute.xlu0 %959
        %961 = vrot.lane.b32.xlu0 %v573, 1
        %v962 = vpop.permute.xlu0 %961
        %963 = vrot.lane.b32.xlu0 %v574, 1
        %v964 = vpop.permute.xlu0 %963
        %965 = vrot.lane.b32.xlu0 %v575, 1
        %v966 = vpop.permute.xlu0 %965
        %967 = vrot.lane.b32.xlu0 %v576, 1
        %v968 = vpop.permute.xlu0 %967
        %969 = vrot.lane.b32.xlu0 %v577, 1
        %v970 = vpop.permute.xlu0 %969
        %971 = vrot.lane.b32.xlu0 %v578, 1
        %v972 = vpop.permute.xlu0 %971
        %973 = vrot.lane.b32.xlu0 %v579, 1
        %v974 = vpop.permute.xlu0 %973
        %975 = vrot.lane.b32.xlu0 %v580, 1
        %v976 = vpop.permute.xlu0 %975
        %977 = vrot.lane.b32.xlu0 %v581, 1
        %v978 = vpop.permute.xlu0 %977
        %979 = vrot.lane.b32.xlu0 %v582, 1
        %v980 = vpop.permute.xlu0 %979
        %981 = vrot.lane.b32.xlu0 %v493, 1
        %v982 = vpop.permute.xlu0 %981
        %983 = vrot.lane.b32.xlu0 %v494, 1
        %v984 = vpop.permute.xlu0 %983
        %vm985 = vcmask 7168
        %v986 = vsel %vm985, %v916, %v918
        %v987 = vsel %vm985, %v918, %v920
        %v988 = vsel %vm985, %v920, %v922
        %v989 = vsel %vm985, %v922, %v924
        %v990 = vsel %vm985, %v924, %v926
        %v991 = vsel %vm985, %v926, %v928
        %v992 = vsel %vm985, %v928, %v930
        %v993 = vsel %vm985, %v930, %v932
        %v994 = vsel %vm985, %v932, %v934
        %v995 = vsel %vm985, %v934, %v936
        %v996 = vsel %vm985, %v936, %v938
        %v997 = vsel %vm985, %v938, %v940
        %v998 = vsel %vm985, %v940, %v942
        %v999 = vsel %vm985, %v942, %v944
        %v1000 = vsel %vm985, %v944, %v946
        %v1001 = vsel %vm985, %v946, %v948
        %v1002 = vsel %vm985, %v948, %v950
        %v1003 = vsel %vm985, %v950, %v952
        %v1004 = vsel %vm985, %v952, %v954
        %v1005 = vsel %vm985, %v954, %v956
        %v1006 = vsel %vm985, %v956, %v958
        %v1007 = vsel %vm985, %v958, %v960
        %v1008 = vsel %vm985, %v960, %v962
        %v1009 = vsel %vm985, %v962, %v964
        %v1010 = vsel %vm985, %v964, %v966
        %v1011 = vsel %vm985, %v966, %v968
        %v1012 = vsel %vm985, %v968, %v970
        %v1013 = vsel %vm985, %v970, %v972
        %v1014 = vsel %vm985, %v972, %v974
        %v1015 = vsel %vm985, %v974, %v976
        %v1016 = vsel %vm985, %v976, %v978
        %v1017 = vsel %vm985, %v978, %v980
        %v1018 = vsel %vm985, %v980, %v982
        %v1019 = vsel %vm985, %v982, %v984
        %vm1020 = vcmask 7168
        %v1023 = vsel %vm1020, %v914, %v916
        %1024 = vrot.lane.b32.xlu0 %v550, 127
        %v1025 = vpop.permute.xlu0 %1024
        %1026 = vrot.lane.b32.xlu0 %v551, 127
        %v1027 = vpop.permute.xlu0 %1026
        %1028 = vrot.lane.b32.xlu0 %v552, 127
        %v1029 = vpop.permute.xlu0 %1028
        %1030 = vrot.lane.b32.xlu0 %v553, 127
        %v1031 = vpop.permute.xlu0 %1030
        %1032 = vrot.lane.b32.xlu0 %v554, 127
        %v1033 = vpop.permute.xlu0 %1032
        %1034 = vrot.lane.b32.xlu0 %v555, 127
        %v1035 = vpop.permute.xlu0 %1034
        %1036 = vrot.lane.b32.xlu0 %v556, 127
        %v1037 = vpop.permute.xlu0 %1036
        %1038 = vrot.lane.b32.xlu0 %v557, 127
        %v1039 = vpop.permute.xlu0 %1038
        %1040 = vrot.lane.b32.xlu0 %v558, 127
        %v1041 = vpop.permute.xlu0 %1040
        %1042 = vrot.lane.b32.xlu0 %v559, 127
        %v1043 = vpop.permute.xlu0 %1042
        %1044 = vrot.lane.b32.xlu0 %v560, 127
        %v1045 = vpop.permute.xlu0 %1044
        %1046 = vrot.lane.b32.xlu0 %v561, 127
        %v1047 = vpop.permute.xlu0 %1046
        %1048 = vrot.lane.b32.xlu0 %v562, 127
        %v1049 = vpop.permute.xlu0 %1048
        %1050 = vrot.lane.b32.xlu0 %v563, 127
        %v1051 = vpop.permute.xlu0 %1050
        %1052 = vrot.lane.b32.xlu0 %v564, 127
        %v1053 = vpop.permute.xlu0 %1052
        %1054 = vrot.lane.b32.xlu0 %v565, 127
        %v1055 = vpop.permute.xlu0 %1054
        %1056 = vrot.lane.b32.xlu0 %v566, 127
        %v1057 = vpop.permute.xlu0 %1056
        %1058 = vrot.lane.b32.xlu0 %v567, 127
        %v1059 = vpop.permute.xlu0 %1058
        %1060 = vrot.lane.b32.xlu0 %v568, 127
        %v1061 = vpop.permute.xlu0 %1060
        %1062 = vrot.lane.b32.xlu0 %v569, 127
        %v1063 = vpop.permute.xlu0 %1062
        %1064 = vrot.lane.b32.xlu0 %v570, 127
        %v1065 = vpop.permute.xlu0 %1064
        %1066 = vrot.lane.b32.xlu0 %v571, 127
        %v1067 = vpop.permute.xlu0 %1066
        %1068 = vrot.lane.b32.xlu0 %v572, 127
        %v1069 = vpop.permute.xlu0 %1068
        %1070 = vrot.lane.b32.xlu0 %v573, 127
        %v1071 = vpop.permute.xlu0 %1070
        %1072 = vrot.lane.b32.xlu0 %v574, 127
        %v1073 = vpop.permute.xlu0 %1072
        %1074 = vrot.lane.b32.xlu0 %v575, 127
        %v1075 = vpop.permute.xlu0 %1074
        %1076 = vrot.lane.b32.xlu0 %v576, 127
        %v1077 = vpop.permute.xlu0 %1076
        %1078 = vrot.lane.b32.xlu0 %v577, 127
        %v1079 = vpop.permute.xlu0 %1078
        %1080 = vrot.lane.b32.xlu0 %v578, 127
        %v1081 = vpop.permute.xlu0 %1080
        %1082 = vrot.lane.b32.xlu0 %v579, 127
        %v1083 = vpop.permute.xlu0 %1082
        %1084 = vrot.lane.b32.xlu0 %v580, 127
        %v1085 = vpop.permute.xlu0 %1084
        %1086 = vrot.lane.b32.xlu0 %v581, 127
        %v1087 = vpop.permute.xlu0 %1086
        %1088 = vrot.lane.b32.xlu0 %v582, 127
        %v1089 = vpop.permute.xlu0 %1088
        %1090 = vrot.lane.b32.xlu0 %v493, 127
        %v1091 = vpop.permute.xlu0 %1090
        %1092 = vrot.lane.b32.xlu0 %v494, 127
        %v1093 = vpop.permute.xlu0 %1092
        %vm1094 = vcmask 1039360
        %v1095 = vsel %vm1094, %v1025, %v1027
        %v1096 = vsel %vm1094, %v1027, %v1029
        %v1097 = vsel %vm1094, %v1029, %v1031
        %v1098 = vsel %vm1094, %v1031, %v1033
        %v1099 = vsel %vm1094, %v1033, %v1035
        %v1100 = vsel %vm1094, %v1035, %v1037
        %v1101 = vsel %vm1094, %v1037, %v1039
        %v1102 = vsel %vm1094, %v1039, %v1041
        %v1103 = vsel %vm1094, %v1041, %v1043
        %v1104 = vsel %vm1094, %v1043, %v1045
        %v1105 = vsel %vm1094, %v1045, %v1047
        %v1106 = vsel %vm1094, %v1047, %v1049
        %v1107 = vsel %vm1094, %v1049, %v1051
        %v1108 = vsel %vm1094, %v1051, %v1053
        %v1109 = vsel %vm1094, %v1053, %v1055
        %v1110 = vsel %vm1094, %v1055, %v1057
        %v1111 = vsel %vm1094, %v1057, %v1059
        %v1112 = vsel %vm1094, %v1059, %v1061
        %v1113 = vsel %vm1094, %v1061, %v1063
        %v1114 = vsel %vm1094, %v1063, %v1065
        %v1115 = vsel %vm1094, %v1065, %v1067
        %v1116 = vsel %vm1094, %v1067, %v1069
        %v1117 = vsel %vm1094, %v1069, %v1071
        %v1118 = vsel %vm1094, %v1071, %v1073
        %v1119 = vsel %vm1094, %v1073, %v1075
        %v1120 = vsel %vm1094, %v1075, %v1077
        %v1121 = vsel %vm1094, %v1077, %v1079
        %v1122 = vsel %vm1094, %v1079, %v1081
        %v1123 = vsel %vm1094, %v1081, %v1083
        %v1124 = vsel %vm1094, %v1083, %v1085
        %v1125 = vsel %vm1094, %v1085, %v1087
        %v1126 = vsel %vm1094, %v1087, %v1089
        %v1127 = vsel %vm1094, %v1089, %v1091
        %v1128 = vsel %vm1094, %v1091, %v1093
        %1129 = vrot.lane.b32.xlu0 %v550, 3
        %v1130 = vpop.permute.xlu0 %1129
        %vm1131 = vcmask 23552
        %v1134 = vsel %vm1131, %v1093, %v1130
        %1135 = vrot.lane.b32.xlu0 %v550, 63
        %v1136 = vpop.permute.xlu0 %1135
        %1137 = vrot.lane.b32.xlu0 %v551, 63
        %v1138 = vpop.permute.xlu0 %1137
        %1139 = vrot.lane.b32.xlu0 %v552, 63
        %v1140 = vpop.permute.xlu0 %1139
        %1141 = vrot.lane.b32.xlu0 %v553, 63
        %v1142 = vpop.permute.xlu0 %1141
        %1143 = vrot.lane.b32.xlu0 %v554, 63
        %v1144 = vpop.permute.xlu0 %1143
        %1145 = vrot.lane.b32.xlu0 %v555, 63
        %v1146 = vpop.permute.xlu0 %1145
        %1147 = vrot.lane.b32.xlu0 %v556, 63
        %v1148 = vpop.permute.xlu0 %1147
        %1149 = vrot.lane.b32.xlu0 %v557, 63
        %v1150 = vpop.permute.xlu0 %1149
        %1151 = vrot.lane.b32.xlu0 %v558, 63
        %v1152 = vpop.permute.xlu0 %1151
        %1153 = vrot.lane.b32.xlu0 %v559, 63
        %v1154 = vpop.permute.xlu0 %1153
        %1155 = vrot.lane.b32.xlu0 %v560, 63
        %v1156 = vpop.permute.xlu0 %1155
        %1157 = vrot.lane.b32.xlu0 %v561, 63
        %v1158 = vpop.permute.xlu0 %1157
        %1159 = vrot.lane.b32.xlu0 %v562, 63
        %v1160 = vpop.permute.xlu0 %1159
        %1161 = vrot.lane.b32.xlu0 %v563, 63
        %v1162 = vpop.permute.xlu0 %1161
        %1163 = vrot.lane.b32.xlu0 %v564, 63
        %v1164 = vpop.permute.xlu0 %1163
        %1165 = vrot.lane.b32.xlu0 %v565, 63
        %v1166 = vpop.permute.xlu0 %1165
        %1167 = vrot.lane.b32.xlu0 %v566, 63
        %v1168 = vpop.permute.xlu0 %1167
        %1169 = vrot.lane.b32.xlu0 %v567, 63
        %v1170 = vpop.permute.xlu0 %1169
        %1171 = vrot.lane.b32.xlu0 %v568, 63
        %v1172 = vpop.permute.xlu0 %1171
        %1173 = vrot.lane.b32.xlu0 %v569, 63
        %v1174 = vpop.permute.xlu0 %1173
        %1175 = vrot.lane.b32.xlu0 %v570, 63
        %v1176 = vpop.permute.xlu0 %1175
        %1177 = vrot.lane.b32.xlu0 %v571, 63
        %v1178 = vpop.permute.xlu0 %1177
        %1179 = vrot.lane.b32.xlu0 %v572, 63
        %v1180 = vpop.permute.xlu0 %1179
        %1181 = vrot.lane.b32.xlu0 %v573, 63
        %v1182 = vpop.permute.xlu0 %1181
        %1183 = vrot.lane.b32.xlu0 %v574, 63
        %v1184 = vpop.permute.xlu0 %1183
        %1185 = vrot.lane.b32.xlu0 %v575, 63
        %v1186 = vpop.permute.xlu0 %1185
        %1187 = vrot.lane.b32.xlu0 %v576, 63
        %v1188 = vpop.permute.xlu0 %1187
        %1189 = vrot.lane.b32.xlu0 %v577, 63
        %v1190 = vpop.permute.xlu0 %1189
        %1191 = vrot.lane.b32.xlu0 %v578, 63
        %v1192 = vpop.permute.xlu0 %1191
        %1193 = vrot.lane.b32.xlu0 %v579, 63
        %v1194 = vpop.permute.xlu0 %1193
        %1195 = vrot.lane.b32.xlu0 %v580, 63
        %v1196 = vpop.permute.xlu0 %1195
        %1197 = vrot.lane.b32.xlu0 %v581, 63
        %v1198 = vpop.permute.xlu0 %1197
        %1199 = vrot.lane.b32.xlu0 %v582, 63
        %v1200 = vpop.permute.xlu0 %1199
        %v1201 = vsel %vm499, %v1136, %v1138
        %v1202 = vsel %vm499, %v1138, %v1140
        %v1203 = vsel %vm499, %v1140, %v1142
        %v1204 = vsel %vm499, %v1142, %v1144
        %v1205 = vsel %vm499, %v1144, %v1146
        %v1206 = vsel %vm499, %v1146, %v1148
        %v1207 = vsel %vm499, %v1148, %v1150
        %v1208 = vsel %vm499, %v1150, %v1152
        %v1209 = vsel %vm499, %v1152, %v1154
        %v1210 = vsel %vm499, %v1154, %v1156
        %v1211 = vsel %vm499, %v1156, %v1158
        %v1212 = vsel %vm499, %v1158, %v1160
        %v1213 = vsel %vm499, %v1160, %v1162
        %v1214 = vsel %vm499, %v1162, %v1164
        %v1215 = vsel %vm499, %v1164, %v1166
        %v1216 = vsel %vm499, %v1166, %v1168
        %v1217 = vsel %vm499, %v1168, %v1170
        %v1218 = vsel %vm499, %v1170, %v1172
        %v1219 = vsel %vm499, %v1172, %v1174
        %v1220 = vsel %vm499, %v1174, %v1176
        %v1221 = vsel %vm499, %v1176, %v1178
        %v1222 = vsel %vm499, %v1178, %v1180
        %v1223 = vsel %vm499, %v1180, %v1182
        %v1224 = vsel %vm499, %v1182, %v1184
        %v1225 = vsel %vm499, %v1184, %v1186
        %v1226 = vsel %vm499, %v1186, %v1188
        %v1227 = vsel %vm499, %v1188, %v1190
        %v1228 = vsel %vm499, %v1190, %v1192
        %v1229 = vsel %vm499, %v1192, %v1194
        %v1230 = vsel %vm499, %v1194, %v1196
        %v1231 = vsel %vm499, %v1196, %v1198
        %v1232 = vsel %vm499, %v1198, %v1200
        %v1233 = vsel %vm499, %v1200, %v496
        %1234 = vrot.lane.b32.xlu0 %v550, 62
        %v1235 = vpop.permute.xlu0 %1234
        %1236 = vrot.lane.b32.xlu0 %v551, 62
        %v1237 = vpop.permute.xlu0 %1236
        %1238 = vrot.lane.b32.xlu0 %v552, 62
        %v1239 = vpop.permute.xlu0 %1238
        %1240 = vrot.lane.b32.xlu0 %v553, 62
        %v1241 = vpop.permute.xlu0 %1240
        %1242 = vrot.lane.b32.xlu0 %v554, 62
        %v1243 = vpop.permute.xlu0 %1242
        %1244 = vrot.lane.b32.xlu0 %v555, 62
        %v1245 = vpop.permute.xlu0 %1244
        %1246 = vrot.lane.b32.xlu0 %v556, 62
        %v1247 = vpop.permute.xlu0 %1246
        %1248 = vrot.lane.b32.xlu0 %v557, 62
        %v1249 = vpop.permute.xlu0 %1248
        %1250 = vrot.lane.b32.xlu0 %v558, 62
        %v1251 = vpop.permute.xlu0 %1250
        %1252 = vrot.lane.b32.xlu0 %v559, 62
        %v1253 = vpop.permute.xlu0 %1252
        %1254 = vrot.lane.b32.xlu0 %v560, 62
        %v1255 = vpop.permute.xlu0 %1254
        %1256 = vrot.lane.b32.xlu0 %v561, 62
        %v1257 = vpop.permute.xlu0 %1256
        %1258 = vrot.lane.b32.xlu0 %v562, 62
        %v1259 = vpop.permute.xlu0 %1258
        %1260 = vrot.lane.b32.xlu0 %v563, 62
        %v1261 = vpop.permute.xlu0 %1260
        %1262 = vrot.lane.b32.xlu0 %v564, 62
        %v1263 = vpop.permute.xlu0 %1262
        %1264 = vrot.lane.b32.xlu0 %v565, 62
        %v1265 = vpop.permute.xlu0 %1264
        %1266 = vrot.lane.b32.xlu0 %v566, 62
        %v1267 = vpop.permute.xlu0 %1266
        %1268 = vrot.lane.b32.xlu0 %v567, 62
        %v1269 = vpop.permute.xlu0 %1268
        %1270 = vrot.lane.b32.xlu0 %v568, 62
        %v1271 = vpop.permute.xlu0 %1270
        %1272 = vrot.lane.b32.xlu0 %v569, 62
        %v1273 = vpop.permute.xlu0 %1272
        %1274 = vrot.lane.b32.xlu0 %v570, 62
        %v1275 = vpop.permute.xlu0 %1274
        %1276 = vrot.lane.b32.xlu0 %v571, 62
        %v1277 = vpop.permute.xlu0 %1276
        %1278 = vrot.lane.b32.xlu0 %v572, 62
        %v1279 = vpop.permute.xlu0 %1278
        %1280 = vrot.lane.b32.xlu0 %v573, 62
        %v1281 = vpop.permute.xlu0 %1280
        %1282 = vrot.lane.b32.xlu0 %v574, 62
        %v1283 = vpop.permute.xlu0 %1282
        %1284 = vrot.lane.b32.xlu0 %v575, 62
        %v1285 = vpop.permute.xlu0 %1284
        %1286 = vrot.lane.b32.xlu0 %v576, 62
        %v1287 = vpop.permute.xlu0 %1286
        %1288 = vrot.lane.b32.xlu0 %v577, 62
        %v1289 = vpop.permute.xlu0 %1288
        %1290 = vrot.lane.b32.xlu0 %v578, 62
        %v1291 = vpop.permute.xlu0 %1290
        %1292 = vrot.lane.b32.xlu0 %v579, 62
        %v1293 = vpop.permute.xlu0 %1292
        %1294 = vrot.lane.b32.xlu0 %v580, 62
        %v1295 = vpop.permute.xlu0 %1294
        %1296 = vrot.lane.b32.xlu0 %v581, 62
        %v1297 = vpop.permute.xlu0 %1296
        %1298 = vrot.lane.b32.xlu0 %v582, 62
        %v1299 = vpop.permute.xlu0 %1298
        %v1300 = vsel %vm693, %v1235, %v1237
        %v1301 = vsel %vm693, %v1237, %v1239
        %v1302 = vsel %vm693, %v1239, %v1241
        %v1303 = vsel %vm693, %v1241, %v1243
        %v1304 = vsel %vm693, %v1243, %v1245
        %v1305 = vsel %vm693, %v1245, %v1247
        %v1306 = vsel %vm693, %v1247, %v1249
        %v1307 = vsel %vm693, %v1249, %v1251
        %v1308 = vsel %vm693, %v1251, %v1253
        %v1309 = vsel %vm693, %v1253, %v1255
        %v1310 = vsel %vm693, %v1255, %v1257
        %v1311 = vsel %vm693, %v1257, %v1259
        %v1312 = vsel %vm693, %v1259, %v1261
        %v1313 = vsel %vm693, %v1261, %v1263
        %v1314 = vsel %vm693, %v1263, %v1265
        %v1315 = vsel %vm693, %v1265, %v1267
        %v1316 = vsel %vm693, %v1267, %v1269
        %v1317 = vsel %vm693, %v1269, %v1271
        %v1318 = vsel %vm693, %v1271, %v1273
        %v1319 = vsel %vm693, %v1273, %v1275
        %v1320 = vsel %vm693, %v1275, %v1277
        %v1321 = vsel %vm693, %v1277, %v1279
        %v1322 = vsel %vm693, %v1279, %v1281
        %v1323 = vsel %vm693, %v1281, %v1283
        %v1324 = vsel %vm693, %v1283, %v1285
        %v1325 = vsel %vm693, %v1285, %v1287
        %v1326 = vsel %vm693, %v1287, %v1289
        %v1327 = vsel %vm693, %v1289, %v1291
        %v1328 = vsel %vm693, %v1291, %v1293
        %v1329 = vsel %vm693, %v1293, %v1295
        %v1330 = vsel %vm693, %v1295, %v1297
        %v1331 = vsel %vm693, %v1297, %v1299
        %v1332 = vsel %vm693, %v1299, %v690
        %1333 = vrot.lane.b32.xlu0 %v550, 61
        %v1334 = vpop.permute.xlu0 %1333
        %1335 = vrot.lane.b32.xlu0 %v551, 61
        %v1336 = vpop.permute.xlu0 %1335
        %1337 = vrot.lane.b32.xlu0 %v552, 61
        %v1338 = vpop.permute.xlu0 %1337
        %1339 = vrot.lane.b32.xlu0 %v553, 61
        %v1340 = vpop.permute.xlu0 %1339
        %1341 = vrot.lane.b32.xlu0 %v554, 61
        %v1342 = vpop.permute.xlu0 %1341
        %1343 = vrot.lane.b32.xlu0 %v555, 61
        %v1344 = vpop.permute.xlu0 %1343
        %1345 = vrot.lane.b32.xlu0 %v556, 61
        %v1346 = vpop.permute.xlu0 %1345
        %1347 = vrot.lane.b32.xlu0 %v557, 61
        %v1348 = vpop.permute.xlu0 %1347
        %1349 = vrot.lane.b32.xlu0 %v558, 61
        %v1350 = vpop.permute.xlu0 %1349
        %1351 = vrot.lane.b32.xlu0 %v559, 61
        %v1352 = vpop.permute.xlu0 %1351
        %1353 = vrot.lane.b32.xlu0 %v560, 61
        %v1354 = vpop.permute.xlu0 %1353
        %1355 = vrot.lane.b32.xlu0 %v561, 61
        %v1356 = vpop.permute.xlu0 %1355
        %1357 = vrot.lane.b32.xlu0 %v562, 61
        %v1358 = vpop.permute.xlu0 %1357
        %1359 = vrot.lane.b32.xlu0 %v563, 61
        %v1360 = vpop.permute.xlu0 %1359
        %1361 = vrot.lane.b32.xlu0 %v564, 61
        %v1362 = vpop.permute.xlu0 %1361
        %1363 = vrot.lane.b32.xlu0 %v565, 61
        %v1364 = vpop.permute.xlu0 %1363
        %1365 = vrot.lane.b32.xlu0 %v566, 61
        %v1366 = vpop.permute.xlu0 %1365
        %1367 = vrot.lane.b32.xlu0 %v567, 61
        %v1368 = vpop.permute.xlu0 %1367
        %1369 = vrot.lane.b32.xlu0 %v568, 61
        %v1370 = vpop.permute.xlu0 %1369
        %1371 = vrot.lane.b32.xlu0 %v569, 61
        %v1372 = vpop.permute.xlu0 %1371
        %1373 = vrot.lane.b32.xlu0 %v570, 61
        %v1374 = vpop.permute.xlu0 %1373
        %1375 = vrot.lane.b32.xlu0 %v571, 61
        %v1376 = vpop.permute.xlu0 %1375
        %1377 = vrot.lane.b32.xlu0 %v572, 61
        %v1378 = vpop.permute.xlu0 %1377
        %1379 = vrot.lane.b32.xlu0 %v573, 61
        %v1380 = vpop.permute.xlu0 %1379
        %1381 = vrot.lane.b32.xlu0 %v574, 61
        %v1382 = vpop.permute.xlu0 %1381
        %1383 = vrot.lane.b32.xlu0 %v575, 61
        %v1384 = vpop.permute.xlu0 %1383
        %1385 = vrot.lane.b32.xlu0 %v576, 61
        %v1386 = vpop.permute.xlu0 %1385
        %1387 = vrot.lane.b32.xlu0 %v577, 61
        %v1388 = vpop.permute.xlu0 %1387
        %1389 = vrot.lane.b32.xlu0 %v578, 61
        %v1390 = vpop.permute.xlu0 %1389
        %1391 = vrot.lane.b32.xlu0 %v579, 61
        %v1392 = vpop.permute.xlu0 %1391
        %1393 = vrot.lane.b32.xlu0 %v580, 61
        %v1394 = vpop.permute.xlu0 %1393
        %1395 = vrot.lane.b32.xlu0 %v581, 61
        %v1396 = vpop.permute.xlu0 %1395
        %1397 = vrot.lane.b32.xlu0 %v582, 61
        %v1398 = vpop.permute.xlu0 %1397
        %v1399 = vsel %vm805, %v1334, %v1336
        %v1400 = vsel %vm805, %v1336, %v1338
        %v1401 = vsel %vm805, %v1338, %v1340
        %v1402 = vsel %vm805, %v1340, %v1342
        %v1403 = vsel %vm805, %v1342, %v1344
        %v1404 = vsel %vm805, %v1344, %v1346
        %v1405 = vsel %vm805, %v1346, %v1348
        %v1406 = vsel %vm805, %v1348, %v1350
        %v1407 = vsel %vm805, %v1350, %v1352
        %v1408 = vsel %vm805, %v1352, %v1354
        %v1409 = vsel %vm805, %v1354, %v1356
        %v1410 = vsel %vm805, %v1356, %v1358
        %v1411 = vsel %vm805, %v1358, %v1360
        %v1412 = vsel %vm805, %v1360, %v1362
        %v1413 = vsel %vm805, %v1362, %v1364
        %v1414 = vsel %vm805, %v1364, %v1366
        %v1415 = vsel %vm805, %v1366, %v1368
        %v1416 = vsel %vm805, %v1368, %v1370
        %v1417 = vsel %vm805, %v1370, %v1372
        %v1418 = vsel %vm805, %v1372, %v1374
        %v1419 = vsel %vm805, %v1374, %v1376
        %v1420 = vsel %vm805, %v1376, %v1378
        %v1421 = vsel %vm805, %v1378, %v1380
        %v1422 = vsel %vm805, %v1380, %v1382
        %v1423 = vsel %vm805, %v1382, %v1384
        %v1424 = vsel %vm805, %v1384, %v1386
        %v1425 = vsel %vm805, %v1386, %v1388
        %v1426 = vsel %vm805, %v1388, %v1390
        %v1427 = vsel %vm805, %v1390, %v1392
        %v1428 = vsel %vm805, %v1392, %v1394
        %v1429 = vsel %vm805, %v1394, %v1396
        %v1430 = vsel %vm805, %v1396, %v1398
        %v1431 = vsel %vm805, %v1398, %v802
        %v1433 = vrot.slane %v800, 4
        %v1434 = vrot.slane %v764, 4
        %v1435 = vrot.slane %v765, 4
        %v1436 = vrot.slane %v766, 4
        %v1437 = vrot.slane %v767, 4
        %v1438 = vrot.slane %v768, 4
        %v1439 = vrot.slane %v769, 4
        %v1440 = vrot.slane %v770, 4
        %v1441 = vrot.slane %v771, 4
        %v1442 = vrot.slane %v772, 4
        %v1443 = vrot.slane %v773, 4
        %v1444 = vrot.slane %v774, 4
        %v1445 = vrot.slane %v775, 4
        %v1446 = vrot.slane %v776, 4
        %v1447 = vrot.slane %v777, 4
        %v1448 = vrot.slane %v778, 4
        %v1449 = vrot.slane %v779, 4
        %v1450 = vrot.slane %v780, 4
        %v1451 = vrot.slane %v781, 4
        %v1452 = vrot.slane %v782, 4
        %v1453 = vrot.slane %v783, 4
        %v1454 = vrot.slane %v784, 4
        %v1455 = vrot.slane %v785, 4
        %v1456 = vrot.slane %v786, 4
        %v1457 = vrot.slane %v787, 4
        %v1458 = vrot.slane %v788, 4
        %v1459 = vrot.slane %v789, 4
        %v1460 = vrot.slane %v790, 4
        %v1461 = vrot.slane %v791, 4
        %v1462 = vrot.slane %v792, 4
        %v1463 = vrot.slane %v793, 4
        %v1464 = vrot.slane %v794, 4
        %v1465 = vrot.slane %v795, 4
        %v1466 = vrot.slane %v796, 4
        %v1467 = vrot.slane %v762, 4
        %v1469 = vrot.slane %v1023, 4
        %v1470 = vrot.slane %v986, 4
        %v1471 = vrot.slane %v987, 4
        %v1472 = vrot.slane %v988, 4
        %v1473 = vrot.slane %v989, 4
        %v1474 = vrot.slane %v990, 4
        %v1475 = vrot.slane %v991, 4
        %v1476 = vrot.slane %v992, 4
        %v1477 = vrot.slane %v993, 4
        %v1478 = vrot.slane %v994, 4
        %v1479 = vrot.slane %v995, 4
        %v1480 = vrot.slane %v996, 4
        %v1481 = vrot.slane %v997, 4
        %v1482 = vrot.slane %v998, 4
        %v1483 = vrot.slane %v999, 4
        %v1484 = vrot.slane %v1000, 4
        %v1485 = vrot.slane %v1001, 4
        %v1486 = vrot.slane %v1002, 4
        %v1487 = vrot.slane %v1003, 4
        %v1488 = vrot.slane %v1004, 4
        %v1489 = vrot.slane %v1005, 4
        %v1490 = vrot.slane %v1006, 4
        %v1491 = vrot.slane %v1007, 4
        %v1492 = vrot.slane %v1008, 4
        %v1493 = vrot.slane %v1009, 4
        %v1494 = vrot.slane %v1010, 4
        %v1495 = vrot.slane %v1011, 4
        %v1496 = vrot.slane %v1012, 4
        %v1497 = vrot.slane %v1013, 4
        %v1498 = vrot.slane %v1014, 4
        %v1499 = vrot.slane %v1015, 4
        %v1500 = vrot.slane %v1016, 4
        %v1501 = vrot.slane %v1017, 4
        %v1502 = vrot.slane %v1018, 4
        %v1503 = vrot.slane %v1019, 4
        %v1505 = vrot.slane %v1095, 4
        %v1506 = vrot.slane %v1096, 4
        %v1507 = vrot.slane %v1097, 4
        %v1508 = vrot.slane %v1098, 4
        %v1509 = vrot.slane %v1099, 4
        %v1510 = vrot.slane %v1100, 4
        %v1511 = vrot.slane %v1101, 4
        %v1512 = vrot.slane %v1102, 4
        %v1513 = vrot.slane %v1103, 4
        %v1514 = vrot.slane %v1104, 4
        %v1515 = vrot.slane %v1105, 4
        %v1516 = vrot.slane %v1106, 4
        %v1517 = vrot.slane %v1107, 4
        %v1518 = vrot.slane %v1108, 4
        %v1519 = vrot.slane %v1109, 4
        %v1520 = vrot.slane %v1110, 4
        %v1521 = vrot.slane %v1111, 4
        %v1522 = vrot.slane %v1112, 4
        %v1523 = vrot.slane %v1113, 4
        %v1524 = vrot.slane %v1114, 4
        %v1525 = vrot.slane %v1115, 4
        %v1526 = vrot.slane %v1116, 4
        %v1527 = vrot.slane %v1117, 4
        %v1528 = vrot.slane %v1118, 4
        %v1529 = vrot.slane %v1119, 4
        %v1530 = vrot.slane %v1120, 4
        %v1531 = vrot.slane %v1121, 4
        %v1532 = vrot.slane %v1122, 4
        %v1533 = vrot.slane %v1123, 4
        %v1534 = vrot.slane %v1124, 4
        %v1535 = vrot.slane %v1125, 4
        %v1536 = vrot.slane %v1126, 4
        %v1537 = vrot.slane %v1127, 4
        %v1538 = vrot.slane %v1128, 4
        %v1539 = vrot.slane %v1134, 4
        %v1540 = vrot.slane %v1300, 4
        %v1541 = vrot.slane %v1301, 4
        %v1542 = vrot.slane %v1302, 4
        %v1543 = vrot.slane %v1303, 4
        %v1544 = vrot.slane %v1304, 4
        %v1545 = vrot.slane %v1305, 4
        %v1546 = vrot.slane %v1306, 4
        %v1547 = vrot.slane %v1307, 4
        %v1548 = vrot.slane %v1308, 4
        %v1549 = vrot.slane %v1309, 4
        %v1550 = vrot.slane %v1310, 4
        %v1551 = vrot.slane %v1311, 4
        %v1552 = vrot.slane %v1312, 4
        %v1553 = vrot.slane %v1313, 4
        %v1554 = vrot.slane %v1314, 4
        %v1555 = vrot.slane %v1315, 4
        %v1556 = vrot.slane %v1316, 4
        %v1557 = vrot.slane %v1317, 4
        %v1558 = vrot.slane %v1318, 4
        %v1559 = vrot.slane %v1319, 4
        %v1560 = vrot.slane %v1320, 4
        %v1561 = vrot.slane %v1321, 4
        %v1562 = vrot.slane %v1322, 4
        %v1563 = vrot.slane %v1323, 4
        %v1564 = vrot.slane %v1324, 4
        %v1565 = vrot.slane %v1325, 4
        %v1566 = vrot.slane %v1326, 4
        %v1567 = vrot.slane %v1327, 4
        %v1568 = vrot.slane %v1328, 4
        %v1569 = vrot.slane %v1329, 4
        %v1570 = vrot.slane %v1330, 4
        %v1571 = vrot.slane %v1331, 4
        %v1572 = vrot.slane %v1332, 4
        %v1573 = vrot.slane %v696, 4
        %vm1574 = vcmask 1043456
        %v1576 = vsel %vm1574, %v688, %v1433
        %v1580 = vsel %vm1574, %v652, %v1434
        %v1584 = vsel %vm1574, %v653, %v1435
        %v1588 = vsel %vm1574, %v654, %v1436
        %v1592 = vsel %vm1574, %v655, %v1437
        %v1596 = vsel %vm1574, %v656, %v1438
        %v1600 = vsel %vm1574, %v657, %v1439
        %v1604 = vsel %vm1574, %v658, %v1440
        %v1608 = vsel %vm1574, %v659, %v1441
        %v1612 = vsel %vm1574, %v660, %v1442
        %v1616 = vsel %vm1574, %v661, %v1443
        %v1620 = vsel %vm1574, %v662, %v1444
        %v1624 = vsel %vm1574, %v663, %v1445
        %v1628 = vsel %vm1574, %v664, %v1446
        %v1632 = vsel %vm1574, %v665, %v1447
        %v1636 = vsel %vm1574, %v666, %v1448
        %v1640 = vsel %vm1574, %v667, %v1449
        %v1644 = vsel %vm1574, %v668, %v1450
        %v1648 = vsel %vm1574, %v669, %v1451
        %v1652 = vsel %vm1574, %v670, %v1452
        %v1656 = vsel %vm1574, %v671, %v1453
        %v1660 = vsel %vm1574, %v672, %v1454
        %v1664 = vsel %vm1574, %v673, %v1455
        %v1668 = vsel %vm1574, %v674, %v1456
        %v1672 = vsel %vm1574, %v675, %v1457
        %v1676 = vsel %vm1574, %v676, %v1458
        %v1680 = vsel %vm1574, %v677, %v1459
        %v1684 = vsel %vm1574, %v678, %v1460
        %v1688 = vsel %vm1574, %v679, %v1461
        %v1692 = vsel %vm1574, %v680, %v1462
        %v1696 = vsel %vm1574, %v681, %v1463
        %v1700 = vsel %vm1574, %v682, %v1464
        %v1704 = vsel %vm1574, %v683, %v1465
        %v1708 = vsel %vm1574, %v684, %v1466
        %v1712 = vsel %vm1574, %v650, %v1467
        %v1715 = vsel %vm1574, %v912, %v1469
        %v1719 = vsel %vm1574, %v876, %v1470
        %v1723 = vsel %vm1574, %v877, %v1471
        %v1727 = vsel %vm1574, %v878, %v1472
        %v1731 = vsel %vm1574, %v879, %v1473
        %v1735 = vsel %vm1574, %v880, %v1474
        %v1739 = vsel %vm1574, %v881, %v1475
        %v1743 = vsel %vm1574, %v882, %v1476
        %v1747 = vsel %vm1574, %v883, %v1477
        %v1751 = vsel %vm1574, %v884, %v1478
        %v1755 = vsel %vm1574, %v885, %v1479
        %v1759 = vsel %vm1574, %v886, %v1480
        %v1763 = vsel %vm1574, %v887, %v1481
        %v1767 = vsel %vm1574, %v888, %v1482
        %v1771 = vsel %vm1574, %v889, %v1483
        %v1775 = vsel %vm1574, %v890, %v1484
        %v1779 = vsel %vm1574, %v891, %v1485
        %v1783 = vsel %vm1574, %v892, %v1486
        %v1787 = vsel %vm1574, %v893, %v1487
        %v1791 = vsel %vm1574, %v894, %v1488
        %v1795 = vsel %vm1574, %v895, %v1489
        %v1799 = vsel %vm1574, %v896, %v1490
        %v1803 = vsel %vm1574, %v897, %v1491
        %v1807 = vsel %vm1574, %v898, %v1492
        %v1811 = vsel %vm1574, %v899, %v1493
        %v1815 = vsel %vm1574, %v900, %v1494
        %v1819 = vsel %vm1574, %v901, %v1495
        %v1823 = vsel %vm1574, %v902, %v1496
        %v1827 = vsel %vm1574, %v903, %v1497
        %v1831 = vsel %vm1574, %v904, %v1498
        %v1835 = vsel %vm1574, %v905, %v1499
        %v1839 = vsel %vm1574, %v906, %v1500
        %v1843 = vsel %vm1574, %v907, %v1501
        %v1847 = vsel %vm1574, %v908, %v1502
        %v1851 = vsel %vm1574, %v874, %v1503
        %v1855 = vsel %vm1574, %v550, %v1505
        %v1859 = vsel %vm1574, %v551, %v1506
        %v1863 = vsel %vm1574, %v552, %v1507
        %v1867 = vsel %vm1574, %v553, %v1508
        %v1871 = vsel %vm1574, %v554, %v1509
        %v1875 = vsel %vm1574, %v555, %v1510
        %v1879 = vsel %vm1574, %v556, %v1511
        %v1883 = vsel %vm1574, %v557, %v1512
        %v1887 = vsel %vm1574, %v558, %v1513
        %v1891 = vsel %vm1574, %v559, %v1514
        %v1895 = vsel %vm1574, %v560, %v1515
        %v1899 = vsel %vm1574, %v561, %v1516
        %v1903 = vsel %vm1574, %v562, %v1517
        %v1907 = vsel %vm1574, %v563, %v1518
        %v1911 = vsel %vm1574, %v564, %v1519
        %v1915 = vsel %vm1574, %v565, %v1520
        %v1919 = vsel %vm1574, %v566, %v1521
        %v1923 = vsel %vm1574, %v567, %v1522
        %v1927 = vsel %vm1574, %v568, %v1523
        %v1931 = vsel %vm1574, %v569, %v1524
        %v1935 = vsel %vm1574, %v570, %v1525
        %v1939 = vsel %vm1574, %v571, %v1526
        %v1943 = vsel %vm1574, %v572, %v1527
        %v1947 = vsel %vm1574, %v573, %v1528
        %v1951 = vsel %vm1574, %v574, %v1529
        %v1955 = vsel %vm1574, %v575, %v1530
        %v1959 = vsel %vm1574, %v576, %v1531
        %v1963 = vsel %vm1574, %v577, %v1532
        %v1967 = vsel %vm1574, %v578, %v1533
        %v1971 = vsel %vm1574, %v579, %v1534
        %v1975 = vsel %vm1574, %v580, %v1535
        %v1979 = vsel %vm1574, %v581, %v1536
        %v1983 = vsel %vm1574, %v582, %v1537
        %v1987 = vsel %vm1574, %v493, %v1538
        %v1991 = vsel %vm1574, %v494, %v1539
        %v1995 = vsel %vm1574, %v1201, %v1540
        %v1999 = vsel %vm1574, %v1202, %v1541
        %v2003 = vsel %vm1574, %v1203, %v1542
        %v2007 = vsel %vm1574, %v1204, %v1543
        %v2011 = vsel %vm1574, %v1205, %v1544
        %v2015 = vsel %vm1574, %v1206, %v1545
        %v2019 = vsel %vm1574, %v1207, %v1546
        %v2023 = vsel %vm1574, %v1208, %v1547
        %v2027 = vsel %vm1574, %v1209, %v1548
        %v2031 = vsel %vm1574, %v1210, %v1549
        %v2035 = vsel %vm1574, %v1211, %v1550
        %v2039 = vsel %vm1574, %v1212, %v1551
        %v2043 = vsel %vm1574, %v1213, %v1552
        %v2047 = vsel %vm1574, %v1214, %v1553
        %v2051 = vsel %vm1574, %v1215, %v1554
        %v2055 = vsel %vm1574, %v1216, %v1555
        %v2059 = vsel %vm1574, %v1217, %v1556
        %v2063 = vsel %vm1574, %v1218, %v1557
        %v2067 = vsel %vm1574, %v1219, %v1558
        %v2071 = vsel %vm1574, %v1220, %v1559
        %v2075 = vsel %vm1574, %v1221, %v1560
        %v2079 = vsel %vm1574, %v1222, %v1561
        %v2083 = vsel %vm1574, %v1223, %v1562
        %v2087 = vsel %vm1574, %v1224, %v1563
        %v2091 = vsel %vm1574, %v1225, %v1564
        %v2095 = vsel %vm1574, %v1226, %v1565
        %v2099 = vsel %vm1574, %v1227, %v1566
        %v2103 = vsel %vm1574, %v1228, %v1567
        %v2107 = vsel %vm1574, %v1229, %v1568
        %v2111 = vsel %vm1574, %v1230, %v1569
        %v2115 = vsel %vm1574, %v1231, %v1570
        %v2119 = vsel %vm1574, %v1232, %v1571
        %v2123 = vsel %vm1574, %v1233, %v1572
        %v2126 = vsel %vm1574, %v584, %v1573
        %v2128 = vld [vmem:[%s2] sm:$0xf]
        %v2129 = vld [vmem:[%s3] sm:$0xff]
        %2131 = vset.pattern.permute.xlu0 0
        %2132 = vperm.xlu0 %2131, %v2129
        %v2133 = vpop.permute.xlu0 %2132
        %vm2135 = vcmask 588800
        %v2137 = vsel %vm2135, %v2128, 0
        %v2140 = vsel %vm1574, %v1399, 0
        %v2143 = vsel %vm1574, %v1400, 0
        %v2146 = vsel %vm1574, %v1401, 0
        %v2149 = vsel %vm1574, %v1402, 0
        %v2152 = vsel %vm1574, %v1403, 0
        %v2155 = vsel %vm1574, %v1404, 0
        %v2158 = vsel %vm1574, %v1405, 0
        %v2161 = vsel %vm1574, %v1406, 0
        %v2164 = vsel %vm1574, %v1407, 0
        %v2167 = vsel %vm1574, %v1408, 0
        %v2170 = vsel %vm1574, %v1409, 0
        %v2173 = vsel %vm1574, %v1410, 0
        %v2176 = vsel %vm1574, %v1411, 0
        %v2179 = vsel %vm1574, %v1412, 0
        %v2182 = vsel %vm1574, %v1413, 0
        %v2185 = vsel %vm1574, %v1414, 0
        %v2188 = vsel %vm1574, %v1415, 0
        %v2191 = vsel %vm1574, %v1416, 0
        %v2194 = vsel %vm1574, %v1417, 0
        %v2197 = vsel %vm1574, %v1418, 0
        %v2200 = vsel %vm1574, %v1419, 0
        %v2203 = vsel %vm1574, %v1420, 0
        %v2206 = vsel %vm1574, %v1421, 0
        %v2209 = vsel %vm1574, %v1422, 0
        %v2212 = vsel %vm1574, %v1423, 0
        %v2215 = vsel %vm1574, %v1424, 0
        %v2218 = vsel %vm1574, %v1425, 0
        %v2221 = vsel %vm1574, %v1426, 0
        %v2224 = vsel %vm1574, %v1427, 0
        %v2227 = vsel %vm1574, %v1428, 0
        %v2230 = vsel %vm1574, %v1429, 0
        %v2233 = vsel %vm1574, %v1430, 0
        %v2236 = vsel %vm1574, %v1431, 0
        %v2238 = vsel %vm1574, %v912, 0
        %v2240 = vsel %vm1574, %v808, 0
        %2242 = vmatpush.bf16.msra.mxu0 0
        %2243 = vmatpush.bf16.msra.mxu0 0
        %2244 = vmatpush.bf16.msra.mxu0 0
        %2245 = vmatpush.bf16.msra.mxu0 %v2140
        %2246 = vmatpush.bf16.msra.mxu0 %v1995
        %2247 = vmatpush.bf16.msra.mxu0 %v1855
        %2248 = vmatpush.bf16.msra.mxu0 %v1715
        %2249 = vmatpush.bf16.msra.mxu0 %v1576
        %2250 = vmatmul.bf16.gmra.mxu0 %v2137
        %v2251 = vpop.f32.mrf.mxu0
        %v2252 = vadd.f32 %v2133, %v2251
        %v2253 = vpop.f32.mrf.mxu0
        %2254 = vdwg.mxu0
        %2255 = vmatpush.bf16.msra.mxu0 0
        %2256 = vmatpush.bf16.msra.mxu0 0
        %2257 = vmatpush.bf16.msra.mxu0 0
        %2258 = vmatpush.bf16.msra.mxu0 %v2143
        %2259 = vmatpush.bf16.msra.mxu0 %v1999
        %2260 = vmatpush.bf16.msra.mxu0 %v1859
        %2261 = vmatpush.bf16.msra.mxu0 %v1719
        %2262 = vmatpush.bf16.msra.mxu0 %v1580
        %2263 = vmatmul.bf16.gmra.mxu0 %v2137
        %v2264 = vpop.f32.mrf.mxu0
        %v2265 = vadd.f32 %v2133, %v2264
        %v2266 = vpop.f32.mrf.mxu0
        %2267 = vdwg.mxu0
        %2268 = vmatpush.bf16.msra.mxu0 0
        %2269 = vmatpush.bf16.msra.mxu0 0
        %2270 = vmatpush.bf16.msra.mxu0 0
        %2271 = vmatpush.bf16.msra.mxu0 %v2146
        %2272 = vmatpush.bf16.msra.mxu0 %v2003
        %2273 = vmatpush.bf16.msra.mxu0 %v1863
        %2274 = vmatpush.bf16.msra.mxu0 %v1723
        %2275 = vmatpush.bf16.msra.mxu0 %v1584
        %2276 = vmatmul.bf16.gmra.mxu0 %v2137
        %v2277 = vpop.f32.mrf.mxu0
        %v2278 = vadd.f32 %v2133, %v2277
        %v2279 = vpop.f32.mrf.mxu0
        %2280 = vdwg.mxu0
        %2281 = vmatpush.bf16.msra.mxu0 0
        %2282 = vmatpush.bf16.msra.mxu0 0
        %2283 = vmatpush.bf16.msra.mxu0 0
        %2284 = vmatpush.bf16.msra.mxu0 %v2149
        %2285 = vmatpush.bf16.msra.mxu0 %v2007
        %2286 = vmatpush.bf16.msra.mxu0 %v1867
        %2287 = vmatpush.bf16.msra.mxu0 %v1727
        %2288 = vmatpush.bf16.msra.mxu0 %v1588
        %2289 = vmatmul.bf16.gmra.mxu0 %v2137
        %v2290 = vpop.f32.mrf.mxu0
        %v2291 = vadd.f32 %v2133, %v2290
        %v2292 = vpop.f32.mrf.mxu0
        %2293 = vdwg.mxu0
        %2294 = vmatpush.bf16.msra.mxu0 0
        %2295 = vmatpush.bf16.msra.mxu0 0
        %2296 = vmatpush.bf16.msra.mxu0 0
        %2297 = vmatpush.bf16.msra.mxu0 %v2152
        %2298 = vmatpush.bf16.msra.mxu0 %v2011
        %2299 = vmatpush.bf16.msra.mxu0 %v1871
        %2300 = vmatpush.bf16.msra.mxu0 %v1731
        %2301 = vmatpush.bf16.msra.mxu0 %v1592
        %2302 = vmatmul.bf16.gmra.mxu0 %v2137
        %v2303 = vpop.f32.mrf.mxu0
        %v2304 = vadd.f32 %v2133, %v2303
        %v2305 = vpop.f32.mrf.mxu0
        %2306 = vdwg.mxu0
        %2307 = vmatpush.bf16.msra.mxu0 0
        %2308 = vmatpush.bf16.msra.mxu0 0
        %2309 = vmatpush.bf16.msra.mxu0 0
        %2310 = vmatpush.bf16.msra.mxu0 %v2155
        %2311 = vmatpush.bf16.msra.mxu0 %v2015
        %2312 = vmatpush.bf16.msra.mxu0 %v1875
        %2313 = vmatpush.bf16.msra.mxu0 %v1735
        %2314 = vmatpush.bf16.msra.mxu0 %v1596
        %2315 = vmatmul.bf16.gmra.mxu0 %v2137
        %v2316 = vpop.f32.mrf.mxu0
        %v2317 = vadd.f32 %v2133, %v2316
        %v2318 = vpop.f32.mrf.mxu0
        %2319 = vdwg.mxu0
        %2320 = vmatpush.bf16.msra.mxu0 0
        %2321 = vmatpush.bf16.msra.mxu0 0
        %2322 = vmatpush.bf16.msra.mxu0 0
        %2323 = vmatpush.bf16.msra.mxu0 %v2158
        %2324 = vmatpush.bf16.msra.mxu0 %v2019
        %2325 = vmatpush.bf16.msra.mxu0 %v1879
        %2326 = vmatpush.bf16.msra.mxu0 %v1739
        %2327 = vmatpush.bf16.msra.mxu0 %v1600
        %2328 = vmatmul.bf16.gmra.mxu0 %v2137
        %v2329 = vpop.f32.mrf.mxu0
        %v2330 = vadd.f32 %v2133, %v2329
        %v2331 = vpop.f32.mrf.mxu0
        %2332 = vdwg.mxu0
        %2333 = vmatpush.bf16.msra.mxu0 0
        %2334 = vmatpush.bf16.msra.mxu0 0
        %2335 = vmatpush.bf16.msra.mxu0 0
        %2336 = vmatpush.bf16.msra.mxu0 %v2161
        %2337 = vmatpush.bf16.msra.mxu0 %v2023
        %2338 = vmatpush.bf16.msra.mxu0 %v1883
        %2339 = vmatpush.bf16.msra.mxu0 %v1743
        %2340 = vmatpush.bf16.msra.mxu0 %v1604
        %2341 = vmatmul.bf16.gmra.mxu0 %v2137
        %v2342 = vpop.f32.mrf.mxu0
        %v2343 = vadd.f32 %v2133, %v2342
        %v2344 = vpop.f32.mrf.mxu0
        %2345 = vdwg.mxu0
        %2346 = vmatpush.bf16.msra.mxu0 0
        %2347 = vmatpush.bf16.msra.mxu0 0
        %2348 = vmatpush.bf16.msra.mxu0 0
        %2349 = vmatpush.bf16.msra.mxu0 %v2164
        %2350 = vmatpush.bf16.msra.mxu0 %v2027
        %2351 = vmatpush.bf16.msra.mxu0 %v1887
        %2352 = vmatpush.bf16.msra.mxu0 %v1747
        %2353 = vmatpush.bf16.msra.mxu0 %v1608
        %2354 = vmatmul.bf16.gmra.mxu0 %v2137
        %v2355 = vpop.f32.mrf.mxu0
        %v2356 = vadd.f32 %v2133, %v2355
        %v2357 = vpop.f32.mrf.mxu0
        %2358 = vdwg.mxu0
        %2359 = vmatpush.bf16.msra.mxu0 0
        %2360 = vmatpush.bf16.msra.mxu0 0
        %2361 = vmatpush.bf16.msra.mxu0 0
        %2362 = vmatpush.bf16.msra.mxu0 %v2167
        %2363 = vmatpush.bf16.msra.mxu0 %v2031
        %2364 = vmatpush.bf16.msra.mxu0 %v1891
        %2365 = vmatpush.bf16.msra.mxu0 %v1751
        %2366 = vmatpush.bf16.msra.mxu0 %v1612
        %2367 = vmatmul.bf16.gmra.mxu0 %v2137
        %v2368 = vpop.f32.mrf.mxu0
        %v2369 = vadd.f32 %v2133, %v2368
        %v2370 = vpop.f32.mrf.mxu0
        %2371 = vdwg.mxu0
        %2372 = vmatpush.bf16.msra.mxu0 0
        %2373 = vmatpush.bf16.msra.mxu0 0
        %2374 = vmatpush.bf16.msra.mxu0 0
        %2375 = vmatpush.bf16.msra.mxu0 %v2170
        %2376 = vmatpush.bf16.msra.mxu0 %v2035
        %2377 = vmatpush.bf16.msra.mxu0 %v1895
        %2378 = vmatpush.bf16.msra.mxu0 %v1755
        %2379 = vmatpush.bf16.msra.mxu0 %v1616
        %2380 = vmatmul.bf16.gmra.mxu0 %v2137
        %v2381 = vpop.f32.mrf.mxu0
        %v2382 = vadd.f32 %v2133, %v2381
        %v2383 = vpop.f32.mrf.mxu0
        %2384 = vdwg.mxu0
        %2385 = vmatpush.bf16.msra.mxu0 0
        %2386 = vmatpush.bf16.msra.mxu0 0
        %2387 = vmatpush.bf16.msra.mxu0 0
        %2388 = vmatpush.bf16.msra.mxu0 %v2173
        %2389 = vmatpush.bf16.msra.mxu0 %v2039
        %2390 = vmatpush.bf16.msra.mxu0 %v1899
        %2391 = vmatpush.bf16.msra.mxu0 %v1759
        %2392 = vmatpush.bf16.msra.mxu0 %v1620
        %2393 = vmatmul.bf16.gmra.mxu0 %v2137
        %v2394 = vpop.f32.mrf.mxu0
        %v2395 = vadd.f32 %v2133, %v2394
        %v2396 = vpop.f32.mrf.mxu0
        %2397 = vdwg.mxu0
        %2398 = vmatpush.bf16.msra.mxu0 0
        %2399 = vmatpush.bf16.msra.mxu0 0
        %2400 = vmatpush.bf16.msra.mxu0 0
        %2401 = vmatpush.bf16.msra.mxu0 %v2176
        %2402 = vmatpush.bf16.msra.mxu0 %v2043
        %2403 = vmatpush.bf16.msra.mxu0 %v1903
        %2404 = vmatpush.bf16.msra.mxu0 %v1763
        %2405 = vmatpush.bf16.msra.mxu0 %v1624
        %2406 = vmatmul.bf16.gmra.mxu0 %v2137
        %v2407 = vpop.f32.mrf.mxu0
        %v2408 = vadd.f32 %v2133, %v2407
        %v2409 = vpop.f32.mrf.mxu0
        %2410 = vdwg.mxu0
        %2411 = vmatpush.bf16.msra.mxu0 0
        %2412 = vmatpush.bf16.msra.mxu0 0
        %2413 = vmatpush.bf16.msra.mxu0 0
        %2414 = vmatpush.bf16.msra.mxu0 %v2179
        %2415 = vmatpush.bf16.msra.mxu0 %v2047
        %2416 = vmatpush.bf16.msra.mxu0 %v1907
        %2417 = vmatpush.bf16.msra.mxu0 %v1767
        %2418 = vmatpush.bf16.msra.mxu0 %v1628
        %2419 = vmatmul.bf16.gmra.mxu0 %v2137
        %v2420 = vpop.f32.mrf.mxu0
        %v2421 = vadd.f32 %v2133, %v2420
        %v2422 = vpop.f32.mrf.mxu0
        %2423 = vdwg.mxu0
        %2424 = vmatpush.bf16.msra.mxu0 0
        %2425 = vmatpush.bf16.msra.mxu0 0
        %2426 = vmatpush.bf16.msra.mxu0 0
        %2427 = vmatpush.bf16.msra.mxu0 %v2182
        %2428 = vmatpush.bf16.msra.mxu0 %v2051
        %2429 = vmatpush.bf16.msra.mxu0 %v1911
        %2430 = vmatpush.bf16.msra.mxu0 %v1771
        %2431 = vmatpush.bf16.msra.mxu0 %v1632
        %2432 = vmatmul.bf16.gmra.mxu0 %v2137
        %v2433 = vpop.f32.mrf.mxu0
        %v2434 = vadd.f32 %v2133, %v2433
        %v2435 = vpop.f32.mrf.mxu0
        %2436 = vdwg.mxu0
        %2437 = vmatpush.bf16.msra.mxu0 0
        %2438 = vmatpush.bf16.msra.mxu0 0
        %2439 = vmatpush.bf16.msra.mxu0 0
        %2440 = vmatpush.bf16.msra.mxu0 %v2185
        %2441 = vmatpush.bf16.msra.mxu0 %v2055
        %2442 = vmatpush.bf16.msra.mxu0 %v1915
        %2443 = vmatpush.bf16.msra.mxu0 %v1775
        %2444 = vmatpush.bf16.msra.mxu0 %v1636
        %2445 = vmatmul.bf16.gmra.mxu0 %v2137
        %v2446 = vpop.f32.mrf.mxu0
        %v2447 = vadd.f32 %v2133, %v2446
        %v2448 = vpop.f32.mrf.mxu0
        %2449 = vdwg.mxu0
        %2450 = vmatpush.bf16.msra.mxu0 0
        %2451 = vmatpush.bf16.msra.mxu0 0
        %2452 = vmatpush.bf16.msra.mxu0 0
        %2453 = vmatpush.bf16.msra.mxu0 %v2188
        %2454 = vmatpush.bf16.msra.mxu0 %v2059
        %2455 = vmatpush.bf16.msra.mxu0 %v1919
        %2456 = vmatpush.bf16.msra.mxu0 %v1779
        %2457 = vmatpush.bf16.msra.mxu0 %v1640
        %2458 = vmatmul.bf16.gmra.mxu0 %v2137
        %v2459 = vpop.f32.mrf.mxu0
        %v2460 = vadd.f32 %v2133, %v2459
        %v2461 = vpop.f32.mrf.mxu0
        %2462 = vdwg.mxu0
        %2463 = vmatpush.bf16.msra.mxu0 0
        %2464 = vmatpush.bf16.msra.mxu0 0
        %2465 = vmatpush.bf16.msra.mxu0 0
        %2466 = vmatpush.bf16.msra.mxu0 %v2191
        %2467 = vmatpush.bf16.msra.mxu0 %v2063
        %2468 = vmatpush.bf16.msra.mxu0 %v1923
        %2469 = vmatpush.bf16.msra.mxu0 %v1783
        %2470 = vmatpush.bf16.msra.mxu0 %v1644
        %2471 = vmatmul.bf16.gmra.mxu0 %v2137
        %v2472 = vpop.f32.mrf.mxu0
        %v2473 = vadd.f32 %v2133, %v2472
        %v2474 = vpop.f32.mrf.mxu0
        %2475 = vdwg.mxu0
        %2476 = vmatpush.bf16.msra.mxu0 0
        %2477 = vmatpush.bf16.msra.mxu0 0
        %2478 = vmatpush.bf16.msra.mxu0 0
        %2479 = vmatpush.bf16.msra.mxu0 %v2194
        %2480 = vmatpush.bf16.msra.mxu0 %v2067
        %2481 = vmatpush.bf16.msra.mxu0 %v1927
        %2482 = vmatpush.bf16.msra.mxu0 %v1787
        %2483 = vmatpush.bf16.msra.mxu0 %v1648
        %2484 = vmatmul.bf16.gmra.mxu0 %v2137
        %v2485 = vpop.f32.mrf.mxu0
        %v2486 = vadd.f32 %v2133, %v2485
        %v2487 = vpop.f32.mrf.mxu0
        %2488 = vdwg.mxu0
        %2489 = vmatpush.bf16.msra.mxu0 0
        %2490 = vmatpush.bf16.msra.mxu0 0
        %2491 = vmatpush.bf16.msra.mxu0 0
        %2492 = vmatpush.bf16.msra.mxu0 %v2197
        %2493 = vmatpush.bf16.msra.mxu0 %v2071
        %2494 = vmatpush.bf16.msra.mxu0 %v1931
        %2495 = vmatpush.bf16.msra.mxu0 %v1791
        %2496 = vmatpush.bf16.msra.mxu0 %v1652
        %2497 = vmatmul.bf16.gmra.mxu0 %v2137
        %v2498 = vpop.f32.mrf.mxu0
        %v2499 = vadd.f32 %v2133, %v2498
        %v2500 = vpop.f32.mrf.mxu0
        %2501 = vdwg.mxu0
        %2502 = vmatpush.bf16.msra.mxu0 0
        %2503 = vmatpush.bf16.msra.mxu0 0
        %2504 = vmatpush.bf16.msra.mxu0 0
        %2505 = vmatpush.bf16.msra.mxu0 %v2200
        %2506 = vmatpush.bf16.msra.mxu0 %v2075
        %2507 = vmatpush.bf16.msra.mxu0 %v1935
        %2508 = vmatpush.bf16.msra.mxu0 %v1795
        %2509 = vmatpush.bf16.msra.mxu0 %v1656
        %2510 = vmatmul.bf16.gmra.mxu0 %v2137
        %v2511 = vpop.f32.mrf.mxu0
        %v2512 = vadd.f32 %v2133, %v2511
        %v2513 = vpop.f32.mrf.mxu0
        %2514 = vdwg.mxu0
        %2515 = vmatpush.bf16.msra.mxu0 0
        %2516 = vmatpush.bf16.msra.mxu0 0
        %2517 = vmatpush.bf16.msra.mxu0 0
        %2518 = vmatpush.bf16.msra.mxu0 %v2203
        %2519 = vmatpush.bf16.msra.mxu0 %v2079
        %2520 = vmatpush.bf16.msra.mxu0 %v1939
        %2521 = vmatpush.bf16.msra.mxu0 %v1799
        %2522 = vmatpush.bf16.msra.mxu0 %v1660
        %2523 = vmatmul.bf16.gmra.mxu0 %v2137
        %v2524 = vpop.f32.mrf.mxu0
        %v2525 = vadd.f32 %v2133, %v2524
        %v2526 = vpop.f32.mrf.mxu0
        %2527 = vdwg.mxu0
        %2528 = vmatpush.bf16.msra.mxu0 0
        %2529 = vmatpush.bf16.msra.mxu0 0
        %2530 = vmatpush.bf16.msra.mxu0 0
        %2531 = vmatpush.bf16.msra.mxu0 %v2206
        %2532 = vmatpush.bf16.msra.mxu0 %v2083
        %2533 = vmatpush.bf16.msra.mxu0 %v1943
        %2534 = vmatpush.bf16.msra.mxu0 %v1803
        %2535 = vmatpush.bf16.msra.mxu0 %v1664
        %2536 = vmatmul.bf16.gmra.mxu0 %v2137
        %v2537 = vpop.f32.mrf.mxu0
        %v2538 = vadd.f32 %v2133, %v2537
        %v2539 = vpop.f32.mrf.mxu0
        %2540 = vdwg.mxu0
        %2541 = vmatpush.bf16.msra.mxu0 0
        %2542 = vmatpush.bf16.msra.mxu0 0
        %2543 = vmatpush.bf16.msra.mxu0 0
        %2544 = vmatpush.bf16.msra.mxu0 %v2209
        %2545 = vmatpush.bf16.msra.mxu0 %v2087
        %2546 = vmatpush.bf16.msra.mxu0 %v1947
        %2547 = vmatpush.bf16.msra.mxu0 %v1807
        %2548 = vmatpush.bf16.msra.mxu0 %v1668
        %2549 = vmatmul.bf16.gmra.mxu0 %v2137
        %v2550 = vpop.f32.mrf.mxu0
        %v2551 = vadd.f32 %v2133, %v2550
        %v2552 = vpop.f32.mrf.mxu0
        %2553 = vdwg.mxu0
        %2554 = vmatpush.bf16.msra.mxu0 0
        %2555 = vmatpush.bf16.msra.mxu0 0
        %2556 = vmatpush.bf16.msra.mxu0 0
        %2557 = vmatpush.bf16.msra.mxu0 %v2212
        %2558 = vmatpush.bf16.msra.mxu0 %v2091
        %2559 = vmatpush.bf16.msra.mxu0 %v1951
        %2560 = vmatpush.bf16.msra.mxu0 %v1811
        %2561 = vmatpush.bf16.msra.mxu0 %v1672
        %2562 = vmatmul.bf16.gmra.mxu0 %v2137
        %v2563 = vpop.f32.mrf.mxu0
        %v2564 = vadd.f32 %v2133, %v2563
        %v2565 = vpop.f32.mrf.mxu0
        %2566 = vdwg.mxu0
        %2567 = vmatpush.bf16.msra.mxu0 0
        %2568 = vmatpush.bf16.msra.mxu0 0
        %2569 = vmatpush.bf16.msra.mxu0 0
        %2570 = vmatpush.bf16.msra.mxu0 %v2215
        %2571 = vmatpush.bf16.msra.mxu0 %v2095
        %2572 = vmatpush.bf16.msra.mxu0 %v1955
        %2573 = vmatpush.bf16.msra.mxu0 %v1815
        %2574 = vmatpush.bf16.msra.mxu0 %v1676
        %2575 = vmatmul.bf16.gmra.mxu0 %v2137
        %v2576 = vpop.f32.mrf.mxu0
        %v2577 = vadd.f32 %v2133, %v2576
        %v2578 = vpop.f32.mrf.mxu0
        %2579 = vdwg.mxu0
        %2580 = vmatpush.bf16.msra.mxu0 0
        %2581 = vmatpush.bf16.msra.mxu0 0
        %2582 = vmatpush.bf16.msra.mxu0 0
        %2583 = vmatpush.bf16.msra.mxu0 %v2218
        %2584 = vmatpush.bf16.msra.mxu0 %v2099
        %2585 = vmatpush.bf16.msra.mxu0 %v1959
        %2586 = vmatpush.bf16.msra.mxu0 %v1819
        %2587 = vmatpush.bf16.msra.mxu0 %v1680
        %2588 = vmatmul.bf16.gmra.mxu0 %v2137
        %v2589 = vpop.f32.mrf.mxu0
        %v2590 = vadd.f32 %v2133, %v2589
        %v2591 = vpop.f32.mrf.mxu0
        %2592 = vdwg.mxu0
        %2593 = vmatpush.bf16.msra.mxu0 0
        %2594 = vmatpush.bf16.msra.mxu0 0
        %2595 = vmatpush.bf16.msra.mxu0 0
        %2596 = vmatpush.bf16.msra.mxu0 %v2221
        %2597 = vmatpush.bf16.msra.mxu0 %v2103
        %2598 = vmatpush.bf16.msra.mxu0 %v1963
        %2599 = vmatpush.bf16.msra.mxu0 %v1823
        %2600 = vmatpush.bf16.msra.mxu0 %v1684
        %2601 = vmatmul.bf16.gmra.mxu0 %v2137
        %v2602 = vpop.f32.mrf.mxu0
        %v2603 = vadd.f32 %v2133, %v2602
        %v2604 = vpop.f32.mrf.mxu0
        %2605 = vdwg.mxu0
        %2606 = vmatpush.bf16.msra.mxu0 0
        %2607 = vmatpush.bf16.msra.mxu0 0
        %2608 = vmatpush.bf16.msra.mxu0 0
        %2609 = vmatpush.bf16.msra.mxu0 %v2224
        %2610 = vmatpush.bf16.msra.mxu0 %v2107
        %2611 = vmatpush.bf16.msra.mxu0 %v1967
        %2612 = vmatpush.bf16.msra.mxu0 %v1827
        %2613 = vmatpush.bf16.msra.mxu0 %v1688
        %2614 = vmatmul.bf16.gmra.mxu0 %v2137
        %v2615 = vpop.f32.mrf.mxu0
        %v2616 = vadd.f32 %v2133, %v2615
        %v2617 = vpop.f32.mrf.mxu0
        %2618 = vdwg.mxu0
        %2619 = vmatpush.bf16.msra.mxu0 0
        %2620 = vmatpush.bf16.msra.mxu0 0
        %2621 = vmatpush.bf16.msra.mxu0 0
        %2622 = vmatpush.bf16.msra.mxu0 %v2227
        %2623 = vmatpush.bf16.msra.mxu0 %v2111
        %2624 = vmatpush.bf16.msra.mxu0 %v1971
        %2625 = vmatpush.bf16.msra.mxu0 %v1831
        %2626 = vmatpush.bf16.msra.mxu0 %v1692
        %2627 = vmatmul.bf16.gmra.mxu0 %v2137
        %v2628 = vpop.f32.mrf.mxu0
        %v2629 = vadd.f32 %v2133, %v2628
        %v2630 = vpop.f32.mrf.mxu0
        %2631 = vdwg.mxu0
        %2632 = vmatpush.bf16.msra.mxu0 0
        %2633 = vmatpush.bf16.msra.mxu0 0
        %2634 = vmatpush.bf16.msra.mxu0 0
        %2635 = vmatpush.bf16.msra.mxu0 %v2230
        %2636 = vmatpush.bf16.msra.mxu0 %v2115
        %2637 = vmatpush.bf16.msra.mxu0 %v1975
        %2638 = vmatpush.bf16.msra.mxu0 %v1835
        %2639 = vmatpush.bf16.msra.mxu0 %v1696
        %2640 = vmatmul.bf16.gmra.mxu0 %v2137
        %v2641 = vpop.f32.mrf.mxu0
        %v2642 = vadd.f32 %v2133, %v2641
        %v2643 = vpop.f32.mrf.mxu0
        %2644 = vdwg.mxu0
        %2645 = vmatpush.bf16.msra.mxu0 0
        %2646 = vmatpush.bf16.msra.mxu0 0
        %2647 = vmatpush.bf16.msra.mxu0 0
        %2648 = vmatpush.bf16.msra.mxu0 %v2233
        %2649 = vmatpush.bf16.msra.mxu0 %v2119
        %2650 = vmatpush.bf16.msra.mxu0 %v1979
        %2651 = vmatpush.bf16.msra.mxu0 %v1839
        %2652 = vmatpush.bf16.msra.mxu0 %v1700
        %2653 = vmatmul.bf16.gmra.mxu0 %v2137
        %v2654 = vpop.f32.mrf.mxu0
        %v2655 = vadd.f32 %v2133, %v2654
        %v2656 = vpop.f32.mrf.mxu0
        %2657 = vdwg.mxu0
        %2658 = vmatpush.bf16.msra.mxu0 0
        %2659 = vmatpush.bf16.msra.mxu0 0
        %2660 = vmatpush.bf16.msra.mxu0 0
        %2661 = vmatpush.bf16.msra.mxu0 %v2236
        %2662 = vmatpush.bf16.msra.mxu0 %v2123
        %2663 = vmatpush.bf16.msra.mxu0 %v1983
        %2664 = vmatpush.bf16.msra.mxu0 %v1843
        %2665 = vmatpush.bf16.msra.mxu0 %v1704
        %2666 = vmatmul.bf16.gmra.mxu0 %v2137
        %v2667 = vpop.f32.mrf.mxu0
        %v2668 = vadd.f32 %v2133, %v2667
        %v2669 = vpop.f32.mrf.mxu0
        %2670 = vdwg.mxu0
        %2671 = vmatpush.bf16.msra.mxu0 0
        %2672 = vmatpush.bf16.msra.mxu0 0
        %2673 = vmatpush.bf16.msra.mxu0 0
        %2674 = vmatpush.bf16.msra.mxu0 %v2238
        %2675 = vmatpush.bf16.msra.mxu0 %v1576
        %2676 = vmatpush.bf16.msra.mxu0 %v1987
        %2677 = vmatpush.bf16.msra.mxu0 %v1847
        %2678 = vmatpush.bf16.msra.mxu0 %v1708
        %2679 = vmatmul.bf16.gmra.mxu0 %v2137
        %v2680 = vpop.f32.mrf.mxu0
        %v2681 = vadd.f32 %v2133, %v2680
        %v2682 = vpop.f32.mrf.mxu0
        %2683 = vdwg.mxu0
        %2684 = vmatpush.bf16.msra.mxu0 0
        %2685 = vmatpush.bf16.msra.mxu0 0
        %2686 = vmatpush.bf16.msra.mxu0 0
        %2687 = vmatpush.bf16.msra.mxu0 %v2240
        %2688 = vmatpush.bf16.msra.mxu0 %v2126
        %2689 = vmatpush.bf16.msra.mxu0 %v1991
        %2690 = vmatpush.bf16.msra.mxu0 %v1851
        %2691 = vmatpush.bf16.msra.mxu0 %v1712
        %2692 = vmatmul.bf16.gmra.mxu0 %v2137
        %v2693 = vpop.f32.mrf.mxu0
        %v2694 = vadd.f32 %v2133, %v2693
        %v2695 = vpop.f32.mrf.mxu0
        %2696 = vdwg.mxu0
        %v2697 = vmax.f32 %v2252, 0.0
        %v2698 = vmax.f32 %v2265, 0.0
        %v2699 = vmax.f32 %v2278, 0.0
        %v2700 = vmax.f32 %v2291, 0.0
        %v2701 = vmax.f32 %v2304, 0.0
        %v2702 = vmax.f32 %v2317, 0.0
        %v2703 = vmax.f32 %v2330, 0.0
        %v2704 = vmax.f32 %v2343, 0.0
        %v2705 = vmax.f32 %v2356, 0.0
        %v2706 = vmax.f32 %v2369, 0.0
        %v2707 = vmax.f32 %v2382, 0.0
        %v2708 = vmax.f32 %v2395, 0.0
        %v2709 = vmax.f32 %v2408, 0.0
        %v2710 = vmax.f32 %v2421, 0.0
        %v2711 = vmax.f32 %v2434, 0.0
        %v2712 = vmax.f32 %v2447, 0.0
        %v2713 = vmax.f32 %v2460, 0.0
        %v2714 = vmax.f32 %v2473, 0.0
        %v2715 = vmax.f32 %v2486, 0.0
        %v2716 = vmax.f32 %v2499, 0.0
        %v2717 = vmax.f32 %v2512, 0.0
        %v2718 = vmax.f32 %v2525, 0.0
        %v2719 = vmax.f32 %v2538, 0.0
        %v2720 = vmax.f32 %v2551, 0.0
        %v2721 = vmax.f32 %v2564, 0.0
        %v2722 = vmax.f32 %v2577, 0.0
        %v2723 = vmax.f32 %v2590, 0.0
        %v2724 = vmax.f32 %v2603, 0.0
        %v2725 = vmax.f32 %v2616, 0.0
        %v2726 = vmax.f32 %v2629, 0.0
        %v2727 = vmax.f32 %v2642, 0.0
        %v2728 = vmax.f32 %v2655, 0.0
        %v2729 = vmax.f32 %v2668, 0.0
        %v2730 = vmax.f32 %v2681, 0.0
        %v2731 = vmax.f32 %v2694, 0.0
        %v2737 = vperm.slane %v466, 0
        %v2738 = vperm.slane %v466, 1
        %v2739 = vperm.slane %v466, 2
        %v2740 = vperm.slane %v466, 3
        %v2741 = vperm.slane %v466, 4
        %v2742 = vperm.slane %v466, 5
        %v2743 = vperm.slane %v466, 6
        %v2744 = vperm.slane %v466, 7
        %v2745 = vperm.slane %v467, 0
        %v2746 = vperm.slane %v467, 1
        %v2747 = vperm.slane %v467, 2
        %v2748 = vperm.slane %v467, 3
        %v2749 = vperm.slane %v467, 4
        %v2750 = vperm.slane %v467, 5
        %v2751 = vperm.slane %v467, 6
        %v2752 = vperm.slane %v467, 7
        %v2753 = vperm.slane %v468, 0
        %v2754 = vperm.slane %v468, 1
        %v2755 = vperm.slane %v468, 2
        %v2756 = vperm.slane %v468, 3
        %v2757 = vperm.slane %v468, 4
        %v2758 = vperm.slane %v468, 5
        %v2759 = vperm.slane %v468, 6
        %v2760 = vperm.slane %v468, 7
        %v2761 = vperm.slane %v469, 0
        %v2762 = vperm.slane %v469, 1
        %v2763 = vperm.slane %v469, 2
        %v2764 = vperm.slane %v469, 3
        %v2765 = vperm.slane %v469, 4
        %v2766 = vperm.slane %v469, 5
        %v2767 = vperm.slane %v469, 6
        %v2768 = vperm.slane %v469, 7
        %v2769 = vperm.slane %v470, 0
        %v2770 = vperm.slane %v470, 1
        %v2771 = vperm.slane %v470, 2
        %v2807 = vmul.f32 %v2697, %v2737
        %v2808 = vmul.f32 %v2698, %v2738
        %v2809 = vmul.f32 %v2699, %v2739
        %v2810 = vmul.f32 %v2700, %v2740
        %v2811 = vmul.f32 %v2701, %v2741
        %v2812 = vmul.f32 %v2702, %v2742
        %v2813 = vmul.f32 %v2703, %v2743
        %v2814 = vmul.f32 %v2704, %v2744
        %v2815 = vmul.f32 %v2705, %v2745
        %v2816 = vmul.f32 %v2706, %v2746
        %v2817 = vmul.f32 %v2707, %v2747
        %v2818 = vmul.f32 %v2708, %v2748
        %v2819 = vmul.f32 %v2709, %v2749
        %v2820 = vmul.f32 %v2710, %v2750
        %v2821 = vmul.f32 %v2711, %v2751
        %v2822 = vmul.f32 %v2712, %v2752
        %v2823 = vmul.f32 %v2713, %v2753
        %v2824 = vmul.f32 %v2714, %v2754
        %v2825 = vmul.f32 %v2715, %v2755
        %v2826 = vmul.f32 %v2716, %v2756
        %v2827 = vmul.f32 %v2717, %v2757
        %v2828 = vmul.f32 %v2718, %v2758
        %v2829 = vmul.f32 %v2719, %v2759
        %v2830 = vmul.f32 %v2720, %v2760
        %v2831 = vmul.f32 %v2721, %v2761
        %v2832 = vmul.f32 %v2722, %v2762
        %v2833 = vmul.f32 %v2723, %v2763
        %v2834 = vmul.f32 %v2724, %v2764
        %v2835 = vmul.f32 %v2725, %v2765
        %v2836 = vmul.f32 %v2726, %v2766
        %v2837 = vmul.f32 %v2727, %v2767
        %v2838 = vmul.f32 %v2728, %v2768
        %v2839 = vmul.f32 %v2729, %v2769
        %v2840 = vmul.f32 %v2730, %v2770
        %v2841 = vmul.f32 %v2731, %v2771
        %v2842 = vpack.c.bf16 %v2808, %v2807
        %v2843 = vpack.c.bf16 %v2810, %v2809
        %v2844 = vpack.c.bf16 %v2812, %v2811
        %v2845 = vpack.c.bf16 %v2814, %v2813
        %v2846 = vpack.c.bf16 %v2816, %v2815
        %v2847 = vpack.c.bf16 %v2818, %v2817
        %v2848 = vpack.c.bf16 %v2820, %v2819
        %v2849 = vpack.c.bf16 %v2822, %v2821
        %v2850 = vpack.c.bf16 %v2824, %v2823
        %v2851 = vpack.c.bf16 %v2826, %v2825
        %v2852 = vpack.c.bf16 %v2828, %v2827
        %v2853 = vpack.c.bf16 %v2830, %v2829
        %v2854 = vpack.c.bf16 %v2832, %v2831
        %v2855 = vpack.c.bf16 %v2834, %v2833
        %v2856 = vpack.c.bf16 %v2836, %v2835
        %v2857 = vpack.c.bf16 %v2838, %v2837
        %v2858 = vpack.c.bf16 %v2840, %v2839
        %v2859 = vpack.c.bf16 %v2841, %v2841
        %v2862 = vunpack.c.h.b16 %v2858
        %v2863 = vunpack.c.l.b16 %v2859
        %v2864 = vpack.c.b16 %v2862, %v2862
        %v2865 = vpack.c.b16 %v2863, %v2863
        %2866 = vrot.lane.b32.xlu0 %v2864, 63
        %v2867 = vpop.permute.xlu0 %2866
        %2868 = vrot.lane.b32.xlu0 %v2865, 63
        %v2869 = vpop.permute.xlu0 %2868
        %v2870 = vsel %vm499, %v2867, %v2869
        %v2887 = vunpack.c.l.b16 %v2842
        %v2888 = vunpack.c.h.b16 %v2842
        %v2889 = vunpack.c.l.b16 %v2843
        %v2890 = vunpack.c.h.b16 %v2843
        %v2891 = vunpack.c.l.b16 %v2844
        %v2892 = vunpack.c.h.b16 %v2844
        %v2893 = vunpack.c.l.b16 %v2845
        %v2894 = vunpack.c.h.b16 %v2845
        %v2895 = vunpack.c.l.b16 %v2846
        %v2896 = vunpack.c.h.b16 %v2846
        %v2897 = vunpack.c.l.b16 %v2847
        %v2898 = vunpack.c.h.b16 %v2847
        %v2899 = vunpack.c.l.b16 %v2848
        %v2900 = vunpack.c.h.b16 %v2848
        %v2901 = vunpack.c.l.b16 %v2849
        %v2902 = vunpack.c.h.b16 %v2849
        %v2903 = vunpack.c.l.b16 %v2850
        %v2904 = vunpack.c.h.b16 %v2850
        %v2905 = vunpack.c.l.b16 %v2851
        %v2906 = vunpack.c.h.b16 %v2851
        %v2907 = vunpack.c.l.b16 %v2852
        %v2908 = vunpack.c.h.b16 %v2852
        %v2909 = vunpack.c.l.b16 %v2853
        %v2910 = vunpack.c.h.b16 %v2853
        %v2911 = vunpack.c.l.b16 %v2854
        %v2912 = vunpack.c.h.b16 %v2854
        %v2913 = vunpack.c.l.b16 %v2855
        %v2914 = vunpack.c.h.b16 %v2855
        %v2915 = vunpack.c.l.b16 %v2856
        %v2916 = vunpack.c.h.b16 %v2856
        %v2917 = vunpack.c.l.b16 %v2857
        %v2918 = vunpack.c.h.b16 %v2857
        %v2919 = vunpack.c.l.b16 %v2858
        %v2920 = vpack.c.b16 %v2887, %v2887
        %v2921 = vpack.c.b16 %v2888, %v2888
        %v2922 = vpack.c.b16 %v2889, %v2889
        %v2923 = vpack.c.b16 %v2890, %v2890
        %v2924 = vpack.c.b16 %v2891, %v2891
        %v2925 = vpack.c.b16 %v2892, %v2892
        %v2926 = vpack.c.b16 %v2893, %v2893
        %v2927 = vpack.c.b16 %v2894, %v2894
        %v2928 = vpack.c.b16 %v2895, %v2895
        %v2929 = vpack.c.b16 %v2896, %v2896
        %v2930 = vpack.c.b16 %v2897, %v2897
        %v2931 = vpack.c.b16 %v2898, %v2898
        %v2932 = vpack.c.b16 %v2899, %v2899
        %v2933 = vpack.c.b16 %v2900, %v2900
        %v2934 = vpack.c.b16 %v2901, %v2901
        %v2935 = vpack.c.b16 %v2902, %v2902
        %v2936 = vpack.c.b16 %v2903, %v2903
        %v2937 = vpack.c.b16 %v2904, %v2904
        %v2938 = vpack.c.b16 %v2905, %v2905
        %v2939 = vpack.c.b16 %v2906, %v2906
        %v2940 = vpack.c.b16 %v2907, %v2907
        %v2941 = vpack.c.b16 %v2908, %v2908
        %v2942 = vpack.c.b16 %v2909, %v2909
        %v2943 = vpack.c.b16 %v2910, %v2910
        %v2944 = vpack.c.b16 %v2911, %v2911
        %v2945 = vpack.c.b16 %v2912, %v2912
        %v2946 = vpack.c.b16 %v2913, %v2913
        %v2947 = vpack.c.b16 %v2914, %v2914
        %v2948 = vpack.c.b16 %v2915, %v2915
        %v2949 = vpack.c.b16 %v2916, %v2916
        %v2950 = vpack.c.b16 %v2917, %v2917
        %v2951 = vpack.c.b16 %v2918, %v2918
        %v2952 = vpack.c.b16 %v2919, %v2919
        %2953 = vrot.lane.b32.xlu0 %v2920, 67
        %v2954 = vpop.permute.xlu0 %2953
        %2955 = vrot.lane.b32.xlu0 %v2921, 67
        %v2956 = vpop.permute.xlu0 %2955
        %2957 = vrot.lane.b32.xlu0 %v2922, 67
        %v2958 = vpop.permute.xlu0 %2957
        %2959 = vrot.lane.b32.xlu0 %v2923, 67
        %v2960 = vpop.permute.xlu0 %2959
        %2961 = vrot.lane.b32.xlu0 %v2924, 67
        %v2962 = vpop.permute.xlu0 %2961
        %2963 = vrot.lane.b32.xlu0 %v2925, 67
        %v2964 = vpop.permute.xlu0 %2963
        %2965 = vrot.lane.b32.xlu0 %v2926, 67
        %v2966 = vpop.permute.xlu0 %2965
        %2967 = vrot.lane.b32.xlu0 %v2927, 67
        %v2968 = vpop.permute.xlu0 %2967
        %2969 = vrot.lane.b32.xlu0 %v2928, 67
        %v2970 = vpop.permute.xlu0 %2969
        %2971 = vrot.lane.b32.xlu0 %v2929, 67
        %v2972 = vpop.permute.xlu0 %2971
        %2973 = vrot.lane.b32.xlu0 %v2930, 67
        %v2974 = vpop.permute.xlu0 %2973
        %2975 = vrot.lane.b32.xlu0 %v2931, 67
        %v2976 = vpop.permute.xlu0 %2975
        %2977 = vrot.lane.b32.xlu0 %v2932, 67
        %v2978 = vpop.permute.xlu0 %2977
        %2979 = vrot.lane.b32.xlu0 %v2933, 67
        %v2980 = vpop.permute.xlu0 %2979
        %2981 = vrot.lane.b32.xlu0 %v2934, 67
        %v2982 = vpop.permute.xlu0 %2981
        %2983 = vrot.lane.b32.xlu0 %v2935, 67
        %v2984 = vpop.permute.xlu0 %2983
        %2985 = vrot.lane.b32.xlu0 %v2936, 67
        %v2986 = vpop.permute.xlu0 %2985
        %2987 = vrot.lane.b32.xlu0 %v2937, 67
        %v2988 = vpop.permute.xlu0 %2987
        %2989 = vrot.lane.b32.xlu0 %v2938, 67
        %v2990 = vpop.permute.xlu0 %2989
        %2991 = vrot.lane.b32.xlu0 %v2939, 67
        %v2992 = vpop.permute.xlu0 %2991
        %2993 = vrot.lane.b32.xlu0 %v2940, 67
        %v2994 = vpop.permute.xlu0 %2993
        %2995 = vrot.lane.b32.xlu0 %v2941, 67
        %v2996 = vpop.permute.xlu0 %2995
        %2997 = vrot.lane.b32.xlu0 %v2942, 67
        %v2998 = vpop.permute.xlu0 %2997
        %2999 = vrot.lane.b32.xlu0 %v2943, 67
        %v3000 = vpop.permute.xlu0 %2999
        %3001 = vrot.lane.b32.xlu0 %v2944, 67
        %v3002 = vpop.permute.xlu0 %3001
        %3003 = vrot.lane.b32.xlu0 %v2945, 67
        %v3004 = vpop.permute.xlu0 %3003
        %3005 = vrot.lane.b32.xlu0 %v2946, 67
        %v3006 = vpop.permute.xlu0 %3005
        %3007 = vrot.lane.b32.xlu0 %v2947, 67
        %v3008 = vpop.permute.xlu0 %3007
        %3009 = vrot.lane.b32.xlu0 %v2948, 67
        %v3010 = vpop.permute.xlu0 %3009
        %3011 = vrot.lane.b32.xlu0 %v2949, 67
        %v3012 = vpop.permute.xlu0 %3011
        %3013 = vrot.lane.b32.xlu0 %v2950, 67
        %v3014 = vpop.permute.xlu0 %3013
        %3015 = vrot.lane.b32.xlu0 %v2951, 67
        %v3016 = vpop.permute.xlu0 %3015
        %3017 = vrot.lane.b32.xlu0 %v2952, 67
        %v3018 = vpop.permute.xlu0 %3017
        %3019 = vrot.lane.b32.xlu0 %v2864, 67
        %v3020 = vpop.permute.xlu0 %3019
        %v3021 = vsel %vm651, %v2954, %v2956
        %v3022 = vsel %vm651, %v2956, %v2958
        %v3023 = vsel %vm651, %v2958, %v2960
        %v3024 = vsel %vm651, %v2960, %v2962
        %v3025 = vsel %vm651, %v2962, %v2964
        %v3026 = vsel %vm651, %v2964, %v2966
        %v3027 = vsel %vm651, %v2966, %v2968
        %v3028 = vsel %vm651, %v2968, %v2970
        %v3029 = vsel %vm651, %v2970, %v2972
        %v3030 = vsel %vm651, %v2972, %v2974
        %v3031 = vsel %vm651, %v2974, %v2976
        %v3032 = vsel %vm651, %v2976, %v2978
        %v3033 = vsel %vm651, %v2978, %v2980
        %v3034 = vsel %vm651, %v2980, %v2982
        %v3035 = vsel %vm651, %v2982, %v2984
        %v3036 = vsel %vm651, %v2984, %v2986
        %v3037 = vsel %vm651, %v2986, %v2988
        %v3038 = vsel %vm651, %v2988, %v2990
        %v3039 = vsel %vm651, %v2990, %v2992
        %v3040 = vsel %vm651, %v2992, %v2994
        %v3041 = vsel %vm651, %v2994, %v2996
        %v3042 = vsel %vm651, %v2996, %v2998
        %v3043 = vsel %vm651, %v2998, %v3000
        %v3044 = vsel %vm651, %v3000, %v3002
        %v3045 = vsel %vm651, %v3002, %v3004
        %v3046 = vsel %vm651, %v3004, %v3006
        %v3047 = vsel %vm651, %v3006, %v3008
        %v3048 = vsel %vm651, %v3008, %v3010
        %v3049 = vsel %vm651, %v3010, %v3012
        %v3050 = vsel %vm651, %v3012, %v3014
        %v3051 = vsel %vm651, %v3014, %v3016
        %v3052 = vsel %vm651, %v3016, %v3018
        %v3053 = vsel %vm651, %v3018, %v3020
        %v3056 = vsel %vm685, %v2870, %v2954
        %3057 = vrot.lane.b32.xlu0 %v2864, 62
        %v3058 = vpop.permute.xlu0 %3057
        %3059 = vrot.lane.b32.xlu0 %v2865, 62
        %v3060 = vpop.permute.xlu0 %3059
        %v3061 = vsel %vm693, %v3058, %v3060
        %3062 = vrot.lane.b32.xlu0 %v2920, 66
        %v3063 = vpop.permute.xlu0 %3062
        %3064 = vrot.lane.b32.xlu0 %v2921, 66
        %v3065 = vpop.permute.xlu0 %3064
        %3066 = vrot.lane.b32.xlu0 %v2922, 66
        %v3067 = vpop.permute.xlu0 %3066
        %3068 = vrot.lane.b32.xlu0 %v2923, 66
        %v3069 = vpop.permute.xlu0 %3068
        %3070 = vrot.lane.b32.xlu0 %v2924, 66
        %v3071 = vpop.permute.xlu0 %3070
        %3072 = vrot.lane.b32.xlu0 %v2925, 66
        %v3073 = vpop.permute.xlu0 %3072
        %3074 = vrot.lane.b32.xlu0 %v2926, 66
        %v3075 = vpop.permute.xlu0 %3074
        %3076 = vrot.lane.b32.xlu0 %v2927, 66
        %v3077 = vpop.permute.xlu0 %3076
        %3078 = vrot.lane.b32.xlu0 %v2928, 66
        %v3079 = vpop.permute.xlu0 %3078
        %3080 = vrot.lane.b32.xlu0 %v2929, 66
        %v3081 = vpop.permute.xlu0 %3080
        %3082 = vrot.lane.b32.xlu0 %v2930, 66
        %v3083 = vpop.permute.xlu0 %3082
        %3084 = vrot.lane.b32.xlu0 %v2931, 66
        %v3085 = vpop.permute.xlu0 %3084
        %3086 = vrot.lane.b32.xlu0 %v2932, 66
        %v3087 = vpop.permute.xlu0 %3086
        %3088 = vrot.lane.b32.xlu0 %v2933, 66
        %v3089 = vpop.permute.xlu0 %3088
        %3090 = vrot.lane.b32.xlu0 %v2934, 66
        %v3091 = vpop.permute.xlu0 %3090
        %3092 = vrot.lane.b32.xlu0 %v2935, 66
        %v3093 = vpop.permute.xlu0 %3092
        %3094 = vrot.lane.b32.xlu0 %v2936, 66
        %v3095 = vpop.permute.xlu0 %3094
        %3096 = vrot.lane.b32.xlu0 %v2937, 66
        %v3097 = vpop.permute.xlu0 %3096
        %3098 = vrot.lane.b32.xlu0 %v2938, 66
        %v3099 = vpop.permute.xlu0 %3098
        %3100 = vrot.lane.b32.xlu0 %v2939, 66
        %v3101 = vpop.permute.xlu0 %3100
        %3102 = vrot.lane.b32.xlu0 %v2940, 66
        %v3103 = vpop.permute.xlu0 %3102
        %3104 = vrot.lane.b32.xlu0 %v2941, 66
        %v3105 = vpop.permute.xlu0 %3104
        %3106 = vrot.lane.b32.xlu0 %v2942, 66
        %v3107 = vpop.permute.xlu0 %3106
        %3108 = vrot.lane.b32.xlu0 %v2943, 66
        %v3109 = vpop.permute.xlu0 %3108
        %3110 = vrot.lane.b32.xlu0 %v2944, 66
        %v3111 = vpop.permute.xlu0 %3110
        %3112 = vrot.lane.b32.xlu0 %v2945, 66
        %v3113 = vpop.permute.xlu0 %3112
        %3114 = vrot.lane.b32.xlu0 %v2946, 66
        %v3115 = vpop.permute.xlu0 %3114
        %3116 = vrot.lane.b32.xlu0 %v2947, 66
        %v3117 = vpop.permute.xlu0 %3116
        %3118 = vrot.lane.b32.xlu0 %v2948, 66
        %v3119 = vpop.permute.xlu0 %3118
        %3120 = vrot.lane.b32.xlu0 %v2949, 66
        %v3121 = vpop.permute.xlu0 %3120
        %3122 = vrot.lane.b32.xlu0 %v2950, 66
        %v3123 = vpop.permute.xlu0 %3122
        %3124 = vrot.lane.b32.xlu0 %v2951, 66
        %v3125 = vpop.permute.xlu0 %3124
        %3126 = vrot.lane.b32.xlu0 %v2952, 66
        %v3127 = vpop.permute.xlu0 %3126
        %3128 = vrot.lane.b32.xlu0 %v2864, 66
        %v3129 = vpop.permute.xlu0 %3128
        %v3130 = vsel %vm763, %v3063, %v3065
        %v3131 = vsel %vm763, %v3065, %v3067
        %v3132 = vsel %vm763, %v3067, %v3069
        %v3133 = vsel %vm763, %v3069, %v3071
        %v3134 = vsel %vm763, %v3071, %v3073
        %v3135 = vsel %vm763, %v3073, %v3075
        %v3136 = vsel %vm763, %v3075, %v3077
        %v3137 = vsel %vm763, %v3077, %v3079
        %v3138 = vsel %vm763, %v3079, %v3081
        %v3139 = vsel %vm763, %v3081, %v3083
        %v3140 = vsel %vm763, %v3083, %v3085
        %v3141 = vsel %vm763, %v3085, %v3087
        %v3142 = vsel %vm763, %v3087, %v3089
        %v3143 = vsel %vm763, %v3089, %v3091
        %v3144 = vsel %vm763, %v3091, %v3093
        %v3145 = vsel %vm763, %v3093, %v3095
        %v3146 = vsel %vm763, %v3095, %v3097
        %v3147 = vsel %vm763, %v3097, %v3099
        %v3148 = vsel %vm763, %v3099, %v3101
        %v3149 = vsel %vm763, %v3101, %v3103
        %v3150 = vsel %vm763, %v3103, %v3105
        %v3151 = vsel %vm763, %v3105, %v3107
        %v3152 = vsel %vm763, %v3107, %v3109
        %v3153 = vsel %vm763, %v3109, %v3111
        %v3154 = vsel %vm763, %v3111, %v3113
        %v3155 = vsel %vm763, %v3113, %v3115
        %v3156 = vsel %vm763, %v3115, %v3117
        %v3157 = vsel %vm763, %v3117, %v3119
        %v3158 = vsel %vm763, %v3119, %v3121
        %v3159 = vsel %vm763, %v3121, %v3123
        %v3160 = vsel %vm763, %v3123, %v3125
        %v3161 = vsel %vm763, %v3125, %v3127
        %v3162 = vsel %vm763, %v3127, %v3129
        %v3165 = vsel %vm797, %v3061, %v3063
        %3166 = vrot.lane.b32.xlu0 %v2864, 61
        %v3167 = vpop.permute.xlu0 %3166
        %3168 = vrot.lane.b32.xlu0 %v2865, 61
        %v3169 = vpop.permute.xlu0 %3168
        %v3170 = vsel %vm805, %v3167, %v3169
        %3171 = vrot.lane.b32.xlu0 %v2920, 65
        %v3172 = vpop.permute.xlu0 %3171
        %3173 = vrot.lane.b32.xlu0 %v2921, 65
        %v3174 = vpop.permute.xlu0 %3173
        %3175 = vrot.lane.b32.xlu0 %v2922, 65
        %v3176 = vpop.permute.xlu0 %3175
        %3177 = vrot.lane.b32.xlu0 %v2923, 65
        %v3178 = vpop.permute.xlu0 %3177
        %3179 = vrot.lane.b32.xlu0 %v2924, 65
        %v3180 = vpop.permute.xlu0 %3179
        %3181 = vrot.lane.b32.xlu0 %v2925, 65
        %v3182 = vpop.permute.xlu0 %3181
        %3183 = vrot.lane.b32.xlu0 %v2926, 65
        %v3184 = vpop.permute.xlu0 %3183
        %3185 = vrot.lane.b32.xlu0 %v2927, 65
        %v3186 = vpop.permute.xlu0 %3185
        %3187 = vrot.lane.b32.xlu0 %v2928, 65
        %v3188 = vpop.permute.xlu0 %3187
        %3189 = vrot.lane.b32.xlu0 %v2929, 65
        %v3190 = vpop.permute.xlu0 %3189
        %3191 = vrot.lane.b32.xlu0 %v2930, 65
        %v3192 = vpop.permute.xlu0 %3191
        %3193 = vrot.lane.b32.xlu0 %v2931, 65
        %v3194 = vpop.permute.xlu0 %3193
        %3195 = vrot.lane.b32.xlu0 %v2932, 65
        %v3196 = vpop.permute.xlu0 %3195
        %3197 = vrot.lane.b32.xlu0 %v2933, 65
        %v3198 = vpop.permute.xlu0 %3197
        %3199 = vrot.lane.b32.xlu0 %v2934, 65
        %v3200 = vpop.permute.xlu0 %3199
        %3201 = vrot.lane.b32.xlu0 %v2935, 65
        %v3202 = vpop.permute.xlu0 %3201
        %3203 = vrot.lane.b32.xlu0 %v2936, 65
        %v3204 = vpop.permute.xlu0 %3203
        %3205 = vrot.lane.b32.xlu0 %v2937, 65
        %v3206 = vpop.permute.xlu0 %3205
        %3207 = vrot.lane.b32.xlu0 %v2938, 65
        %v3208 = vpop.permute.xlu0 %3207
        %3209 = vrot.lane.b32.xlu0 %v2939, 65
        %v3210 = vpop.permute.xlu0 %3209
        %3211 = vrot.lane.b32.xlu0 %v2940, 65
        %v3212 = vpop.permute.xlu0 %3211
        %3213 = vrot.lane.b32.xlu0 %v2941, 65
        %v3214 = vpop.permute.xlu0 %3213
        %3215 = vrot.lane.b32.xlu0 %v2942, 65
        %v3216 = vpop.permute.xlu0 %3215
        %3217 = vrot.lane.b32.xlu0 %v2943, 65
        %v3218 = vpop.permute.xlu0 %3217
        %3219 = vrot.lane.b32.xlu0 %v2944, 65
        %v3220 = vpop.permute.xlu0 %3219
        %3221 = vrot.lane.b32.xlu0 %v2945, 65
        %v3222 = vpop.permute.xlu0 %3221
        %3223 = vrot.lane.b32.xlu0 %v2946, 65
        %v3224 = vpop.permute.xlu0 %3223
        %3225 = vrot.lane.b32.xlu0 %v2947, 65
        %v3226 = vpop.permute.xlu0 %3225
        %3227 = vrot.lane.b32.xlu0 %v2948, 65
        %v3228 = vpop.permute.xlu0 %3227
        %3229 = vrot.lane.b32.xlu0 %v2949, 65
        %v3230 = vpop.permute.xlu0 %3229
        %3231 = vrot.lane.b32.xlu0 %v2950, 65
        %v3232 = vpop.permute.xlu0 %3231
        %3233 = vrot.lane.b32.xlu0 %v2951, 65
        %v3234 = vpop.permute.xlu0 %3233
        %3235 = vrot.lane.b32.xlu0 %v2952, 65
        %v3236 = vpop.permute.xlu0 %3235
        %3237 = vrot.lane.b32.xlu0 %v2864, 65
        %v3238 = vpop.permute.xlu0 %3237
        %v3239 = vsel %vm875, %v3172, %v3174
        %v3240 = vsel %vm875, %v3174, %v3176
        %v3241 = vsel %vm875, %v3176, %v3178
        %v3242 = vsel %vm875, %v3178, %v3180
        %v3243 = vsel %vm875, %v3180, %v3182
        %v3244 = vsel %vm875, %v3182, %v3184
        %v3245 = vsel %vm875, %v3184, %v3186
        %v3246 = vsel %vm875, %v3186, %v3188
        %v3247 = vsel %vm875, %v3188, %v3190
        %v3248 = vsel %vm875, %v3190, %v3192
        %v3249 = vsel %vm875, %v3192, %v3194
        %v3250 = vsel %vm875, %v3194, %v3196
        %v3251 = vsel %vm875, %v3196, %v3198
        %v3252 = vsel %vm875, %v3198, %v3200
        %v3253 = vsel %vm875, %v3200, %v3202
        %v3254 = vsel %vm875, %v3202, %v3204
        %v3255 = vsel %vm875, %v3204, %v3206
        %v3256 = vsel %vm875, %v3206, %v3208
        %v3257 = vsel %vm875, %v3208, %v3210
        %v3258 = vsel %vm875, %v3210, %v3212
        %v3259 = vsel %vm875, %v3212, %v3214
        %v3260 = vsel %vm875, %v3214, %v3216
        %v3261 = vsel %vm875, %v3216, %v3218
        %v3262 = vsel %vm875, %v3218, %v3220
        %v3263 = vsel %vm875, %v3220, %v3222
        %v3264 = vsel %vm875, %v3222, %v3224
        %v3265 = vsel %vm875, %v3224, %v3226
        %v3266 = vsel %vm875, %v3226, %v3228
        %v3267 = vsel %vm875, %v3228, %v3230
        %v3268 = vsel %vm875, %v3230, %v3232
        %v3269 = vsel %vm875, %v3232, %v3234
        %v3270 = vsel %vm875, %v3234, %v3236
        %v3271 = vsel %vm875, %v3236, %v3238
        %v3274 = vsel %vm909, %v3170, %v3172
        %3275 = vrot.lane.b32.xlu0 %v2865, 125
        %v3276 = vpop.permute.xlu0 %3275
        %3277 = vrot.lane.b32.xlu0 %v2920, 1
        %v3278 = vpop.permute.xlu0 %3277
        %3279 = vrot.lane.b32.xlu0 %v2921, 1
        %v3280 = vpop.permute.xlu0 %3279
        %3281 = vrot.lane.b32.xlu0 %v2922, 1
        %v3282 = vpop.permute.xlu0 %3281
        %3283 = vrot.lane.b32.xlu0 %v2923, 1
        %v3284 = vpop.permute.xlu0 %3283
        %3285 = vrot.lane.b32.xlu0 %v2924, 1
        %v3286 = vpop.permute.xlu0 %3285
        %3287 = vrot.lane.b32.xlu0 %v2925, 1
        %v3288 = vpop.permute.xlu0 %3287
        %3289 = vrot.lane.b32.xlu0 %v2926, 1
        %v3290 = vpop.permute.xlu0 %3289
        %3291 = vrot.lane.b32.xlu0 %v2927, 1
        %v3292 = vpop.permute.xlu0 %3291
        %3293 = vrot.lane.b32.xlu0 %v2928, 1
        %v3294 = vpop.permute.xlu0 %3293
        %3295 = vrot.lane.b32.xlu0 %v2929, 1
        %v3296 = vpop.permute.xlu0 %3295
        %3297 = vrot.lane.b32.xlu0 %v2930, 1
        %v3298 = vpop.permute.xlu0 %3297
        %3299 = vrot.lane.b32.xlu0 %v2931, 1
        %v3300 = vpop.permute.xlu0 %3299
        %3301 = vrot.lane.b32.xlu0 %v2932, 1
        %v3302 = vpop.permute.xlu0 %3301
        %3303 = vrot.lane.b32.xlu0 %v2933, 1
        %v3304 = vpop.permute.xlu0 %3303
        %3305 = vrot.lane.b32.xlu0 %v2934, 1
        %v3306 = vpop.permute.xlu0 %3305
        %3307 = vrot.lane.b32.xlu0 %v2935, 1
        %v3308 = vpop.permute.xlu0 %3307
        %3309 = vrot.lane.b32.xlu0 %v2936, 1
        %v3310 = vpop.permute.xlu0 %3309
        %3311 = vrot.lane.b32.xlu0 %v2937, 1
        %v3312 = vpop.permute.xlu0 %3311
        %3313 = vrot.lane.b32.xlu0 %v2938, 1
        %v3314 = vpop.permute.xlu0 %3313
        %3315 = vrot.lane.b32.xlu0 %v2939, 1
        %v3316 = vpop.permute.xlu0 %3315
        %3317 = vrot.lane.b32.xlu0 %v2940, 1
        %v3318 = vpop.permute.xlu0 %3317
        %3319 = vrot.lane.b32.xlu0 %v2941, 1
        %v3320 = vpop.permute.xlu0 %3319
        %3321 = vrot.lane.b32.xlu0 %v2942, 1
        %v3322 = vpop.permute.xlu0 %3321
        %3323 = vrot.lane.b32.xlu0 %v2943, 1
        %v3324 = vpop.permute.xlu0 %3323
        %3325 = vrot.lane.b32.xlu0 %v2944, 1
        %v3326 = vpop.permute.xlu0 %3325
        %3327 = vrot.lane.b32.xlu0 %v2945, 1
        %v3328 = vpop.permute.xlu0 %3327
        %3329 = vrot.lane.b32.xlu0 %v2946, 1
        %v3330 = vpop.permute.xlu0 %3329
        %3331 = vrot.lane.b32.xlu0 %v2947, 1
        %v3332 = vpop.permute.xlu0 %3331
        %3333 = vrot.lane.b32.xlu0 %v2948, 1
        %v3334 = vpop.permute.xlu0 %3333
        %3335 = vrot.lane.b32.xlu0 %v2949, 1
        %v3336 = vpop.permute.xlu0 %3335
        %3337 = vrot.lane.b32.xlu0 %v2950, 1
        %v3338 = vpop.permute.xlu0 %3337
        %3339 = vrot.lane.b32.xlu0 %v2951, 1
        %v3340 = vpop.permute.xlu0 %3339
        %3341 = vrot.lane.b32.xlu0 %v2952, 1
        %v3342 = vpop.permute.xlu0 %3341
        %3343 = vrot.lane.b32.xlu0 %v2864, 1
        %v3344 = vpop.permute.xlu0 %3343
        %3345 = vrot.lane.b32.xlu0 %v2865, 1
        %v3346 = vpop.permute.xlu0 %3345
        %v3347 = vsel %vm985, %v3278, %v3280
        %v3348 = vsel %vm985, %v3280, %v3282
        %v3349 = vsel %vm985, %v3282, %v3284
        %v3350 = vsel %vm985, %v3284, %v3286
        %v3351 = vsel %vm985, %v3286, %v3288
        %v3352 = vsel %vm985, %v3288, %v3290
        %v3353 = vsel %vm985, %v3290, %v3292
        %v3354 = vsel %vm985, %v3292, %v3294
        %v3355 = vsel %vm985, %v3294, %v3296
        %v3356 = vsel %vm985, %v3296, %v3298
        %v3357 = vsel %vm985, %v3298, %v3300
        %v3358 = vsel %vm985, %v3300, %v3302
        %v3359 = vsel %vm985, %v3302, %v3304
        %v3360 = vsel %vm985, %v3304, %v3306
        %v3361 = vsel %vm985, %v3306, %v3308
        %v3362 = vsel %vm985, %v3308, %v3310
        %v3363 = vsel %vm985, %v3310, %v3312
        %v3364 = vsel %vm985, %v3312, %v3314
        %v3365 = vsel %vm985, %v3314, %v3316
        %v3366 = vsel %vm985, %v3316, %v3318
        %v3367 = vsel %vm985, %v3318, %v3320
        %v3368 = vsel %vm985, %v3320, %v3322
        %v3369 = vsel %vm985, %v3322, %v3324
        %v3370 = vsel %vm985, %v3324, %v3326
        %v3371 = vsel %vm985, %v3326, %v3328
        %v3372 = vsel %vm985, %v3328, %v3330
        %v3373 = vsel %vm985, %v3330, %v3332
        %v3374 = vsel %vm985, %v3332, %v3334
        %v3375 = vsel %vm985, %v3334, %v3336
        %v3376 = vsel %vm985, %v3336, %v3338
        %v3377 = vsel %vm985, %v3338, %v3340
        %v3378 = vsel %vm985, %v3340, %v3342
        %v3379 = vsel %vm985, %v3342, %v3344
        %v3380 = vsel %vm985, %v3344, %v3346
        %v3383 = vsel %vm1020, %v3276, %v3278
        %3384 = vrot.lane.b32.xlu0 %v2920, 127
        %v3385 = vpop.permute.xlu0 %3384
        %3386 = vrot.lane.b32.xlu0 %v2921, 127
        %v3387 = vpop.permute.xlu0 %3386
        %3388 = vrot.lane.b32.xlu0 %v2922, 127
        %v3389 = vpop.permute.xlu0 %3388
        %3390 = vrot.lane.b32.xlu0 %v2923, 127
        %v3391 = vpop.permute.xlu0 %3390
        %3392 = vrot.lane.b32.xlu0 %v2924, 127
        %v3393 = vpop.permute.xlu0 %3392
        %3394 = vrot.lane.b32.xlu0 %v2925, 127
        %v3395 = vpop.permute.xlu0 %3394
        %3396 = vrot.lane.b32.xlu0 %v2926, 127
        %v3397 = vpop.permute.xlu0 %3396
        %3398 = vrot.lane.b32.xlu0 %v2927, 127
        %v3399 = vpop.permute.xlu0 %3398
        %3400 = vrot.lane.b32.xlu0 %v2928, 127
        %v3401 = vpop.permute.xlu0 %3400
        %3402 = vrot.lane.b32.xlu0 %v2929, 127
        %v3403 = vpop.permute.xlu0 %3402
        %3404 = vrot.lane.b32.xlu0 %v2930, 127
        %v3405 = vpop.permute.xlu0 %3404
        %3406 = vrot.lane.b32.xlu0 %v2931, 127
        %v3407 = vpop.permute.xlu0 %3406
        %3408 = vrot.lane.b32.xlu0 %v2932, 127
        %v3409 = vpop.permute.xlu0 %3408
        %3410 = vrot.lane.b32.xlu0 %v2933, 127
        %v3411 = vpop.permute.xlu0 %3410
        %3412 = vrot.lane.b32.xlu0 %v2934, 127
        %v3413 = vpop.permute.xlu0 %3412
        %3414 = vrot.lane.b32.xlu0 %v2935, 127
        %v3415 = vpop.permute.xlu0 %3414
        %3416 = vrot.lane.b32.xlu0 %v2936, 127
        %v3417 = vpop.permute.xlu0 %3416
        %3418 = vrot.lane.b32.xlu0 %v2937, 127
        %v3419 = vpop.permute.xlu0 %3418
        %3420 = vrot.lane.b32.xlu0 %v2938, 127
        %v3421 = vpop.permute.xlu0 %3420
        %3422 = vrot.lane.b32.xlu0 %v2939, 127
        %v3423 = vpop.permute.xlu0 %3422
        %3424 = vrot.lane.b32.xlu0 %v2940, 127
        %v3425 = vpop.permute.xlu0 %3424
        %3426 = vrot.lane.b32.xlu0 %v2941, 127
        %v3427 = vpop.permute.xlu0 %3426
        %3428 = vrot.lane.b32.xlu0 %v2942, 127
        %v3429 = vpop.permute.xlu0 %3428
        %3430 = vrot.lane.b32.xlu0 %v2943, 127
        %v3431 = vpop.permute.xlu0 %3430
        %3432 = vrot.lane.b32.xlu0 %v2944, 127
        %v3433 = vpop.permute.xlu0 %3432
        %3434 = vrot.lane.b32.xlu0 %v2945, 127
        %v3435 = vpop.permute.xlu0 %3434
        %3436 = vrot.lane.b32.xlu0 %v2946, 127
        %v3437 = vpop.permute.xlu0 %3436
        %3438 = vrot.lane.b32.xlu0 %v2947, 127
        %v3439 = vpop.permute.xlu0 %3438
        %3440 = vrot.lane.b32.xlu0 %v2948, 127
        %v3441 = vpop.permute.xlu0 %3440
        %3442 = vrot.lane.b32.xlu0 %v2949, 127
        %v3443 = vpop.permute.xlu0 %3442
        %3444 = vrot.lane.b32.xlu0 %v2950, 127
        %v3445 = vpop.permute.xlu0 %3444
        %3446 = vrot.lane.b32.xlu0 %v2951, 127
        %v3447 = vpop.permute.xlu0 %3446
        %3448 = vrot.lane.b32.xlu0 %v2952, 127
        %v3449 = vpop.permute.xlu0 %3448
        %3450 = vrot.lane.b32.xlu0 %v2864, 127
        %v3451 = vpop.permute.xlu0 %3450
        %3452 = vrot.lane.b32.xlu0 %v2865, 127
        %v3453 = vpop.permute.xlu0 %3452
        %v3454 = vsel %vm1094, %v3385, %v3387
        %v3455 = vsel %vm1094, %v3387, %v3389
        %v3456 = vsel %vm1094, %v3389, %v3391
        %v3457 = vsel %vm1094, %v3391, %v3393
        %v3458 = vsel %vm1094, %v3393, %v3395
        %v3459 = vsel %vm1094, %v3395, %v3397
        %v3460 = vsel %vm1094, %v3397, %v3399
        %v3461 = vsel %vm1094, %v3399, %v3401
        %v3462 = vsel %vm1094, %v3401, %v3403
        %v3463 = vsel %vm1094, %v3403, %v3405
        %v3464 = vsel %vm1094, %v3405, %v3407
        %v3465 = vsel %vm1094, %v3407, %v3409
        %v3466 = vsel %vm1094, %v3409, %v3411
        %v3467 = vsel %vm1094, %v3411, %v3413
        %v3468 = vsel %vm1094, %v3413, %v3415
        %v3469 = vsel %vm1094, %v3415, %v3417
        %v3470 = vsel %vm1094, %v3417, %v3419
        %v3471 = vsel %vm1094, %v3419, %v3421
        %v3472 = vsel %vm1094, %v3421, %v3423
        %v3473 = vsel %vm1094, %v3423, %v3425
        %v3474 = vsel %vm1094, %v3425, %v3427
        %v3475 = vsel %vm1094, %v3427, %v3429
        %v3476 = vsel %vm1094, %v3429, %v3431
        %v3477 = vsel %vm1094, %v3431, %v3433
        %v3478 = vsel %vm1094, %v3433, %v3435
        %v3479 = vsel %vm1094, %v3435, %v3437
        %v3480 = vsel %vm1094, %v3437, %v3439
        %v3481 = vsel %vm1094, %v3439, %v3441
        %v3482 = vsel %vm1094, %v3441, %v3443
        %v3483 = vsel %vm1094, %v3443, %v3445
        %v3484 = vsel %vm1094, %v3445, %v3447
        %v3485 = vsel %vm1094, %v3447, %v3449
        %v3486 = vsel %vm1094, %v3449, %v3451
        %v3487 = vsel %vm1094, %v3451, %v3453
        %3488 = vrot.lane.b32.xlu0 %v2920, 3
        %v3489 = vpop.permute.xlu0 %3488
        %v3492 = vsel %vm1131, %v3453, %v3489
        %3493 = vrot.lane.b32.xlu0 %v2920, 63
        %v3494 = vpop.permute.xlu0 %3493
        %3495 = vrot.lane.b32.xlu0 %v2921, 63
        %v3496 = vpop.permute.xlu0 %3495
        %3497 = vrot.lane.b32.xlu0 %v2922, 63
        %v3498 = vpop.permute.xlu0 %3497
        %3499 = vrot.lane.b32.xlu0 %v2923, 63
        %v3500 = vpop.permute.xlu0 %3499
        %3501 = vrot.lane.b32.xlu0 %v2924, 63
        %v3502 = vpop.permute.xlu0 %3501
        %3503 = vrot.lane.b32.xlu0 %v2925, 63
        %v3504 = vpop.permute.xlu0 %3503
        %3505 = vrot.lane.b32.xlu0 %v2926, 63
        %v3506 = vpop.permute.xlu0 %3505
        %3507 = vrot.lane.b32.xlu0 %v2927, 63
        %v3508 = vpop.permute.xlu0 %3507
        %3509 = vrot.lane.b32.xlu0 %v2928, 63
        %v3510 = vpop.permute.xlu0 %3509
        %3511 = vrot.lane.b32.xlu0 %v2929, 63
        %v3512 = vpop.permute.xlu0 %3511
        %3513 = vrot.lane.b32.xlu0 %v2930, 63
        %v3514 = vpop.permute.xlu0 %3513
        %3515 = vrot.lane.b32.xlu0 %v2931, 63
        %v3516 = vpop.permute.xlu0 %3515
        %3517 = vrot.lane.b32.xlu0 %v2932, 63
        %v3518 = vpop.permute.xlu0 %3517
        %3519 = vrot.lane.b32.xlu0 %v2933, 63
        %v3520 = vpop.permute.xlu0 %3519
        %3521 = vrot.lane.b32.xlu0 %v2934, 63
        %v3522 = vpop.permute.xlu0 %3521
        %3523 = vrot.lane.b32.xlu0 %v2935, 63
        %v3524 = vpop.permute.xlu0 %3523
        %3525 = vrot.lane.b32.xlu0 %v2936, 63
        %v3526 = vpop.permute.xlu0 %3525
        %3527 = vrot.lane.b32.xlu0 %v2937, 63
        %v3528 = vpop.permute.xlu0 %3527
        %3529 = vrot.lane.b32.xlu0 %v2938, 63
        %v3530 = vpop.permute.xlu0 %3529
        %3531 = vrot.lane.b32.xlu0 %v2939, 63
        %v3532 = vpop.permute.xlu0 %3531
        %3533 = vrot.lane.b32.xlu0 %v2940, 63
        %v3534 = vpop.permute.xlu0 %3533
        %3535 = vrot.lane.b32.xlu0 %v2941, 63
        %v3536 = vpop.permute.xlu0 %3535
        %3537 = vrot.lane.b32.xlu0 %v2942, 63
        %v3538 = vpop.permute.xlu0 %3537
        %3539 = vrot.lane.b32.xlu0 %v2943, 63
        %v3540 = vpop.permute.xlu0 %3539
        %3541 = vrot.lane.b32.xlu0 %v2944, 63
        %v3542 = vpop.permute.xlu0 %3541
        %3543 = vrot.lane.b32.xlu0 %v2945, 63
        %v3544 = vpop.permute.xlu0 %3543
        %3545 = vrot.lane.b32.xlu0 %v2946, 63
        %v3546 = vpop.permute.xlu0 %3545
        %3547 = vrot.lane.b32.xlu0 %v2947, 63
        %v3548 = vpop.permute.xlu0 %3547
        %3549 = vrot.lane.b32.xlu0 %v2948, 63
        %v3550 = vpop.permute.xlu0 %3549
        %3551 = vrot.lane.b32.xlu0 %v2949, 63
        %v3552 = vpop.permute.xlu0 %3551
        %3553 = vrot.lane.b32.xlu0 %v2950, 63
        %v3554 = vpop.permute.xlu0 %3553
        %3555 = vrot.lane.b32.xlu0 %v2951, 63
        %v3556 = vpop.permute.xlu0 %3555
        %3557 = vrot.lane.b32.xlu0 %v2952, 63
        %v3558 = vpop.permute.xlu0 %3557
        %v3559 = vsel %vm499, %v3494, %v3496
        %v3560 = vsel %vm499, %v3496, %v3498
        %v3561 = vsel %vm499, %v3498, %v3500
        %v3562 = vsel %vm499, %v3500, %v3502
        %v3563 = vsel %vm499, %v3502, %v3504
        %v3564 = vsel %vm499, %v3504, %v3506
        %v3565 = vsel %vm499, %v3506, %v3508
        %v3566 = vsel %vm499, %v3508, %v3510
        %v3567 = vsel %vm499, %v3510, %v3512
        %v3568 = vsel %vm499, %v3512, %v3514
        %v3569 = vsel %vm499, %v3514, %v3516
        %v3570 = vsel %vm499, %v3516, %v3518
        %v3571 = vsel %vm499, %v3518, %v3520
        %v3572 = vsel %vm499, %v3520, %v3522
        %v3573 = vsel %vm499, %v3522, %v3524
        %v3574 = vsel %vm499, %v3524, %v3526
        %v3575 = vsel %vm499, %v3526, %v3528
        %v3576 = vsel %vm499, %v3528, %v3530
        %v3577 = vsel %vm499, %v3530, %v3532
        %v3578 = vsel %vm499, %v3532, %v3534
        %v3579 = vsel %vm499, %v3534, %v3536
        %v3580 = vsel %vm499, %v3536, %v3538
        %v3581 = vsel %vm499, %v3538, %v3540
        %v3582 = vsel %vm499, %v3540, %v3542
        %v3583 = vsel %vm499, %v3542, %v3544
        %v3584 = vsel %vm499, %v3544, %v3546
        %v3585 = vsel %vm499, %v3546, %v3548
        %v3586 = vsel %vm499, %v3548, %v3550
        %v3587 = vsel %vm499, %v3550, %v3552
        %v3588 = vsel %vm499, %v3552, %v3554
        %v3589 = vsel %vm499, %v3554, %v3556
        %v3590 = vsel %vm499, %v3556, %v3558
        %v3591 = vsel %vm499, %v3558, %v2867
        %3592 = vrot.lane.b32.xlu0 %v2920, 62
        %v3593 = vpop.permute.xlu0 %3592
        %3594 = vrot.lane.b32.xlu0 %v2921, 62
        %v3595 = vpop.permute.xlu0 %3594
        %3596 = vrot.lane.b32.xlu0 %v2922, 62
        %v3597 = vpop.permute.xlu0 %3596
        %3598 = vrot.lane.b32.xlu0 %v2923, 62
        %v3599 = vpop.permute.xlu0 %3598
        %3600 = vrot.lane.b32.xlu0 %v2924, 62
        %v3601 = vpop.permute.xlu0 %3600
        %3602 = vrot.lane.b32.xlu0 %v2925, 62
        %v3603 = vpop.permute.xlu0 %3602
        %3604 = vrot.lane.b32.xlu0 %v2926, 62
        %v3605 = vpop.permute.xlu0 %3604
        %3606 = vrot.lane.b32.xlu0 %v2927, 62
        %v3607 = vpop.permute.xlu0 %3606
        %3608 = vrot.lane.b32.xlu0 %v2928, 62
        %v3609 = vpop.permute.xlu0 %3608
        %3610 = vrot.lane.b32.xlu0 %v2929, 62
        %v3611 = vpop.permute.xlu0 %3610
        %3612 = vrot.lane.b32.xlu0 %v2930, 62
        %v3613 = vpop.permute.xlu0 %3612
        %3614 = vrot.lane.b32.xlu0 %v2931, 62
        %v3615 = vpop.permute.xlu0 %3614
        %3616 = vrot.lane.b32.xlu0 %v2932, 62
        %v3617 = vpop.permute.xlu0 %3616
        %3618 = vrot.lane.b32.xlu0 %v2933, 62
        %v3619 = vpop.permute.xlu0 %3618
        %3620 = vrot.lane.b32.xlu0 %v2934, 62
        %v3621 = vpop.permute.xlu0 %3620
        %3622 = vrot.lane.b32.xlu0 %v2935, 62
        %v3623 = vpop.permute.xlu0 %3622
        %3624 = vrot.lane.b32.xlu0 %v2936, 62
        %v3625 = vpop.permute.xlu0 %3624
        %3626 = vrot.lane.b32.xlu0 %v2937, 62
        %v3627 = vpop.permute.xlu0 %3626
        %3628 = vrot.lane.b32.xlu0 %v2938, 62
        %v3629 = vpop.permute.xlu0 %3628
        %3630 = vrot.lane.b32.xlu0 %v2939, 62
        %v3631 = vpop.permute.xlu0 %3630
        %3632 = vrot.lane.b32.xlu0 %v2940, 62
        %v3633 = vpop.permute.xlu0 %3632
        %3634 = vrot.lane.b32.xlu0 %v2941, 62
        %v3635 = vpop.permute.xlu0 %3634
        %3636 = vrot.lane.b32.xlu0 %v2942, 62
        %v3637 = vpop.permute.xlu0 %3636
        %3638 = vrot.lane.b32.xlu0 %v2943, 62
        %v3639 = vpop.permute.xlu0 %3638
        %3640 = vrot.lane.b32.xlu0 %v2944, 62
        %v3641 = vpop.permute.xlu0 %3640
        %3642 = vrot.lane.b32.xlu0 %v2945, 62
        %v3643 = vpop.permute.xlu0 %3642
        %3644 = vrot.lane.b32.xlu0 %v2946, 62
        %v3645 = vpop.permute.xlu0 %3644
        %3646 = vrot.lane.b32.xlu0 %v2947, 62
        %v3647 = vpop.permute.xlu0 %3646
        %3648 = vrot.lane.b32.xlu0 %v2948, 62
        %v3649 = vpop.permute.xlu0 %3648
        %3650 = vrot.lane.b32.xlu0 %v2949, 62
        %v3651 = vpop.permute.xlu0 %3650
        %3652 = vrot.lane.b32.xlu0 %v2950, 62
        %v3653 = vpop.permute.xlu0 %3652
        %3654 = vrot.lane.b32.xlu0 %v2951, 62
        %v3655 = vpop.permute.xlu0 %3654
        %3656 = vrot.lane.b32.xlu0 %v2952, 62
        %v3657 = vpop.permute.xlu0 %3656
        %v3658 = vsel %vm693, %v3593, %v3595
        %v3659 = vsel %vm693, %v3595, %v3597
        %v3660 = vsel %vm693, %v3597, %v3599
        %v3661 = vsel %vm693, %v3599, %v3601
        %v3662 = vsel %vm693, %v3601, %v3603
        %v3663 = vsel %vm693, %v3603, %v3605
        %v3664 = vsel %vm693, %v3605, %v3607
        %v3665 = vsel %vm693, %v3607, %v3609
        %v3666 = vsel %vm693, %v3609, %v3611
        %v3667 = vsel %vm693, %v3611, %v3613
        %v3668 = vsel %vm693, %v3613, %v3615
        %v3669 = vsel %vm693, %v3615, %v3617
        %v3670 = vsel %vm693, %v3617, %v3619
        %v3671 = vsel %vm693, %v3619, %v3621
        %v3672 = vsel %vm693, %v3621, %v3623
        %v3673 = vsel %vm693, %v3623, %v3625
        %v3674 = vsel %vm693, %v3625, %v3627
        %v3675 = vsel %vm693, %v3627, %v3629
        %v3676 = vsel %vm693, %v3629, %v3631
        %v3677 = vsel %vm693, %v3631, %v3633
        %v3678 = vsel %vm693, %v3633, %v3635
        %v3679 = vsel %vm693, %v3635, %v3637
        %v3680 = vsel %vm693, %v3637, %v3639
        %v3681 = vsel %vm693, %v3639, %v3641
        %v3682 = vsel %vm693, %v3641, %v3643
        %v3683 = vsel %vm693, %v3643, %v3645
        %v3684 = vsel %vm693, %v3645, %v3647
        %v3685 = vsel %vm693, %v3647, %v3649
        %v3686 = vsel %vm693, %v3649, %v3651
        %v3687 = vsel %vm693, %v3651, %v3653
        %v3688 = vsel %vm693, %v3653, %v3655
        %v3689 = vsel %vm693, %v3655, %v3657
        %v3690 = vsel %vm693, %v3657, %v3058
        %3691 = vrot.lane.b32.xlu0 %v2920, 61
        %v3692 = vpop.permute.xlu0 %3691
        %3693 = vrot.lane.b32.xlu0 %v2921, 61
        %v3694 = vpop.permute.xlu0 %3693
        %3695 = vrot.lane.b32.xlu0 %v2922, 61
        %v3696 = vpop.permute.xlu0 %3695
        %3697 = vrot.lane.b32.xlu0 %v2923, 61
        %v3698 = vpop.permute.xlu0 %3697
        %3699 = vrot.lane.b32.xlu0 %v2924, 61
        %v3700 = vpop.permute.xlu0 %3699
        %3701 = vrot.lane.b32.xlu0 %v2925, 61
        %v3702 = vpop.permute.xlu0 %3701
        %3703 = vrot.lane.b32.xlu0 %v2926, 61
        %v3704 = vpop.permute.xlu0 %3703
        %3705 = vrot.lane.b32.xlu0 %v2927, 61
        %v3706 = vpop.permute.xlu0 %3705
        %3707 = vrot.lane.b32.xlu0 %v2928, 61
        %v3708 = vpop.permute.xlu0 %3707
        %3709 = vrot.lane.b32.xlu0 %v2929, 61
        %v3710 = vpop.permute.xlu0 %3709
        %3711 = vrot.lane.b32.xlu0 %v2930, 61
        %v3712 = vpop.permute.xlu0 %3711
        %3713 = vrot.lane.b32.xlu0 %v2931, 61
        %v3714 = vpop.permute.xlu0 %3713
        %3715 = vrot.lane.b32.xlu0 %v2932, 61
        %v3716 = vpop.permute.xlu0 %3715
        %3717 = vrot.lane.b32.xlu0 %v2933, 61
        %v3718 = vpop.permute.xlu0 %3717
        %3719 = vrot.lane.b32.xlu0 %v2934, 61
        %v3720 = vpop.permute.xlu0 %3719
        %3721 = vrot.lane.b32.xlu0 %v2935, 61
        %v3722 = vpop.permute.xlu0 %3721
        %3723 = vrot.lane.b32.xlu0 %v2936, 61
        %v3724 = vpop.permute.xlu0 %3723
        %3725 = vrot.lane.b32.xlu0 %v2937, 61
        %v3726 = vpop.permute.xlu0 %3725
        %3727 = vrot.lane.b32.xlu0 %v2938, 61
        %v3728 = vpop.permute.xlu0 %3727
        %3729 = vrot.lane.b32.xlu0 %v2939, 61
        %v3730 = vpop.permute.xlu0 %3729
        %3731 = vrot.lane.b32.xlu0 %v2940, 61
        %v3732 = vpop.permute.xlu0 %3731
        %3733 = vrot.lane.b32.xlu0 %v2941, 61
        %v3734 = vpop.permute.xlu0 %3733
        %3735 = vrot.lane.b32.xlu0 %v2942, 61
        %v3736 = vpop.permute.xlu0 %3735
        %3737 = vrot.lane.b32.xlu0 %v2943, 61
        %v3738 = vpop.permute.xlu0 %3737
        %3739 = vrot.lane.b32.xlu0 %v2944, 61
        %v3740 = vpop.permute.xlu0 %3739
        %3741 = vrot.lane.b32.xlu0 %v2945, 61
        %v3742 = vpop.permute.xlu0 %3741
        %3743 = vrot.lane.b32.xlu0 %v2946, 61
        %v3744 = vpop.permute.xlu0 %3743
        %3745 = vrot.lane.b32.xlu0 %v2947, 61
        %v3746 = vpop.permute.xlu0 %3745
        %3747 = vrot.lane.b32.xlu0 %v2948, 61
        %v3748 = vpop.permute.xlu0 %3747
        %3749 = vrot.lane.b32.xlu0 %v2949, 61
        %v3750 = vpop.permute.xlu0 %3749
        %3751 = vrot.lane.b32.xlu0 %v2950, 61
        %v3752 = vpop.permute.xlu0 %3751
        %3753 = vrot.lane.b32.xlu0 %v2951, 61
        %v3754 = vpop.permute.xlu0 %3753
        %3755 = vrot.lane.b32.xlu0 %v2952, 61
        %v3756 = vpop.permute.xlu0 %3755
        %v3757 = vsel %vm805, %v3692, %v3694
        %v3758 = vsel %vm805, %v3694, %v3696
        %v3759 = vsel %vm805, %v3696, %v3698
        %v3760 = vsel %vm805, %v3698, %v3700
        %v3761 = vsel %vm805, %v3700, %v3702
        %v3762 = vsel %vm805, %v3702, %v3704
        %v3763 = vsel %vm805, %v3704, %v3706
        %v3764 = vsel %vm805, %v3706, %v3708
        %v3765 = vsel %vm805, %v3708, %v3710
        %v3766 = vsel %vm805, %v3710, %v3712
        %v3767 = vsel %vm805, %v3712, %v3714
        %v3768 = vsel %vm805, %v3714, %v3716
        %v3769 = vsel %vm805, %v3716, %v3718
        %v3770 = vsel %vm805, %v3718, %v3720
        %v3771 = vsel %vm805, %v3720, %v3722
        %v3772 = vsel %vm805, %v3722, %v3724
        %v3773 = vsel %vm805, %v3724, %v3726
        %v3774 = vsel %vm805, %v3726, %v3728
        %v3775 = vsel %vm805, %v3728, %v3730
        %v3776 = vsel %vm805, %v3730, %v3732
        %v3777 = vsel %vm805, %v3732, %v3734
        %v3778 = vsel %vm805, %v3734, %v3736
        %v3779 = vsel %vm805, %v3736, %v3738
        %v3780 = vsel %vm805, %v3738, %v3740
        %v3781 = vsel %vm805, %v3740, %v3742
        %v3782 = vsel %vm805, %v3742, %v3744
        %v3783 = vsel %vm805, %v3744, %v3746
        %v3784 = vsel %vm805, %v3746, %v3748
        %v3785 = vsel %vm805, %v3748, %v3750
        %v3786 = vsel %vm805, %v3750, %v3752
        %v3787 = vsel %vm805, %v3752, %v3754
        %v3788 = vsel %vm805, %v3754, %v3756
        %v3789 = vsel %vm805, %v3756, %v3167
        %v3791 = vrot.slane %v3165, 4
        %v3792 = vrot.slane %v3130, 4
        %v3793 = vrot.slane %v3131, 4
        %v3794 = vrot.slane %v3132, 4
        %v3795 = vrot.slane %v3133, 4
        %v3796 = vrot.slane %v3134, 4
        %v3797 = vrot.slane %v3135, 4
        %v3798 = vrot.slane %v3136, 4
        %v3799 = vrot.slane %v3137, 4
        %v3800 = vrot.slane %v3138, 4
        %v3801 = vrot.slane %v3139, 4
        %v3802 = vrot.slane %v3140, 4
        %v3803 = vrot.slane %v3141, 4
        %v3804 = vrot.slane %v3142, 4
        %v3805 = vrot.slane %v3143, 4
        %v3806 = vrot.slane %v3144, 4
        %v3807 = vrot.slane %v3145, 4
        %v3808 = vrot.slane %v3146, 4
        %v3809 = vrot.slane %v3147, 4
        %v3810 = vrot.slane %v3148, 4
        %v3811 = vrot.slane %v3149, 4
        %v3812 = vrot.slane %v3150, 4
        %v3813 = vrot.slane %v3151, 4
        %v3814 = vrot.slane %v3152, 4
        %v3815 = vrot.slane %v3153, 4
        %v3816 = vrot.slane %v3154, 4
        %v3817 = vrot.slane %v3155, 4
        %v3818 = vrot.slane %v3156, 4
        %v3819 = vrot.slane %v3157, 4
        %v3820 = vrot.slane %v3158, 4
        %v3821 = vrot.slane %v3159, 4
        %v3822 = vrot.slane %v3160, 4
        %v3823 = vrot.slane %v3161, 4
        %v3824 = vrot.slane %v3162, 4
        %v3825 = vrot.slane %v3129, 4
        %v3827 = vrot.slane %v3383, 4
        %v3828 = vrot.slane %v3347, 4
        %v3829 = vrot.slane %v3348, 4
        %v3830 = vrot.slane %v3349, 4
        %v3831 = vrot.slane %v3350, 4
        %v3832 = vrot.slane %v3351, 4
        %v3833 = vrot.slane %v3352, 4
        %v3834 = vrot.slane %v3353, 4
        %v3835 = vrot.slane %v3354, 4
        %v3836 = vrot.slane %v3355, 4
        %v3837 = vrot.slane %v3356, 4
        %v3838 = vrot.slane %v3357, 4
        %v3839 = vrot.slane %v3358, 4
        %v3840 = vrot.slane %v3359, 4
        %v3841 = vrot.slane %v3360, 4
        %v3842 = vrot.slane %v3361, 4
        %v3843 = vrot.slane %v3362, 4
        %v3844 = vrot.slane %v3363, 4
        %v3845 = vrot.slane %v3364, 4
        %v3846 = vrot.slane %v3365, 4
        %v3847 = vrot.slane %v3366, 4
        %v3848 = vrot.slane %v3367, 4
        %v3849 = vrot.slane %v3368, 4
        %v3850 = vrot.slane %v3369, 4
        %v3851 = vrot.slane %v3370, 4
        %v3852 = vrot.slane %v3371, 4
        %v3853 = vrot.slane %v3372, 4
        %v3854 = vrot.slane %v3373, 4
        %v3855 = vrot.slane %v3374, 4
        %v3856 = vrot.slane %v3375, 4
        %v3857 = vrot.slane %v3376, 4
        %v3858 = vrot.slane %v3377, 4
        %v3859 = vrot.slane %v3378, 4
        %v3860 = vrot.slane %v3379, 4
        %v3861 = vrot.slane %v3380, 4
        %v3863 = vrot.slane %v3454, 4
        %v3864 = vrot.slane %v3455, 4
        %v3865 = vrot.slane %v3456, 4
        %v3866 = vrot.slane %v3457, 4
        %v3867 = vrot.slane %v3458, 4
        %v3868 = vrot.slane %v3459, 4
        %v3869 = vrot.slane %v3460, 4
        %v3870 = vrot.slane %v3461, 4
        %v3871 = vrot.slane %v3462, 4
        %v3872 = vrot.slane %v3463, 4
        %v3873 = vrot.slane %v3464, 4
        %v3874 = vrot.slane %v3465, 4
        %v3875 = vrot.slane %v3466, 4
        %v3876 = vrot.slane %v3467, 4
        %v3877 = vrot.slane %v3468, 4
        %v3878 = vrot.slane %v3469, 4
        %v3879 = vrot.slane %v3470, 4
        %v3880 = vrot.slane %v3471, 4
        %v3881 = vrot.slane %v3472, 4
        %v3882 = vrot.slane %v3473, 4
        %v3883 = vrot.slane %v3474, 4
        %v3884 = vrot.slane %v3475, 4
        %v3885 = vrot.slane %v3476, 4
        %v3886 = vrot.slane %v3477, 4
        %v3887 = vrot.slane %v3478, 4
        %v3888 = vrot.slane %v3479, 4
        %v3889 = vrot.slane %v3480, 4
        %v3890 = vrot.slane %v3481, 4
        %v3891 = vrot.slane %v3482, 4
        %v3892 = vrot.slane %v3483, 4
        %v3893 = vrot.slane %v3484, 4
        %v3894 = vrot.slane %v3485, 4
        %v3895 = vrot.slane %v3486, 4
        %v3896 = vrot.slane %v3487, 4
        %v3897 = vrot.slane %v3492, 4
        %v3898 = vrot.slane %v3658, 4
        %v3899 = vrot.slane %v3659, 4
        %v3900 = vrot.slane %v3660, 4
        %v3901 = vrot.slane %v3661, 4
        %v3902 = vrot.slane %v3662, 4
        %v3903 = vrot.slane %v3663, 4
        %v3904 = vrot.slane %v3664, 4
        %v3905 = vrot.slane %v3665, 4
        %v3906 = vrot.slane %v3666, 4
        %v3907 = vrot.slane %v3667, 4
        %v3908 = vrot.slane %v3668, 4
        %v3909 = vrot.slane %v3669, 4
        %v3910 = vrot.slane %v3670, 4
        %v3911 = vrot.slane %v3671, 4
        %v3912 = vrot.slane %v3672, 4
        %v3913 = vrot.slane %v3673, 4
        %v3914 = vrot.slane %v3674, 4
        %v3915 = vrot.slane %v3675, 4
        %v3916 = vrot.slane %v3676, 4
        %v3917 = vrot.slane %v3677, 4
        %v3918 = vrot.slane %v3678, 4
        %v3919 = vrot.slane %v3679, 4
        %v3920 = vrot.slane %v3680, 4
        %v3921 = vrot.slane %v3681, 4
        %v3922 = vrot.slane %v3682, 4
        %v3923 = vrot.slane %v3683, 4
        %v3924 = vrot.slane %v3684, 4
        %v3925 = vrot.slane %v3685, 4
        %v3926 = vrot.slane %v3686, 4
        %v3927 = vrot.slane %v3687, 4
        %v3928 = vrot.slane %v3688, 4
        %v3929 = vrot.slane %v3689, 4
        %v3930 = vrot.slane %v3690, 4
        %v3931 = vrot.slane %v3063, 4
        %v3933 = vsel %vm1574, %v3056, %v3791
        %v3937 = vsel %vm1574, %v3021, %v3792
        %v3941 = vsel %vm1574, %v3022, %v3793
        %v3945 = vsel %vm1574, %v3023, %v3794
        %v3949 = vsel %vm1574, %v3024, %v3795
        %v3953 = vsel %vm1574, %v3025, %v3796
        %v3957 = vsel %vm1574, %v3026, %v3797
        %v3961 = vsel %vm1574, %v3027, %v3798
        %v3965 = vsel %vm1574, %v3028, %v3799
        %v3969 = vsel %vm1574, %v3029, %v3800
        %v3973 = vsel %vm1574, %v3030, %v3801
        %v3977 = vsel %vm1574, %v3031, %v3802
        %v3981 = vsel %vm1574, %v3032, %v3803
        %v3985 = vsel %vm1574, %v3033, %v3804
        %v3989 = vsel %vm1574, %v3034, %v3805
        %v3993 = vsel %vm1574, %v3035, %v3806
        %v3997 = vsel %vm1574, %v3036, %v3807
        %v4001 = vsel %vm1574, %v3037, %v3808
        %v4005 = vsel %vm1574, %v3038, %v3809
        %v4009 = vsel %vm1574, %v3039, %v3810
        %v4013 = vsel %vm1574, %v3040, %v3811
        %v4017 = vsel %vm1574, %v3041, %v3812
        %v4021 = vsel %vm1574, %v3042, %v3813
        %v4025 = vsel %vm1574, %v3043, %v3814
        %v4029 = vsel %vm1574, %v3044, %v3815
        %v4033 = vsel %vm1574, %v3045, %v3816
        %v4037 = vsel %vm1574, %v3046, %v3817
        %v4041 = vsel %vm1574, %v3047, %v3818
        %v4045 = vsel %vm1574, %v3048, %v3819
        %v4049 = vsel %vm1574, %v3049, %v3820
        %v4053 = vsel %vm1574, %v3050, %v3821
        %v4057 = vsel %vm1574, %v3051, %v3822
        %v4061 = vsel %vm1574, %v3052, %v3823
        %v4065 = vsel %vm1574, %v3053, %v3824
        %v4069 = vsel %vm1574, %v3020, %v3825
        %v4072 = vsel %vm1574, %v3274, %v3827
        %v4076 = vsel %vm1574, %v3239, %v3828
        %v4080 = vsel %vm1574, %v3240, %v3829
        %v4084 = vsel %vm1574, %v3241, %v3830
        %v4088 = vsel %vm1574, %v3242, %v3831
        %v4092 = vsel %vm1574, %v3243, %v3832
        %v4096 = vsel %vm1574, %v3244, %v3833
        %v4100 = vsel %vm1574, %v3245, %v3834
        %v4104 = vsel %vm1574, %v3246, %v3835
        %v4108 = vsel %vm1574, %v3247, %v3836
        %v4112 = vsel %vm1574, %v3248, %v3837
        %v4116 = vsel %vm1574, %v3249, %v3838
        %v4120 = vsel %vm1574, %v3250, %v3839
        %v4124 = vsel %vm1574, %v3251, %v3840
        %v4128 = vsel %vm1574, %v3252, %v3841
        %v4132 = vsel %vm1574, %v3253, %v3842
        %v4136 = vsel %vm1574, %v3254, %v3843
        %v4140 = vsel %vm1574, %v3255, %v3844
        %v4144 = vsel %vm1574, %v3256, %v3845
        %v4148 = vsel %vm1574, %v3257, %v3846
        %v4152 = vsel %vm1574, %v3258, %v3847
        %v4156 = vsel %vm1574, %v3259, %v3848
        %v4160 = vsel %vm1574, %v3260, %v3849
        %v4164 = vsel %vm1574, %v3261, %v3850
        %v4168 = vsel %vm1574, %v3262, %v3851
        %v4172 = vsel %vm1574, %v3263, %v3852
        %v4176 = vsel %vm1574, %v3264, %v3853
        %v4180 = vsel %vm1574, %v3265, %v3854
        %v4184 = vsel %vm1574, %v3266, %v3855
        %v4188 = vsel %vm1574, %v3267, %v3856
        %v4192 = vsel %vm1574, %v3268, %v3857
        %v4196 = vsel %vm1574, %v3269, %v3858
        %v4200 = vsel %vm1574, %v3270, %v3859
        %v4204 = vsel %vm1574, %v3271, %v3860
        %v4208 = vsel %vm1574, %v3238, %v3861
        %v4212 = vsel %vm1574, %v2920, %v3863
        %v4216 = vsel %vm1574, %v2921, %v3864
        %v4220 = vsel %vm1574, %v2922, %v3865
        %v4224 = vsel %vm1574, %v2923, %v3866
        %v4228 = vsel %vm1574, %v2924, %v3867
        %v4232 = vsel %vm1574, %v2925, %v3868
        %v4236 = vsel %vm1574, %v2926, %v3869
        %v4240 = vsel %vm1574, %v2927, %v3870
        %v4244 = vsel %vm1574, %v2928, %v3871
        %v4248 = vsel %vm1574, %v2929, %v3872
        %v4252 = vsel %vm1574, %v2930, %v3873
        %v4256 = vsel %vm1574, %v2931, %v3874
        %v4260 = vsel %vm1574, %v2932, %v3875
        %v4264 = vsel %vm1574, %v2933, %v3876
        %v4268 = vsel %vm1574, %v2934, %v3877
        %v4272 = vsel %vm1574, %v2935, %v3878
        %v4276 = vsel %vm1574, %v2936, %v3879
        %v4280 = vsel %vm1574, %v2937, %v3880
        %v4284 = vsel %vm1574, %v2938, %v3881
        %v4288 = vsel %vm1574, %v2939, %v3882
        %v4292 = vsel %vm1574, %v2940, %v3883
        %v4296 = vsel %vm1574, %v2941, %v3884
        %v4300 = vsel %vm1574, %v2942, %v3885
        %v4304 = vsel %vm1574, %v2943, %v3886
        %v4308 = vsel %vm1574, %v2944, %v3887
        %v4312 = vsel %vm1574, %v2945, %v3888
        %v4316 = vsel %vm1574, %v2946, %v3889
        %v4320 = vsel %vm1574, %v2947, %v3890
        %v4324 = vsel %vm1574, %v2948, %v3891
        %v4328 = vsel %vm1574, %v2949, %v3892
        %v4332 = vsel %vm1574, %v2950, %v3893
        %v4336 = vsel %vm1574, %v2951, %v3894
        %v4340 = vsel %vm1574, %v2952, %v3895
        %v4344 = vsel %vm1574, %v2864, %v3896
        %v4348 = vsel %vm1574, %v2865, %v3897
        %v4352 = vsel %vm1574, %v3559, %v3898
        %v4356 = vsel %vm1574, %v3560, %v3899
        %v4360 = vsel %vm1574, %v3561, %v3900
        %v4364 = vsel %vm1574, %v3562, %v3901
        %v4368 = vsel %vm1574, %v3563, %v3902
        %v4372 = vsel %vm1574, %v3564, %v3903
        %v4376 = vsel %vm1574, %v3565, %v3904
        %v4380 = vsel %vm1574, %v3566, %v3905
        %v4384 = vsel %vm1574, %v3567, %v3906
        %v4388 = vsel %vm1574, %v3568, %v3907
        %v4392 = vsel %vm1574, %v3569, %v3908
        %v4396 = vsel %vm1574, %v3570, %v3909
        %v4400 = vsel %vm1574, %v3571, %v3910
        %v4404 = vsel %vm1574, %v3572, %v3911
        %v4408 = vsel %vm1574, %v3573, %v3912
        %v4412 = vsel %vm1574, %v3574, %v3913
        %v4416 = vsel %vm1574, %v3575, %v3914
        %v4420 = vsel %vm1574, %v3576, %v3915
        %v4424 = vsel %vm1574, %v3577, %v3916
        %v4428 = vsel %vm1574, %v3578, %v3917
        %v4432 = vsel %vm1574, %v3579, %v3918
        %v4436 = vsel %vm1574, %v3580, %v3919
        %v4440 = vsel %vm1574, %v3581, %v3920
        %v4444 = vsel %vm1574, %v3582, %v3921
        %v4448 = vsel %vm1574, %v3583, %v3922
        %v4452 = vsel %vm1574, %v3584, %v3923
        %v4456 = vsel %vm1574, %v3585, %v3924
        %v4460 = vsel %vm1574, %v3586, %v3925
        %v4464 = vsel %vm1574, %v3587, %v3926
        %v4468 = vsel %vm1574, %v3588, %v3927
        %v4472 = vsel %vm1574, %v3589, %v3928
        %v4476 = vsel %vm1574, %v3590, %v3929
        %v4480 = vsel %vm1574, %v3591, %v3930
        %v4483 = vsel %vm1574, %v2954, %v3931
        %v4485 = vld [vmem:[%s4] sm:$0xf]
        %v4486 = vld [vmem:[%s5] sm:$0xff]
        %4488 = vset.pattern.permute.xlu0 0
        %4489 = vperm.xlu0 %4488, %v4486
        %v4490 = vpop.permute.xlu0 %4489
        %v4493 = vsel %vm2135, %v4485, 0
        %v4496 = vsel %vm1574, %v3757, 0
        %v4499 = vsel %vm1574, %v3758, 0
        %v4502 = vsel %vm1574, %v3759, 0
        %v4505 = vsel %vm1574, %v3760, 0
        %v4508 = vsel %vm1574, %v3761, 0
        %v4511 = vsel %vm1574, %v3762, 0
        %v4514 = vsel %vm1574, %v3763, 0
        %v4517 = vsel %vm1574, %v3764, 0
        %v4520 = vsel %vm1574, %v3765, 0
        %v4523 = vsel %vm1574, %v3766, 0
        %v4526 = vsel %vm1574, %v3767, 0
        %v4529 = vsel %vm1574, %v3768, 0
        %v4532 = vsel %vm1574, %v3769, 0
        %v4535 = vsel %vm1574, %v3770, 0
        %v4538 = vsel %vm1574, %v3771, 0
        %v4541 = vsel %vm1574, %v3772, 0
        %v4544 = vsel %vm1574, %v3773, 0
        %v4547 = vsel %vm1574, %v3774, 0
        %v4550 = vsel %vm1574, %v3775, 0
        %v4553 = vsel %vm1574, %v3776, 0
        %v4556 = vsel %vm1574, %v3777, 0
        %v4559 = vsel %vm1574, %v3778, 0
        %v4562 = vsel %vm1574, %v3779, 0
        %v4565 = vsel %vm1574, %v3780, 0
        %v4568 = vsel %vm1574, %v3781, 0
        %v4571 = vsel %vm1574, %v3782, 0
        %v4574 = vsel %vm1574, %v3783, 0
        %v4577 = vsel %vm1574, %v3784, 0
        %v4580 = vsel %vm1574, %v3785, 0
        %v4583 = vsel %vm1574, %v3786, 0
        %v4586 = vsel %vm1574, %v3787, 0
        %v4589 = vsel %vm1574, %v3788, 0
        %v4592 = vsel %vm1574, %v3789, 0
        %v4594 = vsel %vm1574, %v3274, 0
        %v4596 = vsel %vm1574, %v3172, 0
        %4598 = vmatpush.bf16.msra.mxu0 0
        %4599 = vmatpush.bf16.msra.mxu0 0
        %4600 = vmatpush.bf16.msra.mxu0 0
        %4601 = vmatpush.bf16.msra.mxu0 %v4496
        %4602 = vmatpush.bf16.msra.mxu0 %v4352
        %4603 = vmatpush.bf16.msra.mxu0 %v4212
        %4604 = vmatpush.bf16.msra.mxu0 %v4072
        %4605 = vmatpush.bf16.msra.mxu0 %v3933
        %4606 = vmatmul.bf16.gmra.mxu0 %v4493
        %v4607 = vpop.f32.mrf.mxu0
        %v4608 = vadd.f32 %v4490, %v4607
        %v4609 = vpop.f32.mrf.mxu0
        %4610 = vdwg.mxu0
        %4611 = vmatpush.bf16.msra.mxu0 0
        %4612 = vmatpush.bf16.msra.mxu0 0
        %4613 = vmatpush.bf16.msra.mxu0 0
        %4614 = vmatpush.bf16.msra.mxu0 %v4499
        %4615 = vmatpush.bf16.msra.mxu0 %v4356
        %4616 = vmatpush.bf16.msra.mxu0 %v4216
        %4617 = vmatpush.bf16.msra.mxu0 %v4076
        %4618 = vmatpush.bf16.msra.mxu0 %v3937
        %4619 = vmatmul.bf16.gmra.mxu0 %v4493
        %v4620 = vpop.f32.mrf.mxu0
        %v4621 = vadd.f32 %v4490, %v4620
        %v4622 = vpop.f32.mrf.mxu0
        %4623 = vdwg.mxu0
        %4624 = vmatpush.bf16.msra.mxu0 0
        %4625 = vmatpush.bf16.msra.mxu0 0
        %4626 = vmatpush.bf16.msra.mxu0 0
        %4627 = vmatpush.bf16.msra.mxu0 %v4502
        %4628 = vmatpush.bf16.msra.mxu0 %v4360
        %4629 = vmatpush.bf16.msra.mxu0 %v4220
        %4630 = vmatpush.bf16.msra.mxu0 %v4080
        %4631 = vmatpush.bf16.msra.mxu0 %v3941
        %4632 = vmatmul.bf16.gmra.mxu0 %v4493
        %v4633 = vpop.f32.mrf.mxu0
        %v4634 = vadd.f32 %v4490, %v4633
        %v4635 = vpop.f32.mrf.mxu0
        %4636 = vdwg.mxu0
        %4637 = vmatpush.bf16.msra.mxu0 0
        %4638 = vmatpush.bf16.msra.mxu0 0
        %4639 = vmatpush.bf16.msra.mxu0 0
        %4640 = vmatpush.bf16.msra.mxu0 %v4505
        %4641 = vmatpush.bf16.msra.mxu0 %v4364
        %4642 = vmatpush.bf16.msra.mxu0 %v4224
        %4643 = vmatpush.bf16.msra.mxu0 %v4084
        %4644 = vmatpush.bf16.msra.mxu0 %v3945
        %4645 = vmatmul.bf16.gmra.mxu0 %v4493
        %v4646 = vpop.f32.mrf.mxu0
        %v4647 = vadd.f32 %v4490, %v4646
        %v4648 = vpop.f32.mrf.mxu0
        %4649 = vdwg.mxu0
        %4650 = vmatpush.bf16.msra.mxu0 0
        %4651 = vmatpush.bf16.msra.mxu0 0
        %4652 = vmatpush.bf16.msra.mxu0 0
        %4653 = vmatpush.bf16.msra.mxu0 %v4508
        %4654 = vmatpush.bf16.msra.mxu0 %v4368
        %4655 = vmatpush.bf16.msra.mxu0 %v4228
        %4656 = vmatpush.bf16.msra.mxu0 %v4088
        %4657 = vmatpush.bf16.msra.mxu0 %v3949
        %4658 = vmatmul.bf16.gmra.mxu0 %v4493
        %v4659 = vpop.f32.mrf.mxu0
        %v4660 = vadd.f32 %v4490, %v4659
        %v4661 = vpop.f32.mrf.mxu0
        %4662 = vdwg.mxu0
        %4663 = vmatpush.bf16.msra.mxu0 0
        %4664 = vmatpush.bf16.msra.mxu0 0
        %4665 = vmatpush.bf16.msra.mxu0 0
        %4666 = vmatpush.bf16.msra.mxu0 %v4511
        %4667 = vmatpush.bf16.msra.mxu0 %v4372
        %4668 = vmatpush.bf16.msra.mxu0 %v4232
        %4669 = vmatpush.bf16.msra.mxu0 %v4092
        %4670 = vmatpush.bf16.msra.mxu0 %v3953
        %4671 = vmatmul.bf16.gmra.mxu0 %v4493
        %v4672 = vpop.f32.mrf.mxu0
        %v4673 = vadd.f32 %v4490, %v4672
        %v4674 = vpop.f32.mrf.mxu0
        %4675 = vdwg.mxu0
        %4676 = vmatpush.bf16.msra.mxu0 0
        %4677 = vmatpush.bf16.msra.mxu0 0
        %4678 = vmatpush.bf16.msra.mxu0 0
        %4679 = vmatpush.bf16.msra.mxu0 %v4514
        %4680 = vmatpush.bf16.msra.mxu0 %v4376
        %4681 = vmatpush.bf16.msra.mxu0 %v4236
        %4682 = vmatpush.bf16.msra.mxu0 %v4096
        %4683 = vmatpush.bf16.msra.mxu0 %v3957
        %4684 = vmatmul.bf16.gmra.mxu0 %v4493
        %v4685 = vpop.f32.mrf.mxu0
        %v4686 = vadd.f32 %v4490, %v4685
        %v4687 = vpop.f32.mrf.mxu0
        %4688 = vdwg.mxu0
        %4689 = vmatpush.bf16.msra.mxu0 0
        %4690 = vmatpush.bf16.msra.mxu0 0
        %4691 = vmatpush.bf16.msra.mxu0 0
        %4692 = vmatpush.bf16.msra.mxu0 %v4517
        %4693 = vmatpush.bf16.msra.mxu0 %v4380
        %4694 = vmatpush.bf16.msra.mxu0 %v4240
        %4695 = vmatpush.bf16.msra.mxu0 %v4100
        %4696 = vmatpush.bf16.msra.mxu0 %v3961
        %4697 = vmatmul.bf16.gmra.mxu0 %v4493
        %v4698 = vpop.f32.mrf.mxu0
        %v4699 = vadd.f32 %v4490, %v4698
        %v4700 = vpop.f32.mrf.mxu0
        %4701 = vdwg.mxu0
        %4702 = vmatpush.bf16.msra.mxu0 0
        %4703 = vmatpush.bf16.msra.mxu0 0
        %4704 = vmatpush.bf16.msra.mxu0 0
        %4705 = vmatpush.bf16.msra.mxu0 %v4520
        %4706 = vmatpush.bf16.msra.mxu0 %v4384
        %4707 = vmatpush.bf16.msra.mxu0 %v4244
        %4708 = vmatpush.bf16.msra.mxu0 %v4104
        %4709 = vmatpush.bf16.msra.mxu0 %v3965
        %4710 = vmatmul.bf16.gmra.mxu0 %v4493
        %v4711 = vpop.f32.mrf.mxu0
        %v4712 = vadd.f32 %v4490, %v4711
        %v4713 = vpop.f32.mrf.mxu0
        %4714 = vdwg.mxu0
        %4715 = vmatpush.bf16.msra.mxu0 0
        %4716 = vmatpush.bf16.msra.mxu0 0
        %4717 = vmatpush.bf16.msra.mxu0 0
        %4718 = vmatpush.bf16.msra.mxu0 %v4523
        %4719 = vmatpush.bf16.msra.mxu0 %v4388
        %4720 = vmatpush.bf16.msra.mxu0 %v4248
        %4721 = vmatpush.bf16.msra.mxu0 %v4108
        %4722 = vmatpush.bf16.msra.mxu0 %v3969
        %4723 = vmatmul.bf16.gmra.mxu0 %v4493
        %v4724 = vpop.f32.mrf.mxu0
        %v4725 = vadd.f32 %v4490, %v4724
        %v4726 = vpop.f32.mrf.mxu0
        %4727 = vdwg.mxu0
        %4728 = vmatpush.bf16.msra.mxu0 0
        %4729 = vmatpush.bf16.msra.mxu0 0
        %4730 = vmatpush.bf16.msra.mxu0 0
        %4731 = vmatpush.bf16.msra.mxu0 %v4526
        %4732 = vmatpush.bf16.msra.mxu0 %v4392
        %4733 = vmatpush.bf16.msra.mxu0 %v4252
        %4734 = vmatpush.bf16.msra.mxu0 %v4112
        %4735 = vmatpush.bf16.msra.mxu0 %v3973
        %4736 = vmatmul.bf16.gmra.mxu0 %v4493
        %v4737 = vpop.f32.mrf.mxu0
        %v4738 = vadd.f32 %v4490, %v4737
        %v4739 = vpop.f32.mrf.mxu0
        %4740 = vdwg.mxu0
        %4741 = vmatpush.bf16.msra.mxu0 0
        %4742 = vmatpush.bf16.msra.mxu0 0
        %4743 = vmatpush.bf16.msra.mxu0 0
        %4744 = vmatpush.bf16.msra.mxu0 %v4529
        %4745 = vmatpush.bf16.msra.mxu0 %v4396
        %4746 = vmatpush.bf16.msra.mxu0 %v4256
        %4747 = vmatpush.bf16.msra.mxu0 %v4116
        %4748 = vmatpush.bf16.msra.mxu0 %v3977
        %4749 = vmatmul.bf16.gmra.mxu0 %v4493
        %v4750 = vpop.f32.mrf.mxu0
        %v4751 = vadd.f32 %v4490, %v4750
        %v4752 = vpop.f32.mrf.mxu0
        %4753 = vdwg.mxu0
        %4754 = vmatpush.bf16.msra.mxu0 0
        %4755 = vmatpush.bf16.msra.mxu0 0
        %4756 = vmatpush.bf16.msra.mxu0 0
        %4757 = vmatpush.bf16.msra.mxu0 %v4532
        %4758 = vmatpush.bf16.msra.mxu0 %v4400
        %4759 = vmatpush.bf16.msra.mxu0 %v4260
        %4760 = vmatpush.bf16.msra.mxu0 %v4120
        %4761 = vmatpush.bf16.msra.mxu0 %v3981
        %4762 = vmatmul.bf16.gmra.mxu0 %v4493
        %v4763 = vpop.f32.mrf.mxu0
        %v4764 = vadd.f32 %v4490, %v4763
        %v4765 = vpop.f32.mrf.mxu0
        %4766 = vdwg.mxu0
        %4767 = vmatpush.bf16.msra.mxu0 0
        %4768 = vmatpush.bf16.msra.mxu0 0
        %4769 = vmatpush.bf16.msra.mxu0 0
        %4770 = vmatpush.bf16.msra.mxu0 %v4535
        %4771 = vmatpush.bf16.msra.mxu0 %v4404
        %4772 = vmatpush.bf16.msra.mxu0 %v4264
        %4773 = vmatpush.bf16.msra.mxu0 %v4124
        %4774 = vmatpush.bf16.msra.mxu0 %v3985
        %4775 = vmatmul.bf16.gmra.mxu0 %v4493
        %v4776 = vpop.f32.mrf.mxu0
        %v4777 = vadd.f32 %v4490, %v4776
        %v4778 = vpop.f32.mrf.mxu0
        %4779 = vdwg.mxu0
        %4780 = vmatpush.bf16.msra.mxu0 0
        %4781 = vmatpush.bf16.msra.mxu0 0
        %4782 = vmatpush.bf16.msra.mxu0 0
        %4783 = vmatpush.bf16.msra.mxu0 %v4538
        %4784 = vmatpush.bf16.msra.mxu0 %v4408
        %4785 = vmatpush.bf16.msra.mxu0 %v4268
        %4786 = vmatpush.bf16.msra.mxu0 %v4128
        %4787 = vmatpush.bf16.msra.mxu0 %v3989
        %4788 = vmatmul.bf16.gmra.mxu0 %v4493
        %v4789 = vpop.f32.mrf.mxu0
        %v4790 = vadd.f32 %v4490, %v4789
        %v4791 = vpop.f32.mrf.mxu0
        %4792 = vdwg.mxu0
        %4793 = vmatpush.bf16.msra.mxu0 0
        %4794 = vmatpush.bf16.msra.mxu0 0
        %4795 = vmatpush.bf16.msra.mxu0 0
        %4796 = vmatpush.bf16.msra.mxu0 %v4541
        %4797 = vmatpush.bf16.msra.mxu0 %v4412
        %4798 = vmatpush.bf16.msra.mxu0 %v4272
        %4799 = vmatpush.bf16.msra.mxu0 %v4132
        %4800 = vmatpush.bf16.msra.mxu0 %v3993
        %4801 = vmatmul.bf16.gmra.mxu0 %v4493
        %v4802 = vpop.f32.mrf.mxu0
        %v4803 = vadd.f32 %v4490, %v4802
        %v4804 = vpop.f32.mrf.mxu0
        %4805 = vdwg.mxu0
        %4806 = vmatpush.bf16.msra.mxu0 0
        %4807 = vmatpush.bf16.msra.mxu0 0
        %4808 = vmatpush.bf16.msra.mxu0 0
        %4809 = vmatpush.bf16.msra.mxu0 %v4544
        %4810 = vmatpush.bf16.msra.mxu0 %v4416
        %4811 = vmatpush.bf16.msra.mxu0 %v4276
        %4812 = vmatpush.bf16.msra.mxu0 %v4136
        %4813 = vmatpush.bf16.msra.mxu0 %v3997
        %4814 = vmatmul.bf16.gmra.mxu0 %v4493
        %v4815 = vpop.f32.mrf.mxu0
        %v4816 = vadd.f32 %v4490, %v4815
        %v4817 = vpop.f32.mrf.mxu0
        %4818 = vdwg.mxu0
        %4819 = vmatpush.bf16.msra.mxu0 0
        %4820 = vmatpush.bf16.msra.mxu0 0
        %4821 = vmatpush.bf16.msra.mxu0 0
        %4822 = vmatpush.bf16.msra.mxu0 %v4547
        %4823 = vmatpush.bf16.msra.mxu0 %v4420
        %4824 = vmatpush.bf16.msra.mxu0 %v4280
        %4825 = vmatpush.bf16.msra.mxu0 %v4140
        %4826 = vmatpush.bf16.msra.mxu0 %v4001
        %4827 = vmatmul.bf16.gmra.mxu0 %v4493
        %v4828 = vpop.f32.mrf.mxu0
        %v4829 = vadd.f32 %v4490, %v4828
        %v4830 = vpop.f32.mrf.mxu0
        %4831 = vdwg.mxu0
        %4832 = vmatpush.bf16.msra.mxu0 0
        %4833 = vmatpush.bf16.msra.mxu0 0
        %4834 = vmatpush.bf16.msra.mxu0 0
        %4835 = vmatpush.bf16.msra.mxu0 %v4550
        %4836 = vmatpush.bf16.msra.mxu0 %v4424
        %4837 = vmatpush.bf16.msra.mxu0 %v4284
        %4838 = vmatpush.bf16.msra.mxu0 %v4144
        %4839 = vmatpush.bf16.msra.mxu0 %v4005
        %4840 = vmatmul.bf16.gmra.mxu0 %v4493
        %v4841 = vpop.f32.mrf.mxu0
        %v4842 = vadd.f32 %v4490, %v4841
        %v4843 = vpop.f32.mrf.mxu0
        %4844 = vdwg.mxu0
        %4845 = vmatpush.bf16.msra.mxu0 0
        %4846 = vmatpush.bf16.msra.mxu0 0
        %4847 = vmatpush.bf16.msra.mxu0 0
        %4848 = vmatpush.bf16.msra.mxu0 %v4553
        %4849 = vmatpush.bf16.msra.mxu0 %v4428
        %4850 = vmatpush.bf16.msra.mxu0 %v4288
        %4851 = vmatpush.bf16.msra.mxu0 %v4148
        %4852 = vmatpush.bf16.msra.mxu0 %v4009
        %4853 = vmatmul.bf16.gmra.mxu0 %v4493
        %v4854 = vpop.f32.mrf.mxu0
        %v4855 = vadd.f32 %v4490, %v4854
        %v4856 = vpop.f32.mrf.mxu0
        %4857 = vdwg.mxu0
        %4858 = vmatpush.bf16.msra.mxu0 0
        %4859 = vmatpush.bf16.msra.mxu0 0
        %4860 = vmatpush.bf16.msra.mxu0 0
        %4861 = vmatpush.bf16.msra.mxu0 %v4556
        %4862 = vmatpush.bf16.msra.mxu0 %v4432
        %4863 = vmatpush.bf16.msra.mxu0 %v4292
        %4864 = vmatpush.bf16.msra.mxu0 %v4152
        %4865 = vmatpush.bf16.msra.mxu0 %v4013
        %4866 = vmatmul.bf16.gmra.mxu0 %v4493
        %v4867 = vpop.f32.mrf.mxu0
        %v4868 = vadd.f32 %v4490, %v4867
        %v4869 = vpop.f32.mrf.mxu0
        %4870 = vdwg.mxu0
        %4871 = vmatpush.bf16.msra.mxu0 0
        %4872 = vmatpush.bf16.msra.mxu0 0
        %4873 = vmatpush.bf16.msra.mxu0 0
        %4874 = vmatpush.bf16.msra.mxu0 %v4559
        %4875 = vmatpush.bf16.msra.mxu0 %v4436
        %4876 = vmatpush.bf16.msra.mxu0 %v4296
        %4877 = vmatpush.bf16.msra.mxu0 %v4156
        %4878 = vmatpush.bf16.msra.mxu0 %v4017
        %4879 = vmatmul.bf16.gmra.mxu0 %v4493
        %v4880 = vpop.f32.mrf.mxu0
        %v4881 = vadd.f32 %v4490, %v4880
        %v4882 = vpop.f32.mrf.mxu0
        %4883 = vdwg.mxu0
        %4884 = vmatpush.bf16.msra.mxu0 0
        %4885 = vmatpush.bf16.msra.mxu0 0
        %4886 = vmatpush.bf16.msra.mxu0 0
        %4887 = vmatpush.bf16.msra.mxu0 %v4562
        %4888 = vmatpush.bf16.msra.mxu0 %v4440
        %4889 = vmatpush.bf16.msra.mxu0 %v4300
        %4890 = vmatpush.bf16.msra.mxu0 %v4160
        %4891 = vmatpush.bf16.msra.mxu0 %v4021
        %4892 = vmatmul.bf16.gmra.mxu0 %v4493
        %v4893 = vpop.f32.mrf.mxu0
        %v4894 = vadd.f32 %v4490, %v4893
        %v4895 = vpop.f32.mrf.mxu0
        %4896 = vdwg.mxu0
        %4897 = vmatpush.bf16.msra.mxu0 0
        %4898 = vmatpush.bf16.msra.mxu0 0
        %4899 = vmatpush.bf16.msra.mxu0 0
        %4900 = vmatpush.bf16.msra.mxu0 %v4565
        %4901 = vmatpush.bf16.msra.mxu0 %v4444
        %4902 = vmatpush.bf16.msra.mxu0 %v4304
        %4903 = vmatpush.bf16.msra.mxu0 %v4164
        %4904 = vmatpush.bf16.msra.mxu0 %v4025
        %4905 = vmatmul.bf16.gmra.mxu0 %v4493
        %v4906 = vpop.f32.mrf.mxu0
        %v4907 = vadd.f32 %v4490, %v4906
        %v4908 = vpop.f32.mrf.mxu0
        %4909 = vdwg.mxu0
        %4910 = vmatpush.bf16.msra.mxu0 0
        %4911 = vmatpush.bf16.msra.mxu0 0
        %4912 = vmatpush.bf16.msra.mxu0 0
        %4913 = vmatpush.bf16.msra.mxu0 %v4568
        %4914 = vmatpush.bf16.msra.mxu0 %v4448
        %4915 = vmatpush.bf16.msra.mxu0 %v4308
        %4916 = vmatpush.bf16.msra.mxu0 %v4168
        %4917 = vmatpush.bf16.msra.mxu0 %v4029
        %4918 = vmatmul.bf16.gmra.mxu0 %v4493
        %v4919 = vpop.f32.mrf.mxu0
        %v4920 = vadd.f32 %v4490, %v4919
        %v4921 = vpop.f32.mrf.mxu0
        %4922 = vdwg.mxu0
        %4923 = vmatpush.bf16.msra.mxu0 0
        %4924 = vmatpush.bf16.msra.mxu0 0
        %4925 = vmatpush.bf16.msra.mxu0 0
        %4926 = vmatpush.bf16.msra.mxu0 %v4571
        %4927 = vmatpush.bf16.msra.mxu0 %v4452
        %4928 = vmatpush.bf16.msra.mxu0 %v4312
        %4929 = vmatpush.bf16.msra.mxu0 %v4172
        %4930 = vmatpush.bf16.msra.mxu0 %v4033
        %4931 = vmatmul.bf16.gmra.mxu0 %v4493
        %v4932 = vpop.f32.mrf.mxu0
        %v4933 = vadd.f32 %v4490, %v4932
        %v4934 = vpop.f32.mrf.mxu0
        %4935 = vdwg.mxu0
        %4936 = vmatpush.bf16.msra.mxu0 0
        %4937 = vmatpush.bf16.msra.mxu0 0
        %4938 = vmatpush.bf16.msra.mxu0 0
        %4939 = vmatpush.bf16.msra.mxu0 %v4574
        %4940 = vmatpush.bf16.msra.mxu0 %v4456
        %4941 = vmatpush.bf16.msra.mxu0 %v4316
        %4942 = vmatpush.bf16.msra.mxu0 %v4176
        %4943 = vmatpush.bf16.msra.mxu0 %v4037
        %4944 = vmatmul.bf16.gmra.mxu0 %v4493
        %v4945 = vpop.f32.mrf.mxu0
        %v4946 = vadd.f32 %v4490, %v4945
        %v4947 = vpop.f32.mrf.mxu0
        %4948 = vdwg.mxu0
        %4949 = vmatpush.bf16.msra.mxu0 0
        %4950 = vmatpush.bf16.msra.mxu0 0
        %4951 = vmatpush.bf16.msra.mxu0 0
        %4952 = vmatpush.bf16.msra.mxu0 %v4577
        %4953 = vmatpush.bf16.msra.mxu0 %v4460
        %4954 = vmatpush.bf16.msra.mxu0 %v4320
        %4955 = vmatpush.bf16.msra.mxu0 %v4180
        %4956 = vmatpush.bf16.msra.mxu0 %v4041
        %4957 = vmatmul.bf16.gmra.mxu0 %v4493
        %v4958 = vpop.f32.mrf.mxu0
        %v4959 = vadd.f32 %v4490, %v4958
        %v4960 = vpop.f32.mrf.mxu0
        %4961 = vdwg.mxu0
        %4962 = vmatpush.bf16.msra.mxu0 0
        %4963 = vmatpush.bf16.msra.mxu0 0
        %4964 = vmatpush.bf16.msra.mxu0 0
        %4965 = vmatpush.bf16.msra.mxu0 %v4580
        %4966 = vmatpush.bf16.msra.mxu0 %v4464
        %4967 = vmatpush.bf16.msra.mxu0 %v4324
        %4968 = vmatpush.bf16.msra.mxu0 %v4184
        %4969 = vmatpush.bf16.msra.mxu0 %v4045
        %4970 = vmatmul.bf16.gmra.mxu0 %v4493
        %v4971 = vpop.f32.mrf.mxu0
        %v4972 = vadd.f32 %v4490, %v4971
        %v4973 = vpop.f32.mrf.mxu0
        %4974 = vdwg.mxu0
        %4975 = vmatpush.bf16.msra.mxu0 0
        %4976 = vmatpush.bf16.msra.mxu0 0
        %4977 = vmatpush.bf16.msra.mxu0 0
        %4978 = vmatpush.bf16.msra.mxu0 %v4583
        %4979 = vmatpush.bf16.msra.mxu0 %v4468
        %4980 = vmatpush.bf16.msra.mxu0 %v4328
        %4981 = vmatpush.bf16.msra.mxu0 %v4188
        %4982 = vmatpush.bf16.msra.mxu0 %v4049
        %4983 = vmatmul.bf16.gmra.mxu0 %v4493
        %v4984 = vpop.f32.mrf.mxu0
        %v4985 = vadd.f32 %v4490, %v4984
        %v4986 = vpop.f32.mrf.mxu0
        %4987 = vdwg.mxu0
        %4988 = vmatpush.bf16.msra.mxu0 0
        %4989 = vmatpush.bf16.msra.mxu0 0
        %4990 = vmatpush.bf16.msra.mxu0 0
        %4991 = vmatpush.bf16.msra.mxu0 %v4586
        %4992 = vmatpush.bf16.msra.mxu0 %v4472
        %4993 = vmatpush.bf16.msra.mxu0 %v4332
        %4994 = vmatpush.bf16.msra.mxu0 %v4192
        %4995 = vmatpush.bf16.msra.mxu0 %v4053
        %4996 = vmatmul.bf16.gmra.mxu0 %v4493
        %v4997 = vpop.f32.mrf.mxu0
        %v4998 = vadd.f32 %v4490, %v4997
        %v4999 = vpop.f32.mrf.mxu0
        %5000 = vdwg.mxu0
        %5001 = vmatpush.bf16.msra.mxu0 0
        %5002 = vmatpush.bf16.msra.mxu0 0
        %5003 = vmatpush.bf16.msra.mxu0 0
        %5004 = vmatpush.bf16.msra.mxu0 %v4589
        %5005 = vmatpush.bf16.msra.mxu0 %v4476
        %5006 = vmatpush.bf16.msra.mxu0 %v4336
        %5007 = vmatpush.bf16.msra.mxu0 %v4196
        %5008 = vmatpush.bf16.msra.mxu0 %v4057
        %5009 = vmatmul.bf16.gmra.mxu0 %v4493
        %v5010 = vpop.f32.mrf.mxu0
        %v5011 = vadd.f32 %v4490, %v5010
        %v5012 = vpop.f32.mrf.mxu0
        %5013 = vdwg.mxu0
        %5014 = vmatpush.bf16.msra.mxu0 0
        %5015 = vmatpush.bf16.msra.mxu0 0
        %5016 = vmatpush.bf16.msra.mxu0 0
        %5017 = vmatpush.bf16.msra.mxu0 %v4592
        %5018 = vmatpush.bf16.msra.mxu0 %v4480
        %5019 = vmatpush.bf16.msra.mxu0 %v4340
        %5020 = vmatpush.bf16.msra.mxu0 %v4200
        %5021 = vmatpush.bf16.msra.mxu0 %v4061
        %5022 = vmatmul.bf16.gmra.mxu0 %v4493
        %v5023 = vpop.f32.mrf.mxu0
        %v5024 = vadd.f32 %v4490, %v5023
        %v5025 = vpop.f32.mrf.mxu0
        %5026 = vdwg.mxu0
        %5027 = vmatpush.bf16.msra.mxu0 0
        %5028 = vmatpush.bf16.msra.mxu0 0
        %5029 = vmatpush.bf16.msra.mxu0 0
        %5030 = vmatpush.bf16.msra.mxu0 %v4594
        %5031 = vmatpush.bf16.msra.mxu0 %v3933
        %5032 = vmatpush.bf16.msra.mxu0 %v4344
        %5033 = vmatpush.bf16.msra.mxu0 %v4204
        %5034 = vmatpush.bf16.msra.mxu0 %v4065
        %5035 = vmatmul.bf16.gmra.mxu0 %v4493
        %v5036 = vpop.f32.mrf.mxu0
        %v5037 = vadd.f32 %v4490, %v5036
        %v5038 = vpop.f32.mrf.mxu0
        %5039 = vdwg.mxu0
        %5040 = vmatpush.bf16.msra.mxu0 0
        %5041 = vmatpush.bf16.msra.mxu0 0
        %5042 = vmatpush.bf16.msra.mxu0 0
        %5043 = vmatpush.bf16.msra.mxu0 %v4596
        %5044 = vmatpush.bf16.msra.mxu0 %v4483
        %5045 = vmatpush.bf16.msra.mxu0 %v4348
        %5046 = vmatpush.bf16.msra.mxu0 %v4208
        %5047 = vmatpush.bf16.msra.mxu0 %v4069
        %5048 = vmatmul.bf16.gmra.mxu0 %v4493
        %v5049 = vpop.f32.mrf.mxu0
        %v5050 = vadd.f32 %v4490, %v5049
        %v5051 = vpop.f32.mrf.mxu0
        %5052 = vdwg.mxu0
        %v5053 = vmax.f32 %v4608, 0.0
        %v5054 = vmax.f32 %v4621, 0.0
        %v5055 = vmax.f32 %v4634, 0.0
        %v5056 = vmax.f32 %v4647, 0.0
        %v5057 = vmax.f32 %v4660, 0.0
        %v5058 = vmax.f32 %v4673, 0.0
        %v5059 = vmax.f32 %v4686, 0.0
        %v5060 = vmax.f32 %v4699, 0.0
        %v5061 = vmax.f32 %v4712, 0.0
        %v5062 = vmax.f32 %v4725, 0.0
        %v5063 = vmax.f32 %v4738, 0.0
        %v5064 = vmax.f32 %v4751, 0.0
        %v5065 = vmax.f32 %v4764, 0.0
        %v5066 = vmax.f32 %v4777, 0.0
        %v5067 = vmax.f32 %v4790, 0.0
        %v5068 = vmax.f32 %v4803, 0.0
        %v5069 = vmax.f32 %v4816, 0.0
        %v5070 = vmax.f32 %v4829, 0.0
        %v5071 = vmax.f32 %v4842, 0.0
        %v5072 = vmax.f32 %v4855, 0.0
        %v5073 = vmax.f32 %v4868, 0.0
        %v5074 = vmax.f32 %v4881, 0.0
        %v5075 = vmax.f32 %v4894, 0.0
        %v5076 = vmax.f32 %v4907, 0.0
        %v5077 = vmax.f32 %v4920, 0.0
        %v5078 = vmax.f32 %v4933, 0.0
        %v5079 = vmax.f32 %v4946, 0.0
        %v5080 = vmax.f32 %v4959, 0.0
        %v5081 = vmax.f32 %v4972, 0.0
        %v5082 = vmax.f32 %v4985, 0.0
        %v5083 = vmax.f32 %v4998, 0.0
        %v5084 = vmax.f32 %v5011, 0.0
        %v5085 = vmax.f32 %v5024, 0.0
        %v5086 = vmax.f32 %v5037, 0.0
        %v5087 = vmax.f32 %v5050, 0.0
        %5123 = vrot.lane.b32.xlu0 %v5053, 127
        %v5124 = vpop.permute.xlu0 %5123
        %5125 = vrot.lane.b32.xlu0 %v5054, 127
        %v5126 = vpop.permute.xlu0 %5125
        %5127 = vrot.lane.b32.xlu0 %v5055, 127
        %v5128 = vpop.permute.xlu0 %5127
        %5129 = vrot.lane.b32.xlu0 %v5056, 127
        %v5130 = vpop.permute.xlu0 %5129
        %5131 = vrot.lane.b32.xlu0 %v5057, 127
        %v5132 = vpop.permute.xlu0 %5131
        %5133 = vrot.lane.b32.xlu0 %v5058, 127
        %v5134 = vpop.permute.xlu0 %5133
        %5135 = vrot.lane.b32.xlu0 %v5059, 127
        %v5136 = vpop.permute.xlu0 %5135
        %5137 = vrot.lane.b32.xlu0 %v5060, 127
        %v5138 = vpop.permute.xlu0 %5137
        %5139 = vrot.lane.b32.xlu0 %v5061, 127
        %v5140 = vpop.permute.xlu0 %5139
        %5141 = vrot.lane.b32.xlu0 %v5062, 127
        %v5142 = vpop.permute.xlu0 %5141
        %5143 = vrot.lane.b32.xlu0 %v5063, 127
        %v5144 = vpop.permute.xlu0 %5143
        %5145 = vrot.lane.b32.xlu0 %v5064, 127
        %v5146 = vpop.permute.xlu0 %5145
        %5147 = vrot.lane.b32.xlu0 %v5065, 127
        %v5148 = vpop.permute.xlu0 %5147
        %5149 = vrot.lane.b32.xlu0 %v5066, 127
        %v5150 = vpop.permute.xlu0 %5149
        %5151 = vrot.lane.b32.xlu0 %v5067, 127
        %v5152 = vpop.permute.xlu0 %5151
        %5153 = vrot.lane.b32.xlu0 %v5068, 127
        %v5154 = vpop.permute.xlu0 %5153
        %5155 = vrot.lane.b32.xlu0 %v5069, 127
        %v5156 = vpop.permute.xlu0 %5155
        %5157 = vrot.lane.b32.xlu0 %v5070, 127
        %v5158 = vpop.permute.xlu0 %5157
        %5159 = vrot.lane.b32.xlu0 %v5071, 127
        %v5160 = vpop.permute.xlu0 %5159
        %5161 = vrot.lane.b32.xlu0 %v5072, 127
        %v5162 = vpop.permute.xlu0 %5161
        %5163 = vrot.lane.b32.xlu0 %v5073, 127
        %v5164 = vpop.permute.xlu0 %5163
        %5165 = vrot.lane.b32.xlu0 %v5074, 127
        %v5166 = vpop.permute.xlu0 %5165
        %5167 = vrot.lane.b32.xlu0 %v5075, 127
        %v5168 = vpop.permute.xlu0 %5167
        %5169 = vrot.lane.b32.xlu0 %v5076, 127
        %v5170 = vpop.permute.xlu0 %5169
        %5171 = vrot.lane.b32.xlu0 %v5077, 127
        %v5172 = vpop.permute.xlu0 %5171
        %5173 = vrot.lane.b32.xlu0 %v5078, 127
        %v5174 = vpop.permute.xlu0 %5173
        %5175 = vrot.lane.b32.xlu0 %v5079, 127
        %v5176 = vpop.permute.xlu0 %5175
        %5177 = vrot.lane.b32.xlu0 %v5080, 127
        %v5178 = vpop.permute.xlu0 %5177
        %5179 = vrot.lane.b32.xlu0 %v5081, 127
        %v5180 = vpop.permute.xlu0 %5179
        %5181 = vrot.lane.b32.xlu0 %v5082, 127
        %v5182 = vpop.permute.xlu0 %5181
        %5183 = vrot.lane.b32.xlu0 %v5083, 127
        %v5184 = vpop.permute.xlu0 %5183
        %5185 = vrot.lane.b32.xlu0 %v5084, 127
        %v5186 = vpop.permute.xlu0 %5185
        %5187 = vrot.lane.b32.xlu0 %v5085, 127
        %v5188 = vpop.permute.xlu0 %5187
        %5189 = vrot.lane.b32.xlu0 %v5086, 127
        %v5190 = vpop.permute.xlu0 %5189
        %5191 = vrot.lane.b32.xlu0 %v5087, 127
        %v5192 = vpop.permute.xlu0 %5191
        %vm5193 = vcmask 1039360
        %v5194 = vsel %vm5193, %v5124, %v5126
        %v5195 = vsel %vm5193, %v5126, %v5128
        %v5196 = vsel %vm5193, %v5128, %v5130
        %v5197 = vsel %vm5193, %v5130, %v5132
        %v5198 = vsel %vm5193, %v5132, %v5134
        %v5199 = vsel %vm5193, %v5134, %v5136
        %v5200 = vsel %vm5193, %v5136, %v5138
        %v5201 = vsel %vm5193, %v5138, %v5140
        %v5202 = vsel %vm5193, %v5140, %v5142
        %v5203 = vsel %vm5193, %v5142, %v5144
        %v5204 = vsel %vm5193, %v5144, %v5146
        %v5205 = vsel %vm5193, %v5146, %v5148
        %v5206 = vsel %vm5193, %v5148, %v5150
        %v5207 = vsel %vm5193, %v5150, %v5152
        %v5208 = vsel %vm5193, %v5152, %v5154
        %v5209 = vsel %vm5193, %v5154, %v5156
        %v5210 = vsel %vm5193, %v5156, %v5158
        %v5211 = vsel %vm5193, %v5158, %v5160
        %v5212 = vsel %vm5193, %v5160, %v5162
        %v5213 = vsel %vm5193, %v5162, %v5164
        %v5214 = vsel %vm5193, %v5164, %v5166
        %v5215 = vsel %vm5193, %v5166, %v5168
        %v5216 = vsel %vm5193, %v5168, %v5170
        %v5217 = vsel %vm5193, %v5170, %v5172
        %v5218 = vsel %vm5193, %v5172, %v5174
        %v5219 = vsel %vm5193, %v5174, %v5176
        %v5220 = vsel %vm5193, %v5176, %v5178
        %v5221 = vsel %vm5193, %v5178, %v5180
        %v5222 = vsel %vm5193, %v5180, %v5182
        %v5223 = vsel %vm5193, %v5182, %v5184
        %v5224 = vsel %vm5193, %v5184, %v5186
        %v5225 = vsel %vm5193, %v5186, %v5188
        %v5226 = vsel %vm5193, %v5188, %v5190
        %v5227 = vsel %vm5193, %v5190, %v5192
        %5263 = vrot.lane.b32.xlu0 %v5053, 3
        %v5264 = vpop.permute.xlu0 %5263
        %v5266 = vsel %vm1131, %v5192, %v5264
        %v5267 = vmax.f32 %v5053, %v5194
        %v5268 = vmax.f32 %v5054, %v5195
        %v5269 = vmax.f32 %v5055, %v5196
        %v5270 = vmax.f32 %v5056, %v5197
        %v5271 = vmax.f32 %v5057, %v5198
        %v5272 = vmax.f32 %v5058, %v5199
        %v5273 = vmax.f32 %v5059, %v5200
        %v5274 = vmax.f32 %v5060, %v5201
        %v5275 = vmax.f32 %v5061, %v5202
        %v5276 = vmax.f32 %v5062, %v5203
        %v5277 = vmax.f32 %v5063, %v5204
        %v5278 = vmax.f32 %v5064, %v5205
        %v5279 = vmax.f32 %v5065, %v5206
        %v5280 = vmax.f32 %v5066, %v5207
        %v5281 = vmax.f32 %v5067, %v5208
        %v5282 = vmax.f32 %v5068, %v5209
        %v5283 = vmax.f32 %v5069, %v5210
        %v5284 = vmax.f32 %v5070, %v5211
        %v5285 = vmax.f32 %v5071, %v5212
        %v5286 = vmax.f32 %v5072, %v5213
        %v5287 = vmax.f32 %v5073, %v5214
        %v5288 = vmax.f32 %v5074, %v5215
        %v5289 = vmax.f32 %v5075, %v5216
        %v5290 = vmax.f32 %v5076, %v5217
        %v5291 = vmax.f32 %v5077, %v5218
        %v5292 = vmax.f32 %v5078, %v5219
        %v5293 = vmax.f32 %v5079, %v5220
        %v5294 = vmax.f32 %v5080, %v5221
        %v5295 = vmax.f32 %v5081, %v5222
        %v5296 = vmax.f32 %v5082, %v5223
        %v5297 = vmax.f32 %v5083, %v5224
        %v5298 = vmax.f32 %v5084, %v5225
        %v5299 = vmax.f32 %v5085, %v5226
        %v5300 = vmax.f32 %v5086, %v5227
        %v5301 = vmax.f32 %v5087, %v5266
        %5337 = vrot.lane.b32.xlu0 %v5267, 62
        %v5338 = vpop.permute.xlu0 %5337
        %5339 = vrot.lane.b32.xlu0 %v5268, 62
        %v5340 = vpop.permute.xlu0 %5339
        %5341 = vrot.lane.b32.xlu0 %v5269, 62
        %v5342 = vpop.permute.xlu0 %5341
        %5343 = vrot.lane.b32.xlu0 %v5270, 62
        %v5344 = vpop.permute.xlu0 %5343
        %5345 = vrot.lane.b32.xlu0 %v5271, 62
        %v5346 = vpop.permute.xlu0 %5345
        %5347 = vrot.lane.b32.xlu0 %v5272, 62
        %v5348 = vpop.permute.xlu0 %5347
        %5349 = vrot.lane.b32.xlu0 %v5273, 62
        %v5350 = vpop.permute.xlu0 %5349
        %5351 = vrot.lane.b32.xlu0 %v5274, 62
        %v5352 = vpop.permute.xlu0 %5351
        %5353 = vrot.lane.b32.xlu0 %v5275, 62
        %v5354 = vpop.permute.xlu0 %5353
        %5355 = vrot.lane.b32.xlu0 %v5276, 62
        %v5356 = vpop.permute.xlu0 %5355
        %5357 = vrot.lane.b32.xlu0 %v5277, 62
        %v5358 = vpop.permute.xlu0 %5357
        %5359 = vrot.lane.b32.xlu0 %v5278, 62
        %v5360 = vpop.permute.xlu0 %5359
        %5361 = vrot.lane.b32.xlu0 %v5279, 62
        %v5362 = vpop.permute.xlu0 %5361
        %5363 = vrot.lane.b32.xlu0 %v5280, 62
        %v5364 = vpop.permute.xlu0 %5363
        %5365 = vrot.lane.b32.xlu0 %v5281, 62
        %v5366 = vpop.permute.xlu0 %5365
        %5367 = vrot.lane.b32.xlu0 %v5282, 62
        %v5368 = vpop.permute.xlu0 %5367
        %5369 = vrot.lane.b32.xlu0 %v5283, 62
        %v5370 = vpop.permute.xlu0 %5369
        %5371 = vrot.lane.b32.xlu0 %v5284, 62
        %v5372 = vpop.permute.xlu0 %5371
        %5373 = vrot.lane.b32.xlu0 %v5285, 62
        %v5374 = vpop.permute.xlu0 %5373
        %5375 = vrot.lane.b32.xlu0 %v5286, 62
        %v5376 = vpop.permute.xlu0 %5375
        %5377 = vrot.lane.b32.xlu0 %v5287, 62
        %v5378 = vpop.permute.xlu0 %5377
        %5379 = vrot.lane.b32.xlu0 %v5288, 62
        %v5380 = vpop.permute.xlu0 %5379
        %5381 = vrot.lane.b32.xlu0 %v5289, 62
        %v5382 = vpop.permute.xlu0 %5381
        %5383 = vrot.lane.b32.xlu0 %v5290, 62
        %v5384 = vpop.permute.xlu0 %5383
        %5385 = vrot.lane.b32.xlu0 %v5291, 62
        %v5386 = vpop.permute.xlu0 %5385
        %5387 = vrot.lane.b32.xlu0 %v5292, 62
        %v5388 = vpop.permute.xlu0 %5387
        %5389 = vrot.lane.b32.xlu0 %v5293, 62
        %v5390 = vpop.permute.xlu0 %5389
        %5391 = vrot.lane.b32.xlu0 %v5294, 62
        %v5392 = vpop.permute.xlu0 %5391
        %5393 = vrot.lane.b32.xlu0 %v5295, 62
        %v5394 = vpop.permute.xlu0 %5393
        %5395 = vrot.lane.b32.xlu0 %v5296, 62
        %v5396 = vpop.permute.xlu0 %5395
        %5397 = vrot.lane.b32.xlu0 %v5297, 62
        %v5398 = vpop.permute.xlu0 %5397
        %5399 = vrot.lane.b32.xlu0 %v5298, 62
        %v5400 = vpop.permute.xlu0 %5399
        %5401 = vrot.lane.b32.xlu0 %v5299, 62
        %v5402 = vpop.permute.xlu0 %5401
        %5403 = vrot.lane.b32.xlu0 %v5300, 62
        %v5404 = vpop.permute.xlu0 %5403
        %5405 = vrot.lane.b32.xlu0 %v5301, 62
        %v5406 = vpop.permute.xlu0 %5405
        %vm5407 = vcmask 506880
        %v5408 = vsel %vm5407, %v5338, %v5340
        %v5409 = vsel %vm5407, %v5340, %v5342
        %v5410 = vsel %vm5407, %v5342, %v5344
        %v5411 = vsel %vm5407, %v5344, %v5346
        %v5412 = vsel %vm5407, %v5346, %v5348
        %v5413 = vsel %vm5407, %v5348, %v5350
        %v5414 = vsel %vm5407, %v5350, %v5352
        %v5415 = vsel %vm5407, %v5352, %v5354
        %v5416 = vsel %vm5407, %v5354, %v5356
        %v5417 = vsel %vm5407, %v5356, %v5358
        %v5418 = vsel %vm5407, %v5358, %v5360
        %v5419 = vsel %vm5407, %v5360, %v5362
        %v5420 = vsel %vm5407, %v5362, %v5364
        %v5421 = vsel %vm5407, %v5364, %v5366
        %v5422 = vsel %vm5407, %v5366, %v5368
        %v5423 = vsel %vm5407, %v5368, %v5370
        %v5424 = vsel %vm5407, %v5370, %v5372
        %v5425 = vsel %vm5407, %v5372, %v5374
        %v5426 = vsel %vm5407, %v5374, %v5376
        %v5427 = vsel %vm5407, %v5376, %v5378
        %v5428 = vsel %vm5407, %v5378, %v5380
        %v5429 = vsel %vm5407, %v5380, %v5382
        %v5430 = vsel %vm5407, %v5382, %v5384
        %v5431 = vsel %vm5407, %v5384, %v5386
        %v5432 = vsel %vm5407, %v5386, %v5388
        %v5433 = vsel %vm5407, %v5388, %v5390
        %v5434 = vsel %vm5407, %v5390, %v5392
        %v5435 = vsel %vm5407, %v5392, %v5394
        %v5436 = vsel %vm5407, %v5394, %v5396
        %v5437 = vsel %vm5407, %v5396, %v5398
        %v5438 = vsel %vm5407, %v5398, %v5400
        %v5439 = vsel %vm5407, %v5400, %v5402
        %v5440 = vsel %vm5407, %v5402, %v5404
        %v5441 = vsel %vm5407, %v5404, %v5406
        %5476 = vrot.lane.b32.xlu0 %v5267, 66
        %v5477 = vpop.permute.xlu0 %5476
        %v5479 = vsel %vm797, %v5441, %v5477
        %v5480 = vmax.f32 %v5267, %v5408
        %v5481 = vmax.f32 %v5268, %v5409
        %v5482 = vmax.f32 %v5269, %v5410
        %v5483 = vmax.f32 %v5270, %v5411
        %v5484 = vmax.f32 %v5271, %v5412
        %v5485 = vmax.f32 %v5272, %v5413
        %v5486 = vmax.f32 %v5273, %v5414
        %v5487 = vmax.f32 %v5274, %v5415
        %v5488 = vmax.f32 %v5275, %v5416
        %v5489 = vmax.f32 %v5276, %v5417
        %v5490 = vmax.f32 %v5277, %v5418
        %v5491 = vmax.f32 %v5278, %v5419
        %v5492 = vmax.f32 %v5279, %v5420
        %v5493 = vmax.f32 %v5280, %v5421
        %v5494 = vmax.f32 %v5281, %v5422
        %v5495 = vmax.f32 %v5282, %v5423
        %v5496 = vmax.f32 %v5283, %v5424
        %v5497 = vmax.f32 %v5284, %v5425
        %v5498 = vmax.f32 %v5285, %v5426
        %v5499 = vmax.f32 %v5286, %v5427
        %v5500 = vmax.f32 %v5287, %v5428
        %v5501 = vmax.f32 %v5288, %v5429
        %v5502 = vmax.f32 %v5289, %v5430
        %v5503 = vmax.f32 %v5290, %v5431
        %v5504 = vmax.f32 %v5291, %v5432
        %v5505 = vmax.f32 %v5292, %v5433
        %v5506 = vmax.f32 %v5293, %v5434
        %v5507 = vmax.f32 %v5294, %v5435
        %v5508 = vmax.f32 %v5295, %v5436
        %v5509 = vmax.f32 %v5296, %v5437
        %v5510 = vmax.f32 %v5297, %v5438
        %v5511 = vmax.f32 %v5298, %v5439
        %v5512 = vmax.f32 %v5299, %v5440
        %v5513 = vmax.f32 %v5300, %v5479
        %v5514 = vmax.f32 %v5301, %v5477
        %v5515 = vpack.c.bf16 %v5481, %v5480
        %v5516 = vpack.c.bf16 %v5483, %v5482
        %v5517 = vpack.c.bf16 %v5485, %v5484
        %v5518 = vpack.c.bf16 %v5487, %v5486
        %v5519 = vpack.c.bf16 %v5489, %v5488
        %v5520 = vpack.c.bf16 %v5491, %v5490
        %v5521 = vpack.c.bf16 %v5493, %v5492
        %v5522 = vpack.c.bf16 %v5495, %v5494
        %v5523 = vpack.c.bf16 %v5497, %v5496
        %v5524 = vpack.c.bf16 %v5499, %v5498
        %v5525 = vpack.c.bf16 %v5501, %v5500
        %v5526 = vpack.c.bf16 %v5503, %v5502
        %v5527 = vpack.c.bf16 %v5505, %v5504
        %v5528 = vpack.c.bf16 %v5507, %v5506
        %v5529 = vpack.c.bf16 %v5509, %v5508
        %v5530 = vpack.c.bf16 %v5511, %v5510
        %v5531 = vpack.c.bf16 %v5513, %v5512
        %v5532 = vpack.c.bf16 %v5514, %v5514
        %v5551 = vunpack.c.l.b16 %v5515
        %v5552 = vunpack.c.h.b16 %v5515
        %v5553 = vunpack.c.l.b16 %v5516
        %v5554 = vunpack.c.h.b16 %v5516
        %v5555 = vunpack.c.l.b16 %v5517
        %v5556 = vunpack.c.h.b16 %v5517
        %v5557 = vunpack.c.l.b16 %v5518
        %v5558 = vunpack.c.h.b16 %v5518
        %v5559 = vunpack.c.l.b16 %v5519
        %v5560 = vunpack.c.h.b16 %v5519
        %v5561 = vunpack.c.l.b16 %v5520
        %v5562 = vunpack.c.h.b16 %v5520
        %v5563 = vunpack.c.l.b16 %v5521
        %v5564 = vunpack.c.h.b16 %v5521
        %v5565 = vunpack.c.l.b16 %v5522
        %v5566 = vunpack.c.h.b16 %v5522
        %v5567 = vunpack.c.l.b16 %v5523
        %v5568 = vunpack.c.h.b16 %v5523
        %v5569 = vunpack.c.l.b16 %v5524
        %v5570 = vunpack.c.h.b16 %v5524
        %v5571 = vunpack.c.l.b16 %v5525
        %v5572 = vunpack.c.h.b16 %v5525
        %v5573 = vunpack.c.l.b16 %v5526
        %v5574 = vunpack.c.h.b16 %v5526
        %v5575 = vunpack.c.l.b16 %v5527
        %v5576 = vunpack.c.h.b16 %v5527
        %v5577 = vunpack.c.l.b16 %v5528
        %v5578 = vunpack.c.h.b16 %v5528
        %v5579 = vunpack.c.l.b16 %v5529
        %v5580 = vunpack.c.h.b16 %v5529
        %v5581 = vunpack.c.l.b16 %v5530
        %v5582 = vunpack.c.h.b16 %v5530
        %v5583 = vunpack.c.l.b16 %v5531
        %v5584 = vunpack.c.h.b16 %v5531
        %v5585 = vunpack.c.l.b16 %v5532
        %v5586 = vpack.c.b16 %v5551, %v5551
        %v5587 = vpack.c.b16 %v5552, %v5552
        %v5588 = vpack.c.b16 %v5553, %v5553
        %v5589 = vpack.c.b16 %v5554, %v5554
        %v5590 = vpack.c.b16 %v5555, %v5555
        %v5591 = vpack.c.b16 %v5556, %v5556
        %v5592 = vpack.c.b16 %v5557, %v5557
        %v5593 = vpack.c.b16 %v5558, %v5558
        %v5594 = vpack.c.b16 %v5559, %v5559
        %v5595 = vpack.c.b16 %v5560, %v5560
        %v5596 = vpack.c.b16 %v5561, %v5561
        %v5597 = vpack.c.b16 %v5562, %v5562
        %v5598 = vpack.c.b16 %v5563, %v5563
        %v5599 = vpack.c.b16 %v5564, %v5564
        %v5600 = vpack.c.b16 %v5565, %v5565
        %v5601 = vpack.c.b16 %v5566, %v5566
        %v5602 = vpack.c.b16 %v5567, %v5567
        %v5603 = vpack.c.b16 %v5568, %v5568
        %v5604 = vpack.c.b16 %v5569, %v5569
        %v5605 = vpack.c.b16 %v5570, %v5570
        %v5606 = vpack.c.b16 %v5571, %v5571
        %v5607 = vpack.c.b16 %v5572, %v5572
        %v5608 = vpack.c.b16 %v5573, %v5573
        %v5609 = vpack.c.b16 %v5574, %v5574
        %v5610 = vpack.c.b16 %v5575, %v5575
        %v5611 = vpack.c.b16 %v5576, %v5576
        %v5612 = vpack.c.b16 %v5577, %v5577
        %v5613 = vpack.c.b16 %v5578, %v5578
        %v5614 = vpack.c.b16 %v5579, %v5579
        %v5615 = vpack.c.b16 %v5580, %v5580
        %v5616 = vpack.c.b16 %v5581, %v5581
        %v5617 = vpack.c.b16 %v5582, %v5582
        %v5618 = vpack.c.b16 %v5583, %v5583
        %v5619 = vpack.c.b16 %v5584, %v5584
        %v5620 = vpack.c.b16 %v5585, %v5585
        %5621 = vrot.lane.b32.xlu0 %v5586, 126
        %v5622 = vpop.permute.xlu0 %5621
        %5623 = vrot.lane.b32.xlu0 %v5587, 126
        %v5624 = vpop.permute.xlu0 %5623
        %5625 = vrot.lane.b32.xlu0 %v5588, 126
        %v5626 = vpop.permute.xlu0 %5625
        %5627 = vrot.lane.b32.xlu0 %v5589, 126
        %v5628 = vpop.permute.xlu0 %5627
        %5629 = vrot.lane.b32.xlu0 %v5590, 126
        %v5630 = vpop.permute.xlu0 %5629
        %5631 = vrot.lane.b32.xlu0 %v5591, 126
        %v5632 = vpop.permute.xlu0 %5631
        %5633 = vrot.lane.b32.xlu0 %v5592, 126
        %v5634 = vpop.permute.xlu0 %5633
        %5635 = vrot.lane.b32.xlu0 %v5593, 126
        %v5636 = vpop.permute.xlu0 %5635
        %5637 = vrot.lane.b32.xlu0 %v5594, 126
        %v5638 = vpop.permute.xlu0 %5637
        %5639 = vrot.lane.b32.xlu0 %v5595, 126
        %v5640 = vpop.permute.xlu0 %5639
        %5641 = vrot.lane.b32.xlu0 %v5596, 126
        %v5642 = vpop.permute.xlu0 %5641
        %5643 = vrot.lane.b32.xlu0 %v5597, 126
        %v5644 = vpop.permute.xlu0 %5643
        %5645 = vrot.lane.b32.xlu0 %v5598, 126
        %v5646 = vpop.permute.xlu0 %5645
        %5647 = vrot.lane.b32.xlu0 %v5599, 126
        %v5648 = vpop.permute.xlu0 %5647
        %5649 = vrot.lane.b32.xlu0 %v5600, 126
        %v5650 = vpop.permute.xlu0 %5649
        %5651 = vrot.lane.b32.xlu0 %v5601, 126
        %v5652 = vpop.permute.xlu0 %5651
        %5653 = vrot.lane.b32.xlu0 %v5602, 126
        %v5654 = vpop.permute.xlu0 %5653
        %5655 = vrot.lane.b32.xlu0 %v5603, 126
        %v5656 = vpop.permute.xlu0 %5655
        %5657 = vrot.lane.b32.xlu0 %v5604, 126
        %v5658 = vpop.permute.xlu0 %5657
        %5659 = vrot.lane.b32.xlu0 %v5605, 126
        %v5660 = vpop.permute.xlu0 %5659
        %5661 = vrot.lane.b32.xlu0 %v5606, 126
        %v5662 = vpop.permute.xlu0 %5661
        %5663 = vrot.lane.b32.xlu0 %v5607, 126
        %v5664 = vpop.permute.xlu0 %5663
        %5665 = vrot.lane.b32.xlu0 %v5608, 126
        %v5666 = vpop.permute.xlu0 %5665
        %5667 = vrot.lane.b32.xlu0 %v5609, 126
        %v5668 = vpop.permute.xlu0 %5667
        %5669 = vrot.lane.b32.xlu0 %v5610, 126
        %v5670 = vpop.permute.xlu0 %5669
        %5671 = vrot.lane.b32.xlu0 %v5611, 126
        %v5672 = vpop.permute.xlu0 %5671
        %5673 = vrot.lane.b32.xlu0 %v5612, 126
        %v5674 = vpop.permute.xlu0 %5673
        %5675 = vrot.lane.b32.xlu0 %v5613, 126
        %v5676 = vpop.permute.xlu0 %5675
        %5677 = vrot.lane.b32.xlu0 %v5614, 126
        %v5678 = vpop.permute.xlu0 %5677
        %5679 = vrot.lane.b32.xlu0 %v5615, 126
        %v5680 = vpop.permute.xlu0 %5679
        %5681 = vrot.lane.b32.xlu0 %v5616, 126
        %v5682 = vpop.permute.xlu0 %5681
        %5683 = vrot.lane.b32.xlu0 %v5617, 126
        %v5684 = vpop.permute.xlu0 %5683
        %5685 = vrot.lane.b32.xlu0 %v5618, 126
        %v5686 = vpop.permute.xlu0 %5685
        %5687 = vrot.lane.b32.xlu0 %v5619, 126
        %v5688 = vpop.permute.xlu0 %5687
        %5689 = vrot.lane.b32.xlu0 %v5620, 126
        %v5690 = vpop.permute.xlu0 %5689
        %vm5691 = vcmask 1031168
        %v5692 = vsel %vm5691, %v5622, %v5624
        %v5693 = vsel %vm5691, %v5624, %v5626
        %v5694 = vsel %vm5691, %v5626, %v5628
        %v5695 = vsel %vm5691, %v5628, %v5630
        %v5696 = vsel %vm5691, %v5630, %v5632
        %v5697 = vsel %vm5691, %v5632, %v5634
        %v5698 = vsel %vm5691, %v5634, %v5636
        %v5699 = vsel %vm5691, %v5636, %v5638
        %v5700 = vsel %vm5691, %v5638, %v5640
        %v5701 = vsel %vm5691, %v5640, %v5642
        %v5702 = vsel %vm5691, %v5642, %v5644
        %v5703 = vsel %vm5691, %v5644, %v5646
        %v5704 = vsel %vm5691, %v5646, %v5648
        %v5705 = vsel %vm5691, %v5648, %v5650
        %v5706 = vsel %vm5691, %v5650, %v5652
        %v5707 = vsel %vm5691, %v5652, %v5654
        %v5708 = vsel %vm5691, %v5654, %v5656
        %v5709 = vsel %vm5691, %v5656, %v5658
        %v5710 = vsel %vm5691, %v5658, %v5660
        %v5711 = vsel %vm5691, %v5660, %v5662
        %v5712 = vsel %vm5691, %v5662, %v5664
        %v5713 = vsel %vm5691, %v5664, %v5666
        %v5714 = vsel %vm5691, %v5666, %v5668
        %v5715 = vsel %vm5691, %v5668, %v5670
        %v5716 = vsel %vm5691, %v5670, %v5672
        %v5717 = vsel %vm5691, %v5672, %v5674
        %v5718 = vsel %vm5691, %v5674, %v5676
        %v5719 = vsel %vm5691, %v5676, %v5678
        %v5720 = vsel %vm5691, %v5678, %v5680
        %v5721 = vsel %vm5691, %v5680, %v5682
        %v5722 = vsel %vm5691, %v5682, %v5684
        %v5723 = vsel %vm5691, %v5684, %v5686
        %v5724 = vsel %vm5691, %v5686, %v5688
        %v5725 = vsel %vm5691, %v5688, %v5690
        %5726 = vrot.lane.b32.xlu0 %v5586, 2
        %v5727 = vpop.permute.xlu0 %5726
        %vm5728 = vcmask 15360
        %v5731 = vsel %vm5728, %v5690, %v5727
        %5732 = vrot.lane.b32.xlu0 %v5586, 124
        %v5733 = vpop.permute.xlu0 %5732
        %5734 = vrot.lane.b32.xlu0 %v5587, 124
        %v5735 = vpop.permute.xlu0 %5734
        %5736 = vrot.lane.b32.xlu0 %v5588, 124
        %v5737 = vpop.permute.xlu0 %5736
        %5738 = vrot.lane.b32.xlu0 %v5589, 124
        %v5739 = vpop.permute.xlu0 %5738
        %5740 = vrot.lane.b32.xlu0 %v5590, 124
        %v5741 = vpop.permute.xlu0 %5740
        %5742 = vrot.lane.b32.xlu0 %v5591, 124
        %v5743 = vpop.permute.xlu0 %5742
        %5744 = vrot.lane.b32.xlu0 %v5592, 124
        %v5745 = vpop.permute.xlu0 %5744
        %5746 = vrot.lane.b32.xlu0 %v5593, 124
        %v5747 = vpop.permute.xlu0 %5746
        %5748 = vrot.lane.b32.xlu0 %v5594, 124
        %v5749 = vpop.permute.xlu0 %5748
        %5750 = vrot.lane.b32.xlu0 %v5595, 124
        %v5751 = vpop.permute.xlu0 %5750
        %5752 = vrot.lane.b32.xlu0 %v5596, 124
        %v5753 = vpop.permute.xlu0 %5752
        %5754 = vrot.lane.b32.xlu0 %v5597, 124
        %v5755 = vpop.permute.xlu0 %5754
        %5756 = vrot.lane.b32.xlu0 %v5598, 124
        %v5757 = vpop.permute.xlu0 %5756
        %5758 = vrot.lane.b32.xlu0 %v5599, 124
        %v5759 = vpop.permute.xlu0 %5758
        %5760 = vrot.lane.b32.xlu0 %v5600, 124
        %v5761 = vpop.permute.xlu0 %5760
        %5762 = vrot.lane.b32.xlu0 %v5601, 124
        %v5763 = vpop.permute.xlu0 %5762
        %5764 = vrot.lane.b32.xlu0 %v5602, 124
        %v5765 = vpop.permute.xlu0 %5764
        %5766 = vrot.lane.b32.xlu0 %v5603, 124
        %v5767 = vpop.permute.xlu0 %5766
        %5768 = vrot.lane.b32.xlu0 %v5604, 124
        %v5769 = vpop.permute.xlu0 %5768
        %5770 = vrot.lane.b32.xlu0 %v5605, 124
        %v5771 = vpop.permute.xlu0 %5770
        %5772 = vrot.lane.b32.xlu0 %v5606, 124
        %v5773 = vpop.permute.xlu0 %5772
        %5774 = vrot.lane.b32.xlu0 %v5607, 124
        %v5775 = vpop.permute.xlu0 %5774
        %5776 = vrot.lane.b32.xlu0 %v5608, 124
        %v5777 = vpop.permute.xlu0 %5776
        %5778 = vrot.lane.b32.xlu0 %v5609, 124
        %v5779 = vpop.permute.xlu0 %5778
        %5780 = vrot.lane.b32.xlu0 %v5610, 124
        %v5781 = vpop.permute.xlu0 %5780
        %5782 = vrot.lane.b32.xlu0 %v5611, 124
        %v5783 = vpop.permute.xlu0 %5782
        %5784 = vrot.lane.b32.xlu0 %v5612, 124
        %v5785 = vpop.permute.xlu0 %5784
        %5786 = vrot.lane.b32.xlu0 %v5613, 124
        %v5787 = vpop.permute.xlu0 %5786
        %5788 = vrot.lane.b32.xlu0 %v5614, 124
        %v5789 = vpop.permute.xlu0 %5788
        %5790 = vrot.lane.b32.xlu0 %v5615, 124
        %v5791 = vpop.permute.xlu0 %5790
        %5792 = vrot.lane.b32.xlu0 %v5616, 124
        %v5793 = vpop.permute.xlu0 %5792
        %5794 = vrot.lane.b32.xlu0 %v5617, 124
        %v5795 = vpop.permute.xlu0 %5794
        %5796 = vrot.lane.b32.xlu0 %v5618, 124
        %v5797 = vpop.permute.xlu0 %5796
        %5798 = vrot.lane.b32.xlu0 %v5619, 124
        %v5799 = vpop.permute.xlu0 %5798
        %5800 = vrot.lane.b32.xlu0 %v5620, 124
        %v5801 = vpop.permute.xlu0 %5800
        %vm5802 = vcmask 1014784
        %v5803 = vsel %vm5802, %v5733, %v5735
        %v5804 = vsel %vm5802, %v5735, %v5737
        %v5805 = vsel %vm5802, %v5737, %v5739
        %v5806 = vsel %vm5802, %v5739, %v5741
        %v5807 = vsel %vm5802, %v5741, %v5743
        %v5808 = vsel %vm5802, %v5743, %v5745
        %v5809 = vsel %vm5802, %v5745, %v5747
        %v5810 = vsel %vm5802, %v5747, %v5749
        %v5811 = vsel %vm5802, %v5749, %v5751
        %v5812 = vsel %vm5802, %v5751, %v5753
        %v5813 = vsel %vm5802, %v5753, %v5755
        %v5814 = vsel %vm5802, %v5755, %v5757
        %v5815 = vsel %vm5802, %v5757, %v5759
        %v5816 = vsel %vm5802, %v5759, %v5761
        %v5817 = vsel %vm5802, %v5761, %v5763
        %v5818 = vsel %vm5802, %v5763, %v5765
        %v5819 = vsel %vm5802, %v5765, %v5767
        %v5820 = vsel %vm5802, %v5767, %v5769
        %v5821 = vsel %vm5802, %v5769, %v5771
        %v5822 = vsel %vm5802, %v5771, %v5773
        %v5823 = vsel %vm5802, %v5773, %v5775
        %v5824 = vsel %vm5802, %v5775, %v5777
        %v5825 = vsel %vm5802, %v5777, %v5779
        %v5826 = vsel %vm5802, %v5779, %v5781
        %v5827 = vsel %vm5802, %v5781, %v5783
        %v5828 = vsel %vm5802, %v5783, %v5785
        %v5829 = vsel %vm5802, %v5785, %v5787
        %v5830 = vsel %vm5802, %v5787, %v5789
        %v5831 = vsel %vm5802, %v5789, %v5791
        %v5832 = vsel %vm5802, %v5791, %v5793
        %v5833 = vsel %vm5802, %v5793, %v5795
        %v5834 = vsel %vm5802, %v5795, %v5797
        %v5835 = vsel %vm5802, %v5797, %v5799
        %v5836 = vsel %vm5802, %v5799, %v5801
        %5837 = vrot.lane.b32.xlu0 %v5587, 122
        %v5838 = vpop.permute.xlu0 %5837
        %5839 = vrot.lane.b32.xlu0 %v5588, 122
        %v5840 = vpop.permute.xlu0 %5839
        %5841 = vrot.lane.b32.xlu0 %v5589, 122
        %v5842 = vpop.permute.xlu0 %5841
        %5843 = vrot.lane.b32.xlu0 %v5590, 122
        %v5844 = vpop.permute.xlu0 %5843
        %5845 = vrot.lane.b32.xlu0 %v5591, 122
        %v5846 = vpop.permute.xlu0 %5845
        %5847 = vrot.lane.b32.xlu0 %v5592, 122
        %v5848 = vpop.permute.xlu0 %5847
        %5849 = vrot.lane.b32.xlu0 %v5593, 122
        %v5850 = vpop.permute.xlu0 %5849
        %5851 = vrot.lane.b32.xlu0 %v5594, 122
        %v5852 = vpop.permute.xlu0 %5851
        %5853 = vrot.lane.b32.xlu0 %v5595, 122
        %v5854 = vpop.permute.xlu0 %5853
        %5855 = vrot.lane.b32.xlu0 %v5596, 122
        %v5856 = vpop.permute.xlu0 %5855
        %5857 = vrot.lane.b32.xlu0 %v5597, 122
        %v5858 = vpop.permute.xlu0 %5857
        %5859 = vrot.lane.b32.xlu0 %v5598, 122
        %v5860 = vpop.permute.xlu0 %5859
        %5861 = vrot.lane.b32.xlu0 %v5599, 122
        %v5862 = vpop.permute.xlu0 %5861
        %5863 = vrot.lane.b32.xlu0 %v5600, 122
        %v5864 = vpop.permute.xlu0 %5863
        %5865 = vrot.lane.b32.xlu0 %v5601, 122
        %v5866 = vpop.permute.xlu0 %5865
        %5867 = vrot.lane.b32.xlu0 %v5602, 122
        %v5868 = vpop.permute.xlu0 %5867
        %5869 = vrot.lane.b32.xlu0 %v5603, 122
        %v5870 = vpop.permute.xlu0 %5869
        %5871 = vrot.lane.b32.xlu0 %v5604, 122
        %v5872 = vpop.permute.xlu0 %5871
        %5873 = vrot.lane.b32.xlu0 %v5605, 122
        %v5874 = vpop.permute.xlu0 %5873
        %5875 = vrot.lane.b32.xlu0 %v5606, 122
        %v5876 = vpop.permute.xlu0 %5875
        %5877 = vrot.lane.b32.xlu0 %v5607, 122
        %v5878 = vpop.permute.xlu0 %5877
        %5879 = vrot.lane.b32.xlu0 %v5608, 122
        %v5880 = vpop.permute.xlu0 %5879
        %5881 = vrot.lane.b32.xlu0 %v5609, 122
        %v5882 = vpop.permute.xlu0 %5881
        %5883 = vrot.lane.b32.xlu0 %v5610, 122
        %v5884 = vpop.permute.xlu0 %5883
        %5885 = vrot.lane.b32.xlu0 %v5611, 122
        %v5886 = vpop.permute.xlu0 %5885
        %5887 = vrot.lane.b32.xlu0 %v5612, 122
        %v5888 = vpop.permute.xlu0 %5887
        %5889 = vrot.lane.b32.xlu0 %v5613, 122
        %v5890 = vpop.permute.xlu0 %5889
        %5891 = vrot.lane.b32.xlu0 %v5614, 122
        %v5892 = vpop.permute.xlu0 %5891
        %5893 = vrot.lane.b32.xlu0 %v5615, 122
        %v5894 = vpop.permute.xlu0 %5893
        %5895 = vrot.lane.b32.xlu0 %v5616, 122
        %v5896 = vpop.permute.xlu0 %5895
        %5897 = vrot.lane.b32.xlu0 %v5617, 122
        %v5898 = vpop.permute.xlu0 %5897
        %5899 = vrot.lane.b32.xlu0 %v5618, 122
        %v5900 = vpop.permute.xlu0 %5899
        %5901 = vrot.lane.b32.xlu0 %v5619, 122
        %v5902 = vpop.permute.xlu0 %5901
        %5903 = vrot.lane.b32.xlu0 %v5620, 122
        %v5904 = vpop.permute.xlu0 %5903
        %vm5905 = vcmask 998400
        %v5906 = vsel %vm5905, %v5838, %v5840
        %v5907 = vsel %vm5905, %v5840, %v5842
        %v5908 = vsel %vm5905, %v5842, %v5844
        %v5909 = vsel %vm5905, %v5844, %v5846
        %v5910 = vsel %vm5905, %v5846, %v5848
        %v5911 = vsel %vm5905, %v5848, %v5850
        %v5912 = vsel %vm5905, %v5850, %v5852
        %v5913 = vsel %vm5905, %v5852, %v5854
        %v5914 = vsel %vm5905, %v5854, %v5856
        %v5915 = vsel %vm5905, %v5856, %v5858
        %v5916 = vsel %vm5905, %v5858, %v5860
        %v5917 = vsel %vm5905, %v5860, %v5862
        %v5918 = vsel %vm5905, %v5862, %v5864
        %v5919 = vsel %vm5905, %v5864, %v5866
        %v5920 = vsel %vm5905, %v5866, %v5868
        %v5921 = vsel %vm5905, %v5868, %v5870
        %v5922 = vsel %vm5905, %v5870, %v5872
        %v5923 = vsel %vm5905, %v5872, %v5874
        %v5924 = vsel %vm5905, %v5874, %v5876
        %v5925 = vsel %vm5905, %v5876, %v5878
        %v5926 = vsel %vm5905, %v5878, %v5880
        %v5927 = vsel %vm5905, %v5880, %v5882
        %v5928 = vsel %vm5905, %v5882, %v5884
        %v5929 = vsel %vm5905, %v5884, %v5886
        %v5930 = vsel %vm5905, %v5886, %v5888
        %v5931 = vsel %vm5905, %v5888, %v5890
        %v5932 = vsel %vm5905, %v5890, %v5892
        %v5933 = vsel %vm5905, %v5892, %v5894
        %v5934 = vsel %vm5905, %v5894, %v5896
        %v5935 = vsel %vm5905, %v5896, %v5898
        %v5936 = vsel %vm5905, %v5898, %v5900
        %v5937 = vsel %vm5905, %v5900, %v5902
        %v5938 = vsel %vm5905, %v5902, %v5904
        %vm5939 = vcmask 1031168
        %v5942 = vsel %vm5939, %v5938, %v5622
        %5943 = vrot.lane.b32.xlu0 %v5587, 120
        %v5944 = vpop.permute.xlu0 %5943
        %5945 = vrot.lane.b32.xlu0 %v5588, 120
        %v5946 = vpop.permute.xlu0 %5945
        %5947 = vrot.lane.b32.xlu0 %v5589, 120
        %v5948 = vpop.permute.xlu0 %5947
        %5949 = vrot.lane.b32.xlu0 %v5590, 120
        %v5950 = vpop.permute.xlu0 %5949
        %5951 = vrot.lane.b32.xlu0 %v5591, 120
        %v5952 = vpop.permute.xlu0 %5951
        %5953 = vrot.lane.b32.xlu0 %v5592, 120
        %v5954 = vpop.permute.xlu0 %5953
        %5955 = vrot.lane.b32.xlu0 %v5593, 120
        %v5956 = vpop.permute.xlu0 %5955
        %5957 = vrot.lane.b32.xlu0 %v5594, 120
        %v5958 = vpop.permute.xlu0 %5957
        %5959 = vrot.lane.b32.xlu0 %v5595, 120
        %v5960 = vpop.permute.xlu0 %5959
        %5961 = vrot.lane.b32.xlu0 %v5596, 120
        %v5962 = vpop.permute.xlu0 %5961
        %5963 = vrot.lane.b32.xlu0 %v5597, 120
        %v5964 = vpop.permute.xlu0 %5963
        %5965 = vrot.lane.b32.xlu0 %v5598, 120
        %v5966 = vpop.permute.xlu0 %5965
        %5967 = vrot.lane.b32.xlu0 %v5599, 120
        %v5968 = vpop.permute.xlu0 %5967
        %5969 = vrot.lane.b32.xlu0 %v5600, 120
        %v5970 = vpop.permute.xlu0 %5969
        %5971 = vrot.lane.b32.xlu0 %v5601, 120
        %v5972 = vpop.permute.xlu0 %5971
        %5973 = vrot.lane.b32.xlu0 %v5602, 120
        %v5974 = vpop.permute.xlu0 %5973
        %5975 = vrot.lane.b32.xlu0 %v5603, 120
        %v5976 = vpop.permute.xlu0 %5975
        %5977 = vrot.lane.b32.xlu0 %v5604, 120
        %v5978 = vpop.permute.xlu0 %5977
        %5979 = vrot.lane.b32.xlu0 %v5605, 120
        %v5980 = vpop.permute.xlu0 %5979
        %5981 = vrot.lane.b32.xlu0 %v5606, 120
        %v5982 = vpop.permute.xlu0 %5981
        %5983 = vrot.lane.b32.xlu0 %v5607, 120
        %v5984 = vpop.permute.xlu0 %5983
        %5985 = vrot.lane.b32.xlu0 %v5608, 120
        %v5986 = vpop.permute.xlu0 %5985
        %5987 = vrot.lane.b32.xlu0 %v5609, 120
        %v5988 = vpop.permute.xlu0 %5987
        %5989 = vrot.lane.b32.xlu0 %v5610, 120
        %v5990 = vpop.permute.xlu0 %5989
        %5991 = vrot.lane.b32.xlu0 %v5611, 120
        %v5992 = vpop.permute.xlu0 %5991
        %5993 = vrot.lane.b32.xlu0 %v5612, 120
        %v5994 = vpop.permute.xlu0 %5993
        %5995 = vrot.lane.b32.xlu0 %v5613, 120
        %v5996 = vpop.permute.xlu0 %5995
        %5997 = vrot.lane.b32.xlu0 %v5614, 120
        %v5998 = vpop.permute.xlu0 %5997
        %5999 = vrot.lane.b32.xlu0 %v5615, 120
        %v6000 = vpop.permute.xlu0 %5999
        %6001 = vrot.lane.b32.xlu0 %v5616, 120
        %v6002 = vpop.permute.xlu0 %6001
        %6003 = vrot.lane.b32.xlu0 %v5617, 120
        %v6004 = vpop.permute.xlu0 %6003
        %6005 = vrot.lane.b32.xlu0 %v5618, 120
        %v6006 = vpop.permute.xlu0 %6005
        %6007 = vrot.lane.b32.xlu0 %v5619, 120
        %v6008 = vpop.permute.xlu0 %6007
        %6009 = vrot.lane.b32.xlu0 %v5620, 120
        %v6010 = vpop.permute.xlu0 %6009
        %vm6011 = vcmask 982016
        %v6012 = vsel %vm6011, %v5944, %v5946
        %v6013 = vsel %vm6011, %v5946, %v5948
        %v6014 = vsel %vm6011, %v5948, %v5950
        %v6015 = vsel %vm6011, %v5950, %v5952
        %v6016 = vsel %vm6011, %v5952, %v5954
        %v6017 = vsel %vm6011, %v5954, %v5956
        %v6018 = vsel %vm6011, %v5956, %v5958
        %v6019 = vsel %vm6011, %v5958, %v5960
        %v6020 = vsel %vm6011, %v5960, %v5962
        %v6021 = vsel %vm6011, %v5962, %v5964
        %v6022 = vsel %vm6011, %v5964, %v5966
        %v6023 = vsel %vm6011, %v5966, %v5968
        %v6024 = vsel %vm6011, %v5968, %v5970
        %v6025 = vsel %vm6011, %v5970, %v5972
        %v6026 = vsel %vm6011, %v5972, %v5974
        %v6027 = vsel %vm6011, %v5974, %v5976
        %v6028 = vsel %vm6011, %v5976, %v5978
        %v6029 = vsel %vm6011, %v5978, %v5980
        %v6030 = vsel %vm6011, %v5980, %v5982
        %v6031 = vsel %vm6011, %v5982, %v5984
        %v6032 = vsel %vm6011, %v5984, %v5986
        %v6033 = vsel %vm6011, %v5986, %v5988
        %v6034 = vsel %vm6011, %v5988, %v5990
        %v6035 = vsel %vm6011, %v5990, %v5992
        %v6036 = vsel %vm6011, %v5992, %v5994
        %v6037 = vsel %vm6011, %v5994, %v5996
        %v6038 = vsel %vm6011, %v5996, %v5998
        %v6039 = vsel %vm6011, %v5998, %v6000
        %v6040 = vsel %vm6011, %v6000, %v6002
        %v6041 = vsel %vm6011, %v6002, %v6004
        %v6042 = vsel %vm6011, %v6004, %v6006
        %v6043 = vsel %vm6011, %v6006, %v6008
        %v6044 = vsel %vm6011, %v6008, %v6010
        %vm6045 = vcmask 1014784
        %v6048 = vsel %vm6045, %v6044, %v5733
        %6049 = vrot.lane.b32.xlu0 %v5588, 118
        %v6050 = vpop.permute.xlu0 %6049
        %6051 = vrot.lane.b32.xlu0 %v5589, 118
        %v6052 = vpop.permute.xlu0 %6051
        %6053 = vrot.lane.b32.xlu0 %v5590, 118
        %v6054 = vpop.permute.xlu0 %6053
        %6055 = vrot.lane.b32.xlu0 %v5591, 118
        %v6056 = vpop.permute.xlu0 %6055
        %6057 = vrot.lane.b32.xlu0 %v5592, 118
        %v6058 = vpop.permute.xlu0 %6057
        %6059 = vrot.lane.b32.xlu0 %v5593, 118
        %v6060 = vpop.permute.xlu0 %6059
        %6061 = vrot.lane.b32.xlu0 %v5594, 118
        %v6062 = vpop.permute.xlu0 %6061
        %6063 = vrot.lane.b32.xlu0 %v5595, 118
        %v6064 = vpop.permute.xlu0 %6063
        %6065 = vrot.lane.b32.xlu0 %v5596, 118
        %v6066 = vpop.permute.xlu0 %6065
        %6067 = vrot.lane.b32.xlu0 %v5597, 118
        %v6068 = vpop.permute.xlu0 %6067
        %6069 = vrot.lane.b32.xlu0 %v5598, 118
        %v6070 = vpop.permute.xlu0 %6069
        %6071 = vrot.lane.b32.xlu0 %v5599, 118
        %v6072 = vpop.permute.xlu0 %6071
        %6073 = vrot.lane.b32.xlu0 %v5600, 118
        %v6074 = vpop.permute.xlu0 %6073
        %6075 = vrot.lane.b32.xlu0 %v5601, 118
        %v6076 = vpop.permute.xlu0 %6075
        %6077 = vrot.lane.b32.xlu0 %v5602, 118
        %v6078 = vpop.permute.xlu0 %6077
        %6079 = vrot.lane.b32.xlu0 %v5603, 118
        %v6080 = vpop.permute.xlu0 %6079
        %6081 = vrot.lane.b32.xlu0 %v5604, 118
        %v6082 = vpop.permute.xlu0 %6081
        %6083 = vrot.lane.b32.xlu0 %v5605, 118
        %v6084 = vpop.permute.xlu0 %6083
        %6085 = vrot.lane.b32.xlu0 %v5606, 118
        %v6086 = vpop.permute.xlu0 %6085
        %6087 = vrot.lane.b32.xlu0 %v5607, 118
        %v6088 = vpop.permute.xlu0 %6087
        %6089 = vrot.lane.b32.xlu0 %v5608, 118
        %v6090 = vpop.permute.xlu0 %6089
        %6091 = vrot.lane.b32.xlu0 %v5609, 118
        %v6092 = vpop.permute.xlu0 %6091
        %6093 = vrot.lane.b32.xlu0 %v5610, 118
        %v6094 = vpop.permute.xlu0 %6093
        %6095 = vrot.lane.b32.xlu0 %v5611, 118
        %v6096 = vpop.permute.xlu0 %6095
        %6097 = vrot.lane.b32.xlu0 %v5612, 118
        %v6098 = vpop.permute.xlu0 %6097
        %6099 = vrot.lane.b32.xlu0 %v5613, 118
        %v6100 = vpop.permute.xlu0 %6099
        %6101 = vrot.lane.b32.xlu0 %v5614, 118
        %v6102 = vpop.permute.xlu0 %6101
        %6103 = vrot.lane.b32.xlu0 %v5615, 118
        %v6104 = vpop.permute.xlu0 %6103
        %6105 = vrot.lane.b32.xlu0 %v5616, 118
        %v6106 = vpop.permute.xlu0 %6105
        %6107 = vrot.lane.b32.xlu0 %v5617, 118
        %v6108 = vpop.permute.xlu0 %6107
        %6109 = vrot.lane.b32.xlu0 %v5618, 118
        %v6110 = vpop.permute.xlu0 %6109
        %6111 = vrot.lane.b32.xlu0 %v5619, 118
        %v6112 = vpop.permute.xlu0 %6111
        %6113 = vrot.lane.b32.xlu0 %v5620, 118
        %v6114 = vpop.permute.xlu0 %6113
        %vm6115 = vcmask 965632
        %v6116 = vsel %vm6115, %v6050, %v6052
        %v6117 = vsel %vm6115, %v6052, %v6054
        %v6118 = vsel %vm6115, %v6054, %v6056
        %v6119 = vsel %vm6115, %v6056, %v6058
        %v6120 = vsel %vm6115, %v6058, %v6060
        %v6121 = vsel %vm6115, %v6060, %v6062
        %v6122 = vsel %vm6115, %v6062, %v6064
        %v6123 = vsel %vm6115, %v6064, %v6066
        %v6124 = vsel %vm6115, %v6066, %v6068
        %v6125 = vsel %vm6115, %v6068, %v6070
        %v6126 = vsel %vm6115, %v6070, %v6072
        %v6127 = vsel %vm6115, %v6072, %v6074
        %v6128 = vsel %vm6115, %v6074, %v6076
        %v6129 = vsel %vm6115, %v6076, %v6078
        %v6130 = vsel %vm6115, %v6078, %v6080
        %v6131 = vsel %vm6115, %v6080, %v6082
        %v6132 = vsel %vm6115, %v6082, %v6084
        %v6133 = vsel %vm6115, %v6084, %v6086
        %v6134 = vsel %vm6115, %v6086, %v6088
        %v6135 = vsel %vm6115, %v6088, %v6090
        %v6136 = vsel %vm6115, %v6090, %v6092
        %v6137 = vsel %vm6115, %v6092, %v6094
        %v6138 = vsel %vm6115, %v6094, %v6096
        %v6139 = vsel %vm6115, %v6096, %v6098
        %v6140 = vsel %vm6115, %v6098, %v6100
        %v6141 = vsel %vm6115, %v6100, %v6102
        %v6142 = vsel %vm6115, %v6102, %v6104
        %v6143 = vsel %vm6115, %v6104, %v6106
        %v6144 = vsel %vm6115, %v6106, %v6108
        %v6145 = vsel %vm6115, %v6108, %v6110
        %v6146 = vsel %vm6115, %v6110, %v6112
        %v6147 = vsel %vm6115, %v6112, %v6114
        %6148 = vrot.lane.b32.xlu0 %v5586, 122
        %v6149 = vpop.permute.xlu0 %6148
        %v6150 = vsel %vm5905, %v6149, %v5838
        %vm6151 = vcmask 998400
        %v6154 = vsel %vm6151, %v6147, %v6149
        %6155 = vrot.lane.b32.xlu0 %v5588, 116
        %v6156 = vpop.permute.xlu0 %6155
        %6157 = vrot.lane.b32.xlu0 %v5589, 116
        %v6158 = vpop.permute.xlu0 %6157
        %6159 = vrot.lane.b32.xlu0 %v5590, 116
        %v6160 = vpop.permute.xlu0 %6159
        %6161 = vrot.lane.b32.xlu0 %v5591, 116
        %v6162 = vpop.permute.xlu0 %6161
        %6163 = vrot.lane.b32.xlu0 %v5592, 116
        %v6164 = vpop.permute.xlu0 %6163
        %6165 = vrot.lane.b32.xlu0 %v5593, 116
        %v6166 = vpop.permute.xlu0 %6165
        %6167 = vrot.lane.b32.xlu0 %v5594, 116
        %v6168 = vpop.permute.xlu0 %6167
        %6169 = vrot.lane.b32.xlu0 %v5595, 116
        %v6170 = vpop.permute.xlu0 %6169
        %6171 = vrot.lane.b32.xlu0 %v5596, 116
        %v6172 = vpop.permute.xlu0 %6171
        %6173 = vrot.lane.b32.xlu0 %v5597, 116
        %v6174 = vpop.permute.xlu0 %6173
        %6175 = vrot.lane.b32.xlu0 %v5598, 116
        %v6176 = vpop.permute.xlu0 %6175
        %6177 = vrot.lane.b32.xlu0 %v5599, 116
        %v6178 = vpop.permute.xlu0 %6177
        %6179 = vrot.lane.b32.xlu0 %v5600, 116
        %v6180 = vpop.permute.xlu0 %6179
        %6181 = vrot.lane.b32.xlu0 %v5601, 116
        %v6182 = vpop.permute.xlu0 %6181
        %6183 = vrot.lane.b32.xlu0 %v5602, 116
        %v6184 = vpop.permute.xlu0 %6183
        %6185 = vrot.lane.b32.xlu0 %v5603, 116
        %v6186 = vpop.permute.xlu0 %6185
        %6187 = vrot.lane.b32.xlu0 %v5604, 116
        %v6188 = vpop.permute.xlu0 %6187
        %6189 = vrot.lane.b32.xlu0 %v5605, 116
        %v6190 = vpop.permute.xlu0 %6189
        %6191 = vrot.lane.b32.xlu0 %v5606, 116
        %v6192 = vpop.permute.xlu0 %6191
        %6193 = vrot.lane.b32.xlu0 %v5607, 116
        %v6194 = vpop.permute.xlu0 %6193
        %6195 = vrot.lane.b32.xlu0 %v5608, 116
        %v6196 = vpop.permute.xlu0 %6195
        %6197 = vrot.lane.b32.xlu0 %v5609, 116
        %v6198 = vpop.permute.xlu0 %6197
        %6199 = vrot.lane.b32.xlu0 %v5610, 116
        %v6200 = vpop.permute.xlu0 %6199
        %6201 = vrot.lane.b32.xlu0 %v5611, 116
        %v6202 = vpop.permute.xlu0 %6201
        %6203 = vrot.lane.b32.xlu0 %v5612, 116
        %v6204 = vpop.permute.xlu0 %6203
        %6205 = vrot.lane.b32.xlu0 %v5613, 116
        %v6206 = vpop.permute.xlu0 %6205
        %6207 = vrot.lane.b32.xlu0 %v5614, 116
        %v6208 = vpop.permute.xlu0 %6207
        %6209 = vrot.lane.b32.xlu0 %v5615, 116
        %v6210 = vpop.permute.xlu0 %6209
        %6211 = vrot.lane.b32.xlu0 %v5616, 116
        %v6212 = vpop.permute.xlu0 %6211
        %6213 = vrot.lane.b32.xlu0 %v5617, 116
        %v6214 = vpop.permute.xlu0 %6213
        %6215 = vrot.lane.b32.xlu0 %v5618, 116
        %v6216 = vpop.permute.xlu0 %6215
        %6217 = vrot.lane.b32.xlu0 %v5619, 116
        %v6218 = vpop.permute.xlu0 %6217
        %6219 = vrot.lane.b32.xlu0 %v5620, 116
        %v6220 = vpop.permute.xlu0 %6219
        %vm6221 = vcmask 949248
        %v6222 = vsel %vm6221, %v6156, %v6158
        %v6223 = vsel %vm6221, %v6158, %v6160
        %v6224 = vsel %vm6221, %v6160, %v6162
        %v6225 = vsel %vm6221, %v6162, %v6164
        %v6226 = vsel %vm6221, %v6164, %v6166
        %v6227 = vsel %vm6221, %v6166, %v6168
        %v6228 = vsel %vm6221, %v6168, %v6170
        %v6229 = vsel %vm6221, %v6170, %v6172
        %v6230 = vsel %vm6221, %v6172, %v6174
        %v6231 = vsel %vm6221, %v6174, %v6176
        %v6232 = vsel %vm6221, %v6176, %v6178
        %v6233 = vsel %vm6221, %v6178, %v6180
        %v6234 = vsel %vm6221, %v6180, %v6182
        %v6235 = vsel %vm6221, %v6182, %v6184
        %v6236 = vsel %vm6221, %v6184, %v6186
        %v6237 = vsel %vm6221, %v6186, %v6188
        %v6238 = vsel %vm6221, %v6188, %v6190
        %v6239 = vsel %vm6221, %v6190, %v6192
        %v6240 = vsel %vm6221, %v6192, %v6194
        %v6241 = vsel %vm6221, %v6194, %v6196
        %v6242 = vsel %vm6221, %v6196, %v6198
        %v6243 = vsel %vm6221, %v6198, %v6200
        %v6244 = vsel %vm6221, %v6200, %v6202
        %v6245 = vsel %vm6221, %v6202, %v6204
        %v6246 = vsel %vm6221, %v6204, %v6206
        %v6247 = vsel %vm6221, %v6206, %v6208
        %v6248 = vsel %vm6221, %v6208, %v6210
        %v6249 = vsel %vm6221, %v6210, %v6212
        %v6250 = vsel %vm6221, %v6212, %v6214
        %v6251 = vsel %vm6221, %v6214, %v6216
        %v6252 = vsel %vm6221, %v6216, %v6218
        %v6253 = vsel %vm6221, %v6218, %v6220
        %6254 = vrot.lane.b32.xlu0 %v5586, 120
        %v6255 = vpop.permute.xlu0 %6254
        %v6256 = vsel %vm6011, %v6255, %v5944
        %vm6257 = vcmask 982016
        %v6260 = vsel %vm6257, %v6253, %v6255
        %v6262 = vrot.slane %v5692, 4
        %v6263 = vrot.slane %v5693, 4
        %v6264 = vrot.slane %v5694, 4
        %v6265 = vrot.slane %v5695, 4
        %v6266 = vrot.slane %v5696, 4
        %v6267 = vrot.slane %v5697, 4
        %v6268 = vrot.slane %v5698, 4
        %v6269 = vrot.slane %v5699, 4
        %v6270 = vrot.slane %v5700, 4
        %v6271 = vrot.slane %v5701, 4
        %v6272 = vrot.slane %v5702, 4
        %v6273 = vrot.slane %v5703, 4
        %v6274 = vrot.slane %v5704, 4
        %v6275 = vrot.slane %v5705, 4
        %v6276 = vrot.slane %v5706, 4
        %v6277 = vrot.slane %v5707, 4
        %v6278 = vrot.slane %v5708, 4
        %v6279 = vrot.slane %v5709, 4
        %v6280 = vrot.slane %v5710, 4
        %v6281 = vrot.slane %v5711, 4
        %v6282 = vrot.slane %v5712, 4
        %v6283 = vrot.slane %v5713, 4
        %v6284 = vrot.slane %v5714, 4
        %v6285 = vrot.slane %v5715, 4
        %v6286 = vrot.slane %v5716, 4
        %v6287 = vrot.slane %v5717, 4
        %v6288 = vrot.slane %v5718, 4
        %v6289 = vrot.slane %v5719, 4
        %v6290 = vrot.slane %v5720, 4
        %v6291 = vrot.slane %v5721, 4
        %v6292 = vrot.slane %v5722, 4
        %v6293 = vrot.slane %v5723, 4
        %v6294 = vrot.slane %v5724, 4
        %v6295 = vrot.slane %v5725, 4
        %v6296 = vrot.slane %v5731, 4
        %v6297 = vrot.slane %v5804, 4
        %v6298 = vrot.slane %v5805, 4
        %v6299 = vrot.slane %v5806, 4
        %v6300 = vrot.slane %v5807, 4
        %v6301 = vrot.slane %v5808, 4
        %v6302 = vrot.slane %v5809, 4
        %v6303 = vrot.slane %v5810, 4
        %v6304 = vrot.slane %v5811, 4
        %v6305 = vrot.slane %v5812, 4
        %v6306 = vrot.slane %v5813, 4
        %v6307 = vrot.slane %v5814, 4
        %v6308 = vrot.slane %v5815, 4
        %v6309 = vrot.slane %v5816, 4
        %v6310 = vrot.slane %v5817, 4
        %v6311 = vrot.slane %v5818, 4
        %v6312 = vrot.slane %v5819, 4
        %v6313 = vrot.slane %v5820, 4
        %v6314 = vrot.slane %v5821, 4
        %v6315 = vrot.slane %v5822, 4
        %v6316 = vrot.slane %v5823, 4
        %v6317 = vrot.slane %v5824, 4
        %v6318 = vrot.slane %v5825, 4
        %v6319 = vrot.slane %v5826, 4
        %v6320 = vrot.slane %v5827, 4
        %v6321 = vrot.slane %v5828, 4
        %v6322 = vrot.slane %v5829, 4
        %v6323 = vrot.slane %v5830, 4
        %v6324 = vrot.slane %v5831, 4
        %v6325 = vrot.slane %v5832, 4
        %v6326 = vrot.slane %v5833, 4
        %v6327 = vrot.slane %v5834, 4
        %v6328 = vrot.slane %v5835, 4
        %v6329 = vrot.slane %v5836, 4
        %v6330 = vrot.slane %v5586, 4
        %v6331 = vrot.slane %v5587, 4
        %v6333 = vrot.slane %v6012, 4
        %v6334 = vrot.slane %v6013, 4
        %v6335 = vrot.slane %v6014, 4
        %v6336 = vrot.slane %v6015, 4
        %v6337 = vrot.slane %v6016, 4
        %v6338 = vrot.slane %v6017, 4
        %v6339 = vrot.slane %v6018, 4
        %v6340 = vrot.slane %v6019, 4
        %v6341 = vrot.slane %v6020, 4
        %v6342 = vrot.slane %v6021, 4
        %v6343 = vrot.slane %v6022, 4
        %v6344 = vrot.slane %v6023, 4
        %v6345 = vrot.slane %v6024, 4
        %v6346 = vrot.slane %v6025, 4
        %v6347 = vrot.slane %v6026, 4
        %v6348 = vrot.slane %v6027, 4
        %v6349 = vrot.slane %v6028, 4
        %v6350 = vrot.slane %v6029, 4
        %v6351 = vrot.slane %v6030, 4
        %v6352 = vrot.slane %v6031, 4
        %v6353 = vrot.slane %v6032, 4
        %v6354 = vrot.slane %v6033, 4
        %v6355 = vrot.slane %v6034, 4
        %v6356 = vrot.slane %v6035, 4
        %v6357 = vrot.slane %v6036, 4
        %v6358 = vrot.slane %v6037, 4
        %v6359 = vrot.slane %v6038, 4
        %v6360 = vrot.slane %v6039, 4
        %v6361 = vrot.slane %v6040, 4
        %v6362 = vrot.slane %v6041, 4
        %v6363 = vrot.slane %v6042, 4
        %v6364 = vrot.slane %v6043, 4
        %v6365 = vrot.slane %v6048, 4
        %v6366 = vrot.slane %v5803, 4
        %v6367 = vrot.slane %v5735, 4
        %v6369 = vrot.slane %v6116, 4
        %v6370 = vrot.slane %v6117, 4
        %v6371 = vrot.slane %v6118, 4
        %v6372 = vrot.slane %v6119, 4
        %v6373 = vrot.slane %v6120, 4
        %v6374 = vrot.slane %v6121, 4
        %v6375 = vrot.slane %v6122, 4
        %v6376 = vrot.slane %v6123, 4
        %v6377 = vrot.slane %v6124, 4
        %v6378 = vrot.slane %v6125, 4
        %v6379 = vrot.slane %v6126, 4
        %v6380 = vrot.slane %v6127, 4
        %v6381 = vrot.slane %v6128, 4
        %v6382 = vrot.slane %v6129, 4
        %v6383 = vrot.slane %v6130, 4
        %v6384 = vrot.slane %v6131, 4
        %v6385 = vrot.slane %v6132, 4
        %v6386 = vrot.slane %v6133, 4
        %v6387 = vrot.slane %v6134, 4
        %v6388 = vrot.slane %v6135, 4
        %v6389 = vrot.slane %v6136, 4
        %v6390 = vrot.slane %v6137, 4
        %v6391 = vrot.slane %v6138, 4
        %v6392 = vrot.slane %v6139, 4
        %v6393 = vrot.slane %v6140, 4
        %v6394 = vrot.slane %v6141, 4
        %v6395 = vrot.slane %v6142, 4
        %v6396 = vrot.slane %v6143, 4
        %v6397 = vrot.slane %v6144, 4
        %v6398 = vrot.slane %v6145, 4
        %v6399 = vrot.slane %v6146, 4
        %v6400 = vrot.slane %v6154, 4
        %v6401 = vrot.slane %v6150, 4
        %v6402 = vrot.slane %v5906, 4
        %v6403 = vrot.slane %v5840, 4
        %v6406 = vsel %vm1574, %v5586, %v6262
        %v6410 = vsel %vm1574, %v5587, %v6263
        %v6414 = vsel %vm1574, %v5588, %v6264
        %v6418 = vsel %vm1574, %v5589, %v6265
        %v6422 = vsel %vm1574, %v5590, %v6266
        %v6426 = vsel %vm1574, %v5591, %v6267
        %v6430 = vsel %vm1574, %v5592, %v6268
        %v6434 = vsel %vm1574, %v5593, %v6269
        %v6438 = vsel %vm1574, %v5594, %v6270
        %v6442 = vsel %vm1574, %v5595, %v6271
        %v6446 = vsel %vm1574, %v5596, %v6272
        %v6450 = vsel %vm1574, %v5597, %v6273
        %v6454 = vsel %vm1574, %v5598, %v6274
        %v6458 = vsel %vm1574, %v5599, %v6275
        %v6462 = vsel %vm1574, %v5600, %v6276
        %v6466 = vsel %vm1574, %v5601, %v6277
        %v6470 = vsel %vm1574, %v5602, %v6278
        %v6474 = vsel %vm1574, %v5603, %v6279
        %v6478 = vsel %vm1574, %v5604, %v6280
        %v6482 = vsel %vm1574, %v5605, %v6281
        %v6486 = vsel %vm1574, %v5606, %v6282
        %v6490 = vsel %vm1574, %v5607, %v6283
        %v6494 = vsel %vm1574, %v5608, %v6284
        %v6498 = vsel %vm1574, %v5609, %v6285
        %v6502 = vsel %vm1574, %v5610, %v6286
        %v6506 = vsel %vm1574, %v5611, %v6287
        %v6510 = vsel %vm1574, %v5612, %v6288
        %v6514 = vsel %vm1574, %v5613, %v6289
        %v6518 = vsel %vm1574, %v5614, %v6290
        %v6522 = vsel %vm1574, %v5615, %v6291
        %v6526 = vsel %vm1574, %v5616, %v6292
        %v6530 = vsel %vm1574, %v5617, %v6293
        %v6534 = vsel %vm1574, %v5618, %v6294
        %v6538 = vsel %vm1574, %v5619, %v6295
        %v6542 = vsel %vm1574, %v5620, %v6296
        %v6546 = vsel %vm1574, %v5803, %v6297
        %v6550 = vsel %vm1574, %v5804, %v6298
        %v6554 = vsel %vm1574, %v5805, %v6299
        %v6558 = vsel %vm1574, %v5806, %v6300
        %v6562 = vsel %vm1574, %v5807, %v6301
        %v6566 = vsel %vm1574, %v5808, %v6302
        %v6570 = vsel %vm1574, %v5809, %v6303
        %v6574 = vsel %vm1574, %v5810, %v6304
        %v6578 = vsel %vm1574, %v5811, %v6305
        %v6582 = vsel %vm1574, %v5812, %v6306
        %v6586 = vsel %vm1574, %v5813, %v6307
        %v6590 = vsel %vm1574, %v5814, %v6308
        %v6594 = vsel %vm1574, %v5815, %v6309
        %v6598 = vsel %vm1574, %v5816, %v6310
        %v6602 = vsel %vm1574, %v5817, %v6311
        %v6606 = vsel %vm1574, %v5818, %v6312
        %v6610 = vsel %vm1574, %v5819, %v6313
        %v6614 = vsel %vm1574, %v5820, %v6314
        %v6618 = vsel %vm1574, %v5821, %v6315
        %v6622 = vsel %vm1574, %v5822, %v6316
        %v6626 = vsel %vm1574, %v5823, %v6317
        %v6630 = vsel %vm1574, %v5824, %v6318
        %v6634 = vsel %vm1574, %v5825, %v6319
        %v6638 = vsel %vm1574, %v5826, %v6320
        %v6642 = vsel %vm1574, %v5827, %v6321
        %v6646 = vsel %vm1574, %v5828, %v6322
        %v6650 = vsel %vm1574, %v5829, %v6323
        %v6654 = vsel %vm1574, %v5830, %v6324
        %v6658 = vsel %vm1574, %v5831, %v6325
        %v6662 = vsel %vm1574, %v5832, %v6326
        %v6666 = vsel %vm1574, %v5833, %v6327
        %v6670 = vsel %vm1574, %v5834, %v6328
        %v6674 = vsel %vm1574, %v5835, %v6329
        %v6678 = vsel %vm1574, %v5836, %v6330
        %v6682 = vsel %vm1574, %v5515, %v6331
        %v6686 = vsel %vm1574, %v5906, %v6333
        %v6690 = vsel %vm1574, %v5907, %v6334
        %v6694 = vsel %vm1574, %v5908, %v6335
        %v6698 = vsel %vm1574, %v5909, %v6336
        %v6702 = vsel %vm1574, %v5910, %v6337
        %v6706 = vsel %vm1574, %v5911, %v6338
        %v6710 = vsel %vm1574, %v5912, %v6339
        %v6714 = vsel %vm1574, %v5913, %v6340
        %v6718 = vsel %vm1574, %v5914, %v6341
        %v6722 = vsel %vm1574, %v5915, %v6342
        %v6726 = vsel %vm1574, %v5916, %v6343
        %v6730 = vsel %vm1574, %v5917, %v6344
        %v6734 = vsel %vm1574, %v5918, %v6345
        %v6738 = vsel %vm1574, %v5919, %v6346
        %v6742 = vsel %vm1574, %v5920, %v6347
        %v6746 = vsel %vm1574, %v5921, %v6348
        %v6750 = vsel %vm1574, %v5922, %v6349
        %v6754 = vsel %vm1574, %v5923, %v6350
        %v6758 = vsel %vm1574, %v5924, %v6351
        %v6762 = vsel %vm1574, %v5925, %v6352
        %v6766 = vsel %vm1574, %v5926, %v6353
        %v6770 = vsel %vm1574, %v5927, %v6354
        %v6774 = vsel %vm1574, %v5928, %v6355
        %v6778 = vsel %vm1574, %v5929, %v6356
        %v6782 = vsel %vm1574, %v5930, %v6357
        %v6786 = vsel %vm1574, %v5931, %v6358
        %v6790 = vsel %vm1574, %v5932, %v6359
        %v6794 = vsel %vm1574, %v5933, %v6360
        %v6798 = vsel %vm1574, %v5934, %v6361
        %v6802 = vsel %vm1574, %v5935, %v6362
        %v6806 = vsel %vm1574, %v5936, %v6363
        %v6810 = vsel %vm1574, %v5937, %v6364
        %v6813 = vsel %vm1574, %v5942, %v6365
        %v6817 = vsel %vm1574, %v5692, %v6366
        %v6821 = vsel %vm1574, %v5624, %v6367
        %v6825 = vsel %vm1574, %v6013, %v6369
        %v6829 = vsel %vm1574, %v6014, %v6370
        %v6833 = vsel %vm1574, %v6015, %v6371
        %v6837 = vsel %vm1574, %v6016, %v6372
        %v6841 = vsel %vm1574, %v6017, %v6373
        %v6845 = vsel %vm1574, %v6018, %v6374
        %v6849 = vsel %vm1574, %v6019, %v6375
        %v6853 = vsel %vm1574, %v6020, %v6376
        %v6857 = vsel %vm1574, %v6021, %v6377
        %v6861 = vsel %vm1574, %v6022, %v6378
        %v6865 = vsel %vm1574, %v6023, %v6379
        %v6869 = vsel %vm1574, %v6024, %v6380
        %v6873 = vsel %vm1574, %v6025, %v6381
        %v6877 = vsel %vm1574, %v6026, %v6382
        %v6881 = vsel %vm1574, %v6027, %v6383
        %v6885 = vsel %vm1574, %v6028, %v6384
        %v6889 = vsel %vm1574, %v6029, %v6385
        %v6893 = vsel %vm1574, %v6030, %v6386
        %v6897 = vsel %vm1574, %v6031, %v6387
        %v6901 = vsel %vm1574, %v6032, %v6388
        %v6905 = vsel %vm1574, %v6033, %v6389
        %v6909 = vsel %vm1574, %v6034, %v6390
        %v6913 = vsel %vm1574, %v6035, %v6391
        %v6917 = vsel %vm1574, %v6036, %v6392
        %v6921 = vsel %vm1574, %v6037, %v6393
        %v6925 = vsel %vm1574, %v6038, %v6394
        %v6929 = vsel %vm1574, %v6039, %v6395
        %v6933 = vsel %vm1574, %v6040, %v6396
        %v6937 = vsel %vm1574, %v6041, %v6397
        %v6941 = vsel %vm1574, %v6042, %v6398
        %v6945 = vsel %vm1574, %v6043, %v6399
        %v6948 = vsel %vm1574, %v6048, %v6400
        %v6951 = vsel %vm1574, %v5803, %v6401
        %v6954 = vsel %vm1574, %v5804, %v6402
        %v6958 = vsel %vm1574, %v5737, %v6403
        %v6960 = vld [vmem:[%s6] sm:$0xf]
        %v6961 = vld [vmem:[%s7] sm:$0xff]
        %6963 = vset.pattern.permute.xlu0 0
        %6964 = vperm.xlu0 %6963, %v6961
        %v6965 = vpop.permute.xlu0 %6964
        %v6968 = vsel %vm2135, %v6960, 0
        %v6971 = vsel %vm1574, %v6222, 0
        %v6974 = vsel %vm1574, %v6223, 0
        %v6977 = vsel %vm1574, %v6224, 0
        %v6980 = vsel %vm1574, %v6225, 0
        %v6983 = vsel %vm1574, %v6226, 0
        %v6986 = vsel %vm1574, %v6227, 0
        %v6989 = vsel %vm1574, %v6228, 0
        %v6992 = vsel %vm1574, %v6229, 0
        %v6995 = vsel %vm1574, %v6230, 0
        %v6998 = vsel %vm1574, %v6231, 0
        %v7001 = vsel %vm1574, %v6232, 0
        %v7004 = vsel %vm1574, %v6233, 0
        %v7007 = vsel %vm1574, %v6234, 0
        %v7010 = vsel %vm1574, %v6235, 0
        %v7013 = vsel %vm1574, %v6236, 0
        %v7016 = vsel %vm1574, %v6237, 0
        %v7019 = vsel %vm1574, %v6238, 0
        %v7022 = vsel %vm1574, %v6239, 0
        %v7025 = vsel %vm1574, %v6240, 0
        %v7028 = vsel %vm1574, %v6241, 0
        %v7031 = vsel %vm1574, %v6242, 0
        %v7034 = vsel %vm1574, %v6243, 0
        %v7037 = vsel %vm1574, %v6244, 0
        %v7040 = vsel %vm1574, %v6245, 0
        %v7043 = vsel %vm1574, %v6246, 0
        %v7046 = vsel %vm1574, %v6247, 0
        %v7049 = vsel %vm1574, %v6248, 0
        %v7052 = vsel %vm1574, %v6249, 0
        %v7055 = vsel %vm1574, %v6250, 0
        %v7058 = vsel %vm1574, %v6251, 0
        %v7061 = vsel %vm1574, %v6252, 0
        %v7063 = vsel %vm1574, %v6260, 0
        %v7066 = vsel %vm1574, %v6256, 0
        %v7069 = vsel %vm1574, %v6012, 0
        %v7072 = vsel %vm1574, %v5946, 0
        %7074 = vmatpush.bf16.msra.mxu0 0
        %7075 = vmatpush.bf16.msra.mxu0 0
        %7076 = vmatpush.bf16.msra.mxu0 0
        %7077 = vmatpush.bf16.msra.mxu0 %v6971
        %7078 = vmatpush.bf16.msra.mxu0 %v6825
        %7079 = vmatpush.bf16.msra.mxu0 %v6686
        %7080 = vmatpush.bf16.msra.mxu0 %v6546
        %7081 = vmatpush.bf16.msra.mxu0 %v6406
        %7082 = vmatmul.bf16.gmra.mxu0 %v6968
        %v7083 = vpop.f32.mrf.mxu0
        %v7084 = vadd.f32 %v6965, %v7083
        %v7085 = vpop.f32.mrf.mxu0
        %7086 = vdwg.mxu0
        %7087 = vmatpush.bf16.msra.mxu0 0
        %7088 = vmatpush.bf16.msra.mxu0 0
        %7089 = vmatpush.bf16.msra.mxu0 0
        %7090 = vmatpush.bf16.msra.mxu0 %v6974
        %7091 = vmatpush.bf16.msra.mxu0 %v6829
        %7092 = vmatpush.bf16.msra.mxu0 %v6690
        %7093 = vmatpush.bf16.msra.mxu0 %v6550
        %7094 = vmatpush.bf16.msra.mxu0 %v6410
        %7095 = vmatmul.bf16.gmra.mxu0 %v6968
        %v7096 = vpop.f32.mrf.mxu0
        %v7097 = vadd.f32 %v6965, %v7096
        %v7098 = vpop.f32.mrf.mxu0
        %7099 = vdwg.mxu0
        %7100 = vmatpush.bf16.msra.mxu0 0
        %7101 = vmatpush.bf16.msra.mxu0 0
        %7102 = vmatpush.bf16.msra.mxu0 0
        %7103 = vmatpush.bf16.msra.mxu0 %v6977
        %7104 = vmatpush.bf16.msra.mxu0 %v6833
        %7105 = vmatpush.bf16.msra.mxu0 %v6694
        %7106 = vmatpush.bf16.msra.mxu0 %v6554
        %7107 = vmatpush.bf16.msra.mxu0 %v6414
        %7108 = vmatmul.bf16.gmra.mxu0 %v6968
        %v7109 = vpop.f32.mrf.mxu0
        %v7110 = vadd.f32 %v6965, %v7109
        %v7111 = vpop.f32.mrf.mxu0
        %7112 = vdwg.mxu0
        %7113 = vmatpush.bf16.msra.mxu0 0
        %7114 = vmatpush.bf16.msra.mxu0 0
        %7115 = vmatpush.bf16.msra.mxu0 0
        %7116 = vmatpush.bf16.msra.mxu0 %v6980
        %7117 = vmatpush.bf16.msra.mxu0 %v6837
        %7118 = vmatpush.bf16.msra.mxu0 %v6698
        %7119 = vmatpush.bf16.msra.mxu0 %v6558
        %7120 = vmatpush.bf16.msra.mxu0 %v6418
        %7121 = vmatmul.bf16.gmra.mxu0 %v6968
        %v7122 = vpop.f32.mrf.mxu0
        %v7123 = vadd.f32 %v6965, %v7122
        %v7124 = vpop.f32.mrf.mxu0
        %7125 = vdwg.mxu0
        %7126 = vmatpush.bf16.msra.mxu0 0
        %7127 = vmatpush.bf16.msra.mxu0 0
        %7128 = vmatpush.bf16.msra.mxu0 0
        %7129 = vmatpush.bf16.msra.mxu0 %v6983
        %7130 = vmatpush.bf16.msra.mxu0 %v6841
        %7131 = vmatpush.bf16.msra.mxu0 %v6702
        %7132 = vmatpush.bf16.msra.mxu0 %v6562
        %7133 = vmatpush.bf16.msra.mxu0 %v6422
        %7134 = vmatmul.bf16.gmra.mxu0 %v6968
        %v7135 = vpop.f32.mrf.mxu0
        %v7136 = vadd.f32 %v6965, %v7135
        %v7137 = vpop.f32.mrf.mxu0
        %7138 = vdwg.mxu0
        %7139 = vmatpush.bf16.msra.mxu0 0
        %7140 = vmatpush.bf16.msra.mxu0 0
        %7141 = vmatpush.bf16.msra.mxu0 0
        %7142 = vmatpush.bf16.msra.mxu0 %v6986
        %7143 = vmatpush.bf16.msra.mxu0 %v6845
        %7144 = vmatpush.bf16.msra.mxu0 %v6706
        %7145 = vmatpush.bf16.msra.mxu0 %v6566
        %7146 = vmatpush.bf16.msra.mxu0 %v6426
        %7147 = vmatmul.bf16.gmra.mxu0 %v6968
        %v7148 = vpop.f32.mrf.mxu0
        %v7149 = vadd.f32 %v6965, %v7148
        %v7150 = vpop.f32.mrf.mxu0
        %7151 = vdwg.mxu0
        %7152 = vmatpush.bf16.msra.mxu0 0
        %7153 = vmatpush.bf16.msra.mxu0 0
        %7154 = vmatpush.bf16.msra.mxu0 0
        %7155 = vmatpush.bf16.msra.mxu0 %v6989
        %7156 = vmatpush.bf16.msra.mxu0 %v6849
        %7157 = vmatpush.bf16.msra.mxu0 %v6710
        %7158 = vmatpush.bf16.msra.mxu0 %v6570
        %7159 = vmatpush.bf16.msra.mxu0 %v6430
        %7160 = vmatmul.bf16.gmra.mxu0 %v6968
        %v7161 = vpop.f32.mrf.mxu0
        %v7162 = vadd.f32 %v6965, %v7161
        %v7163 = vpop.f32.mrf.mxu0
        %7164 = vdwg.mxu0
        %7165 = vmatpush.bf16.msra.mxu0 0
        %7166 = vmatpush.bf16.msra.mxu0 0
        %7167 = vmatpush.bf16.msra.mxu0 0
        %7168 = vmatpush.bf16.msra.mxu0 %v6992
        %7169 = vmatpush.bf16.msra.mxu0 %v6853
        %7170 = vmatpush.bf16.msra.mxu0 %v6714
        %7171 = vmatpush.bf16.msra.mxu0 %v6574
        %7172 = vmatpush.bf16.msra.mxu0 %v6434
        %7173 = vmatmul.bf16.gmra.mxu0 %v6968
        %v7174 = vpop.f32.mrf.mxu0
        %v7175 = vadd.f32 %v6965, %v7174
        %v7176 = vpop.f32.mrf.mxu0
        %7177 = vdwg.mxu0
        %7178 = vmatpush.bf16.msra.mxu0 0
        %7179 = vmatpush.bf16.msra.mxu0 0
        %7180 = vmatpush.bf16.msra.mxu0 0
        %7181 = vmatpush.bf16.msra.mxu0 %v6995
        %7182 = vmatpush.bf16.msra.mxu0 %v6857
        %7183 = vmatpush.bf16.msra.mxu0 %v6718
        %7184 = vmatpush.bf16.msra.mxu0 %v6578
        %7185 = vmatpush.bf16.msra.mxu0 %v6438
        %7186 = vmatmul.bf16.gmra.mxu0 %v6968
        %v7187 = vpop.f32.mrf.mxu0
        %v7188 = vadd.f32 %v6965, %v7187
        %v7189 = vpop.f32.mrf.mxu0
        %7190 = vdwg.mxu0
        %7191 = vmatpush.bf16.msra.mxu0 0
        %7192 = vmatpush.bf16.msra.mxu0 0
        %7193 = vmatpush.bf16.msra.mxu0 0
        %7194 = vmatpush.bf16.msra.mxu0 %v6998
        %7195 = vmatpush.bf16.msra.mxu0 %v6861
        %7196 = vmatpush.bf16.msra.mxu0 %v6722
        %7197 = vmatpush.bf16.msra.mxu0 %v6582
        %7198 = vmatpush.bf16.msra.mxu0 %v6442
        %7199 = vmatmul.bf16.gmra.mxu0 %v6968
        %v7200 = vpop.f32.mrf.mxu0
        %v7201 = vadd.f32 %v6965, %v7200
        %v7202 = vpop.f32.mrf.mxu0
        %7203 = vdwg.mxu0
        %7204 = vmatpush.bf16.msra.mxu0 0
        %7205 = vmatpush.bf16.msra.mxu0 0
        %7206 = vmatpush.bf16.msra.mxu0 0
        %7207 = vmatpush.bf16.msra.mxu0 %v7001
        %7208 = vmatpush.bf16.msra.mxu0 %v6865
        %7209 = vmatpush.bf16.msra.mxu0 %v6726
        %7210 = vmatpush.bf16.msra.mxu0 %v6586
        %7211 = vmatpush.bf16.msra.mxu0 %v6446
        %7212 = vmatmul.bf16.gmra.mxu0 %v6968
        %v7213 = vpop.f32.mrf.mxu0
        %v7214 = vadd.f32 %v6965, %v7213
        %v7215 = vpop.f32.mrf.mxu0
        %7216 = vdwg.mxu0
        %7217 = vmatpush.bf16.msra.mxu0 0
        %7218 = vmatpush.bf16.msra.mxu0 0
        %7219 = vmatpush.bf16.msra.mxu0 0
        %7220 = vmatpush.bf16.msra.mxu0 %v7004
        %7221 = vmatpush.bf16.msra.mxu0 %v6869
        %7222 = vmatpush.bf16.msra.mxu0 %v6730
        %7223 = vmatpush.bf16.msra.mxu0 %v6590
        %7224 = vmatpush.bf16.msra.mxu0 %v6450
        %7225 = vmatmul.bf16.gmra.mxu0 %v6968
        %v7226 = vpop.f32.mrf.mxu0
        %v7227 = vadd.f32 %v6965, %v7226
        %v7228 = vpop.f32.mrf.mxu0
        %7229 = vdwg.mxu0
        %7230 = vmatpush.bf16.msra.mxu0 0
        %7231 = vmatpush.bf16.msra.mxu0 0
        %7232 = vmatpush.bf16.msra.mxu0 0
        %7233 = vmatpush.bf16.msra.mxu0 %v7007
        %7234 = vmatpush.bf16.msra.mxu0 %v6873
        %7235 = vmatpush.bf16.msra.mxu0 %v6734
        %7236 = vmatpush.bf16.msra.mxu0 %v6594
        %7237 = vmatpush.bf16.msra.mxu0 %v6454
        %7238 = vmatmul.bf16.gmra.mxu0 %v6968
        %v7239 = vpop.f32.mrf.mxu0
        %v7240 = vadd.f32 %v6965, %v7239
        %v7241 = vpop.f32.mrf.mxu0
        %7242 = vdwg.mxu0
        %7243 = vmatpush.bf16.msra.mxu0 0
        %7244 = vmatpush.bf16.msra.mxu0 0
        %7245 = vmatpush.bf16.msra.mxu0 0
        %7246 = vmatpush.bf16.msra.mxu0 %v7010
        %7247 = vmatpush.bf16.msra.mxu0 %v6877
        %7248 = vmatpush.bf16.msra.mxu0 %v6738
        %7249 = vmatpush.bf16.msra.mxu0 %v6598
        %7250 = vmatpush.bf16.msra.mxu0 %v6458
        %7251 = vmatmul.bf16.gmra.mxu0 %v6968
        %v7252 = vpop.f32.mrf.mxu0
        %v7253 = vadd.f32 %v6965, %v7252
        %v7254 = vpop.f32.mrf.mxu0
        %7255 = vdwg.mxu0
        %7256 = vmatpush.bf16.msra.mxu0 0
        %7257 = vmatpush.bf16.msra.mxu0 0
        %7258 = vmatpush.bf16.msra.mxu0 0
        %7259 = vmatpush.bf16.msra.mxu0 %v7013
        %7260 = vmatpush.bf16.msra.mxu0 %v6881
        %7261 = vmatpush.bf16.msra.mxu0 %v6742
        %7262 = vmatpush.bf16.msra.mxu0 %v6602
        %7263 = vmatpush.bf16.msra.mxu0 %v6462
        %7264 = vmatmul.bf16.gmra.mxu0 %v6968
        %v7265 = vpop.f32.mrf.mxu0
        %v7266 = vadd.f32 %v6965, %v7265
        %v7267 = vpop.f32.mrf.mxu0
        %7268 = vdwg.mxu0
        %7269 = vmatpush.bf16.msra.mxu0 0
        %7270 = vmatpush.bf16.msra.mxu0 0
        %7271 = vmatpush.bf16.msra.mxu0 0
        %7272 = vmatpush.bf16.msra.mxu0 %v7016
        %7273 = vmatpush.bf16.msra.mxu0 %v6885
        %7274 = vmatpush.bf16.msra.mxu0 %v6746
        %7275 = vmatpush.bf16.msra.mxu0 %v6606
        %7276 = vmatpush.bf16.msra.mxu0 %v6466
        %7277 = vmatmul.bf16.gmra.mxu0 %v6968
        %v7278 = vpop.f32.mrf.mxu0
        %v7279 = vadd.f32 %v6965, %v7278
        %v7280 = vpop.f32.mrf.mxu0
        %7281 = vdwg.mxu0
        %7282 = vmatpush.bf16.msra.mxu0 0
        %7283 = vmatpush.bf16.msra.mxu0 0
        %7284 = vmatpush.bf16.msra.mxu0 0
        %7285 = vmatpush.bf16.msra.mxu0 %v7019
        %7286 = vmatpush.bf16.msra.mxu0 %v6889
        %7287 = vmatpush.bf16.msra.mxu0 %v6750
        %7288 = vmatpush.bf16.msra.mxu0 %v6610
        %7289 = vmatpush.bf16.msra.mxu0 %v6470
        %7290 = vmatmul.bf16.gmra.mxu0 %v6968
        %v7291 = vpop.f32.mrf.mxu0
        %v7292 = vadd.f32 %v6965, %v7291
        %v7293 = vpop.f32.mrf.mxu0
        %7294 = vdwg.mxu0
        %7295 = vmatpush.bf16.msra.mxu0 0
        %7296 = vmatpush.bf16.msra.mxu0 0
        %7297 = vmatpush.bf16.msra.mxu0 0
        %7298 = vmatpush.bf16.msra.mxu0 %v7022
        %7299 = vmatpush.bf16.msra.mxu0 %v6893
        %7300 = vmatpush.bf16.msra.mxu0 %v6754
        %7301 = vmatpush.bf16.msra.mxu0 %v6614
        %7302 = vmatpush.bf16.msra.mxu0 %v6474
        %7303 = vmatmul.bf16.gmra.mxu0 %v6968
        %v7304 = vpop.f32.mrf.mxu0
        %v7305 = vadd.f32 %v6965, %v7304
        %v7306 = vpop.f32.mrf.mxu0
        %7307 = vdwg.mxu0
        %7308 = vmatpush.bf16.msra.mxu0 0
        %7309 = vmatpush.bf16.msra.mxu0 0
        %7310 = vmatpush.bf16.msra.mxu0 0
        %7311 = vmatpush.bf16.msra.mxu0 %v7025
        %7312 = vmatpush.bf16.msra.mxu0 %v6897
        %7313 = vmatpush.bf16.msra.mxu0 %v6758
        %7314 = vmatpush.bf16.msra.mxu0 %v6618
        %7315 = vmatpush.bf16.msra.mxu0 %v6478
        %7316 = vmatmul.bf16.gmra.mxu0 %v6968
        %v7317 = vpop.f32.mrf.mxu0
        %v7318 = vadd.f32 %v6965, %v7317
        %v7319 = vpop.f32.mrf.mxu0
        %7320 = vdwg.mxu0
        %7321 = vmatpush.bf16.msra.mxu0 0
        %7322 = vmatpush.bf16.msra.mxu0 0
        %7323 = vmatpush.bf16.msra.mxu0 0
        %7324 = vmatpush.bf16.msra.mxu0 %v7028
        %7325 = vmatpush.bf16.msra.mxu0 %v6901
        %7326 = vmatpush.bf16.msra.mxu0 %v6762
        %7327 = vmatpush.bf16.msra.mxu0 %v6622
        %7328 = vmatpush.bf16.msra.mxu0 %v6482
        %7329 = vmatmul.bf16.gmra.mxu0 %v6968
        %v7330 = vpop.f32.mrf.mxu0
        %v7331 = vadd.f32 %v6965, %v7330
        %v7332 = vpop.f32.mrf.mxu0
        %7333 = vdwg.mxu0
        %7334 = vmatpush.bf16.msra.mxu0 0
        %7335 = vmatpush.bf16.msra.mxu0 0
        %7336 = vmatpush.bf16.msra.mxu0 0
        %7337 = vmatpush.bf16.msra.mxu0 %v7031
        %7338 = vmatpush.bf16.msra.mxu0 %v6905
        %7339 = vmatpush.bf16.msra.mxu0 %v6766
        %7340 = vmatpush.bf16.msra.mxu0 %v6626
        %7341 = vmatpush.bf16.msra.mxu0 %v6486
        %7342 = vmatmul.bf16.gmra.mxu0 %v6968
        %v7343 = vpop.f32.mrf.mxu0
        %v7344 = vadd.f32 %v6965, %v7343
        %v7345 = vpop.f32.mrf.mxu0
        %7346 = vdwg.mxu0
        %7347 = vmatpush.bf16.msra.mxu0 0
        %7348 = vmatpush.bf16.msra.mxu0 0
        %7349 = vmatpush.bf16.msra.mxu0 0
        %7350 = vmatpush.bf16.msra.mxu0 %v7034
        %7351 = vmatpush.bf16.msra.mxu0 %v6909
        %7352 = vmatpush.bf16.msra.mxu0 %v6770
        %7353 = vmatpush.bf16.msra.mxu0 %v6630
        %7354 = vmatpush.bf16.msra.mxu0 %v6490
        %7355 = vmatmul.bf16.gmra.mxu0 %v6968
        %v7356 = vpop.f32.mrf.mxu0
        %v7357 = vadd.f32 %v6965, %v7356
        %v7358 = vpop.f32.mrf.mxu0
        %7359 = vdwg.mxu0
        %7360 = vmatpush.bf16.msra.mxu0 0
        %7361 = vmatpush.bf16.msra.mxu0 0
        %7362 = vmatpush.bf16.msra.mxu0 0
        %7363 = vmatpush.bf16.msra.mxu0 %v7037
        %7364 = vmatpush.bf16.msra.mxu0 %v6913
        %7365 = vmatpush.bf16.msra.mxu0 %v6774
        %7366 = vmatpush.bf16.msra.mxu0 %v6634
        %7367 = vmatpush.bf16.msra.mxu0 %v6494
        %7368 = vmatmul.bf16.gmra.mxu0 %v6968
        %v7369 = vpop.f32.mrf.mxu0
        %v7370 = vadd.f32 %v6965, %v7369
        %v7371 = vpop.f32.mrf.mxu0
        %7372 = vdwg.mxu0
        %7373 = vmatpush.bf16.msra.mxu0 0
        %7374 = vmatpush.bf16.msra.mxu0 0
        %7375 = vmatpush.bf16.msra.mxu0 0
        %7376 = vmatpush.bf16.msra.mxu0 %v7040
        %7377 = vmatpush.bf16.msra.mxu0 %v6917
        %7378 = vmatpush.bf16.msra.mxu0 %v6778
        %7379 = vmatpush.bf16.msra.mxu0 %v6638
        %7380 = vmatpush.bf16.msra.mxu0 %v6498
        %7381 = vmatmul.bf16.gmra.mxu0 %v6968
        %v7382 = vpop.f32.mrf.mxu0
        %v7383 = vadd.f32 %v6965, %v7382
        %v7384 = vpop.f32.mrf.mxu0
        %7385 = vdwg.mxu0
        %7386 = vmatpush.bf16.msra.mxu0 0
        %7387 = vmatpush.bf16.msra.mxu0 0
        %7388 = vmatpush.bf16.msra.mxu0 0
        %7389 = vmatpush.bf16.msra.mxu0 %v7043
        %7390 = vmatpush.bf16.msra.mxu0 %v6921
        %7391 = vmatpush.bf16.msra.mxu0 %v6782
        %7392 = vmatpush.bf16.msra.mxu0 %v6642
        %7393 = vmatpush.bf16.msra.mxu0 %v6502
        %7394 = vmatmul.bf16.gmra.mxu0 %v6968
        %v7395 = vpop.f32.mrf.mxu0
        %v7396 = vadd.f32 %v6965, %v7395
        %v7397 = vpop.f32.mrf.mxu0
        %7398 = vdwg.mxu0
        %7399 = vmatpush.bf16.msra.mxu0 0
        %7400 = vmatpush.bf16.msra.mxu0 0
        %7401 = vmatpush.bf16.msra.mxu0 0
        %7402 = vmatpush.bf16.msra.mxu0 %v7046
        %7403 = vmatpush.bf16.msra.mxu0 %v6925
        %7404 = vmatpush.bf16.msra.mxu0 %v6786
        %7405 = vmatpush.bf16.msra.mxu0 %v6646
        %7406 = vmatpush.bf16.msra.mxu0 %v6506
        %7407 = vmatmul.bf16.gmra.mxu0 %v6968
        %v7408 = vpop.f32.mrf.mxu0
        %v7409 = vadd.f32 %v6965, %v7408
        %v7410 = vpop.f32.mrf.mxu0
        %7411 = vdwg.mxu0
        %7412 = vmatpush.bf16.msra.mxu0 0
        %7413 = vmatpush.bf16.msra.mxu0 0
        %7414 = vmatpush.bf16.msra.mxu0 0
        %7415 = vmatpush.bf16.msra.mxu0 %v7049
        %7416 = vmatpush.bf16.msra.mxu0 %v6929
        %7417 = vmatpush.bf16.msra.mxu0 %v6790
        %7418 = vmatpush.bf16.msra.mxu0 %v6650
        %7419 = vmatpush.bf16.msra.mxu0 %v6510
        %7420 = vmatmul.bf16.gmra.mxu0 %v6968
        %v7421 = vpop.f32.mrf.mxu0
        %v7422 = vadd.f32 %v6965, %v7421
        %v7423 = vpop.f32.mrf.mxu0
        %7424 = vdwg.mxu0
        %7425 = vmatpush.bf16.msra.mxu0 0
        %7426 = vmatpush.bf16.msra.mxu0 0
        %7427 = vmatpush.bf16.msra.mxu0 0
        %7428 = vmatpush.bf16.msra.mxu0 %v7052
        %7429 = vmatpush.bf16.msra.mxu0 %v6933
        %7430 = vmatpush.bf16.msra.mxu0 %v6794
        %7431 = vmatpush.bf16.msra.mxu0 %v6654
        %7432 = vmatpush.bf16.msra.mxu0 %v6514
        %7433 = vmatmul.bf16.gmra.mxu0 %v6968
        %v7434 = vpop.f32.mrf.mxu0
        %v7435 = vadd.f32 %v6965, %v7434
        %v7436 = vpop.f32.mrf.mxu0
        %7437 = vdwg.mxu0
        %7438 = vmatpush.bf16.msra.mxu0 0
        %7439 = vmatpush.bf16.msra.mxu0 0
        %7440 = vmatpush.bf16.msra.mxu0 0
        %7441 = vmatpush.bf16.msra.mxu0 %v7055
        %7442 = vmatpush.bf16.msra.mxu0 %v6937
        %7443 = vmatpush.bf16.msra.mxu0 %v6798
        %7444 = vmatpush.bf16.msra.mxu0 %v6658
        %7445 = vmatpush.bf16.msra.mxu0 %v6518
        %7446 = vmatmul.bf16.gmra.mxu0 %v6968
        %v7447 = vpop.f32.mrf.mxu0
        %v7448 = vadd.f32 %v6965, %v7447
        %v7449 = vpop.f32.mrf.mxu0
        %7450 = vdwg.mxu0
        %7451 = vmatpush.bf16.msra.mxu0 0
        %7452 = vmatpush.bf16.msra.mxu0 0
        %7453 = vmatpush.bf16.msra.mxu0 0
        %7454 = vmatpush.bf16.msra.mxu0 %v7058
        %7455 = vmatpush.bf16.msra.mxu0 %v6941
        %7456 = vmatpush.bf16.msra.mxu0 %v6802
        %7457 = vmatpush.bf16.msra.mxu0 %v6662
        %7458 = vmatpush.bf16.msra.mxu0 %v6522
        %7459 = vmatmul.bf16.gmra.mxu0 %v6968
        %v7460 = vpop.f32.mrf.mxu0
        %v7461 = vadd.f32 %v6965, %v7460
        %v7462 = vpop.f32.mrf.mxu0
        %7463 = vdwg.mxu0
        %7464 = vmatpush.bf16.msra.mxu0 0
        %7465 = vmatpush.bf16.msra.mxu0 0
        %7466 = vmatpush.bf16.msra.mxu0 0
        %7467 = vmatpush.bf16.msra.mxu0 %v7061
        %7468 = vmatpush.bf16.msra.mxu0 %v6945
        %7469 = vmatpush.bf16.msra.mxu0 %v6806
        %7470 = vmatpush.bf16.msra.mxu0 %v6666
        %7471 = vmatpush.bf16.msra.mxu0 %v6526
        %7472 = vmatmul.bf16.gmra.mxu0 %v6968
        %v7473 = vpop.f32.mrf.mxu0
        %v7474 = vadd.f32 %v6965, %v7473
        %v7475 = vpop.f32.mrf.mxu0
        %7476 = vdwg.mxu0
        %7477 = vmatpush.bf16.msra.mxu0 0
        %7478 = vmatpush.bf16.msra.mxu0 0
        %7479 = vmatpush.bf16.msra.mxu0 0
        %7480 = vmatpush.bf16.msra.mxu0 %v7063
        %7481 = vmatpush.bf16.msra.mxu0 %v6948
        %7482 = vmatpush.bf16.msra.mxu0 %v6810
        %7483 = vmatpush.bf16.msra.mxu0 %v6670
        %7484 = vmatpush.bf16.msra.mxu0 %v6530
        %7485 = vmatmul.bf16.gmra.mxu0 %v6968
        %v7486 = vpop.f32.mrf.mxu0
        %v7487 = vadd.f32 %v6965, %v7486
        %v7488 = vpop.f32.mrf.mxu0
        %7489 = vdwg.mxu0
        %7490 = vmatpush.bf16.msra.mxu0 0
        %7491 = vmatpush.bf16.msra.mxu0 0
        %7492 = vmatpush.bf16.msra.mxu0 0
        %7493 = vmatpush.bf16.msra.mxu0 %v7066
        %7494 = vmatpush.bf16.msra.mxu0 %v6951
        %7495 = vmatpush.bf16.msra.mxu0 %v6813
        %7496 = vmatpush.bf16.msra.mxu0 %v6674
        %7497 = vmatpush.bf16.msra.mxu0 %v6534
        %7498 = vmatmul.bf16.gmra.mxu0 %v6968
        %v7499 = vpop.f32.mrf.mxu0
        %v7500 = vadd.f32 %v6965, %v7499
        %v7501 = vpop.f32.mrf.mxu0
        %7502 = vdwg.mxu0
        %7503 = vmatpush.bf16.msra.mxu0 0
        %7504 = vmatpush.bf16.msra.mxu0 0
        %7505 = vmatpush.bf16.msra.mxu0 0
        %7506 = vmatpush.bf16.msra.mxu0 %v7069
        %7507 = vmatpush.bf16.msra.mxu0 %v6954
        %7508 = vmatpush.bf16.msra.mxu0 %v6817
        %7509 = vmatpush.bf16.msra.mxu0 %v6678
        %7510 = vmatpush.bf16.msra.mxu0 %v6538
        %7511 = vmatmul.bf16.gmra.mxu0 %v6968
        %v7512 = vpop.f32.mrf.mxu0
        %v7513 = vadd.f32 %v6965, %v7512
        %v7514 = vpop.f32.mrf.mxu0
        %7515 = vdwg.mxu0
        %7516 = vmatpush.bf16.msra.mxu0 0
        %7517 = vmatpush.bf16.msra.mxu0 0
        %7518 = vmatpush.bf16.msra.mxu0 0
        %7519 = vmatpush.bf16.msra.mxu0 %v7072
        %7520 = vmatpush.bf16.msra.mxu0 %v6958
        %7521 = vmatpush.bf16.msra.mxu0 %v6821
        %7522 = vmatpush.bf16.msra.mxu0 %v6682
        %7523 = vmatpush.bf16.msra.mxu0 %v6542
        %7524 = vmatmul.bf16.gmra.mxu0 %v6968
        %v7525 = vpop.f32.mrf.mxu0
        %v7526 = vadd.f32 %v6965, %v7525
        %v7527 = vpop.f32.mrf.mxu0
        %7528 = vdwg.mxu0
        %v7529 = vmax.f32 %v7084, 0.0
        %v7530 = vmax.f32 %v7097, 0.0
        %v7531 = vmax.f32 %v7110, 0.0
        %v7532 = vmax.f32 %v7123, 0.0
        %v7533 = vmax.f32 %v7136, 0.0
        %v7534 = vmax.f32 %v7149, 0.0
        %v7535 = vmax.f32 %v7162, 0.0
        %v7536 = vmax.f32 %v7175, 0.0
        %v7537 = vmax.f32 %v7188, 0.0
        %v7538 = vmax.f32 %v7201, 0.0
        %v7539 = vmax.f32 %v7214, 0.0
        %v7540 = vmax.f32 %v7227, 0.0
        %v7541 = vmax.f32 %v7240, 0.0
        %v7542 = vmax.f32 %v7253, 0.0
        %v7543 = vmax.f32 %v7266, 0.0
        %v7544 = vmax.f32 %v7279, 0.0
        %v7545 = vmax.f32 %v7292, 0.0
        %v7546 = vmax.f32 %v7305, 0.0
        %v7547 = vmax.f32 %v7318, 0.0
        %v7548 = vmax.f32 %v7331, 0.0
        %v7549 = vmax.f32 %v7344, 0.0
        %v7550 = vmax.f32 %v7357, 0.0
        %v7551 = vmax.f32 %v7370, 0.0
        %v7552 = vmax.f32 %v7383, 0.0
        %v7553 = vmax.f32 %v7396, 0.0
        %v7554 = vmax.f32 %v7409, 0.0
        %v7555 = vmax.f32 %v7422, 0.0
        %v7556 = vmax.f32 %v7435, 0.0
        %v7557 = vmax.f32 %v7448, 0.0
        %v7558 = vmax.f32 %v7461, 0.0
        %v7559 = vmax.f32 %v7474, 0.0
        %v7560 = vmax.f32 %v7487, 0.0
        %v7561 = vmax.f32 %v7500, 0.0
        %v7562 = vmax.f32 %v7513, 0.0
        %v7563 = vmax.f32 %v7526, 0.0
        %v7564 = vpack.c.bf16 %v7530, %v7529
        %v7565 = vpack.c.bf16 %v7532, %v7531
        %v7566 = vpack.c.bf16 %v7534, %v7533
        %v7567 = vpack.c.bf16 %v7536, %v7535
        %v7568 = vpack.c.bf16 %v7538, %v7537
        %v7569 = vpack.c.bf16 %v7540, %v7539
        %v7570 = vpack.c.bf16 %v7542, %v7541
        %v7571 = vpack.c.bf16 %v7544, %v7543
        %v7572 = vpack.c.bf16 %v7546, %v7545
        %v7573 = vpack.c.bf16 %v7548, %v7547
        %v7574 = vpack.c.bf16 %v7550, %v7549
        %v7575 = vpack.c.bf16 %v7552, %v7551
        %v7576 = vpack.c.bf16 %v7554, %v7553
        %v7577 = vpack.c.bf16 %v7556, %v7555
        %v7578 = vpack.c.bf16 %v7558, %v7557
        %v7579 = vpack.c.bf16 %v7560, %v7559
        %v7580 = vpack.c.bf16 %v7562, %v7561
        %v7581 = vpack.c.bf16 %v7563, %v7563
        %v7600 = vunpack.c.l.b16 %v7564
        %v7601 = vunpack.c.h.b16 %v7564
        %v7602 = vunpack.c.l.b16 %v7565
        %v7603 = vunpack.c.h.b16 %v7565
        %v7604 = vunpack.c.l.b16 %v7566
        %v7605 = vunpack.c.h.b16 %v7566
        %v7606 = vunpack.c.l.b16 %v7567
        %v7607 = vunpack.c.h.b16 %v7567
        %v7608 = vunpack.c.l.b16 %v7568
        %v7609 = vunpack.c.h.b16 %v7568
        %v7610 = vunpack.c.l.b16 %v7569
        %v7611 = vunpack.c.h.b16 %v7569
        %v7612 = vunpack.c.l.b16 %v7570
        %v7613 = vunpack.c.h.b16 %v7570
        %v7614 = vunpack.c.l.b16 %v7571
        %v7615 = vunpack.c.h.b16 %v7571
        %v7616 = vunpack.c.l.b16 %v7572
        %v7617 = vunpack.c.h.b16 %v7572
        %v7618 = vunpack.c.l.b16 %v7573
        %v7619 = vunpack.c.h.b16 %v7573
        %v7620 = vunpack.c.l.b16 %v7574
        %v7621 = vunpack.c.h.b16 %v7574
        %v7622 = vunpack.c.l.b16 %v7575
        %v7623 = vunpack.c.h.b16 %v7575
        %v7624 = vunpack.c.l.b16 %v7576
        %v7625 = vunpack.c.h.b16 %v7576
        %v7626 = vunpack.c.l.b16 %v7577
        %v7627 = vunpack.c.h.b16 %v7577
        %v7628 = vunpack.c.l.b16 %v7578
        %v7629 = vunpack.c.h.b16 %v7578
        %v7630 = vunpack.c.l.b16 %v7579
        %v7631 = vunpack.c.h.b16 %v7579
        %v7632 = vunpack.c.l.b16 %v7580
        %v7633 = vunpack.c.h.b16 %v7580
        %v7634 = vunpack.c.l.b16 %v7581
        %v7635 = vpack.c.b16 %v7600, %v7600
        %v7636 = vpack.c.b16 %v7601, %v7601
        %v7637 = vpack.c.b16 %v7602, %v7602
        %v7638 = vpack.c.b16 %v7603, %v7603
        %v7639 = vpack.c.b16 %v7604, %v7604
        %v7640 = vpack.c.b16 %v7605, %v7605
        %v7641 = vpack.c.b16 %v7606, %v7606
        %v7642 = vpack.c.b16 %v7607, %v7607
        %v7643 = vpack.c.b16 %v7608, %v7608
        %v7644 = vpack.c.b16 %v7609, %v7609
        %v7645 = vpack.c.b16 %v7610, %v7610
        %v7646 = vpack.c.b16 %v7611, %v7611
        %v7647 = vpack.c.b16 %v7612, %v7612
        %v7648 = vpack.c.b16 %v7613, %v7613
        %v7649 = vpack.c.b16 %v7614, %v7614
        %v7650 = vpack.c.b16 %v7615, %v7615
        %v7651 = vpack.c.b16 %v7616, %v7616
        %v7652 = vpack.c.b16 %v7617, %v7617
        %v7653 = vpack.c.b16 %v7618, %v7618
        %v7654 = vpack.c.b16 %v7619, %v7619
        %v7655 = vpack.c.b16 %v7620, %v7620
        %v7656 = vpack.c.b16 %v7621, %v7621
        %v7657 = vpack.c.b16 %v7622, %v7622
        %v7658 = vpack.c.b16 %v7623, %v7623
        %v7659 = vpack.c.b16 %v7624, %v7624
        %v7660 = vpack.c.b16 %v7625, %v7625
        %v7661 = vpack.c.b16 %v7626, %v7626
        %v7662 = vpack.c.b16 %v7627, %v7627
        %v7663 = vpack.c.b16 %v7628, %v7628
        %v7664 = vpack.c.b16 %v7629, %v7629
        %v7665 = vpack.c.b16 %v7630, %v7630
        %v7666 = vpack.c.b16 %v7631, %v7631
        %v7667 = vpack.c.b16 %v7632, %v7632
        %v7668 = vpack.c.b16 %v7633, %v7633
        %v7669 = vpack.c.b16 %v7634, %v7634
        %7670 = vrot.lane.b32.xlu0 %v7635, 126
        %v7671 = vpop.permute.xlu0 %7670
        %7672 = vrot.lane.b32.xlu0 %v7636, 126
        %v7673 = vpop.permute.xlu0 %7672
        %7674 = vrot.lane.b32.xlu0 %v7637, 126
        %v7675 = vpop.permute.xlu0 %7674
        %7676 = vrot.lane.b32.xlu0 %v7638, 126
        %v7677 = vpop.permute.xlu0 %7676
        %7678 = vrot.lane.b32.xlu0 %v7639, 126
        %v7679 = vpop.permute.xlu0 %7678
        %7680 = vrot.lane.b32.xlu0 %v7640, 126
        %v7681 = vpop.permute.xlu0 %7680
        %7682 = vrot.lane.b32.xlu0 %v7641, 126
        %v7683 = vpop.permute.xlu0 %7682
        %7684 = vrot.lane.b32.xlu0 %v7642, 126
        %v7685 = vpop.permute.xlu0 %7684
        %7686 = vrot.lane.b32.xlu0 %v7643, 126
        %v7687 = vpop.permute.xlu0 %7686
        %7688 = vrot.lane.b32.xlu0 %v7644, 126
        %v7689 = vpop.permute.xlu0 %7688
        %7690 = vrot.lane.b32.xlu0 %v7645, 126
        %v7691 = vpop.permute.xlu0 %7690
        %7692 = vrot.lane.b32.xlu0 %v7646, 126
        %v7693 = vpop.permute.xlu0 %7692
        %7694 = vrot.lane.b32.xlu0 %v7647, 126
        %v7695 = vpop.permute.xlu0 %7694
        %7696 = vrot.lane.b32.xlu0 %v7648, 126
        %v7697 = vpop.permute.xlu0 %7696
        %7698 = vrot.lane.b32.xlu0 %v7649, 126
        %v7699 = vpop.permute.xlu0 %7698
        %7700 = vrot.lane.b32.xlu0 %v7650, 126
        %v7701 = vpop.permute.xlu0 %7700
        %7702 = vrot.lane.b32.xlu0 %v7651, 126
        %v7703 = vpop.permute.xlu0 %7702
        %7704 = vrot.lane.b32.xlu0 %v7652, 126
        %v7705 = vpop.permute.xlu0 %7704
        %7706 = vrot.lane.b32.xlu0 %v7653, 126
        %v7707 = vpop.permute.xlu0 %7706
        %7708 = vrot.lane.b32.xlu0 %v7654, 126
        %v7709 = vpop.permute.xlu0 %7708
        %7710 = vrot.lane.b32.xlu0 %v7655, 126
        %v7711 = vpop.permute.xlu0 %7710
        %7712 = vrot.lane.b32.xlu0 %v7656, 126
        %v7713 = vpop.permute.xlu0 %7712
        %7714 = vrot.lane.b32.xlu0 %v7657, 126
        %v7715 = vpop.permute.xlu0 %7714
        %7716 = vrot.lane.b32.xlu0 %v7658, 126
        %v7717 = vpop.permute.xlu0 %7716
        %7718 = vrot.lane.b32.xlu0 %v7659, 126
        %v7719 = vpop.permute.xlu0 %7718
        %7720 = vrot.lane.b32.xlu0 %v7660, 126
        %v7721 = vpop.permute.xlu0 %7720
        %7722 = vrot.lane.b32.xlu0 %v7661, 126
        %v7723 = vpop.permute.xlu0 %7722
        %7724 = vrot.lane.b32.xlu0 %v7662, 126
        %v7725 = vpop.permute.xlu0 %7724
        %7726 = vrot.lane.b32.xlu0 %v7663, 126
        %v7727 = vpop.permute.xlu0 %7726
        %7728 = vrot.lane.b32.xlu0 %v7664, 126
        %v7729 = vpop.permute.xlu0 %7728
        %7730 = vrot.lane.b32.xlu0 %v7665, 126
        %v7731 = vpop.permute.xlu0 %7730
        %7732 = vrot.lane.b32.xlu0 %v7666, 126
        %v7733 = vpop.permute.xlu0 %7732
        %7734 = vrot.lane.b32.xlu0 %v7667, 126
        %v7735 = vpop.permute.xlu0 %7734
        %7736 = vrot.lane.b32.xlu0 %v7668, 126
        %v7737 = vpop.permute.xlu0 %7736
        %7738 = vrot.lane.b32.xlu0 %v7669, 126
        %v7739 = vpop.permute.xlu0 %7738
        %v7740 = vsel %vm5691, %v7671, %v7673
        %v7741 = vsel %vm5691, %v7673, %v7675
        %v7742 = vsel %vm5691, %v7675, %v7677
        %v7743 = vsel %vm5691, %v7677, %v7679
        %v7744 = vsel %vm5691, %v7679, %v7681
        %v7745 = vsel %vm5691, %v7681, %v7683
        %v7746 = vsel %vm5691, %v7683, %v7685
        %v7747 = vsel %vm5691, %v7685, %v7687
        %v7748 = vsel %vm5691, %v7687, %v7689
        %v7749 = vsel %vm5691, %v7689, %v7691
        %v7750 = vsel %vm5691, %v7691, %v7693
        %v7751 = vsel %vm5691, %v7693, %v7695
        %v7752 = vsel %vm5691, %v7695, %v7697
        %v7753 = vsel %vm5691, %v7697, %v7699
        %v7754 = vsel %vm5691, %v7699, %v7701
        %v7755 = vsel %vm5691, %v7701, %v7703
        %v7756 = vsel %vm5691, %v7703, %v7705
        %v7757 = vsel %vm5691, %v7705, %v7707
        %v7758 = vsel %vm5691, %v7707, %v7709
        %v7759 = vsel %vm5691, %v7709, %v7711
        %v7760 = vsel %vm5691, %v7711, %v7713
        %v7761 = vsel %vm5691, %v7713, %v7715
        %v7762 = vsel %vm5691, %v7715, %v7717
        %v7763 = vsel %vm5691, %v7717, %v7719
        %v7764 = vsel %vm5691, %v7719, %v7721
        %v7765 = vsel %vm5691, %v7721, %v7723
        %v7766 = vsel %vm5691, %v7723, %v7725
        %v7767 = vsel %vm5691, %v7725, %v7727
        %v7768 = vsel %vm5691, %v7727, %v7729
        %v7769 = vsel %vm5691, %v7729, %v7731
        %v7770 = vsel %vm5691, %v7731, %v7733
        %v7771 = vsel %vm5691, %v7733, %v7735
        %v7772 = vsel %vm5691, %v7735, %v7737
        %v7773 = vsel %vm5691, %v7737, %v7739
        %7774 = vrot.lane.b32.xlu0 %v7635, 2
        %v7775 = vpop.permute.xlu0 %7774
        %v7778 = vsel %vm5728, %v7739, %v7775
        %7779 = vrot.lane.b32.xlu0 %v7635, 124
        %v7780 = vpop.permute.xlu0 %7779
        %7781 = vrot.lane.b32.xlu0 %v7636, 124
        %v7782 = vpop.permute.xlu0 %7781
        %7783 = vrot.lane.b32.xlu0 %v7637, 124
        %v7784 = vpop.permute.xlu0 %7783
        %7785 = vrot.lane.b32.xlu0 %v7638, 124
        %v7786 = vpop.permute.xlu0 %7785
        %7787 = vrot.lane.b32.xlu0 %v7639, 124
        %v7788 = vpop.permute.xlu0 %7787
        %7789 = vrot.lane.b32.xlu0 %v7640, 124
        %v7790 = vpop.permute.xlu0 %7789
        %7791 = vrot.lane.b32.xlu0 %v7641, 124
        %v7792 = vpop.permute.xlu0 %7791
        %7793 = vrot.lane.b32.xlu0 %v7642, 124
        %v7794 = vpop.permute.xlu0 %7793
        %7795 = vrot.lane.b32.xlu0 %v7643, 124
        %v7796 = vpop.permute.xlu0 %7795
        %7797 = vrot.lane.b32.xlu0 %v7644, 124
        %v7798 = vpop.permute.xlu0 %7797
        %7799 = vrot.lane.b32.xlu0 %v7645, 124
        %v7800 = vpop.permute.xlu0 %7799
        %7801 = vrot.lane.b32.xlu0 %v7646, 124
        %v7802 = vpop.permute.xlu0 %7801
        %7803 = vrot.lane.b32.xlu0 %v7647, 124
        %v7804 = vpop.permute.xlu0 %7803
        %7805 = vrot.lane.b32.xlu0 %v7648, 124
        %v7806 = vpop.permute.xlu0 %7805
        %7807 = vrot.lane.b32.xlu0 %v7649, 124
        %v7808 = vpop.permute.xlu0 %7807
        %7809 = vrot.lane.b32.xlu0 %v7650, 124
        %v7810 = vpop.permute.xlu0 %7809
        %7811 = vrot.lane.b32.xlu0 %v7651, 124
        %v7812 = vpop.permute.xlu0 %7811
        %7813 = vrot.lane.b32.xlu0 %v7652, 124
        %v7814 = vpop.permute.xlu0 %7813
        %7815 = vrot.lane.b32.xlu0 %v7653, 124
        %v7816 = vpop.permute.xlu0 %7815
        %7817 = vrot.lane.b32.xlu0 %v7654, 124
        %v7818 = vpop.permute.xlu0 %7817
        %7819 = vrot.lane.b32.xlu0 %v7655, 124
        %v7820 = vpop.permute.xlu0 %7819
        %7821 = vrot.lane.b32.xlu0 %v7656, 124
        %v7822 = vpop.permute.xlu0 %7821
        %7823 = vrot.lane.b32.xlu0 %v7657, 124
        %v7824 = vpop.permute.xlu0 %7823
        %7825 = vrot.lane.b32.xlu0 %v7658, 124
        %v7826 = vpop.permute.xlu0 %7825
        %7827 = vrot.lane.b32.xlu0 %v7659, 124
        %v7828 = vpop.permute.xlu0 %7827
        %7829 = vrot.lane.b32.xlu0 %v7660, 124
        %v7830 = vpop.permute.xlu0 %7829
        %7831 = vrot.lane.b32.xlu0 %v7661, 124
        %v7832 = vpop.permute.xlu0 %7831
        %7833 = vrot.lane.b32.xlu0 %v7662, 124
        %v7834 = vpop.permute.xlu0 %7833
        %7835 = vrot.lane.b32.xlu0 %v7663, 124
        %v7836 = vpop.permute.xlu0 %7835
        %7837 = vrot.lane.b32.xlu0 %v7664, 124
        %v7838 = vpop.permute.xlu0 %7837
        %7839 = vrot.lane.b32.xlu0 %v7665, 124
        %v7840 = vpop.permute.xlu0 %7839
        %7841 = vrot.lane.b32.xlu0 %v7666, 124
        %v7842 = vpop.permute.xlu0 %7841
        %7843 = vrot.lane.b32.xlu0 %v7667, 124
        %v7844 = vpop.permute.xlu0 %7843
        %7845 = vrot.lane.b32.xlu0 %v7668, 124
        %v7846 = vpop.permute.xlu0 %7845
        %7847 = vrot.lane.b32.xlu0 %v7669, 124
        %v7848 = vpop.permute.xlu0 %7847
        %v7849 = vsel %vm5802, %v7780, %v7782
        %v7850 = vsel %vm5802, %v7782, %v7784
        %v7851 = vsel %vm5802, %v7784, %v7786
        %v7852 = vsel %vm5802, %v7786, %v7788
        %v7853 = vsel %vm5802, %v7788, %v7790
        %v7854 = vsel %vm5802, %v7790, %v7792
        %v7855 = vsel %vm5802, %v7792, %v7794
        %v7856 = vsel %vm5802, %v7794, %v7796
        %v7857 = vsel %vm5802, %v7796, %v7798
        %v7858 = vsel %vm5802, %v7798, %v7800
        %v7859 = vsel %vm5802, %v7800, %v7802
        %v7860 = vsel %vm5802, %v7802, %v7804
        %v7861 = vsel %vm5802, %v7804, %v7806
        %v7862 = vsel %vm5802, %v7806, %v7808
        %v7863 = vsel %vm5802, %v7808, %v7810
        %v7864 = vsel %vm5802, %v7810, %v7812
        %v7865 = vsel %vm5802, %v7812, %v7814
        %v7866 = vsel %vm5802, %v7814, %v7816
        %v7867 = vsel %vm5802, %v7816, %v7818
        %v7868 = vsel %vm5802, %v7818, %v7820
        %v7869 = vsel %vm5802, %v7820, %v7822
        %v7870 = vsel %vm5802, %v7822, %v7824
        %v7871 = vsel %vm5802, %v7824, %v7826
        %v7872 = vsel %vm5802, %v7826, %v7828
        %v7873 = vsel %vm5802, %v7828, %v7830
        %v7874 = vsel %vm5802, %v7830, %v7832
        %v7875 = vsel %vm5802, %v7832, %v7834
        %v7876 = vsel %vm5802, %v7834, %v7836
        %v7877 = vsel %vm5802, %v7836, %v7838
        %v7878 = vsel %vm5802, %v7838, %v7840
        %v7879 = vsel %vm5802, %v7840, %v7842
        %v7880 = vsel %vm5802, %v7842, %v7844
        %v7881 = vsel %vm5802, %v7844, %v7846
        %v7882 = vsel %vm5802, %v7846, %v7848
        %7883 = vrot.lane.b32.xlu0 %v7636, 122
        %v7884 = vpop.permute.xlu0 %7883
        %7885 = vrot.lane.b32.xlu0 %v7637, 122
        %v7886 = vpop.permute.xlu0 %7885
        %7887 = vrot.lane.b32.xlu0 %v7638, 122
        %v7888 = vpop.permute.xlu0 %7887
        %7889 = vrot.lane.b32.xlu0 %v7639, 122
        %v7890 = vpop.permute.xlu0 %7889
        %7891 = vrot.lane.b32.xlu0 %v7640, 122
        %v7892 = vpop.permute.xlu0 %7891
        %7893 = vrot.lane.b32.xlu0 %v7641, 122
        %v7894 = vpop.permute.xlu0 %7893
        %7895 = vrot.lane.b32.xlu0 %v7642, 122
        %v7896 = vpop.permute.xlu0 %7895
        %7897 = vrot.lane.b32.xlu0 %v7643, 122
        %v7898 = vpop.permute.xlu0 %7897
        %7899 = vrot.lane.b32.xlu0 %v7644, 122
        %v7900 = vpop.permute.xlu0 %7899
        %7901 = vrot.lane.b32.xlu0 %v7645, 122
        %v7902 = vpop.permute.xlu0 %7901
        %7903 = vrot.lane.b32.xlu0 %v7646, 122
        %v7904 = vpop.permute.xlu0 %7903
        %7905 = vrot.lane.b32.xlu0 %v7647, 122
        %v7906 = vpop.permute.xlu0 %7905
        %7907 = vrot.lane.b32.xlu0 %v7648, 122
        %v7908 = vpop.permute.xlu0 %7907
        %7909 = vrot.lane.b32.xlu0 %v7649, 122
        %v7910 = vpop.permute.xlu0 %7909
        %7911 = vrot.lane.b32.xlu0 %v7650, 122
        %v7912 = vpop.permute.xlu0 %7911
        %7913 = vrot.lane.b32.xlu0 %v7651, 122
        %v7914 = vpop.permute.xlu0 %7913
        %7915 = vrot.lane.b32.xlu0 %v7652, 122
        %v7916 = vpop.permute.xlu0 %7915
        %7917 = vrot.lane.b32.xlu0 %v7653, 122
        %v7918 = vpop.permute.xlu0 %7917
        %7919 = vrot.lane.b32.xlu0 %v7654, 122
        %v7920 = vpop.permute.xlu0 %7919
        %7921 = vrot.lane.b32.xlu0 %v7655, 122
        %v7922 = vpop.permute.xlu0 %7921
        %7923 = vrot.lane.b32.xlu0 %v7656, 122
        %v7924 = vpop.permute.xlu0 %7923
        %7925 = vrot.lane.b32.xlu0 %v7657, 122
        %v7926 = vpop.permute.xlu0 %7925
        %7927 = vrot.lane.b32.xlu0 %v7658, 122
        %v7928 = vpop.permute.xlu0 %7927
        %7929 = vrot.lane.b32.xlu0 %v7659, 122
        %v7930 = vpop.permute.xlu0 %7929
        %7931 = vrot.lane.b32.xlu0 %v7660, 122
        %v7932 = vpop.permute.xlu0 %7931
        %7933 = vrot.lane.b32.xlu0 %v7661, 122
        %v7934 = vpop.permute.xlu0 %7933
        %7935 = vrot.lane.b32.xlu0 %v7662, 122
        %v7936 = vpop.permute.xlu0 %7935
        %7937 = vrot.lane.b32.xlu0 %v7663, 122
        %v7938 = vpop.permute.xlu0 %7937
        %7939 = vrot.lane.b32.xlu0 %v7664, 122
        %v7940 = vpop.permute.xlu0 %7939
        %7941 = vrot.lane.b32.xlu0 %v7665, 122
        %v7942 = vpop.permute.xlu0 %7941
        %7943 = vrot.lane.b32.xlu0 %v7666, 122
        %v7944 = vpop.permute.xlu0 %7943
        %7945 = vrot.lane.b32.xlu0 %v7667, 122
        %v7946 = vpop.permute.xlu0 %7945
        %7947 = vrot.lane.b32.xlu0 %v7668, 122
        %v7948 = vpop.permute.xlu0 %7947
        %7949 = vrot.lane.b32.xlu0 %v7669, 122
        %v7950 = vpop.permute.xlu0 %7949
        %v7951 = vsel %vm5905, %v7884, %v7886
        %v7952 = vsel %vm5905, %v7886, %v7888
        %v7953 = vsel %vm5905, %v7888, %v7890
        %v7954 = vsel %vm5905, %v7890, %v7892
        %v7955 = vsel %vm5905, %v7892, %v7894
        %v7956 = vsel %vm5905, %v7894, %v7896
        %v7957 = vsel %vm5905, %v7896, %v7898
        %v7958 = vsel %vm5905, %v7898, %v7900
        %v7959 = vsel %vm5905, %v7900, %v7902
        %v7960 = vsel %vm5905, %v7902, %v7904
        %v7961 = vsel %vm5905, %v7904, %v7906
        %v7962 = vsel %vm5905, %v7906, %v7908
        %v7963 = vsel %vm5905, %v7908, %v7910
        %v7964 = vsel %vm5905, %v7910, %v7912
        %v7965 = vsel %vm5905, %v7912, %v7914
        %v7966 = vsel %vm5905, %v7914, %v7916
        %v7967 = vsel %vm5905, %v7916, %v7918
        %v7968 = vsel %vm5905, %v7918, %v7920
        %v7969 = vsel %vm5905, %v7920, %v7922
        %v7970 = vsel %vm5905, %v7922, %v7924
        %v7971 = vsel %vm5905, %v7924, %v7926
        %v7972 = vsel %vm5905, %v7926, %v7928
        %v7973 = vsel %vm5905, %v7928, %v7930
        %v7974 = vsel %vm5905, %v7930, %v7932
        %v7975 = vsel %vm5905, %v7932, %v7934
        %v7976 = vsel %vm5905, %v7934, %v7936
        %v7977 = vsel %vm5905, %v7936, %v7938
        %v7978 = vsel %vm5905, %v7938, %v7940
        %v7979 = vsel %vm5905, %v7940, %v7942
        %v7980 = vsel %vm5905, %v7942, %v7944
        %v7981 = vsel %vm5905, %v7944, %v7946
        %v7982 = vsel %vm5905, %v7946, %v7948
        %v7983 = vsel %vm5905, %v7948, %v7950
        %v7986 = vsel %vm5939, %v7983, %v7671
        %7987 = vrot.lane.b32.xlu0 %v7636, 120
        %v7988 = vpop.permute.xlu0 %7987
        %7989 = vrot.lane.b32.xlu0 %v7637, 120
        %v7990 = vpop.permute.xlu0 %7989
        %7991 = vrot.lane.b32.xlu0 %v7638, 120
        %v7992 = vpop.permute.xlu0 %7991
        %7993 = vrot.lane.b32.xlu0 %v7639, 120
        %v7994 = vpop.permute.xlu0 %7993
        %7995 = vrot.lane.b32.xlu0 %v7640, 120
        %v7996 = vpop.permute.xlu0 %7995
        %7997 = vrot.lane.b32.xlu0 %v7641, 120
        %v7998 = vpop.permute.xlu0 %7997
        %7999 = vrot.lane.b32.xlu0 %v7642, 120
        %v8000 = vpop.permute.xlu0 %7999
        %8001 = vrot.lane.b32.xlu0 %v7643, 120
        %v8002 = vpop.permute.xlu0 %8001
        %8003 = vrot.lane.b32.xlu0 %v7644, 120
        %v8004 = vpop.permute.xlu0 %8003
        %8005 = vrot.lane.b32.xlu0 %v7645, 120
        %v8006 = vpop.permute.xlu0 %8005
        %8007 = vrot.lane.b32.xlu0 %v7646, 120
        %v8008 = vpop.permute.xlu0 %8007
        %8009 = vrot.lane.b32.xlu0 %v7647, 120
        %v8010 = vpop.permute.xlu0 %8009
        %8011 = vrot.lane.b32.xlu0 %v7648, 120
        %v8012 = vpop.permute.xlu0 %8011
        %8013 = vrot.lane.b32.xlu0 %v7649, 120
        %v8014 = vpop.permute.xlu0 %8013
        %8015 = vrot.lane.b32.xlu0 %v7650, 120
        %v8016 = vpop.permute.xlu0 %8015
        %8017 = vrot.lane.b32.xlu0 %v7651, 120
        %v8018 = vpop.permute.xlu0 %8017
        %8019 = vrot.lane.b32.xlu0 %v7652, 120
        %v8020 = vpop.permute.xlu0 %8019
        %8021 = vrot.lane.b32.xlu0 %v7653, 120
        %v8022 = vpop.permute.xlu0 %8021
        %8023 = vrot.lane.b32.xlu0 %v7654, 120
        %v8024 = vpop.permute.xlu0 %8023
        %8025 = vrot.lane.b32.xlu0 %v7655, 120
        %v8026 = vpop.permute.xlu0 %8025
        %8027 = vrot.lane.b32.xlu0 %v7656, 120
        %v8028 = vpop.permute.xlu0 %8027
        %8029 = vrot.lane.b32.xlu0 %v7657, 120
        %v8030 = vpop.permute.xlu0 %8029
        %8031 = vrot.lane.b32.xlu0 %v7658, 120
        %v8032 = vpop.permute.xlu0 %8031
        %8033 = vrot.lane.b32.xlu0 %v7659, 120
        %v8034 = vpop.permute.xlu0 %8033
        %8035 = vrot.lane.b32.xlu0 %v7660, 120
        %v8036 = vpop.permute.xlu0 %8035
        %8037 = vrot.lane.b32.xlu0 %v7661, 120
        %v8038 = vpop.permute.xlu0 %8037
        %8039 = vrot.lane.b32.xlu0 %v7662, 120
        %v8040 = vpop.permute.xlu0 %8039
        %8041 = vrot.lane.b32.xlu0 %v7663, 120
        %v8042 = vpop.permute.xlu0 %8041
        %8043 = vrot.lane.b32.xlu0 %v7664, 120
        %v8044 = vpop.permute.xlu0 %8043
        %8045 = vrot.lane.b32.xlu0 %v7665, 120
        %v8046 = vpop.permute.xlu0 %8045
        %8047 = vrot.lane.b32.xlu0 %v7666, 120
        %v8048 = vpop.permute.xlu0 %8047
        %8049 = vrot.lane.b32.xlu0 %v7667, 120
        %v8050 = vpop.permute.xlu0 %8049
        %8051 = vrot.lane.b32.xlu0 %v7668, 120
        %v8052 = vpop.permute.xlu0 %8051
        %8053 = vrot.lane.b32.xlu0 %v7669, 120
        %v8054 = vpop.permute.xlu0 %8053
        %v8055 = vsel %vm6011, %v7988, %v7990
        %v8056 = vsel %vm6011, %v7990, %v7992
        %v8057 = vsel %vm6011, %v7992, %v7994
        %v8058 = vsel %vm6011, %v7994, %v7996
        %v8059 = vsel %vm6011, %v7996, %v7998
        %v8060 = vsel %vm6011, %v7998, %v8000
        %v8061 = vsel %vm6011, %v8000, %v8002
        %v8062 = vsel %vm6011, %v8002, %v8004
        %v8063 = vsel %vm6011, %v8004, %v8006
        %v8064 = vsel %vm6011, %v8006, %v8008
        %v8065 = vsel %vm6011, %v8008, %v8010
        %v8066 = vsel %vm6011, %v8010, %v8012
        %v8067 = vsel %vm6011, %v8012, %v8014
        %v8068 = vsel %vm6011, %v8014, %v8016
        %v8069 = vsel %vm6011, %v8016, %v8018
        %v8070 = vsel %vm6011, %v8018, %v8020
        %v8071 = vsel %vm6011, %v8020, %v8022
        %v8072 = vsel %vm6011, %v8022, %v8024
        %v8073 = vsel %vm6011, %v8024, %v8026
        %v8074 = vsel %vm6011, %v8026, %v8028
        %v8075 = vsel %vm6011, %v8028, %v8030
        %v8076 = vsel %vm6011, %v8030, %v8032
        %v8077 = vsel %vm6011, %v8032, %v8034
        %v8078 = vsel %vm6011, %v8034, %v8036
        %v8079 = vsel %vm6011, %v8036, %v8038
        %v8080 = vsel %vm6011, %v8038, %v8040
        %v8081 = vsel %vm6011, %v8040, %v8042
        %v8082 = vsel %vm6011, %v8042, %v8044
        %v8083 = vsel %vm6011, %v8044, %v8046
        %v8084 = vsel %vm6011, %v8046, %v8048
        %v8085 = vsel %vm6011, %v8048, %v8050
        %v8086 = vsel %vm6011, %v8050, %v8052
        %v8087 = vsel %vm6011, %v8052, %v8054
        %v8090 = vsel %vm6045, %v8087, %v7780
        %8091 = vrot.lane.b32.xlu0 %v7637, 118
        %v8092 = vpop.permute.xlu0 %8091
        %8093 = vrot.lane.b32.xlu0 %v7638, 118
        %v8094 = vpop.permute.xlu0 %8093
        %8095 = vrot.lane.b32.xlu0 %v7639, 118
        %v8096 = vpop.permute.xlu0 %8095
        %8097 = vrot.lane.b32.xlu0 %v7640, 118
        %v8098 = vpop.permute.xlu0 %8097
        %8099 = vrot.lane.b32.xlu0 %v7641, 118
        %v8100 = vpop.permute.xlu0 %8099
        %8101 = vrot.lane.b32.xlu0 %v7642, 118
        %v8102 = vpop.permute.xlu0 %8101
        %8103 = vrot.lane.b32.xlu0 %v7643, 118
        %v8104 = vpop.permute.xlu0 %8103
        %8105 = vrot.lane.b32.xlu0 %v7644, 118
        %v8106 = vpop.permute.xlu0 %8105
        %8107 = vrot.lane.b32.xlu0 %v7645, 118
        %v8108 = vpop.permute.xlu0 %8107
        %8109 = vrot.lane.b32.xlu0 %v7646, 118
        %v8110 = vpop.permute.xlu0 %8109
        %8111 = vrot.lane.b32.xlu0 %v7647, 118
        %v8112 = vpop.permute.xlu0 %8111
        %8113 = vrot.lane.b32.xlu0 %v7648, 118
        %v8114 = vpop.permute.xlu0 %8113
        %8115 = vrot.lane.b32.xlu0 %v7649, 118
        %v8116 = vpop.permute.xlu0 %8115
        %8117 = vrot.lane.b32.xlu0 %v7650, 118
        %v8118 = vpop.permute.xlu0 %8117
        %8119 = vrot.lane.b32.xlu0 %v7651, 118
        %v8120 = vpop.permute.xlu0 %8119
        %8121 = vrot.lane.b32.xlu0 %v7652, 118
        %v8122 = vpop.permute.xlu0 %8121
        %8123 = vrot.lane.b32.xlu0 %v7653, 118
        %v8124 = vpop.permute.xlu0 %8123
        %8125 = vrot.lane.b32.xlu0 %v7654, 118
        %v8126 = vpop.permute.xlu0 %8125
        %8127 = vrot.lane.b32.xlu0 %v7655, 118
        %v8128 = vpop.permute.xlu0 %8127
        %8129 = vrot.lane.b32.xlu0 %v7656, 118
        %v8130 = vpop.permute.xlu0 %8129
        %8131 = vrot.lane.b32.xlu0 %v7657, 118
        %v8132 = vpop.permute.xlu0 %8131
        %8133 = vrot.lane.b32.xlu0 %v7658, 118
        %v8134 = vpop.permute.xlu0 %8133
        %8135 = vrot.lane.b32.xlu0 %v7659, 118
        %v8136 = vpop.permute.xlu0 %8135
        %8137 = vrot.lane.b32.xlu0 %v7660, 118
        %v8138 = vpop.permute.xlu0 %8137
        %8139 = vrot.lane.b32.xlu0 %v7661, 118
        %v8140 = vpop.permute.xlu0 %8139
        %8141 = vrot.lane.b32.xlu0 %v7662, 118
        %v8142 = vpop.permute.xlu0 %8141
        %8143 = vrot.lane.b32.xlu0 %v7663, 118
        %v8144 = vpop.permute.xlu0 %8143
        %8145 = vrot.lane.b32.xlu0 %v7664, 118
        %v8146 = vpop.permute.xlu0 %8145
        %8147 = vrot.lane.b32.xlu0 %v7665, 118
        %v8148 = vpop.permute.xlu0 %8147
        %8149 = vrot.lane.b32.xlu0 %v7666, 118
        %v8150 = vpop.permute.xlu0 %8149
        %8151 = vrot.lane.b32.xlu0 %v7667, 118
        %v8152 = vpop.permute.xlu0 %8151
        %8153 = vrot.lane.b32.xlu0 %v7668, 118
        %v8154 = vpop.permute.xlu0 %8153
        %8155 = vrot.lane.b32.xlu0 %v7669, 118
        %v8156 = vpop.permute.xlu0 %8155
        %v8157 = vsel %vm6115, %v8092, %v8094
        %v8158 = vsel %vm6115, %v8094, %v8096
        %v8159 = vsel %vm6115, %v8096, %v8098
        %v8160 = vsel %vm6115, %v8098, %v8100
        %v8161 = vsel %vm6115, %v8100, %v8102
        %v8162 = vsel %vm6115, %v8102, %v8104
        %v8163 = vsel %vm6115, %v8104, %v8106
        %v8164 = vsel %vm6115, %v8106, %v8108
        %v8165 = vsel %vm6115, %v8108, %v8110
        %v8166 = vsel %vm6115, %v8110, %v8112
        %v8167 = vsel %vm6115, %v8112, %v8114
        %v8168 = vsel %vm6115, %v8114, %v8116
        %v8169 = vsel %vm6115, %v8116, %v8118
        %v8170 = vsel %vm6115, %v8118, %v8120
        %v8171 = vsel %vm6115, %v8120, %v8122
        %v8172 = vsel %vm6115, %v8122, %v8124
        %v8173 = vsel %vm6115, %v8124, %v8126
        %v8174 = vsel %vm6115, %v8126, %v8128
        %v8175 = vsel %vm6115, %v8128, %v8130
        %v8176 = vsel %vm6115, %v8130, %v8132
        %v8177 = vsel %vm6115, %v8132, %v8134
        %v8178 = vsel %vm6115, %v8134, %v8136
        %v8179 = vsel %vm6115, %v8136, %v8138
        %v8180 = vsel %vm6115, %v8138, %v8140
        %v8181 = vsel %vm6115, %v8140, %v8142
        %v8182 = vsel %vm6115, %v8142, %v8144
        %v8183 = vsel %vm6115, %v8144, %v8146
        %v8184 = vsel %vm6115, %v8146, %v8148
        %v8185 = vsel %vm6115, %v8148, %v8150
        %v8186 = vsel %vm6115, %v8150, %v8152
        %v8187 = vsel %vm6115, %v8152, %v8154
        %v8188 = vsel %vm6115, %v8154, %v8156
        %8189 = vrot.lane.b32.xlu0 %v7635, 122
        %v8190 = vpop.permute.xlu0 %8189
        %v8191 = vsel %vm5905, %v8190, %v7884
        %v8194 = vsel %vm6151, %v8188, %v8190
        %8195 = vrot.lane.b32.xlu0 %v7637, 116
        %v8196 = vpop.permute.xlu0 %8195
        %8197 = vrot.lane.b32.xlu0 %v7638, 116
        %v8198 = vpop.permute.xlu0 %8197
        %8199 = vrot.lane.b32.xlu0 %v7639, 116
        %v8200 = vpop.permute.xlu0 %8199
        %8201 = vrot.lane.b32.xlu0 %v7640, 116
        %v8202 = vpop.permute.xlu0 %8201
        %8203 = vrot.lane.b32.xlu0 %v7641, 116
        %v8204 = vpop.permute.xlu0 %8203
        %8205 = vrot.lane.b32.xlu0 %v7642, 116
        %v8206 = vpop.permute.xlu0 %8205
        %8207 = vrot.lane.b32.xlu0 %v7643, 116
        %v8208 = vpop.permute.xlu0 %8207
        %8209 = vrot.lane.b32.xlu0 %v7644, 116
        %v8210 = vpop.permute.xlu0 %8209
        %8211 = vrot.lane.b32.xlu0 %v7645, 116
        %v8212 = vpop.permute.xlu0 %8211
        %8213 = vrot.lane.b32.xlu0 %v7646, 116
        %v8214 = vpop.permute.xlu0 %8213
        %8215 = vrot.lane.b32.xlu0 %v7647, 116
        %v8216 = vpop.permute.xlu0 %8215
        %8217 = vrot.lane.b32.xlu0 %v7648, 116
        %v8218 = vpop.permute.xlu0 %8217
        %8219 = vrot.lane.b32.xlu0 %v7649, 116
        %v8220 = vpop.permute.xlu0 %8219
        %8221 = vrot.lane.b32.xlu0 %v7650, 116
        %v8222 = vpop.permute.xlu0 %8221
        %8223 = vrot.lane.b32.xlu0 %v7651, 116
        %v8224 = vpop.permute.xlu0 %8223
        %8225 = vrot.lane.b32.xlu0 %v7652, 116
        %v8226 = vpop.permute.xlu0 %8225
        %8227 = vrot.lane.b32.xlu0 %v7653, 116
        %v8228 = vpop.permute.xlu0 %8227
        %8229 = vrot.lane.b32.xlu0 %v7654, 116
        %v8230 = vpop.permute.xlu0 %8229
        %8231 = vrot.lane.b32.xlu0 %v7655, 116
        %v8232 = vpop.permute.xlu0 %8231
        %8233 = vrot.lane.b32.xlu0 %v7656, 116
        %v8234 = vpop.permute.xlu0 %8233
        %8235 = vrot.lane.b32.xlu0 %v7657, 116
        %v8236 = vpop.permute.xlu0 %8235
        %8237 = vrot.lane.b32.xlu0 %v7658, 116
        %v8238 = vpop.permute.xlu0 %8237
        %8239 = vrot.lane.b32.xlu0 %v7659, 116
        %v8240 = vpop.permute.xlu0 %8239
        %8241 = vrot.lane.b32.xlu0 %v7660, 116
        %v8242 = vpop.permute.xlu0 %8241
        %8243 = vrot.lane.b32.xlu0 %v7661, 116
        %v8244 = vpop.permute.xlu0 %8243
        %8245 = vrot.lane.b32.xlu0 %v7662, 116
        %v8246 = vpop.permute.xlu0 %8245
        %8247 = vrot.lane.b32.xlu0 %v7663, 116
        %v8248 = vpop.permute.xlu0 %8247
        %8249 = vrot.lane.b32.xlu0 %v7664, 116
        %v8250 = vpop.permute.xlu0 %8249
        %8251 = vrot.lane.b32.xlu0 %v7665, 116
        %v8252 = vpop.permute.xlu0 %8251
        %8253 = vrot.lane.b32.xlu0 %v7666, 116
        %v8254 = vpop.permute.xlu0 %8253
        %8255 = vrot.lane.b32.xlu0 %v7667, 116
        %v8256 = vpop.permute.xlu0 %8255
        %8257 = vrot.lane.b32.xlu0 %v7668, 116
        %v8258 = vpop.permute.xlu0 %8257
        %8259 = vrot.lane.b32.xlu0 %v7669, 116
        %v8260 = vpop.permute.xlu0 %8259
        %v8261 = vsel %vm6221, %v8196, %v8198
        %v8262 = vsel %vm6221, %v8198, %v8200
        %v8263 = vsel %vm6221, %v8200, %v8202
        %v8264 = vsel %vm6221, %v8202, %v8204
        %v8265 = vsel %vm6221, %v8204, %v8206
        %v8266 = vsel %vm6221, %v8206, %v8208
        %v8267 = vsel %vm6221, %v8208, %v8210
        %v8268 = vsel %vm6221, %v8210, %v8212
        %v8269 = vsel %vm6221, %v8212, %v8214
        %v8270 = vsel %vm6221, %v8214, %v8216
        %v8271 = vsel %vm6221, %v8216, %v8218
        %v8272 = vsel %vm6221, %v8218, %v8220
        %v8273 = vsel %vm6221, %v8220, %v8222
        %v8274 = vsel %vm6221, %v8222, %v8224
        %v8275 = vsel %vm6221, %v8224, %v8226
        %v8276 = vsel %vm6221, %v8226, %v8228
        %v8277 = vsel %vm6221, %v8228, %v8230
        %v8278 = vsel %vm6221, %v8230, %v8232
        %v8279 = vsel %vm6221, %v8232, %v8234
        %v8280 = vsel %vm6221, %v8234, %v8236
        %v8281 = vsel %vm6221, %v8236, %v8238
        %v8282 = vsel %vm6221, %v8238, %v8240
        %v8283 = vsel %vm6221, %v8240, %v8242
        %v8284 = vsel %vm6221, %v8242, %v8244
        %v8285 = vsel %vm6221, %v8244, %v8246
        %v8286 = vsel %vm6221, %v8246, %v8248
        %v8287 = vsel %vm6221, %v8248, %v8250
        %v8288 = vsel %vm6221, %v8250, %v8252
        %v8289 = vsel %vm6221, %v8252, %v8254
        %v8290 = vsel %vm6221, %v8254, %v8256
        %v8291 = vsel %vm6221, %v8256, %v8258
        %v8292 = vsel %vm6221, %v8258, %v8260
        %8293 = vrot.lane.b32.xlu0 %v7635, 120
        %v8294 = vpop.permute.xlu0 %8293
        %v8295 = vsel %vm6011, %v8294, %v7988
        %v8298 = vsel %vm6257, %v8292, %v8294
        %v8300 = vrot.slane %v7740, 4
        %v8301 = vrot.slane %v7741, 4
        %v8302 = vrot.slane %v7742, 4
        %v8303 = vrot.slane %v7743, 4
        %v8304 = vrot.slane %v7744, 4
        %v8305 = vrot.slane %v7745, 4
        %v8306 = vrot.slane %v7746, 4
        %v8307 = vrot.slane %v7747, 4
        %v8308 = vrot.slane %v7748, 4
        %v8309 = vrot.slane %v7749, 4
        %v8310 = vrot.slane %v7750, 4
        %v8311 = vrot.slane %v7751, 4
        %v8312 = vrot.slane %v7752, 4
        %v8313 = vrot.slane %v7753, 4
        %v8314 = vrot.slane %v7754, 4
        %v8315 = vrot.slane %v7755, 4
        %v8316 = vrot.slane %v7756, 4
        %v8317 = vrot.slane %v7757, 4
        %v8318 = vrot.slane %v7758, 4
        %v8319 = vrot.slane %v7759, 4
        %v8320 = vrot.slane %v7760, 4
        %v8321 = vrot.slane %v7761, 4
        %v8322 = vrot.slane %v7762, 4
        %v8323 = vrot.slane %v7763, 4
        %v8324 = vrot.slane %v7764, 4
        %v8325 = vrot.slane %v7765, 4
        %v8326 = vrot.slane %v7766, 4
        %v8327 = vrot.slane %v7767, 4
        %v8328 = vrot.slane %v7768, 4
        %v8329 = vrot.slane %v7769, 4
        %v8330 = vrot.slane %v7770, 4
        %v8331 = vrot.slane %v7771, 4
        %v8332 = vrot.slane %v7772, 4
        %v8333 = vrot.slane %v7773, 4
        %v8334 = vrot.slane %v7778, 4
        %v8335 = vrot.slane %v7850, 4
        %v8336 = vrot.slane %v7851, 4
        %v8337 = vrot.slane %v7852, 4
        %v8338 = vrot.slane %v7853, 4
        %v8339 = vrot.slane %v7854, 4
        %v8340 = vrot.slane %v7855, 4
        %v8341 = vrot.slane %v7856, 4
        %v8342 = vrot.slane %v7857, 4
        %v8343 = vrot.slane %v7858, 4
        %v8344 = vrot.slane %v7859, 4
        %v8345 = vrot.slane %v7860, 4
        %v8346 = vrot.slane %v7861, 4
        %v8347 = vrot.slane %v7862, 4
        %v8348 = vrot.slane %v7863, 4
        %v8349 = vrot.slane %v7864, 4
        %v8350 = vrot.slane %v7865, 4
        %v8351 = vrot.slane %v7866, 4
        %v8352 = vrot.slane %v7867, 4
        %v8353 = vrot.slane %v7868, 4
        %v8354 = vrot.slane %v7869, 4
        %v8355 = vrot.slane %v7870, 4
        %v8356 = vrot.slane %v7871, 4
        %v8357 = vrot.slane %v7872, 4
        %v8358 = vrot.slane %v7873, 4
        %v8359 = vrot.slane %v7874, 4
        %v8360 = vrot.slane %v7875, 4
        %v8361 = vrot.slane %v7876, 4
        %v8362 = vrot.slane %v7877, 4
        %v8363 = vrot.slane %v7878, 4
        %v8364 = vrot.slane %v7879, 4
        %v8365 = vrot.slane %v7880, 4
        %v8366 = vrot.slane %v7881, 4
        %v8367 = vrot.slane %v7882, 4
        %v8368 = vrot.slane %v7635, 4
        %v8369 = vrot.slane %v7636, 4
        %v8371 = vrot.slane %v8055, 4
        %v8372 = vrot.slane %v8056, 4
        %v8373 = vrot.slane %v8057, 4
        %v8374 = vrot.slane %v8058, 4
        %v8375 = vrot.slane %v8059, 4
        %v8376 = vrot.slane %v8060, 4
        %v8377 = vrot.slane %v8061, 4
        %v8378 = vrot.slane %v8062, 4
        %v8379 = vrot.slane %v8063, 4
        %v8380 = vrot.slane %v8064, 4
        %v8381 = vrot.slane %v8065, 4
        %v8382 = vrot.slane %v8066, 4
        %v8383 = vrot.slane %v8067, 4
        %v8384 = vrot.slane %v8068, 4
        %v8385 = vrot.slane %v8069, 4
        %v8386 = vrot.slane %v8070, 4
        %v8387 = vrot.slane %v8071, 4
        %v8388 = vrot.slane %v8072, 4
        %v8389 = vrot.slane %v8073, 4
        %v8390 = vrot.slane %v8074, 4
        %v8391 = vrot.slane %v8075, 4
        %v8392 = vrot.slane %v8076, 4
        %v8393 = vrot.slane %v8077, 4
        %v8394 = vrot.slane %v8078, 4
        %v8395 = vrot.slane %v8079, 4
        %v8396 = vrot.slane %v8080, 4
        %v8397 = vrot.slane %v8081, 4
        %v8398 = vrot.slane %v8082, 4
        %v8399 = vrot.slane %v8083, 4
        %v8400 = vrot.slane %v8084, 4
        %v8401 = vrot.slane %v8085, 4
        %v8402 = vrot.slane %v8086, 4
        %v8403 = vrot.slane %v8090, 4
        %v8404 = vrot.slane %v7849, 4
        %v8405 = vrot.slane %v7782, 4
        %v8407 = vrot.slane %v8157, 4
        %v8408 = vrot.slane %v8158, 4
        %v8409 = vrot.slane %v8159, 4
        %v8410 = vrot.slane %v8160, 4
        %v8411 = vrot.slane %v8161, 4
        %v8412 = vrot.slane %v8162, 4
        %v8413 = vrot.slane %v8163, 4
        %v8414 = vrot.slane %v8164, 4
        %v8415 = vrot.slane %v8165, 4
        %v8416 = vrot.slane %v8166, 4
        %v8417 = vrot.slane %v8167, 4
        %v8418 = vrot.slane %v8168, 4
        %v8419 = vrot.slane %v8169, 4
        %v8420 = vrot.slane %v8170, 4
        %v8421 = vrot.slane %v8171, 4
        %v8422 = vrot.slane %v8172, 4
        %v8423 = vrot.slane %v8173, 4
        %v8424 = vrot.slane %v8174, 4
        %v8425 = vrot.slane %v8175, 4
        %v8426 = vrot.slane %v8176, 4
        %v8427 = vrot.slane %v8177, 4
        %v8428 = vrot.slane %v8178, 4
        %v8429 = vrot.slane %v8179, 4
        %v8430 = vrot.slane %v8180, 4
        %v8431 = vrot.slane %v8181, 4
        %v8432 = vrot.slane %v8182, 4
        %v8433 = vrot.slane %v8183, 4
        %v8434 = vrot.slane %v8184, 4
        %v8435 = vrot.slane %v8185, 4
        %v8436 = vrot.slane %v8186, 4
        %v8437 = vrot.slane %v8187, 4
        %v8438 = vrot.slane %v8194, 4
        %v8439 = vrot.slane %v8191, 4
        %v8440 = vrot.slane %v7951, 4
        %v8441 = vrot.slane %v7886, 4
        %v8444 = vsel %vm1574, %v7635, %v8300
        %v8448 = vsel %vm1574, %v7636, %v8301
        %v8452 = vsel %vm1574, %v7637, %v8302
        %v8456 = vsel %vm1574, %v7638, %v8303
        %v8460 = vsel %vm1574, %v7639, %v8304
        %v8464 = vsel %vm1574, %v7640, %v8305
        %v8468 = vsel %vm1574, %v7641, %v8306
        %v8472 = vsel %vm1574, %v7642, %v8307
        %v8476 = vsel %vm1574, %v7643, %v8308
        %v8480 = vsel %vm1574, %v7644, %v8309
        %v8484 = vsel %vm1574, %v7645, %v8310
        %v8488 = vsel %vm1574, %v7646, %v8311
        %v8492 = vsel %vm1574, %v7647, %v8312
        %v8496 = vsel %vm1574, %v7648, %v8313
        %v8500 = vsel %vm1574, %v7649, %v8314
        %v8504 = vsel %vm1574, %v7650, %v8315
        %v8508 = vsel %vm1574, %v7651, %v8316
        %v8512 = vsel %vm1574, %v7652, %v8317
        %v8516 = vsel %vm1574, %v7653, %v8318
        %v8520 = vsel %vm1574, %v7654, %v8319
        %v8524 = vsel %vm1574, %v7655, %v8320
        %v8528 = vsel %vm1574, %v7656, %v8321
        %v8532 = vsel %vm1574, %v7657, %v8322
        %v8536 = vsel %vm1574, %v7658, %v8323
        %v8540 = vsel %vm1574, %v7659, %v8324
        %v8544 = vsel %vm1574, %v7660, %v8325
        %v8548 = vsel %vm1574, %v7661, %v8326
        %v8552 = vsel %vm1574, %v7662, %v8327
        %v8556 = vsel %vm1574, %v7663, %v8328
        %v8560 = vsel %vm1574, %v7664, %v8329
        %v8564 = vsel %vm1574, %v7665, %v8330
        %v8568 = vsel %vm1574, %v7666, %v8331
        %v8572 = vsel %vm1574, %v7667, %v8332
        %v8576 = vsel %vm1574, %v7668, %v8333
        %v8580 = vsel %vm1574, %v7669, %v8334
        %v8584 = vsel %vm1574, %v7849, %v8335
        %v8588 = vsel %vm1574, %v7850, %v8336
        %v8592 = vsel %vm1574, %v7851, %v8337
        %v8596 = vsel %vm1574, %v7852, %v8338
        %v8600 = vsel %vm1574, %v7853, %v8339
        %v8604 = vsel %vm1574, %v7854, %v8340
        %v8608 = vsel %vm1574, %v7855, %v8341
        %v8612 = vsel %vm1574, %v7856, %v8342
        %v8616 = vsel %vm1574, %v7857, %v8343
        %v8620 = vsel %vm1574, %v7858, %v8344
        %v8624 = vsel %vm1574, %v7859, %v8345
        %v8628 = vsel %vm1574, %v7860, %v8346
        %v8632 = vsel %vm1574, %v7861, %v8347
        %v8636 = vsel %vm1574, %v7862, %v8348
        %v8640 = vsel %vm1574, %v7863, %v8349
        %v8644 = vsel %vm1574, %v7864, %v8350
        %v8648 = vsel %vm1574, %v7865, %v8351
        %v8652 = vsel %vm1574, %v7866, %v8352
        %v8656 = vsel %vm1574, %v7867, %v8353
        %v8660 = vsel %vm1574, %v7868, %v8354
        %v8664 = vsel %vm1574, %v7869, %v8355
        %v8668 = vsel %vm1574, %v7870, %v8356
        %v8672 = vsel %vm1574, %v7871, %v8357
        %v8676 = vsel %vm1574, %v7872, %v8358
        %v8680 = vsel %vm1574, %v7873, %v8359
        %v8684 = vsel %vm1574, %v7874, %v8360
        %v8688 = vsel %vm1574, %v7875, %v8361
        %v8692 = vsel %vm1574, %v7876, %v8362
        %v8696 = vsel %vm1574, %v7877, %v8363
        %v8700 = vsel %vm1574, %v7878, %v8364
        %v8704 = vsel %vm1574, %v7879, %v8365
        %v8708 = vsel %vm1574, %v7880, %v8366
        %v8712 = vsel %vm1574, %v7881, %v8367
        %v8716 = vsel %vm1574, %v7882, %v8368
        %v8720 = vsel %vm1574, %v7564, %v8369
        %v8724 = vsel %vm1574, %v7951, %v8371
        %v8728 = vsel %vm1574, %v7952, %v8372
        %v8732 = vsel %vm1574, %v7953, %v8373
        %v8736 = vsel %vm1574, %v7954, %v8374
        %v8740 = vsel %vm1574, %v7955, %v8375
        %v8744 = vsel %vm1574, %v7956, %v8376
        %v8748 = vsel %vm1574, %v7957, %v8377
        %v8752 = vsel %vm1574, %v7958, %v8378
        %v8756 = vsel %vm1574, %v7959, %v8379
        %v8760 = vsel %vm1574, %v7960, %v8380
        %v8764 = vsel %vm1574, %v7961, %v8381
        %v8768 = vsel %vm1574, %v7962, %v8382
        %v8772 = vsel %vm1574, %v7963, %v8383
        %v8776 = vsel %vm1574, %v7964, %v8384
        %v8780 = vsel %vm1574, %v7965, %v8385
        %v8784 = vsel %vm1574, %v7966, %v8386
        %v8788 = vsel %vm1574, %v7967, %v8387
        %v8792 = vsel %vm1574, %v7968, %v8388
        %v8796 = vsel %vm1574, %v7969, %v8389
        %v8800 = vsel %vm1574, %v7970, %v8390
        %v8804 = vsel %vm1574, %v7971, %v8391
        %v8808 = vsel %vm1574, %v7972, %v8392
        %v8812 = vsel %vm1574, %v7973, %v8393
        %v8816 = vsel %vm1574, %v7974, %v8394
        %v8820 = vsel %vm1574, %v7975, %v8395
        %v8824 = vsel %vm1574, %v7976, %v8396
        %v8828 = vsel %vm1574, %v7977, %v8397
        %v8832 = vsel %vm1574, %v7978, %v8398
        %v8836 = vsel %vm1574, %v7979, %v8399
        %v8840 = vsel %vm1574, %v7980, %v8400
        %v8844 = vsel %vm1574, %v7981, %v8401
        %v8848 = vsel %vm1574, %v7982, %v8402
        %v8851 = vsel %vm1574, %v7986, %v8403
        %v8855 = vsel %vm1574, %v7740, %v8404
        %v8859 = vsel %vm1574, %v7673, %v8405
        %v8863 = vsel %vm1574, %v8056, %v8407
        %v8867 = vsel %vm1574, %v8057, %v8408
        %v8871 = vsel %vm1574, %v8058, %v8409
        %v8875 = vsel %vm1574, %v8059, %v8410
        %v8879 = vsel %vm1574, %v8060, %v8411
        %v8883 = vsel %vm1574, %v8061, %v8412
        %v8887 = vsel %vm1574, %v8062, %v8413
        %v8891 = vsel %vm1574, %v8063, %v8414
        %v8895 = vsel %vm1574, %v8064, %v8415
        %v8899 = vsel %vm1574, %v8065, %v8416
        %v8903 = vsel %vm1574, %v8066, %v8417
        %v8907 = vsel %vm1574, %v8067, %v8418
        %v8911 = vsel %vm1574, %v8068, %v8419
        %v8915 = vsel %vm1574, %v8069, %v8420
        %v8919 = vsel %vm1574, %v8070, %v8421
        %v8923 = vsel %vm1574, %v8071, %v8422
        %v8927 = vsel %vm1574, %v8072, %v8423
        %v8931 = vsel %vm1574, %v8073, %v8424
        %v8935 = vsel %vm1574, %v8074, %v8425
        %v8939 = vsel %vm1574, %v8075, %v8426
        %v8943 = vsel %vm1574, %v8076, %v8427
        %v8947 = vsel %vm1574, %v8077, %v8428
        %v8951 = vsel %vm1574, %v8078, %v8429
        %v8955 = vsel %vm1574, %v8079, %v8430
        %v8959 = vsel %vm1574, %v8080, %v8431
        %v8963 = vsel %vm1574, %v8081, %v8432
        %v8967 = vsel %vm1574, %v8082, %v8433
        %v8971 = vsel %vm1574, %v8083, %v8434
        %v8975 = vsel %vm1574, %v8084, %v8435
        %v8979 = vsel %vm1574, %v8085, %v8436
        %v8983 = vsel %vm1574, %v8086, %v8437
        %v8986 = vsel %vm1574, %v8090, %v8438
        %v8989 = vsel %vm1574, %v7849, %v8439
        %v8992 = vsel %vm1574, %v7850, %v8440
        %v8996 = vsel %vm1574, %v7784, %v8441
        %v8998 = vld [vmem:[%s8] sm:$0xf]
        %v8999 = vld [vmem:[%s9] sm:$0xff]
        %9001 = vset.pattern.permute.xlu0 0
        %9002 = vperm.xlu0 %9001, %v8999
        %v9003 = vpop.permute.xlu0 %9002
        %v9006 = vsel %vm2135, %v8998, 0
        %v9009 = vsel %vm1574, %v8261, 0
        %v9012 = vsel %vm1574, %v8262, 0
        %v9015 = vsel %vm1574, %v8263, 0
        %v9018 = vsel %vm1574, %v8264, 0
        %v9021 = vsel %vm1574, %v8265, 0
        %v9024 = vsel %vm1574, %v8266, 0
        %v9027 = vsel %vm1574, %v8267, 0
        %v9030 = vsel %vm1574, %v8268, 0
        %v9033 = vsel %vm1574, %v8269, 0
        %v9036 = vsel %vm1574, %v8270, 0
        %v9039 = vsel %vm1574, %v8271, 0
        %v9042 = vsel %vm1574, %v8272, 0
        %v9045 = vsel %vm1574, %v8273, 0
        %v9048 = vsel %vm1574, %v8274, 0
        %v9051 = vsel %vm1574, %v8275, 0
        %v9054 = vsel %vm1574, %v8276, 0
        %v9057 = vsel %vm1574, %v8277, 0
        %v9060 = vsel %vm1574, %v8278, 0
        %v9063 = vsel %vm1574, %v8279, 0
        %v9066 = vsel %vm1574, %v8280, 0
        %v9069 = vsel %vm1574, %v8281, 0
        %v9072 = vsel %vm1574, %v8282, 0
        %v9075 = vsel %vm1574, %v8283, 0
        %v9078 = vsel %vm1574, %v8284, 0
        %v9081 = vsel %vm1574, %v8285, 0
        %v9084 = vsel %vm1574, %v8286, 0
        %v9087 = vsel %vm1574, %v8287, 0
        %v9090 = vsel %vm1574, %v8288, 0
        %v9093 = vsel %vm1574, %v8289, 0
        %v9096 = vsel %vm1574, %v8290, 0
        %v9099 = vsel %vm1574, %v8291, 0
        %v9101 = vsel %vm1574, %v8298, 0
        %v9104 = vsel %vm1574, %v8295, 0
        %v9107 = vsel %vm1574, %v8055, 0
        %v9110 = vsel %vm1574, %v7990, 0
        %9112 = vmatpush.bf16.msra.mxu0 0
        %9113 = vmatpush.bf16.msra.mxu0 0
        %9114 = vmatpush.bf16.msra.mxu0 0
        %9115 = vmatpush.bf16.msra.mxu0 %v9009
        %9116 = vmatpush.bf16.msra.mxu0 %v8863
        %9117 = vmatpush.bf16.msra.mxu0 %v8724
        %9118 = vmatpush.bf16.msra.mxu0 %v8584
        %9119 = vmatpush.bf16.msra.mxu0 %v8444
        %9120 = vmatmul.bf16.gmra.mxu0 %v9006
        %v9121 = vpop.f32.mrf.mxu0
        %v9122 = vadd.f32 %v9003, %v9121
        %v9123 = vpop.f32.mrf.mxu0
        %9124 = vdwg.mxu0
        %9125 = vmatpush.bf16.msra.mxu0 0
        %9126 = vmatpush.bf16.msra.mxu0 0
        %9127 = vmatpush.bf16.msra.mxu0 0
        %9128 = vmatpush.bf16.msra.mxu0 %v9012
        %9129 = vmatpush.bf16.msra.mxu0 %v8867
        %9130 = vmatpush.bf16.msra.mxu0 %v8728
        %9131 = vmatpush.bf16.msra.mxu0 %v8588
        %9132 = vmatpush.bf16.msra.mxu0 %v8448
        %9133 = vmatmul.bf16.gmra.mxu0 %v9006
        %v9134 = vpop.f32.mrf.mxu0
        %v9135 = vadd.f32 %v9003, %v9134
        %v9136 = vpop.f32.mrf.mxu0
        %9137 = vdwg.mxu0
        %9138 = vmatpush.bf16.msra.mxu0 0
        %9139 = vmatpush.bf16.msra.mxu0 0
        %9140 = vmatpush.bf16.msra.mxu0 0
        %9141 = vmatpush.bf16.msra.mxu0 %v9015
        %9142 = vmatpush.bf16.msra.mxu0 %v8871
        %9143 = vmatpush.bf16.msra.mxu0 %v8732
        %9144 = vmatpush.bf16.msra.mxu0 %v8592
        %9145 = vmatpush.bf16.msra.mxu0 %v8452
        %9146 = vmatmul.bf16.gmra.mxu0 %v9006
        %v9147 = vpop.f32.mrf.mxu0
        %v9148 = vadd.f32 %v9003, %v9147
        %v9149 = vpop.f32.mrf.mxu0
        %9150 = vdwg.mxu0
        %9151 = vmatpush.bf16.msra.mxu0 0
        %9152 = vmatpush.bf16.msra.mxu0 0
        %9153 = vmatpush.bf16.msra.mxu0 0
        %9154 = vmatpush.bf16.msra.mxu0 %v9018
        %9155 = vmatpush.bf16.msra.mxu0 %v8875
        %9156 = vmatpush.bf16.msra.mxu0 %v8736
        %9157 = vmatpush.bf16.msra.mxu0 %v8596
        %9158 = vmatpush.bf16.msra.mxu0 %v8456
        %9159 = vmatmul.bf16.gmra.mxu0 %v9006
        %v9160 = vpop.f32.mrf.mxu0
        %v9161 = vadd.f32 %v9003, %v9160
        %v9162 = vpop.f32.mrf.mxu0
        %9163 = vdwg.mxu0
        %9164 = vmatpush.bf16.msra.mxu0 0
        %9165 = vmatpush.bf16.msra.mxu0 0
        %9166 = vmatpush.bf16.msra.mxu0 0
        %9167 = vmatpush.bf16.msra.mxu0 %v9021
        %9168 = vmatpush.bf16.msra.mxu0 %v8879
        %9169 = vmatpush.bf16.msra.mxu0 %v8740
        %9170 = vmatpush.bf16.msra.mxu0 %v8600
        %9171 = vmatpush.bf16.msra.mxu0 %v8460
        %9172 = vmatmul.bf16.gmra.mxu0 %v9006
        %v9173 = vpop.f32.mrf.mxu0
        %v9174 = vadd.f32 %v9003, %v9173
        %v9175 = vpop.f32.mrf.mxu0
        %9176 = vdwg.mxu0
        %9177 = vmatpush.bf16.msra.mxu0 0
        %9178 = vmatpush.bf16.msra.mxu0 0
        %9179 = vmatpush.bf16.msra.mxu0 0
        %9180 = vmatpush.bf16.msra.mxu0 %v9024
        %9181 = vmatpush.bf16.msra.mxu0 %v8883
        %9182 = vmatpush.bf16.msra.mxu0 %v8744
        %9183 = vmatpush.bf16.msra.mxu0 %v8604
        %9184 = vmatpush.bf16.msra.mxu0 %v8464
        %9185 = vmatmul.bf16.gmra.mxu0 %v9006
        %v9186 = vpop.f32.mrf.mxu0
        %v9187 = vadd.f32 %v9003, %v9186
        %v9188 = vpop.f32.mrf.mxu0
        %9189 = vdwg.mxu0
        %9190 = vmatpush.bf16.msra.mxu0 0
        %9191 = vmatpush.bf16.msra.mxu0 0
        %9192 = vmatpush.bf16.msra.mxu0 0
        %9193 = vmatpush.bf16.msra.mxu0 %v9027
        %9194 = vmatpush.bf16.msra.mxu0 %v8887
        %9195 = vmatpush.bf16.msra.mxu0 %v8748
        %9196 = vmatpush.bf16.msra.mxu0 %v8608
        %9197 = vmatpush.bf16.msra.mxu0 %v8468
        %9198 = vmatmul.bf16.gmra.mxu0 %v9006
        %v9199 = vpop.f32.mrf.mxu0
        %v9200 = vadd.f32 %v9003, %v9199
        %v9201 = vpop.f32.mrf.mxu0
        %9202 = vdwg.mxu0
        %9203 = vmatpush.bf16.msra.mxu0 0
        %9204 = vmatpush.bf16.msra.mxu0 0
        %9205 = vmatpush.bf16.msra.mxu0 0
        %9206 = vmatpush.bf16.msra.mxu0 %v9030
        %9207 = vmatpush.bf16.msra.mxu0 %v8891
        %9208 = vmatpush.bf16.msra.mxu0 %v8752
        %9209 = vmatpush.bf16.msra.mxu0 %v8612
        %9210 = vmatpush.bf16.msra.mxu0 %v8472
        %9211 = vmatmul.bf16.gmra.mxu0 %v9006
        %v9212 = vpop.f32.mrf.mxu0
        %v9213 = vadd.f32 %v9003, %v9212
        %v9214 = vpop.f32.mrf.mxu0
        %9215 = vdwg.mxu0
        %9216 = vmatpush.bf16.msra.mxu0 0
        %9217 = vmatpush.bf16.msra.mxu0 0
        %9218 = vmatpush.bf16.msra.mxu0 0
        %9219 = vmatpush.bf16.msra.mxu0 %v9033
        %9220 = vmatpush.bf16.msra.mxu0 %v8895
        %9221 = vmatpush.bf16.msra.mxu0 %v8756
        %9222 = vmatpush.bf16.msra.mxu0 %v8616
        %9223 = vmatpush.bf16.msra.mxu0 %v8476
        %9224 = vmatmul.bf16.gmra.mxu0 %v9006
        %v9225 = vpop.f32.mrf.mxu0
        %v9226 = vadd.f32 %v9003, %v9225
        %v9227 = vpop.f32.mrf.mxu0
        %9228 = vdwg.mxu0
        %9229 = vmatpush.bf16.msra.mxu0 0
        %9230 = vmatpush.bf16.msra.mxu0 0
        %9231 = vmatpush.bf16.msra.mxu0 0
        %9232 = vmatpush.bf16.msra.mxu0 %v9036
        %9233 = vmatpush.bf16.msra.mxu0 %v8899
        %9234 = vmatpush.bf16.msra.mxu0 %v8760
        %9235 = vmatpush.bf16.msra.mxu0 %v8620
        %9236 = vmatpush.bf16.msra.mxu0 %v8480
        %9237 = vmatmul.bf16.gmra.mxu0 %v9006
        %v9238 = vpop.f32.mrf.mxu0
        %v9239 = vadd.f32 %v9003, %v9238
        %v9240 = vpop.f32.mrf.mxu0
        %9241 = vdwg.mxu0
        %9242 = vmatpush.bf16.msra.mxu0 0
        %9243 = vmatpush.bf16.msra.mxu0 0
        %9244 = vmatpush.bf16.msra.mxu0 0
        %9245 = vmatpush.bf16.msra.mxu0 %v9039
        %9246 = vmatpush.bf16.msra.mxu0 %v8903
        %9247 = vmatpush.bf16.msra.mxu0 %v8764
        %9248 = vmatpush.bf16.msra.mxu0 %v8624
        %9249 = vmatpush.bf16.msra.mxu0 %v8484
        %9250 = vmatmul.bf16.gmra.mxu0 %v9006
        %v9251 = vpop.f32.mrf.mxu0
        %v9252 = vadd.f32 %v9003, %v9251
        %v9253 = vpop.f32.mrf.mxu0
        %9254 = vdwg.mxu0
        %9255 = vmatpush.bf16.msra.mxu0 0
        %9256 = vmatpush.bf16.msra.mxu0 0
        %9257 = vmatpush.bf16.msra.mxu0 0
        %9258 = vmatpush.bf16.msra.mxu0 %v9042
        %9259 = vmatpush.bf16.msra.mxu0 %v8907
        %9260 = vmatpush.bf16.msra.mxu0 %v8768
        %9261 = vmatpush.bf16.msra.mxu0 %v8628
        %9262 = vmatpush.bf16.msra.mxu0 %v8488
        %9263 = vmatmul.bf16.gmra.mxu0 %v9006
        %v9264 = vpop.f32.mrf.mxu0
        %v9265 = vadd.f32 %v9003, %v9264
        %v9266 = vpop.f32.mrf.mxu0
        %9267 = vdwg.mxu0
        %9268 = vmatpush.bf16.msra.mxu0 0
        %9269 = vmatpush.bf16.msra.mxu0 0
        %9270 = vmatpush.bf16.msra.mxu0 0
        %9271 = vmatpush.bf16.msra.mxu0 %v9045
        %9272 = vmatpush.bf16.msra.mxu0 %v8911
        %9273 = vmatpush.bf16.msra.mxu0 %v8772
        %9274 = vmatpush.bf16.msra.mxu0 %v8632
        %9275 = vmatpush.bf16.msra.mxu0 %v8492
        %9276 = vmatmul.bf16.gmra.mxu0 %v9006
        %v9277 = vpop.f32.mrf.mxu0
        %v9278 = vadd.f32 %v9003, %v9277
        %v9279 = vpop.f32.mrf.mxu0
        %9280 = vdwg.mxu0
        %9281 = vmatpush.bf16.msra.mxu0 0
        %9282 = vmatpush.bf16.msra.mxu0 0
        %9283 = vmatpush.bf16.msra.mxu0 0
        %9284 = vmatpush.bf16.msra.mxu0 %v9048
        %9285 = vmatpush.bf16.msra.mxu0 %v8915
        %9286 = vmatpush.bf16.msra.mxu0 %v8776
        %9287 = vmatpush.bf16.msra.mxu0 %v8636
        %9288 = vmatpush.bf16.msra.mxu0 %v8496
        %9289 = vmatmul.bf16.gmra.mxu0 %v9006
        %v9290 = vpop.f32.mrf.mxu0
        %v9291 = vadd.f32 %v9003, %v9290
        %v9292 = vpop.f32.mrf.mxu0
        %9293 = vdwg.mxu0
        %9294 = vmatpush.bf16.msra.mxu0 0
        %9295 = vmatpush.bf16.msra.mxu0 0
        %9296 = vmatpush.bf16.msra.mxu0 0
        %9297 = vmatpush.bf16.msra.mxu0 %v9051
        %9298 = vmatpush.bf16.msra.mxu0 %v8919
        %9299 = vmatpush.bf16.msra.mxu0 %v8780
        %9300 = vmatpush.bf16.msra.mxu0 %v8640
        %9301 = vmatpush.bf16.msra.mxu0 %v8500
        %9302 = vmatmul.bf16.gmra.mxu0 %v9006
        %v9303 = vpop.f32.mrf.mxu0
        %v9304 = vadd.f32 %v9003, %v9303
        %v9305 = vpop.f32.mrf.mxu0
        %9306 = vdwg.mxu0
        %9307 = vmatpush.bf16.msra.mxu0 0
        %9308 = vmatpush.bf16.msra.mxu0 0
        %9309 = vmatpush.bf16.msra.mxu0 0
        %9310 = vmatpush.bf16.msra.mxu0 %v9054
        %9311 = vmatpush.bf16.msra.mxu0 %v8923
        %9312 = vmatpush.bf16.msra.mxu0 %v8784
        %9313 = vmatpush.bf16.msra.mxu0 %v8644
        %9314 = vmatpush.bf16.msra.mxu0 %v8504
        %9315 = vmatmul.bf16.gmra.mxu0 %v9006
        %v9316 = vpop.f32.mrf.mxu0
        %v9317 = vadd.f32 %v9003, %v9316
        %v9318 = vpop.f32.mrf.mxu0
        %9319 = vdwg.mxu0
        %9320 = vmatpush.bf16.msra.mxu0 0
        %9321 = vmatpush.bf16.msra.mxu0 0
        %9322 = vmatpush.bf16.msra.mxu0 0
        %9323 = vmatpush.bf16.msra.mxu0 %v9057
        %9324 = vmatpush.bf16.msra.mxu0 %v8927
        %9325 = vmatpush.bf16.msra.mxu0 %v8788
        %9326 = vmatpush.bf16.msra.mxu0 %v8648
        %9327 = vmatpush.bf16.msra.mxu0 %v8508
        %9328 = vmatmul.bf16.gmra.mxu0 %v9006
        %v9329 = vpop.f32.mrf.mxu0
        %v9330 = vadd.f32 %v9003, %v9329
        %v9331 = vpop.f32.mrf.mxu0
        %9332 = vdwg.mxu0
        %9333 = vmatpush.bf16.msra.mxu0 0
        %9334 = vmatpush.bf16.msra.mxu0 0
        %9335 = vmatpush.bf16.msra.mxu0 0
        %9336 = vmatpush.bf16.msra.mxu0 %v9060
        %9337 = vmatpush.bf16.msra.mxu0 %v8931
        %9338 = vmatpush.bf16.msra.mxu0 %v8792
        %9339 = vmatpush.bf16.msra.mxu0 %v8652
        %9340 = vmatpush.bf16.msra.mxu0 %v8512
        %9341 = vmatmul.bf16.gmra.mxu0 %v9006
        %v9342 = vpop.f32.mrf.mxu0
        %v9343 = vadd.f32 %v9003, %v9342
        %v9344 = vpop.f32.mrf.mxu0
        %9345 = vdwg.mxu0
        %9346 = vmatpush.bf16.msra.mxu0 0
        %9347 = vmatpush.bf16.msra.mxu0 0
        %9348 = vmatpush.bf16.msra.mxu0 0
        %9349 = vmatpush.bf16.msra.mxu0 %v9063
        %9350 = vmatpush.bf16.msra.mxu0 %v8935
        %9351 = vmatpush.bf16.msra.mxu0 %v8796
        %9352 = vmatpush.bf16.msra.mxu0 %v8656
        %9353 = vmatpush.bf16.msra.mxu0 %v8516
        %9354 = vmatmul.bf16.gmra.mxu0 %v9006
        %v9355 = vpop.f32.mrf.mxu0
        %v9356 = vadd.f32 %v9003, %v9355
        %v9357 = vpop.f32.mrf.mxu0
        %9358 = vdwg.mxu0
        %9359 = vmatpush.bf16.msra.mxu0 0
        %9360 = vmatpush.bf16.msra.mxu0 0
        %9361 = vmatpush.bf16.msra.mxu0 0
        %9362 = vmatpush.bf16.msra.mxu0 %v9066
        %9363 = vmatpush.bf16.msra.mxu0 %v8939
        %9364 = vmatpush.bf16.msra.mxu0 %v8800
        %9365 = vmatpush.bf16.msra.mxu0 %v8660
        %9366 = vmatpush.bf16.msra.mxu0 %v8520
        %9367 = vmatmul.bf16.gmra.mxu0 %v9006
        %v9368 = vpop.f32.mrf.mxu0
        %v9369 = vadd.f32 %v9003, %v9368
        %v9370 = vpop.f32.mrf.mxu0
        %9371 = vdwg.mxu0
        %9372 = vmatpush.bf16.msra.mxu0 0
        %9373 = vmatpush.bf16.msra.mxu0 0
        %9374 = vmatpush.bf16.msra.mxu0 0
        %9375 = vmatpush.bf16.msra.mxu0 %v9069
        %9376 = vmatpush.bf16.msra.mxu0 %v8943
        %9377 = vmatpush.bf16.msra.mxu0 %v8804
        %9378 = vmatpush.bf16.msra.mxu0 %v8664
        %9379 = vmatpush.bf16.msra.mxu0 %v8524
        %9380 = vmatmul.bf16.gmra.mxu0 %v9006
        %v9381 = vpop.f32.mrf.mxu0
        %v9382 = vadd.f32 %v9003, %v9381
        %v9383 = vpop.f32.mrf.mxu0
        %9384 = vdwg.mxu0
        %9385 = vmatpush.bf16.msra.mxu0 0
        %9386 = vmatpush.bf16.msra.mxu0 0
        %9387 = vmatpush.bf16.msra.mxu0 0
        %9388 = vmatpush.bf16.msra.mxu0 %v9072
        %9389 = vmatpush.bf16.msra.mxu0 %v8947
        %9390 = vmatpush.bf16.msra.mxu0 %v8808
        %9391 = vmatpush.bf16.msra.mxu0 %v8668
        %9392 = vmatpush.bf16.msra.mxu0 %v8528
        %9393 = vmatmul.bf16.gmra.mxu0 %v9006
        %v9394 = vpop.f32.mrf.mxu0
        %v9395 = vadd.f32 %v9003, %v9394
        %v9396 = vpop.f32.mrf.mxu0
        %9397 = vdwg.mxu0
        %9398 = vmatpush.bf16.msra.mxu0 0
        %9399 = vmatpush.bf16.msra.mxu0 0
        %9400 = vmatpush.bf16.msra.mxu0 0
        %9401 = vmatpush.bf16.msra.mxu0 %v9075
        %9402 = vmatpush.bf16.msra.mxu0 %v8951
        %9403 = vmatpush.bf16.msra.mxu0 %v8812
        %9404 = vmatpush.bf16.msra.mxu0 %v8672
        %9405 = vmatpush.bf16.msra.mxu0 %v8532
        %9406 = vmatmul.bf16.gmra.mxu0 %v9006
        %v9407 = vpop.f32.mrf.mxu0
        %v9408 = vadd.f32 %v9003, %v9407
        %v9409 = vpop.f32.mrf.mxu0
        %9410 = vdwg.mxu0
        %9411 = vmatpush.bf16.msra.mxu0 0
        %9412 = vmatpush.bf16.msra.mxu0 0
        %9413 = vmatpush.bf16.msra.mxu0 0
        %9414 = vmatpush.bf16.msra.mxu0 %v9078
        %9415 = vmatpush.bf16.msra.mxu0 %v8955
        %9416 = vmatpush.bf16.msra.mxu0 %v8816
        %9417 = vmatpush.bf16.msra.mxu0 %v8676
        %9418 = vmatpush.bf16.msra.mxu0 %v8536
        %9419 = vmatmul.bf16.gmra.mxu0 %v9006
        %v9420 = vpop.f32.mrf.mxu0
        %v9421 = vadd.f32 %v9003, %v9420
        %v9422 = vpop.f32.mrf.mxu0
        %9423 = vdwg.mxu0
        %9424 = vmatpush.bf16.msra.mxu0 0
        %9425 = vmatpush.bf16.msra.mxu0 0
        %9426 = vmatpush.bf16.msra.mxu0 0
        %9427 = vmatpush.bf16.msra.mxu0 %v9081
        %9428 = vmatpush.bf16.msra.mxu0 %v8959
        %9429 = vmatpush.bf16.msra.mxu0 %v8820
        %9430 = vmatpush.bf16.msra.mxu0 %v8680
        %9431 = vmatpush.bf16.msra.mxu0 %v8540
        %9432 = vmatmul.bf16.gmra.mxu0 %v9006
        %v9433 = vpop.f32.mrf.mxu0
        %v9434 = vadd.f32 %v9003, %v9433
        %v9435 = vpop.f32.mrf.mxu0
        %9436 = vdwg.mxu0
        %9437 = vmatpush.bf16.msra.mxu0 0
        %9438 = vmatpush.bf16.msra.mxu0 0
        %9439 = vmatpush.bf16.msra.mxu0 0
        %9440 = vmatpush.bf16.msra.mxu0 %v9084
        %9441 = vmatpush.bf16.msra.mxu0 %v8963
        %9442 = vmatpush.bf16.msra.mxu0 %v8824
        %9443 = vmatpush.bf16.msra.mxu0 %v8684
        %9444 = vmatpush.bf16.msra.mxu0 %v8544
        %9445 = vmatmul.bf16.gmra.mxu0 %v9006
        %v9446 = vpop.f32.mrf.mxu0
        %v9447 = vadd.f32 %v9003, %v9446
        %v9448 = vpop.f32.mrf.mxu0
        %9449 = vdwg.mxu0
        %9450 = vmatpush.bf16.msra.mxu0 0
        %9451 = vmatpush.bf16.msra.mxu0 0
        %9452 = vmatpush.bf16.msra.mxu0 0
        %9453 = vmatpush.bf16.msra.mxu0 %v9087
        %9454 = vmatpush.bf16.msra.mxu0 %v8967
        %9455 = vmatpush.bf16.msra.mxu0 %v8828
        %9456 = vmatpush.bf16.msra.mxu0 %v8688
        %9457 = vmatpush.bf16.msra.mxu0 %v8548
        %9458 = vmatmul.bf16.gmra.mxu0 %v9006
        %v9459 = vpop.f32.mrf.mxu0
        %v9460 = vadd.f32 %v9003, %v9459
        %v9461 = vpop.f32.mrf.mxu0
        %9462 = vdwg.mxu0
        %9463 = vmatpush.bf16.msra.mxu0 0
        %9464 = vmatpush.bf16.msra.mxu0 0
        %9465 = vmatpush.bf16.msra.mxu0 0
        %9466 = vmatpush.bf16.msra.mxu0 %v9090
        %9467 = vmatpush.bf16.msra.mxu0 %v8971
        %9468 = vmatpush.bf16.msra.mxu0 %v8832
        %9469 = vmatpush.bf16.msra.mxu0 %v8692
        %9470 = vmatpush.bf16.msra.mxu0 %v8552
        %9471 = vmatmul.bf16.gmra.mxu0 %v9006
        %v9472 = vpop.f32.mrf.mxu0
        %v9473 = vadd.f32 %v9003, %v9472
        %v9474 = vpop.f32.mrf.mxu0
        %9475 = vdwg.mxu0
        %9476 = vmatpush.bf16.msra.mxu0 0
        %9477 = vmatpush.bf16.msra.mxu0 0
        %9478 = vmatpush.bf16.msra.mxu0 0
        %9479 = vmatpush.bf16.msra.mxu0 %v9093
        %9480 = vmatpush.bf16.msra.mxu0 %v8975
        %9481 = vmatpush.bf16.msra.mxu0 %v8836
        %9482 = vmatpush.bf16.msra.mxu0 %v8696
        %9483 = vmatpush.bf16.msra.mxu0 %v8556
        %9484 = vmatmul.bf16.gmra.mxu0 %v9006
        %v9485 = vpop.f32.mrf.mxu0
        %v9486 = vadd.f32 %v9003, %v9485
        %v9487 = vpop.f32.mrf.mxu0
        %9488 = vdwg.mxu0
        %9489 = vmatpush.bf16.msra.mxu0 0
        %9490 = vmatpush.bf16.msra.mxu0 0
        %9491 = vmatpush.bf16.msra.mxu0 0
        %9492 = vmatpush.bf16.msra.mxu0 %v9096
        %9493 = vmatpush.bf16.msra.mxu0 %v8979
        %9494 = vmatpush.bf16.msra.mxu0 %v8840
        %9495 = vmatpush.bf16.msra.mxu0 %v8700
        %9496 = vmatpush.bf16.msra.mxu0 %v8560
        %9497 = vmatmul.bf16.gmra.mxu0 %v9006
        %v9498 = vpop.f32.mrf.mxu0
        %v9499 = vadd.f32 %v9003, %v9498
        %v9500 = vpop.f32.mrf.mxu0
        %9501 = vdwg.mxu0
        %9502 = vmatpush.bf16.msra.mxu0 0
        %9503 = vmatpush.bf16.msra.mxu0 0
        %9504 = vmatpush.bf16.msra.mxu0 0
        %9505 = vmatpush.bf16.msra.mxu0 %v9099
        %9506 = vmatpush.bf16.msra.mxu0 %v8983
        %9507 = vmatpush.bf16.msra.mxu0 %v8844
        %9508 = vmatpush.bf16.msra.mxu0 %v8704
        %9509 = vmatpush.bf16.msra.mxu0 %v8564
        %9510 = vmatmul.bf16.gmra.mxu0 %v9006
        %v9511 = vpop.f32.mrf.mxu0
        %v9512 = vadd.f32 %v9003, %v9511
        %v9513 = vpop.f32.mrf.mxu0
        %9514 = vdwg.mxu0
        %9515 = vmatpush.bf16.msra.mxu0 0
        %9516 = vmatpush.bf16.msra.mxu0 0
        %9517 = vmatpush.bf16.msra.mxu0 0
        %9518 = vmatpush.bf16.msra.mxu0 %v9101
        %9519 = vmatpush.bf16.msra.mxu0 %v8986
        %9520 = vmatpush.bf16.msra.mxu0 %v8848
        %9521 = vmatpush.bf16.msra.mxu0 %v8708
        %9522 = vmatpush.bf16.msra.mxu0 %v8568
        %9523 = vmatmul.bf16.gmra.mxu0 %v9006
        %v9524 = vpop.f32.mrf.mxu0
        %v9525 = vadd.f32 %v9003, %v9524
        %v9526 = vpop.f32.mrf.mxu0
        %9527 = vdwg.mxu0
        %9528 = vmatpush.bf16.msra.mxu0 0
        %9529 = vmatpush.bf16.msra.mxu0 0
        %9530 = vmatpush.bf16.msra.mxu0 0
        %9531 = vmatpush.bf16.msra.mxu0 %v9104
        %9532 = vmatpush.bf16.msra.mxu0 %v8989
        %9533 = vmatpush.bf16.msra.mxu0 %v8851
        %9534 = vmatpush.bf16.msra.mxu0 %v8712
        %9535 = vmatpush.bf16.msra.mxu0 %v8572
        %9536 = vmatmul.bf16.gmra.mxu0 %v9006
        %v9537 = vpop.f32.mrf.mxu0
        %v9538 = vadd.f32 %v9003, %v9537
        %v9539 = vpop.f32.mrf.mxu0
        %9540 = vdwg.mxu0
        %9541 = vmatpush.bf16.msra.mxu0 0
        %9542 = vmatpush.bf16.msra.mxu0 0
        %9543 = vmatpush.bf16.msra.mxu0 0
        %9544 = vmatpush.bf16.msra.mxu0 %v9107
        %9545 = vmatpush.bf16.msra.mxu0 %v8992
        %9546 = vmatpush.bf16.msra.mxu0 %v8855
        %9547 = vmatpush.bf16.msra.mxu0 %v8716
        %9548 = vmatpush.bf16.msra.mxu0 %v8576
        %9549 = vmatmul.bf16.gmra.mxu0 %v9006
        %v9550 = vpop.f32.mrf.mxu0
        %v9551 = vadd.f32 %v9003, %v9550
        %v9552 = vpop.f32.mrf.mxu0
        %9553 = vdwg.mxu0
        %9554 = vmatpush.bf16.msra.mxu0 0
        %9555 = vmatpush.bf16.msra.mxu0 0
        %9556 = vmatpush.bf16.msra.mxu0 0
        %9557 = vmatpush.bf16.msra.mxu0 %v9110
        %9558 = vmatpush.bf16.msra.mxu0 %v8996
        %9559 = vmatpush.bf16.msra.mxu0 %v8859
        %9560 = vmatpush.bf16.msra.mxu0 %v8720
        %9561 = vmatpush.bf16.msra.mxu0 %v8580
        %9562 = vmatmul.bf16.gmra.mxu0 %v9006
        %v9563 = vpop.f32.mrf.mxu0
        %v9564 = vadd.f32 %v9003, %v9563
        %v9565 = vpop.f32.mrf.mxu0
        %9566 = vdwg.mxu0
        %v9567 = vmax.f32 %v9122, 0.0
        %v9568 = vmax.f32 %v9135, 0.0
        %v9569 = vmax.f32 %v9148, 0.0
        %v9570 = vmax.f32 %v9161, 0.0
        %v9571 = vmax.f32 %v9174, 0.0
        %v9572 = vmax.f32 %v9187, 0.0
        %v9573 = vmax.f32 %v9200, 0.0
        %v9574 = vmax.f32 %v9213, 0.0
        %v9575 = vmax.f32 %v9226, 0.0
        %v9576 = vmax.f32 %v9239, 0.0
        %v9577 = vmax.f32 %v9252, 0.0
        %v9578 = vmax.f32 %v9265, 0.0
        %v9579 = vmax.f32 %v9278, 0.0
        %v9580 = vmax.f32 %v9291, 0.0
        %v9581 = vmax.f32 %v9304, 0.0
        %v9582 = vmax.f32 %v9317, 0.0
        %v9583 = vmax.f32 %v9330, 0.0
        %v9584 = vmax.f32 %v9343, 0.0
        %v9585 = vmax.f32 %v9356, 0.0
        %v9586 = vmax.f32 %v9369, 0.0
        %v9587 = vmax.f32 %v9382, 0.0
        %v9588 = vmax.f32 %v9395, 0.0
        %v9589 = vmax.f32 %v9408, 0.0
        %v9590 = vmax.f32 %v9421, 0.0
        %v9591 = vmax.f32 %v9434, 0.0
        %v9592 = vmax.f32 %v9447, 0.0
        %v9593 = vmax.f32 %v9460, 0.0
        %v9594 = vmax.f32 %v9473, 0.0
        %v9595 = vmax.f32 %v9486, 0.0
        %v9596 = vmax.f32 %v9499, 0.0
        %v9597 = vmax.f32 %v9512, 0.0
        %v9598 = vmax.f32 %v9525, 0.0
        %v9599 = vmax.f32 %v9538, 0.0
        %v9600 = vmax.f32 %v9551, 0.0
        %v9601 = vmax.f32 %v9564, 0.0
        %9637 = vrot.lane.b32.xlu0 %v9567, 126
        %v9638 = vpop.permute.xlu0 %9637
        %9639 = vrot.lane.b32.xlu0 %v9568, 126
        %v9640 = vpop.permute.xlu0 %9639
        %9641 = vrot.lane.b32.xlu0 %v9569, 126
        %v9642 = vpop.permute.xlu0 %9641
        %9643 = vrot.lane.b32.xlu0 %v9570, 126
        %v9644 = vpop.permute.xlu0 %9643
        %9645 = vrot.lane.b32.xlu0 %v9571, 126
        %v9646 = vpop.permute.xlu0 %9645
        %9647 = vrot.lane.b32.xlu0 %v9572, 126
        %v9648 = vpop.permute.xlu0 %9647
        %9649 = vrot.lane.b32.xlu0 %v9573, 126
        %v9650 = vpop.permute.xlu0 %9649
        %9651 = vrot.lane.b32.xlu0 %v9574, 126
        %v9652 = vpop.permute.xlu0 %9651
        %9653 = vrot.lane.b32.xlu0 %v9575, 126
        %v9654 = vpop.permute.xlu0 %9653
        %9655 = vrot.lane.b32.xlu0 %v9576, 126
        %v9656 = vpop.permute.xlu0 %9655
        %9657 = vrot.lane.b32.xlu0 %v9577, 126
        %v9658 = vpop.permute.xlu0 %9657
        %9659 = vrot.lane.b32.xlu0 %v9578, 126
        %v9660 = vpop.permute.xlu0 %9659
        %9661 = vrot.lane.b32.xlu0 %v9579, 126
        %v9662 = vpop.permute.xlu0 %9661
        %9663 = vrot.lane.b32.xlu0 %v9580, 126
        %v9664 = vpop.permute.xlu0 %9663
        %9665 = vrot.lane.b32.xlu0 %v9581, 126
        %v9666 = vpop.permute.xlu0 %9665
        %9667 = vrot.lane.b32.xlu0 %v9582, 126
        %v9668 = vpop.permute.xlu0 %9667
        %9669 = vrot.lane.b32.xlu0 %v9583, 126
        %v9670 = vpop.permute.xlu0 %9669
        %9671 = vrot.lane.b32.xlu0 %v9584, 126
        %v9672 = vpop.permute.xlu0 %9671
        %9673 = vrot.lane.b32.xlu0 %v9585, 126
        %v9674 = vpop.permute.xlu0 %9673
        %9675 = vrot.lane.b32.xlu0 %v9586, 126
        %v9676 = vpop.permute.xlu0 %9675
        %9677 = vrot.lane.b32.xlu0 %v9587, 126
        %v9678 = vpop.permute.xlu0 %9677
        %9679 = vrot.lane.b32.xlu0 %v9588, 126
        %v9680 = vpop.permute.xlu0 %9679
        %9681 = vrot.lane.b32.xlu0 %v9589, 126
        %v9682 = vpop.permute.xlu0 %9681
        %9683 = vrot.lane.b32.xlu0 %v9590, 126
        %v9684 = vpop.permute.xlu0 %9683
        %9685 = vrot.lane.b32.xlu0 %v9591, 126
        %v9686 = vpop.permute.xlu0 %9685
        %9687 = vrot.lane.b32.xlu0 %v9592, 126
        %v9688 = vpop.permute.xlu0 %9687
        %9689 = vrot.lane.b32.xlu0 %v9593, 126
        %v9690 = vpop.permute.xlu0 %9689
        %9691 = vrot.lane.b32.xlu0 %v9594, 126
        %v9692 = vpop.permute.xlu0 %9691
        %9693 = vrot.lane.b32.xlu0 %v9595, 126
        %v9694 = vpop.permute.xlu0 %9693
        %9695 = vrot.lane.b32.xlu0 %v9596, 126
        %v9696 = vpop.permute.xlu0 %9695
        %9697 = vrot.lane.b32.xlu0 %v9597, 126
        %v9698 = vpop.permute.xlu0 %9697
        %9699 = vrot.lane.b32.xlu0 %v9598, 126
        %v9700 = vpop.permute.xlu0 %9699
        %9701 = vrot.lane.b32.xlu0 %v9599, 126
        %v9702 = vpop.permute.xlu0 %9701
        %9703 = vrot.lane.b32.xlu0 %v9600, 126
        %v9704 = vpop.permute.xlu0 %9703
        %9705 = vrot.lane.b32.xlu0 %v9601, 126
        %v9706 = vpop.permute.xlu0 %9705
        %v9707 = vsel %vm5939, %v9638, %v9640
        %v9708 = vsel %vm5939, %v9640, %v9642
        %v9709 = vsel %vm5939, %v9642, %v9644
        %v9710 = vsel %vm5939, %v9644, %v9646
        %v9711 = vsel %vm5939, %v9646, %v9648
        %v9712 = vsel %vm5939, %v9648, %v9650
        %v9713 = vsel %vm5939, %v9650, %v9652
        %v9714 = vsel %vm5939, %v9652, %v9654
        %v9715 = vsel %vm5939, %v9654, %v9656
        %v9716 = vsel %vm5939, %v9656, %v9658
        %v9717 = vsel %vm5939, %v9658, %v9660
        %v9718 = vsel %vm5939, %v9660, %v9662
        %v9719 = vsel %vm5939, %v9662, %v9664
        %v9720 = vsel %vm5939, %v9664, %v9666
        %v9721 = vsel %vm5939, %v9666, %v9668
        %v9722 = vsel %vm5939, %v9668, %v9670
        %v9723 = vsel %vm5939, %v9670, %v9672
        %v9724 = vsel %vm5939, %v9672, %v9674
        %v9725 = vsel %vm5939, %v9674, %v9676
        %v9726 = vsel %vm5939, %v9676, %v9678
        %v9727 = vsel %vm5939, %v9678, %v9680
        %v9728 = vsel %vm5939, %v9680, %v9682
        %v9729 = vsel %vm5939, %v9682, %v9684
        %v9730 = vsel %vm5939, %v9684, %v9686
        %v9731 = vsel %vm5939, %v9686, %v9688
        %v9732 = vsel %vm5939, %v9688, %v9690
        %v9733 = vsel %vm5939, %v9690, %v9692
        %v9734 = vsel %vm5939, %v9692, %v9694
        %v9735 = vsel %vm5939, %v9694, %v9696
        %v9736 = vsel %vm5939, %v9696, %v9698
        %v9737 = vsel %vm5939, %v9698, %v9700
        %v9738 = vsel %vm5939, %v9700, %v9702
        %v9739 = vsel %vm5939, %v9702, %v9704
        %v9740 = vsel %vm5939, %v9704, %v9706
        %9776 = vrot.lane.b32.xlu0 %v9567, 2
        %v9777 = vpop.permute.xlu0 %9776
        %v9779 = vsel %vm5728, %v9706, %v9777
        %v9780 = vmax.f32 %v9567, %v9707
        %v9781 = vmax.f32 %v9568, %v9708
        %v9782 = vmax.f32 %v9569, %v9709
        %v9783 = vmax.f32 %v9570, %v9710
        %v9784 = vmax.f32 %v9571, %v9711
        %v9785 = vmax.f32 %v9572, %v9712
        %v9786 = vmax.f32 %v9573, %v9713
        %v9787 = vmax.f32 %v9574, %v9714
        %v9788 = vmax.f32 %v9575, %v9715
        %v9789 = vmax.f32 %v9576, %v9716
        %v9790 = vmax.f32 %v9577, %v9717
        %v9791 = vmax.f32 %v9578, %v9718
        %v9792 = vmax.f32 %v9579, %v9719
        %v9793 = vmax.f32 %v9580, %v9720
        %v9794 = vmax.f32 %v9581, %v9721
        %v9795 = vmax.f32 %v9582, %v9722
        %v9796 = vmax.f32 %v9583, %v9723
        %v9797 = vmax.f32 %v9584, %v9724
        %v9798 = vmax.f32 %v9585, %v9725
        %v9799 = vmax.f32 %v9586, %v9726
        %v9800 = vmax.f32 %v9587, %v9727
        %v9801 = vmax.f32 %v9588, %v9728
        %v9802 = vmax.f32 %v9589, %v9729
        %v9803 = vmax.f32 %v9590, %v9730
        %v9804 = vmax.f32 %v9591, %v9731
        %v9805 = vmax.f32 %v9592, %v9732
        %v9806 = vmax.f32 %v9593, %v9733
        %v9807 = vmax.f32 %v9594, %v9734
        %v9808 = vmax.f32 %v9595, %v9735
        %v9809 = vmax.f32 %v9596, %v9736
        %v9810 = vmax.f32 %v9597, %v9737
        %v9811 = vmax.f32 %v9598, %v9738
        %v9812 = vmax.f32 %v9599, %v9739
        %v9813 = vmax.f32 %v9600, %v9740
        %v9814 = vmax.f32 %v9601, %v9779
        %9849 = vrot.lane.b32.xlu0 %v9781, 124
        %v9850 = vpop.permute.xlu0 %9849
        %9851 = vrot.lane.b32.xlu0 %v9782, 124
        %v9852 = vpop.permute.xlu0 %9851
        %9853 = vrot.lane.b32.xlu0 %v9783, 124
        %v9854 = vpop.permute.xlu0 %9853
        %9855 = vrot.lane.b32.xlu0 %v9784, 124
        %v9856 = vpop.permute.xlu0 %9855
        %9857 = vrot.lane.b32.xlu0 %v9785, 124
        %v9858 = vpop.permute.xlu0 %9857
        %9859 = vrot.lane.b32.xlu0 %v9786, 124
        %v9860 = vpop.permute.xlu0 %9859
        %9861 = vrot.lane.b32.xlu0 %v9787, 124
        %v9862 = vpop.permute.xlu0 %9861
        %9863 = vrot.lane.b32.xlu0 %v9788, 124
        %v9864 = vpop.permute.xlu0 %9863
        %9865 = vrot.lane.b32.xlu0 %v9789, 124
        %v9866 = vpop.permute.xlu0 %9865
        %9867 = vrot.lane.b32.xlu0 %v9790, 124
        %v9868 = vpop.permute.xlu0 %9867
        %9869 = vrot.lane.b32.xlu0 %v9791, 124
        %v9870 = vpop.permute.xlu0 %9869
        %9871 = vrot.lane.b32.xlu0 %v9792, 124
        %v9872 = vpop.permute.xlu0 %9871
        %9873 = vrot.lane.b32.xlu0 %v9793, 124
        %v9874 = vpop.permute.xlu0 %9873
        %9875 = vrot.lane.b32.xlu0 %v9794, 124
        %v9876 = vpop.permute.xlu0 %9875
        %9877 = vrot.lane.b32.xlu0 %v9795, 124
        %v9878 = vpop.permute.xlu0 %9877
        %9879 = vrot.lane.b32.xlu0 %v9796, 124
        %v9880 = vpop.permute.xlu0 %9879
        %9881 = vrot.lane.b32.xlu0 %v9797, 124
        %v9882 = vpop.permute.xlu0 %9881
        %9883 = vrot.lane.b32.xlu0 %v9798, 124
        %v9884 = vpop.permute.xlu0 %9883
        %9885 = vrot.lane.b32.xlu0 %v9799, 124
        %v9886 = vpop.permute.xlu0 %9885
        %9887 = vrot.lane.b32.xlu0 %v9800, 124
        %v9888 = vpop.permute.xlu0 %9887
        %9889 = vrot.lane.b32.xlu0 %v9801, 124
        %v9890 = vpop.permute.xlu0 %9889
        %9891 = vrot.lane.b32.xlu0 %v9802, 124
        %v9892 = vpop.permute.xlu0 %9891
        %9893 = vrot.lane.b32.xlu0 %v9803, 124
        %v9894 = vpop.permute.xlu0 %9893
        %9895 = vrot.lane.b32.xlu0 %v9804, 124
        %v9896 = vpop.permute.xlu0 %9895
        %9897 = vrot.lane.b32.xlu0 %v9805, 124
        %v9898 = vpop.permute.xlu0 %9897
        %9899 = vrot.lane.b32.xlu0 %v9806, 124
        %v9900 = vpop.permute.xlu0 %9899
        %9901 = vrot.lane.b32.xlu0 %v9807, 124
        %v9902 = vpop.permute.xlu0 %9901
        %9903 = vrot.lane.b32.xlu0 %v9808, 124
        %v9904 = vpop.permute.xlu0 %9903
        %9905 = vrot.lane.b32.xlu0 %v9809, 124
        %v9906 = vpop.permute.xlu0 %9905
        %9907 = vrot.lane.b32.xlu0 %v9810, 124
        %v9908 = vpop.permute.xlu0 %9907
        %9909 = vrot.lane.b32.xlu0 %v9811, 124
        %v9910 = vpop.permute.xlu0 %9909
        %9911 = vrot.lane.b32.xlu0 %v9812, 124
        %v9912 = vpop.permute.xlu0 %9911
        %9913 = vrot.lane.b32.xlu0 %v9813, 124
        %v9914 = vpop.permute.xlu0 %9913
        %9915 = vrot.lane.b32.xlu0 %v9814, 124
        %v9916 = vpop.permute.xlu0 %9915
        %v9917 = vsel %vm6045, %v9850, %v9852
        %v9918 = vsel %vm6045, %v9852, %v9854
        %v9919 = vsel %vm6045, %v9854, %v9856
        %v9920 = vsel %vm6045, %v9856, %v9858
        %v9921 = vsel %vm6045, %v9858, %v9860
        %v9922 = vsel %vm6045, %v9860, %v9862
        %v9923 = vsel %vm6045, %v9862, %v9864
        %v9924 = vsel %vm6045, %v9864, %v9866
        %v9925 = vsel %vm6045, %v9866, %v9868
        %v9926 = vsel %vm6045, %v9868, %v9870
        %v9927 = vsel %vm6045, %v9870, %v9872
        %v9928 = vsel %vm6045, %v9872, %v9874
        %v9929 = vsel %vm6045, %v9874, %v9876
        %v9930 = vsel %vm6045, %v9876, %v9878
        %v9931 = vsel %vm6045, %v9878, %v9880
        %v9932 = vsel %vm6045, %v9880, %v9882
        %v9933 = vsel %vm6045, %v9882, %v9884
        %v9934 = vsel %vm6045, %v9884, %v9886
        %v9935 = vsel %vm6045, %v9886, %v9888
        %v9936 = vsel %vm6045, %v9888, %v9890
        %v9937 = vsel %vm6045, %v9890, %v9892
        %v9938 = vsel %vm6045, %v9892, %v9894
        %v9939 = vsel %vm6045, %v9894, %v9896
        %v9940 = vsel %vm6045, %v9896, %v9898
        %v9941 = vsel %vm6045, %v9898, %v9900
        %v9942 = vsel %vm6045, %v9900, %v9902
        %v9943 = vsel %vm6045, %v9902, %v9904
        %v9944 = vsel %vm6045, %v9904, %v9906
        %v9945 = vsel %vm6045, %v9906, %v9908
        %v9946 = vsel %vm6045, %v9908, %v9910
        %v9947 = vsel %vm6045, %v9910, %v9912
        %v9948 = vsel %vm6045, %v9912, %v9914
        %v9949 = vsel %vm6045, %v9914, %v9916
        %v9983 = vmax.f32 %v9780, %v9917
        %v9984 = vmax.f32 %v9781, %v9918
        %v9985 = vmax.f32 %v9782, %v9919
        %v9986 = vmax.f32 %v9783, %v9920
        %v9987 = vmax.f32 %v9784, %v9921
        %v9988 = vmax.f32 %v9785, %v9922
        %v9989 = vmax.f32 %v9786, %v9923
        %v9990 = vmax.f32 %v9787, %v9924
        %v9991 = vmax.f32 %v9788, %v9925
        %v9992 = vmax.f32 %v9789, %v9926
        %v9993 = vmax.f32 %v9790, %v9927
        %v9994 = vmax.f32 %v9791, %v9928
        %v9995 = vmax.f32 %v9792, %v9929
        %v9996 = vmax.f32 %v9793, %v9930
        %v9997 = vmax.f32 %v9794, %v9931
        %v9998 = vmax.f32 %v9795, %v9932
        %v9999 = vmax.f32 %v9796, %v9933
        %v10000 = vmax.f32 %v9797, %v9934
        %v10001 = vmax.f32 %v9798, %v9935
        %v10002 = vmax.f32 %v9799, %v9936
        %v10003 = vmax.f32 %v9800, %v9937
        %v10004 = vmax.f32 %v9801, %v9938
        %v10005 = vmax.f32 %v9802, %v9939
        %v10006 = vmax.f32 %v9803, %v9940
        %v10007 = vmax.f32 %v9804, %v9941
        %v10008 = vmax.f32 %v9805, %v9942
        %v10009 = vmax.f32 %v9806, %v9943
        %v10010 = vmax.f32 %v9807, %v9944
        %v10011 = vmax.f32 %v9808, %v9945
        %v10012 = vmax.f32 %v9809, %v9946
        %v10013 = vmax.f32 %v9810, %v9947
        %v10014 = vmax.f32 %v9811, %v9948
        %v10015 = vmax.f32 %v9812, %v9949
        %v10016 = vmax.f32 %v9813, %v9780
        %v10017 = vmax.f32 %v9814, %v9781
        %v10018 = vld [vmem:[%s10] sm:$0xff]
        %v10019 = vld [vmem:[%s10 + $0x8] sm:$0xff]
        %v10020 = vld [vmem:[%s10 + $0x10] sm:$0xff]
        %v10021 = vld [vmem:[%s10 + $0x18] sm:$0xff]
        %v10022 = vld [vmem:[%s10 + $0x20] sm:$0xff]
        %v10023 = vld [vmem:[%s10 + $0x28] sm:$0xff]
        %v10024 = vld [vmem:[%s10 + $0x30] sm:$0xff]
        %v10025 = vld [vmem:[%s10 + $0x38] sm:$0xff]
        %v10026 = vld [vmem:[%s10 + $0x40] sm:$0xff]
        %v10027 = vld [vmem:[%s10 + $0x48] sm:$0xff]
        %v10028 = vld [vmem:[%s10 + $0x50] sm:$0xff]
        %v10029 = vld [vmem:[%s10 + $0x58] sm:$0xff]
        %v10030 = vld [vmem:[%s10 + $0x60] sm:$0xff]
        %v10031 = vld [vmem:[%s10 + $0x68] sm:$0xff]
        %v10032 = vld [vmem:[%s10 + $0x70] sm:$0xff]
        %v10033 = vld [vmem:[%s10 + $0x78] sm:$0xff]
        %v10034 = vld [vmem:[%s10 + $0x80] sm:$0xff]
        %v10035 = vld [vmem:[%s10 + $0x88] sm:$0xf]
        %v10036 = vunpack.c.l.bf16 %v10018
        %v10037 = vunpack.c.h.bf16 %v10018
        %v10038 = vunpack.c.l.bf16 %v10019
        %v10039 = vunpack.c.h.bf16 %v10019
        %v10040 = vunpack.c.l.bf16 %v10020
        %v10041 = vunpack.c.h.bf16 %v10020
        %v10042 = vunpack.c.l.bf16 %v10021
        %v10043 = vunpack.c.h.bf16 %v10021
        %v10044 = vunpack.c.l.bf16 %v10022
        %v10045 = vunpack.c.h.bf16 %v10022
        %v10046 = vunpack.c.l.bf16 %v10023
        %v10047 = vunpack.c.h.bf16 %v10023
        %v10048 = vunpack.c.l.bf16 %v10024
        %v10049 = vunpack.c.h.bf16 %v10024
        %v10050 = vunpack.c.l.bf16 %v10025
        %v10051 = vunpack.c.h.bf16 %v10025
        %v10052 = vunpack.c.l.bf16 %v10026
        %v10053 = vunpack.c.h.bf16 %v10026
        %v10054 = vunpack.c.l.bf16 %v10027
        %v10055 = vunpack.c.h.bf16 %v10027
        %v10056 = vunpack.c.l.bf16 %v10028
        %v10057 = vunpack.c.h.bf16 %v10028
        %v10058 = vunpack.c.l.bf16 %v10029
        %v10059 = vunpack.c.h.bf16 %v10029
        %v10060 = vunpack.c.l.bf16 %v10030
        %v10061 = vunpack.c.h.bf16 %v10030
        %v10062 = vunpack.c.l.bf16 %v10031
        %v10063 = vunpack.c.h.bf16 %v10031
        %v10064 = vunpack.c.l.bf16 %v10032
        %v10065 = vunpack.c.h.bf16 %v10032
        %v10066 = vunpack.c.l.bf16 %v10033
        %v10067 = vunpack.c.h.bf16 %v10033
        %v10068 = vunpack.c.l.bf16 %v10034
        %v10069 = vunpack.c.h.bf16 %v10034
        %v10070 = vunpack.c.l.bf16 %v10035
        %v10071 = vperm.slane %v9983, 0
        %v10072 = vperm.slane %v9984, 0
        %v10073 = vperm.slane %v9985, 0
        %v10074 = vperm.slane %v9986, 0
        %v10075 = vperm.slane %v9987, 0
        %v10076 = vperm.slane %v9988, 0
        %v10077 = vperm.slane %v9989, 0
        %v10078 = vperm.slane %v9990, 0
        %v10079 = vperm.slane %v9991, 0
        %v10080 = vperm.slane %v9992, 0
        %v10081 = vperm.slane %v9993, 0
        %v10082 = vperm.slane %v9994, 0
        %v10083 = vperm.slane %v9995, 0
        %v10084 = vperm.slane %v9996, 0
        %v10085 = vperm.slane %v9997, 0
        %v10086 = vperm.slane %v9998, 0
        %v10087 = vperm.slane %v9999, 0
        %v10088 = vperm.slane %v10000, 0
        %v10089 = vperm.slane %v10001, 0
        %v10090 = vperm.slane %v10002, 0
        %v10091 = vperm.slane %v10003, 0
        %v10092 = vperm.slane %v10004, 0
        %v10093 = vperm.slane %v10005, 0
        %v10094 = vperm.slane %v10006, 0
        %v10095 = vperm.slane %v10007, 0
        %v10096 = vperm.slane %v10008, 0
        %v10097 = vperm.slane %v10009, 0
        %v10098 = vperm.slane %v10010, 0
        %v10099 = vperm.slane %v10011, 0
        %v10100 = vperm.slane %v10012, 0
        %v10101 = vperm.slane %v10013, 0
        %v10102 = vperm.slane %v10014, 0
        %v10103 = vperm.slane %v10015, 0
        %v10104 = vperm.slane %v10016, 0
        %v10105 = vperm.slane %v10017, 0
        %v10106 = vmul.f32 %v10036, %v10071
        %v10107 = vmul.f32 %v10037, %v10072
        %v10108 = vmul.f32 %v10038, %v10073
        %v10109 = vmul.f32 %v10039, %v10074
        %v10110 = vmul.f32 %v10040, %v10075
        %v10111 = vmul.f32 %v10041, %v10076
        %v10112 = vmul.f32 %v10042, %v10077
        %v10113 = vmul.f32 %v10043, %v10078
        %v10114 = vmul.f32 %v10044, %v10079
        %v10115 = vmul.f32 %v10045, %v10080
        %v10116 = vmul.f32 %v10046, %v10081
        %v10117 = vmul.f32 %v10047, %v10082
        %v10118 = vmul.f32 %v10048, %v10083
        %v10119 = vmul.f32 %v10049, %v10084
        %v10120 = vmul.f32 %v10050, %v10085
        %v10121 = vmul.f32 %v10051, %v10086
        %v10122 = vmul.f32 %v10052, %v10087
        %v10123 = vmul.f32 %v10053, %v10088
        %v10124 = vmul.f32 %v10054, %v10089
        %v10125 = vmul.f32 %v10055, %v10090
        %v10126 = vmul.f32 %v10056, %v10091
        %v10127 = vmul.f32 %v10057, %v10092
        %v10128 = vmul.f32 %v10058, %v10093
        %v10129 = vmul.f32 %v10059, %v10094
        %v10130 = vmul.f32 %v10060, %v10095
        %v10131 = vmul.f32 %v10061, %v10096
        %v10132 = vmul.f32 %v10062, %v10097
        %v10133 = vmul.f32 %v10063, %v10098
        %v10134 = vmul.f32 %v10064, %v10099
        %v10135 = vmul.f32 %v10065, %v10100
        %v10136 = vmul.f32 %v10066, %v10101
        %v10137 = vmul.f32 %v10067, %v10102
        %v10138 = vmul.f32 %v10068, %v10103
        %v10139 = vmul.f32 %v10069, %v10104
        %v10140 = vmul.f32 %v10070, %v10105
        %s10141 = scalar_lea.vmem %s10, 140
        %v10142 = vld [vmem:[%s10141] sm:$0xff]
        %v10143 = vld [vmem:[%s10141 + $0x8] sm:$0xff]
        %v10144 = vld [vmem:[%s10141 + $0x10] sm:$0xff]
        %v10145 = vld [vmem:[%s10141 + $0x18] sm:$0xff]
        %v10146 = vld [vmem:[%s10141 + $0x20] sm:$0xff]
        %v10147 = vld [vmem:[%s10141 + $0x28] sm:$0xff]
        %v10148 = vld [vmem:[%s10141 + $0x30] sm:$0xff]
        %v10149 = vld [vmem:[%s10141 + $0x38] sm:$0xff]
        %v10150 = vld [vmem:[%s10141 + $0x40] sm:$0xff]
        %v10151 = vld [vmem:[%s10141 + $0x48] sm:$0xff]
        %v10152 = vld [vmem:[%s10141 + $0x50] sm:$0xff]
        %v10153 = vld [vmem:[%s10141 + $0x58] sm:$0xff]
        %v10154 = vld [vmem:[%s10141 + $0x60] sm:$0xff]
        %v10155 = vld [vmem:[%s10141 + $0x68] sm:$0xff]
        %v10156 = vld [vmem:[%s10141 + $0x70] sm:$0xff]
        %v10157 = vld [vmem:[%s10141 + $0x78] sm:$0xff]
        %v10158 = vld [vmem:[%s10141 + $0x80] sm:$0xff]
        %v10159 = vld [vmem:[%s10141 + $0x88] sm:$0xf]
        %v10160 = vunpack.c.l.bf16 %v10142
        %v10161 = vunpack.c.h.bf16 %v10142
        %v10162 = vunpack.c.l.bf16 %v10143
        %v10163 = vunpack.c.h.bf16 %v10143
        %v10164 = vunpack.c.l.bf16 %v10144
        %v10165 = vunpack.c.h.bf16 %v10144
        %v10166 = vunpack.c.l.bf16 %v10145
        %v10167 = vunpack.c.h.bf16 %v10145
        %v10168 = vunpack.c.l.bf16 %v10146
        %v10169 = vunpack.c.h.bf16 %v10146
        %v10170 = vunpack.c.l.bf16 %v10147
        %v10171 = vunpack.c.h.bf16 %v10147
        %v10172 = vunpack.c.l.bf16 %v10148
        %v10173 = vunpack.c.h.bf16 %v10148
        %v10174 = vunpack.c.l.bf16 %v10149
        %v10175 = vunpack.c.h.bf16 %v10149
        %v10176 = vunpack.c.l.bf16 %v10150
        %v10177 = vunpack.c.h.bf16 %v10150
        %v10178 = vunpack.c.l.bf16 %v10151
        %v10179 = vunpack.c.h.bf16 %v10151
        %v10180 = vunpack.c.l.bf16 %v10152
        %v10181 = vunpack.c.h.bf16 %v10152
        %v10182 = vunpack.c.l.bf16 %v10153
        %v10183 = vunpack.c.h.bf16 %v10153
        %v10184 = vunpack.c.l.bf16 %v10154
        %v10185 = vunpack.c.h.bf16 %v10154
        %v10186 = vunpack.c.l.bf16 %v10155
        %v10187 = vunpack.c.h.bf16 %v10155
        %v10188 = vunpack.c.l.bf16 %v10156
        %v10189 = vunpack.c.h.bf16 %v10156
        %v10190 = vunpack.c.l.bf16 %v10157
        %v10191 = vunpack.c.h.bf16 %v10157
        %v10192 = vunpack.c.l.bf16 %v10158
        %v10193 = vunpack.c.h.bf16 %v10158
        %v10194 = vunpack.c.l.bf16 %v10159
        %v10195 = vperm.slane %v9983, 1
        %v10196 = vperm.slane %v9984, 1
        %v10197 = vperm.slane %v9985, 1
        %v10198 = vperm.slane %v9986, 1
        %v10199 = vperm.slane %v9987, 1
        %v10200 = vperm.slane %v9988, 1
        %v10201 = vperm.slane %v9989, 1
        %v10202 = vperm.slane %v9990, 1
        %v10203 = vperm.slane %v9991, 1
        %v10204 = vperm.slane %v9992, 1
        %v10205 = vperm.slane %v9993, 1
        %v10206 = vperm.slane %v9994, 1
        %v10207 = vperm.slane %v9995, 1
        %v10208 = vperm.slane %v9996, 1
        %v10209 = vperm.slane %v9997, 1
        %v10210 = vperm.slane %v9998, 1
        %v10211 = vperm.slane %v9999, 1
        %v10212 = vperm.slane %v10000, 1
        %v10213 = vperm.slane %v10001, 1
        %v10214 = vperm.slane %v10002, 1
        %v10215 = vperm.slane %v10003, 1
        %v10216 = vperm.slane %v10004, 1
        %v10217 = vperm.slane %v10005, 1
        %v10218 = vperm.slane %v10006, 1
        %v10219 = vperm.slane %v10007, 1
        %v10220 = vperm.slane %v10008, 1
        %v10221 = vperm.slane %v10009, 1
        %v10222 = vperm.slane %v10010, 1
        %v10223 = vperm.slane %v10011, 1
        %v10224 = vperm.slane %v10012, 1
        %v10225 = vperm.slane %v10013, 1
        %v10226 = vperm.slane %v10014, 1
        %v10227 = vperm.slane %v10015, 1
        %v10228 = vperm.slane %v10016, 1
        %v10229 = vperm.slane %v10017, 1
        %v10230 = vmul.f32 %v10160, %v10195
        %v10231 = vmul.f32 %v10161, %v10196
        %v10232 = vmul.f32 %v10162, %v10197
        %v10233 = vmul.f32 %v10163, %v10198
        %v10234 = vmul.f32 %v10164, %v10199
        %v10235 = vmul.f32 %v10165, %v10200
        %v10236 = vmul.f32 %v10166, %v10201
        %v10237 = vmul.f32 %v10167, %v10202
        %v10238 = vmul.f32 %v10168, %v10203
        %v10239 = vmul.f32 %v10169, %v10204
        %v10240 = vmul.f32 %v10170, %v10205
        %v10241 = vmul.f32 %v10171, %v10206
        %v10242 = vmul.f32 %v10172, %v10207
        %v10243 = vmul.f32 %v10173, %v10208
        %v10244 = vmul.f32 %v10174, %v10209
        %v10245 = vmul.f32 %v10175, %v10210
        %v10246 = vmul.f32 %v10176, %v10211
        %v10247 = vmul.f32 %v10177, %v10212
        %v10248 = vmul.f32 %v10178, %v10213
        %v10249 = vmul.f32 %v10179, %v10214
        %v10250 = vmul.f32 %v10180, %v10215
        %v10251 = vmul.f32 %v10181, %v10216
        %v10252 = vmul.f32 %v10182, %v10217
        %v10253 = vmul.f32 %v10183, %v10218
        %v10254 = vmul.f32 %v10184, %v10219
        %v10255 = vmul.f32 %v10185, %v10220
        %v10256 = vmul.f32 %v10186, %v10221
        %v10257 = vmul.f32 %v10187, %v10222
        %v10258 = vmul.f32 %v10188, %v10223
        %v10259 = vmul.f32 %v10189, %v10224
        %v10260 = vmul.f32 %v10190, %v10225
        %v10261 = vmul.f32 %v10191, %v10226
        %v10262 = vmul.f32 %v10192, %v10227
        %v10263 = vmul.f32 %v10193, %v10228
        %v10264 = vmul.f32 %v10194, %v10229
        %v10265 = vadd.f32 %v10106, %v10230
        %v10266 = vadd.f32 %v10107, %v10231
        %v10267 = vadd.f32 %v10108, %v10232
        %v10268 = vadd.f32 %v10109, %v10233
        %v10269 = vadd.f32 %v10110, %v10234
        %v10270 = vadd.f32 %v10111, %v10235
        %v10271 = vadd.f32 %v10112, %v10236
        %v10272 = vadd.f32 %v10113, %v10237
        %v10273 = vadd.f32 %v10114, %v10238
        %v10274 = vadd.f32 %v10115, %v10239
        %v10275 = vadd.f32 %v10116, %v10240
        %v10276 = vadd.f32 %v10117, %v10241
        %v10277 = vadd.f32 %v10118, %v10242
        %v10278 = vadd.f32 %v10119, %v10243
        %v10279 = vadd.f32 %v10120, %v10244
        %v10280 = vadd.f32 %v10121, %v10245
        %v10281 = vadd.f32 %v10122, %v10246
        %v10282 = vadd.f32 %v10123, %v10247
        %v10283 = vadd.f32 %v10124, %v10248
        %v10284 = vadd.f32 %v10125, %v10249
        %v10285 = vadd.f32 %v10126, %v10250
        %v10286 = vadd.f32 %v10127, %v10251
        %v10287 = vadd.f32 %v10128, %v10252
        %v10288 = vadd.f32 %v10129, %v10253
        %v10289 = vadd.f32 %v10130, %v10254
        %v10290 = vadd.f32 %v10131, %v10255
        %v10291 = vadd.f32 %v10132, %v10256
        %v10292 = vadd.f32 %v10133, %v10257
        %v10293 = vadd.f32 %v10134, %v10258
        %v10294 = vadd.f32 %v10135, %v10259
        %v10295 = vadd.f32 %v10136, %v10260
        %v10296 = vadd.f32 %v10137, %v10261
        %v10297 = vadd.f32 %v10138, %v10262
        %v10298 = vadd.f32 %v10139, %v10263
        %v10299 = vadd.f32 %v10140, %v10264
        %s10300 = scalar_lea.vmem %s10, 280
        %v10301 = vld [vmem:[%s10300] sm:$0xff]
        %v10302 = vld [vmem:[%s10300 + $0x8] sm:$0xff]
        %v10303 = vld [vmem:[%s10300 + $0x10] sm:$0xff]
        %v10304 = vld [vmem:[%s10300 + $0x18] sm:$0xff]
        %v10305 = vld [vmem:[%s10300 + $0x20] sm:$0xff]
        %v10306 = vld [vmem:[%s10300 + $0x28] sm:$0xff]
        %v10307 = vld [vmem:[%s10300 + $0x30] sm:$0xff]
        %v10308 = vld [vmem:[%s10300 + $0x38] sm:$0xff]
        %v10309 = vld [vmem:[%s10300 + $0x40] sm:$0xff]
        %v10310 = vld [vmem:[%s10300 + $0x48] sm:$0xff]
        %v10311 = vld [vmem:[%s10300 + $0x50] sm:$0xff]
        %v10312 = vld [vmem:[%s10300 + $0x58] sm:$0xff]
        %v10313 = vld [vmem:[%s10300 + $0x60] sm:$0xff]
        %v10314 = vld [vmem:[%s10300 + $0x68] sm:$0xff]
        %v10315 = vld [vmem:[%s10300 + $0x70] sm:$0xff]
        %v10316 = vld [vmem:[%s10300 + $0x78] sm:$0xff]
        %v10317 = vld [vmem:[%s10300 + $0x80] sm:$0xff]
        %v10318 = vld [vmem:[%s10300 + $0x88] sm:$0xf]
        %v10319 = vunpack.c.l.bf16 %v10301
        %v10320 = vunpack.c.h.bf16 %v10301
        %v10321 = vunpack.c.l.bf16 %v10302
        %v10322 = vunpack.c.h.bf16 %v10302
        %v10323 = vunpack.c.l.bf16 %v10303
        %v10324 = vunpack.c.h.bf16 %v10303
        %v10325 = vunpack.c.l.bf16 %v10304
        %v10326 = vunpack.c.h.bf16 %v10304
        %v10327 = vunpack.c.l.bf16 %v10305
        %v10328 = vunpack.c.h.bf16 %v10305
        %v10329 = vunpack.c.l.bf16 %v10306
        %v10330 = vunpack.c.h.bf16 %v10306
        %v10331 = vunpack.c.l.bf16 %v10307
        %v10332 = vunpack.c.h.bf16 %v10307
        %v10333 = vunpack.c.l.bf16 %v10308
        %v10334 = vunpack.c.h.bf16 %v10308
        %v10335 = vunpack.c.l.bf16 %v10309
        %v10336 = vunpack.c.h.bf16 %v10309
        %v10337 = vunpack.c.l.bf16 %v10310
        %v10338 = vunpack.c.h.bf16 %v10310
        %v10339 = vunpack.c.l.bf16 %v10311
        %v10340 = vunpack.c.h.bf16 %v10311
        %v10341 = vunpack.c.l.bf16 %v10312
        %v10342 = vunpack.c.h.bf16 %v10312
        %v10343 = vunpack.c.l.bf16 %v10313
        %v10344 = vunpack.c.h.bf16 %v10313
        %v10345 = vunpack.c.l.bf16 %v10314
        %v10346 = vunpack.c.h.bf16 %v10314
        %v10347 = vunpack.c.l.bf16 %v10315
        %v10348 = vunpack.c.h.bf16 %v10315
        %v10349 = vunpack.c.l.bf16 %v10316
        %v10350 = vunpack.c.h.bf16 %v10316
        %v10351 = vunpack.c.l.bf16 %v10317
        %v10352 = vunpack.c.h.bf16 %v10317
        %v10353 = vunpack.c.l.bf16 %v10318
        %v10354 = vperm.slane %v9983, 2
        %v10355 = vperm.slane %v9984, 2
        %v10356 = vperm.slane %v9985, 2
        %v10357 = vperm.slane %v9986, 2
        %v10358 = vperm.slane %v9987, 2
        %v10359 = vperm.slane %v9988, 2
        %v10360 = vperm.slane %v9989, 2
        %v10361 = vperm.slane %v9990, 2
        %v10362 = vperm.slane %v9991, 2
        %v10363 = vperm.slane %v9992, 2
        %v10364 = vperm.slane %v9993, 2
        %v10365 = vperm.slane %v9994, 2
        %v10366 = vperm.slane %v9995, 2
        %v10367 = vperm.slane %v9996, 2
        %v10368 = vperm.slane %v9997, 2
        %v10369 = vperm.slane %v9998, 2
        %v10370 = vperm.slane %v9999, 2
        %v10371 = vperm.slane %v10000, 2
        %v10372 = vperm.slane %v10001, 2
        %v10373 = vperm.slane %v10002, 2
        %v10374 = vperm.slane %v10003, 2
        %v10375 = vperm.slane %v10004, 2
        %v10376 = vperm.slane %v10005, 2
        %v10377 = vperm.slane %v10006, 2
        %v10378 = vperm.slane %v10007, 2
        %v10379 = vperm.slane %v10008, 2
        %v10380 = vperm.slane %v10009, 2
        %v10381 = vperm.slane %v10010, 2
        %v10382 = vperm.slane %v10011, 2
        %v10383 = vperm.slane %v10012, 2
        %v10384 = vperm.slane %v10013, 2
        %v10385 = vperm.slane %v10014, 2
        %v10386 = vperm.slane %v10015, 2
        %v10387 = vperm.slane %v10016, 2
        %v10388 = vperm.slane %v10017, 2
        %v10389 = vmul.f32 %v10319, %v10354
        %v10390 = vmul.f32 %v10320, %v10355
        %v10391 = vmul.f32 %v10321, %v10356
        %v10392 = vmul.f32 %v10322, %v10357
        %v10393 = vmul.f32 %v10323, %v10358
        %v10394 = vmul.f32 %v10324, %v10359
        %v10395 = vmul.f32 %v10325, %v10360
        %v10396 = vmul.f32 %v10326, %v10361
        %v10397 = vmul.f32 %v10327, %v10362
        %v10398 = vmul.f32 %v10328, %v10363
        %v10399 = vmul.f32 %v10329, %v10364
        %v10400 = vmul.f32 %v10330, %v10365
        %v10401 = vmul.f32 %v10331, %v10366
        %v10402 = vmul.f32 %v10332, %v10367
        %v10403 = vmul.f32 %v10333, %v10368
        %v10404 = vmul.f32 %v10334, %v10369
        %v10405 = vmul.f32 %v10335, %v10370
        %v10406 = vmul.f32 %v10336, %v10371
        %v10407 = vmul.f32 %v10337, %v10372
        %v10408 = vmul.f32 %v10338, %v10373
        %v10409 = vmul.f32 %v10339, %v10374
        %v10410 = vmul.f32 %v10340, %v10375
        %v10411 = vmul.f32 %v10341, %v10376
        %v10412 = vmul.f32 %v10342, %v10377
        %v10413 = vmul.f32 %v10343, %v10378
        %v10414 = vmul.f32 %v10344, %v10379
        %v10415 = vmul.f32 %v10345, %v10380
        %v10416 = vmul.f32 %v10346, %v10381
        %v10417 = vmul.f32 %v10347, %v10382
        %v10418 = vmul.f32 %v10348, %v10383
        %v10419 = vmul.f32 %v10349, %v10384
        %v10420 = vmul.f32 %v10350, %v10385
        %v10421 = vmul.f32 %v10351, %v10386
        %v10422 = vmul.f32 %v10352, %v10387
        %v10423 = vmul.f32 %v10353, %v10388
        %v10424 = vadd.f32 %v10265, %v10389
        %v10425 = vadd.f32 %v10266, %v10390
        %v10426 = vadd.f32 %v10267, %v10391
        %v10427 = vadd.f32 %v10268, %v10392
        %v10428 = vadd.f32 %v10269, %v10393
        %v10429 = vadd.f32 %v10270, %v10394
        %v10430 = vadd.f32 %v10271, %v10395
        %v10431 = vadd.f32 %v10272, %v10396
        %v10432 = vadd.f32 %v10273, %v10397
        %v10433 = vadd.f32 %v10274, %v10398
        %v10434 = vadd.f32 %v10275, %v10399
        %v10435 = vadd.f32 %v10276, %v10400
        %v10436 = vadd.f32 %v10277, %v10401
        %v10437 = vadd.f32 %v10278, %v10402
        %v10438 = vadd.f32 %v10279, %v10403
        %v10439 = vadd.f32 %v10280, %v10404
        %v10440 = vadd.f32 %v10281, %v10405
        %v10441 = vadd.f32 %v10282, %v10406
        %v10442 = vadd.f32 %v10283, %v10407
        %v10443 = vadd.f32 %v10284, %v10408
        %v10444 = vadd.f32 %v10285, %v10409
        %v10445 = vadd.f32 %v10286, %v10410
        %v10446 = vadd.f32 %v10287, %v10411
        %v10447 = vadd.f32 %v10288, %v10412
        %v10448 = vadd.f32 %v10289, %v10413
        %v10449 = vadd.f32 %v10290, %v10414
        %v10450 = vadd.f32 %v10291, %v10415
        %v10451 = vadd.f32 %v10292, %v10416
        %v10452 = vadd.f32 %v10293, %v10417
        %v10453 = vadd.f32 %v10294, %v10418
        %v10454 = vadd.f32 %v10295, %v10419
        %v10455 = vadd.f32 %v10296, %v10420
        %v10456 = vadd.f32 %v10297, %v10421
        %v10457 = vadd.f32 %v10298, %v10422
        %v10458 = vadd.f32 %v10299, %v10423
        %s10459 = scalar_lea.vmem %s10, 420
        %v10460 = vld [vmem:[%s10459] sm:$0xff]
        %v10461 = vld [vmem:[%s10459 + $0x8] sm:$0xff]
        %v10462 = vld [vmem:[%s10459 + $0x10] sm:$0xff]
        %v10463 = vld [vmem:[%s10459 + $0x18] sm:$0xff]
        %v10464 = vld [vmem:[%s10459 + $0x20] sm:$0xff]
        %v10465 = vld [vmem:[%s10459 + $0x28] sm:$0xff]
        %v10466 = vld [vmem:[%s10459 + $0x30] sm:$0xff]
        %v10467 = vld [vmem:[%s10459 + $0x38] sm:$0xff]
        %v10468 = vld [vmem:[%s10459 + $0x40] sm:$0xff]
        %v10469 = vld [vmem:[%s10459 + $0x48] sm:$0xff]
        %v10470 = vld [vmem:[%s10459 + $0x50] sm:$0xff]
        %v10471 = vld [vmem:[%s10459 + $0x58] sm:$0xff]
        %v10472 = vld [vmem:[%s10459 + $0x60] sm:$0xff]
        %v10473 = vld [vmem:[%s10459 + $0x68] sm:$0xff]
        %v10474 = vld [vmem:[%s10459 + $0x70] sm:$0xff]
        %v10475 = vld [vmem:[%s10459 + $0x78] sm:$0xff]
        %v10476 = vld [vmem:[%s10459 + $0x80] sm:$0xff]
        %v10477 = vld [vmem:[%s10459 + $0x88] sm:$0xf]
        %v10478 = vunpack.c.l.bf16 %v10460
        %v10479 = vunpack.c.h.bf16 %v10460
        %v10480 = vunpack.c.l.bf16 %v10461
        %v10481 = vunpack.c.h.bf16 %v10461
        %v10482 = vunpack.c.l.bf16 %v10462
        %v10483 = vunpack.c.h.bf16 %v10462
        %v10484 = vunpack.c.l.bf16 %v10463
        %v10485 = vunpack.c.h.bf16 %v10463
        %v10486 = vunpack.c.l.bf16 %v10464
        %v10487 = vunpack.c.h.bf16 %v10464
        %v10488 = vunpack.c.l.bf16 %v10465
        %v10489 = vunpack.c.h.bf16 %v10465
        %v10490 = vunpack.c.l.bf16 %v10466
        %v10491 = vunpack.c.h.bf16 %v10466
        %v10492 = vunpack.c.l.bf16 %v10467
        %v10493 = vunpack.c.h.bf16 %v10467
        %v10494 = vunpack.c.l.bf16 %v10468
        %v10495 = vunpack.c.h.bf16 %v10468
        %v10496 = vunpack.c.l.bf16 %v10469
        %v10497 = vunpack.c.h.bf16 %v10469
        %v10498 = vunpack.c.l.bf16 %v10470
        %v10499 = vunpack.c.h.bf16 %v10470
        %v10500 = vunpack.c.l.bf16 %v10471
        %v10501 = vunpack.c.h.bf16 %v10471
        %v10502 = vunpack.c.l.bf16 %v10472
        %v10503 = vunpack.c.h.bf16 %v10472
        %v10504 = vunpack.c.l.bf16 %v10473
        %v10505 = vunpack.c.h.bf16 %v10473
        %v10506 = vunpack.c.l.bf16 %v10474
        %v10507 = vunpack.c.h.bf16 %v10474
        %v10508 = vunpack.c.l.bf16 %v10475
        %v10509 = vunpack.c.h.bf16 %v10475
        %v10510 = vunpack.c.l.bf16 %v10476
        %v10511 = vunpack.c.h.bf16 %v10476
        %v10512 = vunpack.c.l.bf16 %v10477
        %v10513 = vperm.slane %v9983, 3
        %v10514 = vperm.slane %v9984, 3
        %v10515 = vperm.slane %v9985, 3
        %v10516 = vperm.slane %v9986, 3
        %v10517 = vperm.slane %v9987, 3
        %v10518 = vperm.slane %v9988, 3
        %v10519 = vperm.slane %v9989, 3
        %v10520 = vperm.slane %v9990, 3
        %v10521 = vperm.slane %v9991, 3
        %v10522 = vperm.slane %v9992, 3
        %v10523 = vperm.slane %v9993, 3
        %v10524 = vperm.slane %v9994, 3
        %v10525 = vperm.slane %v9995, 3
        %v10526 = vperm.slane %v9996, 3
        %v10527 = vperm.slane %v9997, 3
        %v10528 = vperm.slane %v9998, 3
        %v10529 = vperm.slane %v9999, 3
        %v10530 = vperm.slane %v10000, 3
        %v10531 = vperm.slane %v10001, 3
        %v10532 = vperm.slane %v10002, 3
        %v10533 = vperm.slane %v10003, 3
        %v10534 = vperm.slane %v10004, 3
        %v10535 = vperm.slane %v10005, 3
        %v10536 = vperm.slane %v10006, 3
        %v10537 = vperm.slane %v10007, 3
        %v10538 = vperm.slane %v10008, 3
        %v10539 = vperm.slane %v10009, 3
        %v10540 = vperm.slane %v10010, 3
        %v10541 = vperm.slane %v10011, 3
        %v10542 = vperm.slane %v10012, 3
        %v10543 = vperm.slane %v10013, 3
        %v10544 = vperm.slane %v10014, 3
        %v10545 = vperm.slane %v10015, 3
        %v10546 = vperm.slane %v10016, 3
        %v10547 = vperm.slane %v10017, 3
        %v10548 = vmul.f32 %v10478, %v10513
        %v10549 = vmul.f32 %v10479, %v10514
        %v10550 = vmul.f32 %v10480, %v10515
        %v10551 = vmul.f32 %v10481, %v10516
        %v10552 = vmul.f32 %v10482, %v10517
        %v10553 = vmul.f32 %v10483, %v10518
        %v10554 = vmul.f32 %v10484, %v10519
        %v10555 = vmul.f32 %v10485, %v10520
        %v10556 = vmul.f32 %v10486, %v10521
        %v10557 = vmul.f32 %v10487, %v10522
        %v10558 = vmul.f32 %v10488, %v10523
        %v10559 = vmul.f32 %v10489, %v10524
        %v10560 = vmul.f32 %v10490, %v10525
        %v10561 = vmul.f32 %v10491, %v10526
        %v10562 = vmul.f32 %v10492, %v10527
        %v10563 = vmul.f32 %v10493, %v10528
        %v10564 = vmul.f32 %v10494, %v10529
        %v10565 = vmul.f32 %v10495, %v10530
        %v10566 = vmul.f32 %v10496, %v10531
        %v10567 = vmul.f32 %v10497, %v10532
        %v10568 = vmul.f32 %v10498, %v10533
        %v10569 = vmul.f32 %v10499, %v10534
        %v10570 = vmul.f32 %v10500, %v10535
        %v10571 = vmul.f32 %v10501, %v10536
        %v10572 = vmul.f32 %v10502, %v10537
        %v10573 = vmul.f32 %v10503, %v10538
        %v10574 = vmul.f32 %v10504, %v10539
        %v10575 = vmul.f32 %v10505, %v10540
        %v10576 = vmul.f32 %v10506, %v10541
        %v10577 = vmul.f32 %v10507, %v10542
        %v10578 = vmul.f32 %v10508, %v10543
        %v10579 = vmul.f32 %v10509, %v10544
        %v10580 = vmul.f32 %v10510, %v10545
        %v10581 = vmul.f32 %v10511, %v10546
        %v10582 = vmul.f32 %v10512, %v10547
        %v10583 = vadd.f32 %v10424, %v10548
        %v10584 = vadd.f32 %v10425, %v10549
        %v10585 = vadd.f32 %v10426, %v10550
        %v10586 = vadd.f32 %v10427, %v10551
        %v10587 = vadd.f32 %v10428, %v10552
        %v10588 = vadd.f32 %v10429, %v10553
        %v10589 = vadd.f32 %v10430, %v10554
        %v10590 = vadd.f32 %v10431, %v10555
        %v10591 = vadd.f32 %v10432, %v10556
        %v10592 = vadd.f32 %v10433, %v10557
        %v10593 = vadd.f32 %v10434, %v10558
        %v10594 = vadd.f32 %v10435, %v10559
        %v10595 = vadd.f32 %v10436, %v10560
        %v10596 = vadd.f32 %v10437, %v10561
        %v10597 = vadd.f32 %v10438, %v10562
        %v10598 = vadd.f32 %v10439, %v10563
        %v10599 = vadd.f32 %v10440, %v10564
        %v10600 = vadd.f32 %v10441, %v10565
        %v10601 = vadd.f32 %v10442, %v10566
        %v10602 = vadd.f32 %v10443, %v10567
        %v10603 = vadd.f32 %v10444, %v10568
        %v10604 = vadd.f32 %v10445, %v10569
        %v10605 = vadd.f32 %v10446, %v10570
        %v10606 = vadd.f32 %v10447, %v10571
        %v10607 = vadd.f32 %v10448, %v10572
        %v10608 = vadd.f32 %v10449, %v10573
        %v10609 = vadd.f32 %v10450, %v10574
        %v10610 = vadd.f32 %v10451, %v10575
        %v10611 = vadd.f32 %v10452, %v10576
        %v10612 = vadd.f32 %v10453, %v10577
        %v10613 = vadd.f32 %v10454, %v10578
        %v10614 = vadd.f32 %v10455, %v10579
        %v10615 = vadd.f32 %v10456, %v10580
        %v10616 = vadd.f32 %v10457, %v10581
        %v10617 = vadd.f32 %v10458, %v10582
        %s10618 = scalar_lea.vmem %s10, 560
        %v10619 = vld [vmem:[%s10618] sm:$0xff]
        %v10620 = vld [vmem:[%s10618 + $0x8] sm:$0xff]
        %v10621 = vld [vmem:[%s10618 + $0x10] sm:$0xff]
        %v10622 = vld [vmem:[%s10618 + $0x18] sm:$0xff]
        %v10623 = vld [vmem:[%s10618 + $0x20] sm:$0xff]
        %v10624 = vld [vmem:[%s10618 + $0x28] sm:$0xff]
        %v10625 = vld [vmem:[%s10618 + $0x30] sm:$0xff]
        %v10626 = vld [vmem:[%s10618 + $0x38] sm:$0xff]
        %v10627 = vld [vmem:[%s10618 + $0x40] sm:$0xff]
        %v10628 = vld [vmem:[%s10618 + $0x48] sm:$0xff]
        %v10629 = vld [vmem:[%s10618 + $0x50] sm:$0xff]
        %v10630 = vld [vmem:[%s10618 + $0x58] sm:$0xff]
        %v10631 = vld [vmem:[%s10618 + $0x60] sm:$0xff]
        %v10632 = vld [vmem:[%s10618 + $0x68] sm:$0xff]
        %v10633 = vld [vmem:[%s10618 + $0x70] sm:$0xff]
        %v10634 = vld [vmem:[%s10618 + $0x78] sm:$0xff]
        %v10635 = vld [vmem:[%s10618 + $0x80] sm:$0xff]
        %v10636 = vld [vmem:[%s10618 + $0x88] sm:$0xf]
        %v10637 = vunpack.c.l.bf16 %v10619
        %v10638 = vunpack.c.h.bf16 %v10619
        %v10639 = vunpack.c.l.bf16 %v10620
        %v10640 = vunpack.c.h.bf16 %v10620
        %v10641 = vunpack.c.l.bf16 %v10621
        %v10642 = vunpack.c.h.bf16 %v10621
        %v10643 = vunpack.c.l.bf16 %v10622
        %v10644 = vunpack.c.h.bf16 %v10622
        %v10645 = vunpack.c.l.bf16 %v10623
        %v10646 = vunpack.c.h.bf16 %v10623
        %v10647 = vunpack.c.l.bf16 %v10624
        %v10648 = vunpack.c.h.bf16 %v10624
        %v10649 = vunpack.c.l.bf16 %v10625
        %v10650 = vunpack.c.h.bf16 %v10625
        %v10651 = vunpack.c.l.bf16 %v10626
        %v10652 = vunpack.c.h.bf16 %v10626
        %v10653 = vunpack.c.l.bf16 %v10627
        %v10654 = vunpack.c.h.bf16 %v10627
        %v10655 = vunpack.c.l.bf16 %v10628
        %v10656 = vunpack.c.h.bf16 %v10628
        %v10657 = vunpack.c.l.bf16 %v10629
        %v10658 = vunpack.c.h.bf16 %v10629
        %v10659 = vunpack.c.l.bf16 %v10630
        %v10660 = vunpack.c.h.bf16 %v10630
        %v10661 = vunpack.c.l.bf16 %v10631
        %v10662 = vunpack.c.h.bf16 %v10631
        %v10663 = vunpack.c.l.bf16 %v10632
        %v10664 = vunpack.c.h.bf16 %v10632
        %v10665 = vunpack.c.l.bf16 %v10633
        %v10666 = vunpack.c.h.bf16 %v10633
        %v10667 = vunpack.c.l.bf16 %v10634
        %v10668 = vunpack.c.h.bf16 %v10634
        %v10669 = vunpack.c.l.bf16 %v10635
        %v10670 = vunpack.c.h.bf16 %v10635
        %v10671 = vunpack.c.l.bf16 %v10636
        %v10672 = vperm.slane %v9983, 4
        %v10673 = vperm.slane %v9984, 4
        %v10674 = vperm.slane %v9985, 4
        %v10675 = vperm.slane %v9986, 4
        %v10676 = vperm.slane %v9987, 4
        %v10677 = vperm.slane %v9988, 4
        %v10678 = vperm.slane %v9989, 4
        %v10679 = vperm.slane %v9990, 4
        %v10680 = vperm.slane %v9991, 4
        %v10681 = vperm.slane %v9992, 4
        %v10682 = vperm.slane %v9993, 4
        %v10683 = vperm.slane %v9994, 4
        %v10684 = vperm.slane %v9995, 4
        %v10685 = vperm.slane %v9996, 4
        %v10686 = vperm.slane %v9997, 4
        %v10687 = vperm.slane %v9998, 4
        %v10688 = vperm.slane %v9999, 4
        %v10689 = vperm.slane %v10000, 4
        %v10690 = vperm.slane %v10001, 4
        %v10691 = vperm.slane %v10002, 4
        %v10692 = vperm.slane %v10003, 4
        %v10693 = vperm.slane %v10004, 4
        %v10694 = vperm.slane %v10005, 4
        %v10695 = vperm.slane %v10006, 4
        %v10696 = vperm.slane %v10007, 4
        %v10697 = vperm.slane %v10008, 4
        %v10698 = vperm.slane %v10009, 4
        %v10699 = vperm.slane %v10010, 4
        %v10700 = vperm.slane %v10011, 4
        %v10701 = vperm.slane %v10012, 4
        %v10702 = vperm.slane %v10013, 4
        %v10703 = vperm.slane %v10014, 4
        %v10704 = vperm.slane %v10015, 4
        %v10705 = vperm.slane %v10016, 4
        %v10706 = vperm.slane %v10017, 4
        %v10707 = vmul.f32 %v10637, %v10672
        %v10708 = vmul.f32 %v10638, %v10673
        %v10709 = vmul.f32 %v10639, %v10674
        %v10710 = vmul.f32 %v10640, %v10675
        %v10711 = vmul.f32 %v10641, %v10676
        %v10712 = vmul.f32 %v10642, %v10677
        %v10713 = vmul.f32 %v10643, %v10678
        %v10714 = vmul.f32 %v10644, %v10679
        %v10715 = vmul.f32 %v10645, %v10680
        %v10716 = vmul.f32 %v10646, %v10681
        %v10717 = vmul.f32 %v10647, %v10682
        %v10718 = vmul.f32 %v10648, %v10683
        %v10719 = vmul.f32 %v10649, %v10684
        %v10720 = vmul.f32 %v10650, %v10685
        %v10721 = vmul.f32 %v10651, %v10686
        %v10722 = vmul.f32 %v10652, %v10687
        %v10723 = vmul.f32 %v10653, %v10688
        %v10724 = vmul.f32 %v10654, %v10689
        %v10725 = vmul.f32 %v10655, %v10690
        %v10726 = vmul.f32 %v10656, %v10691
        %v10727 = vmul.f32 %v10657, %v10692
        %v10728 = vmul.f32 %v10658, %v10693
        %v10729 = vmul.f32 %v10659, %v10694
        %v10730 = vmul.f32 %v10660, %v10695
        %v10731 = vmul.f32 %v10661, %v10696
        %v10732 = vmul.f32 %v10662, %v10697
        %v10733 = vmul.f32 %v10663, %v10698
        %v10734 = vmul.f32 %v10664, %v10699
        %v10735 = vmul.f32 %v10665, %v10700
        %v10736 = vmul.f32 %v10666, %v10701
        %v10737 = vmul.f32 %v10667, %v10702
        %v10738 = vmul.f32 %v10668, %v10703
        %v10739 = vmul.f32 %v10669, %v10704
        %v10740 = vmul.f32 %v10670, %v10705
        %v10741 = vmul.f32 %v10671, %v10706
        %v10742 = vadd.f32 %v10583, %v10707
        %v10743 = vadd.f32 %v10584, %v10708
        %v10744 = vadd.f32 %v10585, %v10709
        %v10745 = vadd.f32 %v10586, %v10710
        %v10746 = vadd.f32 %v10587, %v10711
        %v10747 = vadd.f32 %v10588, %v10712
        %v10748 = vadd.f32 %v10589, %v10713
        %v10749 = vadd.f32 %v10590, %v10714
        %v10750 = vadd.f32 %v10591, %v10715
        %v10751 = vadd.f32 %v10592, %v10716
        %v10752 = vadd.f32 %v10593, %v10717
        %v10753 = vadd.f32 %v10594, %v10718
        %v10754 = vadd.f32 %v10595, %v10719
        %v10755 = vadd.f32 %v10596, %v10720
        %v10756 = vadd.f32 %v10597, %v10721
        %v10757 = vadd.f32 %v10598, %v10722
        %v10758 = vadd.f32 %v10599, %v10723
        %v10759 = vadd.f32 %v10600, %v10724
        %v10760 = vadd.f32 %v10601, %v10725
        %v10761 = vadd.f32 %v10602, %v10726
        %v10762 = vadd.f32 %v10603, %v10727
        %v10763 = vadd.f32 %v10604, %v10728
        %v10764 = vadd.f32 %v10605, %v10729
        %v10765 = vadd.f32 %v10606, %v10730
        %v10766 = vadd.f32 %v10607, %v10731
        %v10767 = vadd.f32 %v10608, %v10732
        %v10768 = vadd.f32 %v10609, %v10733
        %v10769 = vadd.f32 %v10610, %v10734
        %v10770 = vadd.f32 %v10611, %v10735
        %v10771 = vadd.f32 %v10612, %v10736
        %v10772 = vadd.f32 %v10613, %v10737
        %v10773 = vadd.f32 %v10614, %v10738
        %v10774 = vadd.f32 %v10615, %v10739
        %v10775 = vadd.f32 %v10616, %v10740
        %v10776 = vadd.f32 %v10617, %v10741
        %s10777 = scalar_lea.vmem %s10, 700
        %v10778 = vld [vmem:[%s10777] sm:$0xff]
        %v10779 = vld [vmem:[%s10777 + $0x8] sm:$0xff]
        %v10780 = vld [vmem:[%s10777 + $0x10] sm:$0xff]
        %v10781 = vld [vmem:[%s10777 + $0x18] sm:$0xff]
        %v10782 = vld [vmem:[%s10777 + $0x20] sm:$0xff]
        %v10783 = vld [vmem:[%s10777 + $0x28] sm:$0xff]
        %v10784 = vld [vmem:[%s10777 + $0x30] sm:$0xff]
        %v10785 = vld [vmem:[%s10777 + $0x38] sm:$0xff]
        %v10786 = vld [vmem:[%s10777 + $0x40] sm:$0xff]
        %v10787 = vld [vmem:[%s10777 + $0x48] sm:$0xff]
        %v10788 = vld [vmem:[%s10777 + $0x50] sm:$0xff]
        %v10789 = vld [vmem:[%s10777 + $0x58] sm:$0xff]
        %v10790 = vld [vmem:[%s10777 + $0x60] sm:$0xff]
        %v10791 = vld [vmem:[%s10777 + $0x68] sm:$0xff]
        %v10792 = vld [vmem:[%s10777 + $0x70] sm:$0xff]
        %v10793 = vld [vmem:[%s10777 + $0x78] sm:$0xff]
        %v10794 = vld [vmem:[%s10777 + $0x80] sm:$0xff]
        %v10795 = vld [vmem:[%s10777 + $0x88] sm:$0xf]
        %v10796 = vunpack.c.l.bf16 %v10778
        %v10797 = vunpack.c.h.bf16 %v10778
        %v10798 = vunpack.c.l.bf16 %v10779
        %v10799 = vunpack.c.h.bf16 %v10779
        %v10800 = vunpack.c.l.bf16 %v10780
        %v10801 = vunpack.c.h.bf16 %v10780
        %v10802 = vunpack.c.l.bf16 %v10781
        %v10803 = vunpack.c.h.bf16 %v10781
        %v10804 = vunpack.c.l.bf16 %v10782
        %v10805 = vunpack.c.h.bf16 %v10782
        %v10806 = vunpack.c.l.bf16 %v10783
        %v10807 = vunpack.c.h.bf16 %v10783
        %v10808 = vunpack.c.l.bf16 %v10784
        %v10809 = vunpack.c.h.bf16 %v10784
        %v10810 = vunpack.c.l.bf16 %v10785
        %v10811 = vunpack.c.h.bf16 %v10785
        %v10812 = vunpack.c.l.bf16 %v10786
        %v10813 = vunpack.c.h.bf16 %v10786
        %v10814 = vunpack.c.l.bf16 %v10787
        %v10815 = vunpack.c.h.bf16 %v10787
        %v10816 = vunpack.c.l.bf16 %v10788
        %v10817 = vunpack.c.h.bf16 %v10788
        %v10818 = vunpack.c.l.bf16 %v10789
        %v10819 = vunpack.c.h.bf16 %v10789
        %v10820 = vunpack.c.l.bf16 %v10790
        %v10821 = vunpack.c.h.bf16 %v10790
        %v10822 = vunpack.c.l.bf16 %v10791
        %v10823 = vunpack.c.h.bf16 %v10791
        %v10824 = vunpack.c.l.bf16 %v10792
        %v10825 = vunpack.c.h.bf16 %v10792
        %v10826 = vunpack.c.l.bf16 %v10793
        %v10827 = vunpack.c.h.bf16 %v10793
        %v10828 = vunpack.c.l.bf16 %v10794
        %v10829 = vunpack.c.h.bf16 %v10794
        %v10830 = vunpack.c.l.bf16 %v10795
        %v10831 = vperm.slane %v9983, 5
        %v10832 = vperm.slane %v9984, 5
        %v10833 = vperm.slane %v9985, 5
        %v10834 = vperm.slane %v9986, 5
        %v10835 = vperm.slane %v9987, 5
        %v10836 = vperm.slane %v9988, 5
        %v10837 = vperm.slane %v9989, 5
        %v10838 = vperm.slane %v9990, 5
        %v10839 = vperm.slane %v9991, 5
        %v10840 = vperm.slane %v9992, 5
        %v10841 = vperm.slane %v9993, 5
        %v10842 = vperm.slane %v9994, 5
        %v10843 = vperm.slane %v9995, 5
        %v10844 = vperm.slane %v9996, 5
        %v10845 = vperm.slane %v9997, 5
        %v10846 = vperm.slane %v9998, 5
        %v10847 = vperm.slane %v9999, 5
        %v10848 = vperm.slane %v10000, 5
        %v10849 = vperm.slane %v10001, 5
        %v10850 = vperm.slane %v10002, 5
        %v10851 = vperm.slane %v10003, 5
        %v10852 = vperm.slane %v10004, 5
        %v10853 = vperm.slane %v10005, 5
        %v10854 = vperm.slane %v10006, 5
        %v10855 = vperm.slane %v10007, 5
        %v10856 = vperm.slane %v10008, 5
        %v10857 = vperm.slane %v10009, 5
        %v10858 = vperm.slane %v10010, 5
        %v10859 = vperm.slane %v10011, 5
        %v10860 = vperm.slane %v10012, 5
        %v10861 = vperm.slane %v10013, 5
        %v10862 = vperm.slane %v10014, 5
        %v10863 = vperm.slane %v10015, 5
        %v10864 = vperm.slane %v10016, 5
        %v10865 = vperm.slane %v10017, 5
        %v10866 = vmul.f32 %v10796, %v10831
        %v10867 = vmul.f32 %v10797, %v10832
        %v10868 = vmul.f32 %v10798, %v10833
        %v10869 = vmul.f32 %v10799, %v10834
        %v10870 = vmul.f32 %v10800, %v10835
        %v10871 = vmul.f32 %v10801, %v10836
        %v10872 = vmul.f32 %v10802, %v10837
        %v10873 = vmul.f32 %v10803, %v10838
        %v10874 = vmul.f32 %v10804, %v10839
        %v10875 = vmul.f32 %v10805, %v10840
        %v10876 = vmul.f32 %v10806, %v10841
        %v10877 = vmul.f32 %v10807, %v10842
        %v10878 = vmul.f32 %v10808, %v10843
        %v10879 = vmul.f32 %v10809, %v10844
        %v10880 = vmul.f32 %v10810, %v10845
        %v10881 = vmul.f32 %v10811, %v10846
        %v10882 = vmul.f32 %v10812, %v10847
        %v10883 = vmul.f32 %v10813, %v10848
        %v10884 = vmul.f32 %v10814, %v10849
        %v10885 = vmul.f32 %v10815, %v10850
        %v10886 = vmul.f32 %v10816, %v10851
        %v10887 = vmul.f32 %v10817, %v10852
        %v10888 = vmul.f32 %v10818, %v10853
        %v10889 = vmul.f32 %v10819, %v10854
        %v10890 = vmul.f32 %v10820, %v10855
        %v10891 = vmul.f32 %v10821, %v10856
        %v10892 = vmul.f32 %v10822, %v10857
        %v10893 = vmul.f32 %v10823, %v10858
        %v10894 = vmul.f32 %v10824, %v10859
        %v10895 = vmul.f32 %v10825, %v10860
        %v10896 = vmul.f32 %v10826, %v10861
        %v10897 = vmul.f32 %v10827, %v10862
        %v10898 = vmul.f32 %v10828, %v10863
        %v10899 = vmul.f32 %v10829, %v10864
        %v10900 = vmul.f32 %v10830, %v10865
        %v10901 = vadd.f32 %v10742, %v10866
        %v10902 = vadd.f32 %v10743, %v10867
        %v10903 = vadd.f32 %v10744, %v10868
        %v10904 = vadd.f32 %v10745, %v10869
        %v10905 = vadd.f32 %v10746, %v10870
        %v10906 = vadd.f32 %v10747, %v10871
        %v10907 = vadd.f32 %v10748, %v10872
        %v10908 = vadd.f32 %v10749, %v10873
        %v10909 = vadd.f32 %v10750, %v10874
        %v10910 = vadd.f32 %v10751, %v10875
        %v10911 = vadd.f32 %v10752, %v10876
        %v10912 = vadd.f32 %v10753, %v10877
        %v10913 = vadd.f32 %v10754, %v10878
        %v10914 = vadd.f32 %v10755, %v10879
        %v10915 = vadd.f32 %v10756, %v10880
        %v10916 = vadd.f32 %v10757, %v10881
        %v10917 = vadd.f32 %v10758, %v10882
        %v10918 = vadd.f32 %v10759, %v10883
        %v10919 = vadd.f32 %v10760, %v10884
        %v10920 = vadd.f32 %v10761, %v10885
        %v10921 = vadd.f32 %v10762, %v10886
        %v10922 = vadd.f32 %v10763, %v10887
        %v10923 = vadd.f32 %v10764, %v10888
        %v10924 = vadd.f32 %v10765, %v10889
        %v10925 = vadd.f32 %v10766, %v10890
        %v10926 = vadd.f32 %v10767, %v10891
        %v10927 = vadd.f32 %v10768, %v10892
        %v10928 = vadd.f32 %v10769, %v10893
        %v10929 = vadd.f32 %v10770, %v10894
        %v10930 = vadd.f32 %v10771, %v10895
        %v10931 = vadd.f32 %v10772, %v10896
        %v10932 = vadd.f32 %v10773, %v10897
        %v10933 = vadd.f32 %v10774, %v10898
        %v10934 = vadd.f32 %v10775, %v10899
        %v10935 = vadd.f32 %v10776, %v10900
        %s10936 = scalar_lea.vmem %s10, 840
        %v10937 = vld [vmem:[%s10936] sm:$0xff]
        %v10938 = vld [vmem:[%s10936 + $0x8] sm:$0xff]
        %v10939 = vld [vmem:[%s10936 + $0x10] sm:$0xff]
        %v10940 = vld [vmem:[%s10936 + $0x18] sm:$0xff]
        %v10941 = vld [vmem:[%s10936 + $0x20] sm:$0xff]
        %v10942 = vld [vmem:[%s10936 + $0x28] sm:$0xff]
        %v10943 = vld [vmem:[%s10936 + $0x30] sm:$0xff]
        %v10944 = vld [vmem:[%s10936 + $0x38] sm:$0xff]
        %v10945 = vld [vmem:[%s10936 + $0x40] sm:$0xff]
        %v10946 = vld [vmem:[%s10936 + $0x48] sm:$0xff]
        %v10947 = vld [vmem:[%s10936 + $0x50] sm:$0xff]
        %v10948 = vld [vmem:[%s10936 + $0x58] sm:$0xff]
        %v10949 = vld [vmem:[%s10936 + $0x60] sm:$0xff]
        %v10950 = vld [vmem:[%s10936 + $0x68] sm:$0xff]
        %v10951 = vld [vmem:[%s10936 + $0x70] sm:$0xff]
        %v10952 = vld [vmem:[%s10936 + $0x78] sm:$0xff]
        %v10953 = vld [vmem:[%s10936 + $0x80] sm:$0xff]
        %v10954 = vld [vmem:[%s10936 + $0x88] sm:$0xf]
        %v10955 = vunpack.c.l.bf16 %v10937
        %v10956 = vunpack.c.h.bf16 %v10937
        %v10957 = vunpack.c.l.bf16 %v10938
        %v10958 = vunpack.c.h.bf16 %v10938
        %v10959 = vunpack.c.l.bf16 %v10939
        %v10960 = vunpack.c.h.bf16 %v10939
        %v10961 = vunpack.c.l.bf16 %v10940
        %v10962 = vunpack.c.h.bf16 %v10940
        %v10963 = vunpack.c.l.bf16 %v10941
        %v10964 = vunpack.c.h.bf16 %v10941
        %v10965 = vunpack.c.l.bf16 %v10942
        %v10966 = vunpack.c.h.bf16 %v10942
        %v10967 = vunpack.c.l.bf16 %v10943
        %v10968 = vunpack.c.h.bf16 %v10943
        %v10969 = vunpack.c.l.bf16 %v10944
        %v10970 = vunpack.c.h.bf16 %v10944
        %v10971 = vunpack.c.l.bf16 %v10945
        %v10972 = vunpack.c.h.bf16 %v10945
        %v10973 = vunpack.c.l.bf16 %v10946
        %v10974 = vunpack.c.h.bf16 %v10946
        %v10975 = vunpack.c.l.bf16 %v10947
        %v10976 = vunpack.c.h.bf16 %v10947
        %v10977 = vunpack.c.l.bf16 %v10948
        %v10978 = vunpack.c.h.bf16 %v10948
        %v10979 = vunpack.c.l.bf16 %v10949
        %v10980 = vunpack.c.h.bf16 %v10949
        %v10981 = vunpack.c.l.bf16 %v10950
        %v10982 = vunpack.c.h.bf16 %v10950
        %v10983 = vunpack.c.l.bf16 %v10951
        %v10984 = vunpack.c.h.bf16 %v10951
        %v10985 = vunpack.c.l.bf16 %v10952
        %v10986 = vunpack.c.h.bf16 %v10952
        %v10987 = vunpack.c.l.bf16 %v10953
        %v10988 = vunpack.c.h.bf16 %v10953
        %v10989 = vunpack.c.l.bf16 %v10954
        %v10990 = vperm.slane %v9983, 6
        %v10991 = vperm.slane %v9984, 6
        %v10992 = vperm.slane %v9985, 6
        %v10993 = vperm.slane %v9986, 6
        %v10994 = vperm.slane %v9987, 6
        %v10995 = vperm.slane %v9988, 6
        %v10996 = vperm.slane %v9989, 6
        %v10997 = vperm.slane %v9990, 6
        %v10998 = vperm.slane %v9991, 6
        %v10999 = vperm.slane %v9992, 6
        %v11000 = vperm.slane %v9993, 6
        %v11001 = vperm.slane %v9994, 6
        %v11002 = vperm.slane %v9995, 6
        %v11003 = vperm.slane %v9996, 6
        %v11004 = vperm.slane %v9997, 6
        %v11005 = vperm.slane %v9998, 6
        %v11006 = vperm.slane %v9999, 6
        %v11007 = vperm.slane %v10000, 6
        %v11008 = vperm.slane %v10001, 6
        %v11009 = vperm.slane %v10002, 6
        %v11010 = vperm.slane %v10003, 6
        %v11011 = vperm.slane %v10004, 6
        %v11012 = vperm.slane %v10005, 6
        %v11013 = vperm.slane %v10006, 6
        %v11014 = vperm.slane %v10007, 6
        %v11015 = vperm.slane %v10008, 6
        %v11016 = vperm.slane %v10009, 6
        %v11017 = vperm.slane %v10010, 6
        %v11018 = vperm.slane %v10011, 6
        %v11019 = vperm.slane %v10012, 6
        %v11020 = vperm.slane %v10013, 6
        %v11021 = vperm.slane %v10014, 6
        %v11022 = vperm.slane %v10015, 6
        %v11023 = vperm.slane %v10016, 6
        %v11024 = vperm.slane %v10017, 6
        %v11025 = vmul.f32 %v10955, %v10990
        %v11026 = vmul.f32 %v10956, %v10991
        %v11027 = vmul.f32 %v10957, %v10992
        %v11028 = vmul.f32 %v10958, %v10993
        %v11029 = vmul.f32 %v10959, %v10994
        %v11030 = vmul.f32 %v10960, %v10995
        %v11031 = vmul.f32 %v10961, %v10996
        %v11032 = vmul.f32 %v10962, %v10997
        %v11033 = vmul.f32 %v10963, %v10998
        %v11034 = vmul.f32 %v10964, %v10999
        %v11035 = vmul.f32 %v10965, %v11000
        %v11036 = vmul.f32 %v10966, %v11001
        %v11037 = vmul.f32 %v10967, %v11002
        %v11038 = vmul.f32 %v10968, %v11003
        %v11039 = vmul.f32 %v10969, %v11004
        %v11040 = vmul.f32 %v10970, %v11005
        %v11041 = vmul.f32 %v10971, %v11006
        %v11042 = vmul.f32 %v10972, %v11007
        %v11043 = vmul.f32 %v10973, %v11008
        %v11044 = vmul.f32 %v10974, %v11009
        %v11045 = vmul.f32 %v10975, %v11010
        %v11046 = vmul.f32 %v10976, %v11011
        %v11047 = vmul.f32 %v10977, %v11012
        %v11048 = vmul.f32 %v10978, %v11013
        %v11049 = vmul.f32 %v10979, %v11014
        %v11050 = vmul.f32 %v10980, %v11015
        %v11051 = vmul.f32 %v10981, %v11016
        %v11052 = vmul.f32 %v10982, %v11017
        %v11053 = vmul.f32 %v10983, %v11018
        %v11054 = vmul.f32 %v10984, %v11019
        %v11055 = vmul.f32 %v10985, %v11020
        %v11056 = vmul.f32 %v10986, %v11021
        %v11057 = vmul.f32 %v10987, %v11022
        %v11058 = vmul.f32 %v10988, %v11023
        %v11059 = vmul.f32 %v10989, %v11024
        %v11060 = vadd.f32 %v10901, %v11025
        %v11061 = vadd.f32 %v10902, %v11026
        %v11062 = vadd.f32 %v10903, %v11027
        %v11063 = vadd.f32 %v10904, %v11028
        %v11064 = vadd.f32 %v10905, %v11029
        %v11065 = vadd.f32 %v10906, %v11030
        %v11066 = vadd.f32 %v10907, %v11031
        %v11067 = vadd.f32 %v10908, %v11032
        %v11068 = vadd.f32 %v10909, %v11033
        %v11069 = vadd.f32 %v10910, %v11034
        %v11070 = vadd.f32 %v10911, %v11035
        %v11071 = vadd.f32 %v10912, %v11036
        %v11072 = vadd.f32 %v10913, %v11037
        %v11073 = vadd.f32 %v10914, %v11038
        %v11074 = vadd.f32 %v10915, %v11039
        %v11075 = vadd.f32 %v10916, %v11040
        %v11076 = vadd.f32 %v10917, %v11041
        %v11077 = vadd.f32 %v10918, %v11042
        %v11078 = vadd.f32 %v10919, %v11043
        %v11079 = vadd.f32 %v10920, %v11044
        %v11080 = vadd.f32 %v10921, %v11045
        %v11081 = vadd.f32 %v10922, %v11046
        %v11082 = vadd.f32 %v10923, %v11047
        %v11083 = vadd.f32 %v10924, %v11048
        %v11084 = vadd.f32 %v10925, %v11049
        %v11085 = vadd.f32 %v10926, %v11050
        %v11086 = vadd.f32 %v10927, %v11051
        %v11087 = vadd.f32 %v10928, %v11052
        %v11088 = vadd.f32 %v10929, %v11053
        %v11089 = vadd.f32 %v10930, %v11054
        %v11090 = vadd.f32 %v10931, %v11055
        %v11091 = vadd.f32 %v10932, %v11056
        %v11092 = vadd.f32 %v10933, %v11057
        %v11093 = vadd.f32 %v10934, %v11058
        %v11094 = vadd.f32 %v10935, %v11059
        %s11095 = scalar_lea.vmem %s10, 980
        %v11096 = vld [vmem:[%s11095] sm:$0xff]
        %v11097 = vld [vmem:[%s11095 + $0x8] sm:$0xff]
        %v11098 = vld [vmem:[%s11095 + $0x10] sm:$0xff]
        %v11099 = vld [vmem:[%s11095 + $0x18] sm:$0xff]
        %v11100 = vld [vmem:[%s11095 + $0x20] sm:$0xff]
        %v11101 = vld [vmem:[%s11095 + $0x28] sm:$0xff]
        %v11102 = vld [vmem:[%s11095 + $0x30] sm:$0xff]
        %v11103 = vld [vmem:[%s11095 + $0x38] sm:$0xff]
        %v11104 = vld [vmem:[%s11095 + $0x40] sm:$0xff]
        %v11105 = vld [vmem:[%s11095 + $0x48] sm:$0xff]
        %v11106 = vld [vmem:[%s11095 + $0x50] sm:$0xff]
        %v11107 = vld [vmem:[%s11095 + $0x58] sm:$0xff]
        %v11108 = vld [vmem:[%s11095 + $0x60] sm:$0xff]
        %v11109 = vld [vmem:[%s11095 + $0x68] sm:$0xff]
        %v11110 = vld [vmem:[%s11095 + $0x70] sm:$0xff]
        %v11111 = vld [vmem:[%s11095 + $0x78] sm:$0xff]
        %v11112 = vld [vmem:[%s11095 + $0x80] sm:$0xff]
        %v11113 = vld [vmem:[%s11095 + $0x88] sm:$0xf]
        %v11114 = vunpack.c.l.bf16 %v11096
        %v11115 = vunpack.c.h.bf16 %v11096
        %v11116 = vunpack.c.l.bf16 %v11097
        %v11117 = vunpack.c.h.bf16 %v11097
        %v11118 = vunpack.c.l.bf16 %v11098
        %v11119 = vunpack.c.h.bf16 %v11098
        %v11120 = vunpack.c.l.bf16 %v11099
        %v11121 = vunpack.c.h.bf16 %v11099
        %v11122 = vunpack.c.l.bf16 %v11100
        %v11123 = vunpack.c.h.bf16 %v11100
        %v11124 = vunpack.c.l.bf16 %v11101
        %v11125 = vunpack.c.h.bf16 %v11101
        %v11126 = vunpack.c.l.bf16 %v11102
        %v11127 = vunpack.c.h.bf16 %v11102
        %v11128 = vunpack.c.l.bf16 %v11103
        %v11129 = vunpack.c.h.bf16 %v11103
        %v11130 = vunpack.c.l.bf16 %v11104
        %v11131 = vunpack.c.h.bf16 %v11104
        %v11132 = vunpack.c.l.bf16 %v11105
        %v11133 = vunpack.c.h.bf16 %v11105
        %v11134 = vunpack.c.l.bf16 %v11106
        %v11135 = vunpack.c.h.bf16 %v11106
        %v11136 = vunpack.c.l.bf16 %v11107
        %v11137 = vunpack.c.h.bf16 %v11107
        %v11138 = vunpack.c.l.bf16 %v11108
        %v11139 = vunpack.c.h.bf16 %v11108
        %v11140 = vunpack.c.l.bf16 %v11109
        %v11141 = vunpack.c.h.bf16 %v11109
        %v11142 = vunpack.c.l.bf16 %v11110
        %v11143 = vunpack.c.h.bf16 %v11110
        %v11144 = vunpack.c.l.bf16 %v11111
        %v11145 = vunpack.c.h.bf16 %v11111
        %v11146 = vunpack.c.l.bf16 %v11112
        %v11147 = vunpack.c.h.bf16 %v11112
        %v11148 = vunpack.c.l.bf16 %v11113
        %v11149 = vperm.slane %v9983, 7
        %v11150 = vperm.slane %v9984, 7
        %v11151 = vperm.slane %v9985, 7
        %v11152 = vperm.slane %v9986, 7
        %v11153 = vperm.slane %v9987, 7
        %v11154 = vperm.slane %v9988, 7
        %v11155 = vperm.slane %v9989, 7
        %v11156 = vperm.slane %v9990, 7
        %v11157 = vperm.slane %v9991, 7
        %v11158 = vperm.slane %v9992, 7
        %v11159 = vperm.slane %v9993, 7
        %v11160 = vperm.slane %v9994, 7
        %v11161 = vperm.slane %v9995, 7
        %v11162 = vperm.slane %v9996, 7
        %v11163 = vperm.slane %v9997, 7
        %v11164 = vperm.slane %v9998, 7
        %v11165 = vperm.slane %v9999, 7
        %v11166 = vperm.slane %v10000, 7
        %v11167 = vperm.slane %v10001, 7
        %v11168 = vperm.slane %v10002, 7
        %v11169 = vperm.slane %v10003, 7
        %v11170 = vperm.slane %v10004, 7
        %v11171 = vperm.slane %v10005, 7
        %v11172 = vperm.slane %v10006, 7
        %v11173 = vperm.slane %v10007, 7
        %v11174 = vperm.slane %v10008, 7
        %v11175 = vperm.slane %v10009, 7
        %v11176 = vperm.slane %v10010, 7
        %v11177 = vperm.slane %v10011, 7
        %v11178 = vperm.slane %v10012, 7
        %v11179 = vperm.slane %v10013, 7
        %v11180 = vperm.slane %v10014, 7
        %v11181 = vperm.slane %v10015, 7
        %v11182 = vperm.slane %v10016, 7
        %v11183 = vperm.slane %v10017, 7
        %v11184 = vmul.f32 %v11114, %v11149
        %v11185 = vmul.f32 %v11115, %v11150
        %v11186 = vmul.f32 %v11116, %v11151
        %v11187 = vmul.f32 %v11117, %v11152
        %v11188 = vmul.f32 %v11118, %v11153
        %v11189 = vmul.f32 %v11119, %v11154
        %v11190 = vmul.f32 %v11120, %v11155
        %v11191 = vmul.f32 %v11121, %v11156
        %v11192 = vmul.f32 %v11122, %v11157
        %v11193 = vmul.f32 %v11123, %v11158
        %v11194 = vmul.f32 %v11124, %v11159
        %v11195 = vmul.f32 %v11125, %v11160
        %v11196 = vmul.f32 %v11126, %v11161
        %v11197 = vmul.f32 %v11127, %v11162
        %v11198 = vmul.f32 %v11128, %v11163
        %v11199 = vmul.f32 %v11129, %v11164
        %v11200 = vmul.f32 %v11130, %v11165
        %v11201 = vmul.f32 %v11131, %v11166
        %v11202 = vmul.f32 %v11132, %v11167
        %v11203 = vmul.f32 %v11133, %v11168
        %v11204 = vmul.f32 %v11134, %v11169
        %v11205 = vmul.f32 %v11135, %v11170
        %v11206 = vmul.f32 %v11136, %v11171
        %v11207 = vmul.f32 %v11137, %v11172
        %v11208 = vmul.f32 %v11138, %v11173
        %v11209 = vmul.f32 %v11139, %v11174
        %v11210 = vmul.f32 %v11140, %v11175
        %v11211 = vmul.f32 %v11141, %v11176
        %v11212 = vmul.f32 %v11142, %v11177
        %v11213 = vmul.f32 %v11143, %v11178
        %v11214 = vmul.f32 %v11144, %v11179
        %v11215 = vmul.f32 %v11145, %v11180
        %v11216 = vmul.f32 %v11146, %v11181
        %v11217 = vmul.f32 %v11147, %v11182
        %v11218 = vmul.f32 %v11148, %v11183
        %v11219 = vadd.f32 %v11060, %v11184
        %v11220 = vadd.f32 %v11061, %v11185
        %v11221 = vadd.f32 %v11062, %v11186
        %v11222 = vadd.f32 %v11063, %v11187
        %v11223 = vadd.f32 %v11064, %v11188
        %v11224 = vadd.f32 %v11065, %v11189
        %v11225 = vadd.f32 %v11066, %v11190
        %v11226 = vadd.f32 %v11067, %v11191
        %v11227 = vadd.f32 %v11068, %v11192
        %v11228 = vadd.f32 %v11069, %v11193
        %v11229 = vadd.f32 %v11070, %v11194
        %v11230 = vadd.f32 %v11071, %v11195
        %v11231 = vadd.f32 %v11072, %v11196
        %v11232 = vadd.f32 %v11073, %v11197
        %v11233 = vadd.f32 %v11074, %v11198
        %v11234 = vadd.f32 %v11075, %v11199
        %v11235 = vadd.f32 %v11076, %v11200
        %v11236 = vadd.f32 %v11077, %v11201
        %v11237 = vadd.f32 %v11078, %v11202
        %v11238 = vadd.f32 %v11079, %v11203
        %v11239 = vadd.f32 %v11080, %v11204
        %v11240 = vadd.f32 %v11081, %v11205
        %v11241 = vadd.f32 %v11082, %v11206
        %v11242 = vadd.f32 %v11083, %v11207
        %v11243 = vadd.f32 %v11084, %v11208
        %v11244 = vadd.f32 %v11085, %v11209
        %v11245 = vadd.f32 %v11086, %v11210
        %v11246 = vadd.f32 %v11087, %v11211
        %v11247 = vadd.f32 %v11088, %v11212
        %v11248 = vadd.f32 %v11089, %v11213
        %v11249 = vadd.f32 %v11090, %v11214
        %v11250 = vadd.f32 %v11091, %v11215
        %v11251 = vadd.f32 %v11092, %v11216
        %v11252 = vadd.f32 %v11093, %v11217
        %v11253 = vadd.f32 %v11094, %v11218
        %v11254 = vadd.f32 %v11219, %v11220
        %v11255 = vadd.f32 %v11254, %v11221
        %v11256 = vadd.f32 %v11255, %v11222
        %v11257 = vadd.f32 %v11256, %v11223
        %v11258 = vadd.f32 %v11257, %v11224
        %v11259 = vadd.f32 %v11258, %v11225
        %v11260 = vadd.f32 %v11259, %v11226
        %v11261 = vadd.f32 %v11260, %v11227
        %v11262 = vadd.f32 %v11261, %v11228
        %v11263 = vadd.f32 %v11262, %v11229
        %v11264 = vadd.f32 %v11263, %v11230
        %v11265 = vadd.f32 %v11264, %v11231
        %v11266 = vadd.f32 %v11265, %v11232
        %v11267 = vadd.f32 %v11266, %v11233
        %v11268 = vadd.f32 %v11267, %v11234
        %v11269 = vadd.f32 %v11268, %v11235
        %v11270 = vadd.f32 %v11269, %v11236
        %v11271 = vadd.f32 %v11270, %v11237
        %v11272 = vadd.f32 %v11271, %v11238
        %v11273 = vadd.f32 %v11272, %v11239
        %v11274 = vadd.f32 %v11273, %v11240
        %v11275 = vadd.f32 %v11274, %v11241
        %v11276 = vadd.f32 %v11275, %v11242
        %v11277 = vadd.f32 %v11276, %v11243
        %v11278 = vadd.f32 %v11277, %v11244
        %v11279 = vadd.f32 %v11278, %v11245
        %v11280 = vadd.f32 %v11279, %v11246
        %v11281 = vadd.f32 %v11280, %v11247
        %v11282 = vadd.f32 %v11281, %v11248
        %v11283 = vadd.f32 %v11282, %v11249
        %v11284 = vadd.f32 %v11283, %v11250
        %v11285 = vadd.f32 %v11284, %v11251
        %v11286 = vadd.f32 %v11285, %v11252
        %vm11287 = vcmask 31744
        %v11288 = vsel %vm11287, %v11253, 0.0
        %v11289 = vadd.f32 %v11286, %v11288
        %11290 = vadd.xlane.f32.xlu0 %v11289
        %v11291 = vpop.xlane.xlu0 %11290
        %v11292 = vld [vmem:[%s11] sm:$0x1]
        %v11294 = vperm.slane %v11292, 0
        %v11295 = vlaneseq
        %v11296 = vshrl.u32 %v11295, 7
        %11298 = vset.pattern.permute.xlu0 %v11296
        %11299 = vperm.xlu0 %11298, %v11294
        %v11300 = vpop.permute.xlu0 %11299
        %v11302 = vadd.f32 %v11291, %v11300
        %v11303 = vmax.f32 %v11302, 0.0
        %v11304 = vld [vmem:[%s12] sm:$0xff]
        %v11305 = vld [vmem:[%s13] sm:$0x1]
        %11307 = vset.pattern.permute.xlu0 0
        %11308 = vperm.xlu0 %11307, %v11303
        %v11309 = vpop.permute.xlu0 %11308
        %v11310 = vlaneseq
        %v11311 = vand.u32 %v11310, 127
        %v11312 = vperm.slane %v11309, %v11311
        %vm11313 = vcmask 64512
        %v11314 = vsel %vm11313, %v11312, 0
        %11316 = vmatpush.msra.mxu0 0.0
        %11317 = vmatpush.msra.mxu0 0.0
        %11318 = vmatpush.msra.mxu0 0.0
        %11319 = vmatpush.msra.mxu0 0.0
        %11320 = vmatpush.msra.mxu0 0.0
        %11321 = vmatpush.msra.mxu0 0.0
        %11322 = vmatpush.msra.mxu0 0.0
        %11323 = vmatpush.msra.mxu0 0.0
        %11324 = vmatpush.msra.mxu0 0.0
        %11325 = vmatpush.msra.mxu0 0.0
        %11326 = vmatpush.msra.mxu0 0.0
        %11327 = vmatpush.msra.mxu0 0.0
        %11328 = vmatpush.msra.mxu0 0.0
        %11329 = vmatpush.msra.mxu0 0.0
        %11330 = vmatpush.msra.mxu0 0.0
        %11331 = vmatpush.msra.mxu0 %v11304
        %11332 = vmatmul.f32.gmra.mxu0 %v11314
        %v11333 = vpop.f32.mrf.mxu0
        %v11334 = vadd.f32 %v11305, %v11333
        %11335 = vdwg.mxu0
        %v11336 = vmax.f32 %v11334, 0.0
        %vm11337 = vcmask 24576
        %11338 = vst.msk [vmem:[%s459] sm:$0x1] %vm11337, %v11336
        %s11339 = sand.u32 %s335, 1
        %s11340 = scalar_lea.sflag [#allocation3], %s11339
        %s11341 = sand.u32 %s335, 1
        %s11342 = scalar_lea.vmem [#allocation2], %s11341
        // Predicated region
        $region77: #{ledgerise_lens_forward.1} parent=75 // pred_check
          %p11343 = pneg %p345
        $region78: #{ledgerise_lens_forward.1} parent=75 // pred_check_branch
          %11345 = sbr.rel (%p11343) target = $region80
        $region79: #{ledgerise_lens_forward.1} parent=75 // pred_region
          %11347 = vsyncadd %s11340, 0
          %s11348 = scalar_lea.hbm %s14, %s28
          %s11350 = sshll.u32 %s11342, 4
          %s11351 = int_to_ptr.vmem [resolvable:$true] %s11350
          %s11352 = sshll.u32 %s11348, 4
          %s11353 = int_to_ptr.hbm [resolvable:$true] %s11352
          %11355 = dma.vmem_to_hbm [thread:$0]  %s11351, 16, %s11353, %s11340
        $region80: #{ledgerise_lens_forward.1} parent=75 // pred_fallthru
          _
      $region76: #{ledgerise_lens_forward.1} parent=5 // pred_fallthru
        _
      %p11356 = scmp.le.s32.totalorder 2, %s23
      // Predicated region
      $region81: #{ledgerise_lens_forward.1} parent=5 // pred_check
        %p11357 = pneg %p11356
      $region82: #{ledgerise_lens_forward.1} parent=5 // pred_check_branch
        %11359 = sbr.rel (%p11357) target = $region84
      $region83: #{ledgerise_lens_forward.1} parent=5 // pred_region
        %s11360 = ssub.s32 %s23, 2
        // Predicated region
        $region85: #{ledgerise_lens_forward.1} parent=83 // pred_check
          %p11361 = pneg %p351
        $region86: #{ledgerise_lens_forward.1} parent=83 // pred_check_branch
          %11363 = sbr.rel (%p11361) target = $region88
        $region87: #{ledgerise_lens_forward.1} parent=83 // pred_region
          %s11364 = sand.u32 %s336, 1
          %s11365 = scalar_lea.sflag [#allocation3], %s11364
          %s11366 = sand.u32 %s336, 1
          %s11367 = scalar_lea.vmem [#allocation2], %s11366
          %11369 = dma.done %s11365, 16
        $region88: #{ledgerise_lens_forward.1} parent=83 // pred_fallthru
          _
      $region84: #{ledgerise_lens_forward.1} parent=5 // pred_fallthru
        _
    $region6: #{ledgerise_lens_forward.1} parent=1 // loop_footer
      %s27 = sadd.s32 1, %s23
    $region7: #{ledgerise_lens_forward.1} parent=1 // loop_footer_branch
      %22 = sbr.rel target = $region3
    $region8: #{ledgerise_lens_forward.1} parent=1 // loop_exit
      _
    %11370 = vsyncpa [#allocation3], 1
    %s11371 = scalar_lea.sflag [#allocation3], 1
    %11372 = vsyncpa %s11371, 1

</llo_original>
